<compile_context>
chip_gen: v7x
topology: tpu7x:2x2x1
jax: 0.10.0
libtpu: 0.0.40
codegen_flags: <defaults>
</compile_context>

<pallas_src>
import functools
import numpy as np

import jax
import jax.numpy as jnp
from jax import lax
from jax.experimental import pallas as pl
from jax.experimental.pallas import tpu as pltpu

BN_EPS = 1e-5


def _round_up(x, m):
    return -(-x // m) * m


# ------------------------------ Pallas kernel ------------------------------

def _matmul_affine_kernel(a_ref, b_ref, scale_ref, shift_ref, o_ref, acc_ref, *, relu):
    """bf16 MXU matmul with f32 K-accumulation, fused per-column affine + ReLU."""

    @pl.when(pl.program_id(2) == 0)
    def _():
        acc_ref[...] = jnp.zeros_like(acc_ref)

    acc_ref[...] += jnp.dot(a_ref[...], b_ref[...],
                            preferred_element_type=jnp.float32)

    @pl.when(pl.program_id(2) == pl.num_programs(2) - 1)
    def _():
        y = acc_ref[...] * scale_ref[...] + shift_ref[...]
        if relu:
            y = jnp.maximum(y, 0.0)
        o_ref[...] = y.astype(o_ref.dtype)


def fused_matmul_affine(a, b, scale, shift, *, relu, out_dtype):
    """(M,K) @ (K,N) * scale[N] + shift[N] (+ optional ReLU).

    Operands are cast to bf16 (MXU-native rate on v5e/v6e/v7x), accumulation is
    f32. Tiles are picked per call; padding is sliced off the result.
    """
    M, K = a.shape
    K2, N = b.shape
    assert K == K2

    # --- tile selection ------------------------------------------------------
    tm = min(512, _round_up(M, 128))          # big early layers get bigger M tiles
    Mp = _round_up(M, tm)

    Np0 = _round_up(N, 128)
    tn = 256 if Np0 % 256 == 0 else 128       # 256-wide N feeds the v6e/v7x MXU
    Np = _round_up(N, tn)

    Kp0 = _round_up(K, 128)
    tk = Kp0 if Kp0 <= 4096 else 2048         # keep whole K resident when small
    Kp = _round_up(K, tk)

    a_p = jnp.pad(a.astype(jnp.bfloat16), ((0, Mp - M), (0, Kp - K)))
    b_p = jnp.pad(b.astype(jnp.bfloat16), ((0, Kp - K), (0, Np - N)))
    sc_p = jnp.pad(scale.astype(jnp.float32).reshape(1, N), ((0, 0), (0, Np - N)))
    sh_p = jnp.pad(shift.astype(jnp.float32).reshape(1, N), ((0, 0), (0, Np - N)))

    out = pl.pallas_call(
        functools.partial(_matmul_affine_kernel, relu=relu),
        out_shape=jax.ShapeDtypeStruct((Mp, Np), out_dtype),
        grid_spec=pltpu.PrefetchScalarGridSpec(
            num_scalar_prefetch=0,
            grid=(Mp // tm, Np // tn, Kp // tk),
            in_specs=[
                pl.BlockSpec((tm, tk), lambda i, j, k: (i, k)),
                pl.BlockSpec((tk, tn), lambda i, j, k: (k, j)),
                pl.BlockSpec((1, tn), lambda i, j, k: (0, j)),
                pl.BlockSpec((1, tn), lambda i, j, k: (0, j)),
            ],
            out_specs=pl.BlockSpec((tm, tn), lambda i, j, k: (i, j)),
            scratch_shapes=[pltpu.VMEM((tm, tn), jnp.float32)],
        ),
        compiler_params=pltpu.CompilerParams(
            dimension_semantics=("parallel", "parallel", "arbitrary")),
    )(a_p, b_p, sc_p, sh_p)
    return out[:M, :N]


# ------------------------------ conv glue (im2col) ------------------------------

def _im2col(x, kh, kw, stride, pad):
    """NHWC -> (N*Ho*Wo, kh*kw*C); feature order (kh, kw, C) matches HWIO reshape."""
    n, h, w, c = x.shape
    if pad:
        x = jnp.pad(x, ((0, 0), (pad, pad), (pad, pad), (0, 0)))
    hp, wp = h + 2 * pad, w + 2 * pad
    ho = (hp - kh) // stride + 1
    wo = (wp - kw) // stride + 1
    cols = []
    for i in range(kh):
        for j in range(kw):
            cols.append(
                x[:, i:i + stride * ho:stride, j:j + stride * wo:stride, :][:, :ho, :wo, :])
    patches = jnp.stack(cols, axis=3)          # (n, ho, wo, kh*kw, c)
    return patches.reshape(n * ho * wo, kh * kw * c), (n, ho, wo)


def conv_bn_relu(x, p, *, stride, pad, out_dtype=jnp.bfloat16):
    """Conv2d (HWIO weights, no bias) + folded eval-mode BN + ReLU, via one Pallas call."""
    w = p['w']
    kh, kw, cin, cout = w.shape
    x = x.astype(jnp.bfloat16)                 # bf16 activations: half HBM / MXU-native
    if kh == 1 and kw == 1 and stride == 1 and pad == 0:
        n, h, wd, _ = x.shape
        a, dims = x.reshape(n * h * wd, cin), (n, h, wd)
    else:
        a, dims = _im2col(x, kh, kw, stride, pad)
    b = w.reshape(kh * kw * cin, cout)
    y = fused_matmul_affine(a, b, p['scale'], p['shift'], relu=True, out_dtype=out_dtype)
    n, ho, wo = dims
    return y.reshape(n, ho, wo, cout)


# ------------------------------ parameters ------------------------------

def _kaiming_conv(key, kh, kw, cin, cout):
    # kaiming_normal_(mode='fan_out', nonlinearity='relu'): std = sqrt(2 / (k*k*cout))
    std = float(np.sqrt(2.0 / (kh * kw * cout)))
    return std * jax.random.normal(key, (kh, kw, cin, cout), jnp.float32)


def _conv_bn_params(key, cin, cout, k):
    # eval-mode BN with gamma=1, beta=0, running_mean=0, running_var=1
    scale = jnp.full((cout,), 1.0 / np.sqrt(1.0 + BN_EPS), jnp.float32)
    shift = jnp.zeros((cout,), jnp.float32)
    return dict(w=_kaiming_conv(key, k, k, cin, cout), scale=scale, shift=shift)


def init_extra_layers_params(key, in_channel):
    cfg = [                      # (cin, cout, kernel)
        (in_channel, 256, 1),    # convbnrelu9_1
        (256, 256, 3),           # convbnrelu9_2
        (256, 128, 1),           # convbnrelu10_1
        (128, 256, 3),           # convbnrelu10_2
        (256, 128, 1),           # convbnrelu11_1
        (128, 256, 3),           # convbnrelu11_2
    ]
    keys = jax.random.split(key, len(cfg))
    return [_conv_bn_params(k, cin, cout, ksz) for k, (cin, cout, ksz) in zip(keys, cfg)]


# ------------------------------ forward ------------------------------

_LAYER_SPEC = [      # (stride, pad, is_returned)
    (1, 0, False),   # convbnrelu9_1
    (2, 1, True),    # convbnrelu9_2   -> out9_2
    (1, 0, False),   # convbnrelu10_1
    (2, 1, True),    # convbnrelu10_2  -> out10_2
    (1, 0, False),   # convbnrelu11_1
    (1, 0, True),    # convbnrelu11_2  -> out11_2
]


def extra_layers_forward(params, x_nchw):
    x = jnp.transpose(x_nchw, (0, 2, 3, 1)).astype(jnp.float32)   # NCHW -> NHWC
    outs = []
    for p, (stride, pad, keep) in zip(params, _LAYER_SPEC):
        # returned feature maps are emitted in f32; intermediates stay bf16
        out_dtype = jnp.float32 if keep else jnp.bfloat16
        x = conv_bn_relu(x, p, stride=stride, pad=pad, out_dtype=out_dtype)
        if keep:
            outs.append(x)
    to_nchw = lambda t: jnp.transpose(t, (0, 3, 1, 2))
    return tuple(to_nchw(t) for t in outs)


# ------------------------------ pure-XLA reference ------------------------------

def _reference_forward(params, x_nchw):
    x = jnp.transpose(x_nchw, (0, 2, 3, 1)).astype(jnp.float32)
    outs = []
    for p, (stride, pad, keep) in zip(params, _LAYER_SPEC):
        y = lax.conv_general_dilated(
            x, p['w'], window_strides=(stride, stride),
            padding=((pad, pad), (pad, pad)),
            dimension_numbers=('NHWC', 'HWIO', 'NHWC'),
            precision=lax.Precision.HIGHEST)
        x = jnp.maximum(y * p['scale'] + p['shift'], 0.0)
        if keep:
            outs.append(x)
    return tuple(jnp.transpose(t, (0, 3, 1, 2)) for t in outs)


# ------------------------------ main ------------------------------

if __name__ == "__main__":
    key = jax.random.PRNGKey(0)
    pkey, xkey = jax.random.split(key)

    # Small shapes consistent with the module: 10x10 input map gives the canonical
    # SSD-style 5x5 / 3x3 / 1x1 extra feature maps.
    batch, in_channel, spatial = 2, 128, 10
    params = init_extra_layers_params(pkey, in_channel)
    x = jax.random.normal(xkey, (batch, in_channel, spatial, spatial), jnp.float32)

    fwd = jax.jit(extra_layers_forward)
    outs = jax.block_until_ready(fwd(params, x))

    expected = [(batch, 256, 5, 5), (batch, 256, 3, 3), (batch, 256, 1, 1)]
    got = [tuple(map(int, o.shape)) for o in outs]
    assert got == expected, f"shape mismatch: {got} vs {expected}"
    assert all(bool(jnp.all(jnp.isfinite(o))) for o in outs)

    # numerical check vs f32 XLA reference (bf16 MXU operands, f32 accumulation)
    refs = jax.block_until_ready(jax.jit(_reference_forward)(params, x))
    for o, r in zip(outs, refs):
        err = float(jnp.max(jnp.abs(o.astype(jnp.float32) - r)))
        scale = float(jnp.max(jnp.abs(r))) + 1e-6
        assert err <= 8e-2 * scale, f"numerical mismatch: err={err}, max|ref|={scale}"

    print("KERNEL_OK")
</pallas_src>

<mosaic_0001>
module attributes {stable_mosaic.version = 11 : i64} {
  func.func @_matmul_affine_kernel(%arg0: i32, %arg1: i32, %arg2: i32, %arg3: memref<256x128xbf16, #tpu.memory_space<vmem>>, %arg4: memref<128x256xbf16, #tpu.memory_space<vmem>>, %arg5: memref<1x256xf32, #tpu.memory_space<vmem>>, %arg6: memref<1x256xf32, #tpu.memory_space<vmem>>, %arg7: memref<256x256xbf16, #tpu.memory_space<vmem>>, %arg8: memref<256x256xf32, #tpu.memory_space<vmem>>) attributes {dimension_semantics = [#tpu.dimension_semantics<parallel>, #tpu.dimension_semantics<parallel>, #tpu.dimension_semantics<arbitrary>], iteration_bounds = array<i64: 1, 1, 1>, scalar_prefetch = 0 : i64, scratch_operands = 1 : i64, tpu.core_type = #tpu.core_type<tc>, window_params = [{transform_indices = @transform_0, window_bounds = array<i64: 256, 128>}, {transform_indices = @transform_1, window_bounds = array<i64: 128, 256>}, {transform_indices = @transform_2, window_bounds = array<i64: 1, 256>}, {transform_indices = @transform_3, window_bounds = array<i64: 1, 256>}, {transform_indices = @transform_4, window_bounds = array<i64: 256, 256>}]} {
    %c0_i32 = arith.constant 0 : i32
    %0 = arith.cmpi eq, %arg2, %c0_i32 : i32
    %1 = arith.extui %0 : i1 to i32
    %c0_i32_0 = arith.constant 0 : i32
    %2 = arith.cmpi ne, %1, %c0_i32_0 : i32
    scf.if %2 {
      %cst_10 = arith.constant 0.000000e+00 : f32
      %12 = vector.broadcast %cst_10 : f32 to vector<256x256xf32>
      %c0_11 = arith.constant 0 : index
      %c0_12 = arith.constant 0 : index
      %13 = vector.load %arg8[%c0_11, %c0_12] : memref<256x256xf32, #tpu.memory_space<vmem>>, vector<256x256xf32>
      tpu.vector_store %arg8[%c0_11, %c0_12], %12 {strides = array<i32>} : memref<256x256xf32, #tpu.memory_space<vmem>>, vector<256x256xf32>,
    } else {
    }
    %c0 = arith.constant 0 : index
    %c0_1 = arith.constant 0 : index
    %3 = vector.load %arg8[%c0, %c0_1] : memref<256x256xf32, #tpu.memory_space<vmem>>, vector<256x256xf32>
    %c0_2 = arith.constant 0 : index
    %c0_3 = arith.constant 0 : index
    %4 = vector.load %arg3[%c0_2, %c0_3] : memref<256x128xbf16, #tpu.memory_space<vmem>>, vector<256x128xbf16>
    %c0_4 = arith.constant 0 : index
    %c0_5 = arith.constant 0 : index
    %5 = vector.load %arg4[%c0_4, %c0_5] : memref<128x256xbf16, #tpu.memory_space<vmem>>, vector<128x256xbf16>
    %cst = arith.constant dense<0.000000e+00> : vector<256x256xf32>
    %6 = tpu.matmul %4, %5, %cst {dimension_numbers = #tpu.dot_dimension_numbers<[1], [0], [0], [1], [0, 0, 1, 1], [], []>} : vector<256x128xbf16>, vector<128x256xbf16>, vector<256x256xf32> -> vector<256x256xf32>
    %7 = arith.addf %3, %6 : vector<256x256xf32>
    %c0_6 = arith.constant 0 : index
    %c0_7 = arith.constant 0 : index
    %8 = vector.load %arg8[%c0_6, %c0_7] : memref<256x256xf32, #tpu.memory_space<vmem>>, vector<256x256xf32>
    tpu.vector_store %arg8[%c0_6, %c0_7], %7 {strides = array<i32>} : memref<256x256xf32, #tpu.memory_space<vmem>>, vector<256x256xf32>,
    %c0_i32_8 = arith.constant 0 : i32
    %9 = arith.cmpi eq, %arg2, %c0_i32_8 : i32
    %10 = arith.extui %9 : i1 to i32
    %c0_i32_9 = arith.constant 0 : i32
    %11 = arith.cmpi ne, %10, %c0_i32_9 : i32
    scf.if %11 {
      %c0_10 = arith.constant 0 : index
      %c0_11 = arith.constant 0 : index
      %12 = vector.load %arg8[%c0_10, %c0_11] : memref<256x256xf32, #tpu.memory_space<vmem>>, vector<256x256xf32>
      %c0_12 = arith.constant 0 : index
      %c0_13 = arith.constant 0 : index
      %13 = vector.load %arg5[%c0_12, %c0_13] : memref<1x256xf32, #tpu.memory_space<vmem>>, vector<1x256xf32>
      %14 = vector.broadcast %13 : vector<1x256xf32> to vector<256x256xf32>
      %15 = arith.mulf %12, %14 : vector<256x256xf32>
      %c0_14 = arith.constant 0 : index
      %c0_15 = arith.constant 0 : index
      %16 = vector.load %arg6[%c0_14, %c0_15] : memref<1x256xf32, #tpu.memory_space<vmem>>, vector<1x256xf32>
      %17 = vector.broadcast %16 : vector<1x256xf32> to vector<256x256xf32>
      %18 = arith.addf %15, %17 : vector<256x256xf32>
      %cst_16 = arith.constant 0.000000e+00 : f32
      %19 = vector.broadcast %cst_16 : f32 to vector<256x256xf32>
      %20 = arith.maximumf %18, %19 : vector<256x256xf32>
      %21 = arith.truncf %20 : vector<256x256xf32> to vector<256x256xbf16>
      %c0_17 = arith.constant 0 : index
      %c0_18 = arith.constant 0 : index
      %22 = vector.load %arg7[%c0_17, %c0_18] : memref<256x256xbf16, #tpu.memory_space<vmem>>, vector<256x256xbf16>
      tpu.vector_store %arg7[%c0_17, %c0_18], %21 {strides = array<i32>} : memref<256x256xbf16, #tpu.memory_space<vmem>>, vector<256x256xbf16>,
    } else {
    }
    return
  }
  func.func @transform_0(%arg0: i32, %arg1: i32, %arg2: i32) -> (i32, i32) {
    %c0_i32 = arith.constant 0 : i32
    return %arg0, %arg2 : i32, i32
  }
  func.func @transform_1(%arg0: i32, %arg1: i32, %arg2: i32) -> (i32, i32) {
    %c0_i32 = arith.constant 0 : i32
    return %arg2, %arg1 : i32, i32
  }
  func.func @transform_2(%arg0: i32, %arg1: i32, %arg2: i32) -> (i32, i32) {
    %c0_i32 = arith.constant 0 : i32
    %c0_i32_0 = arith.constant 0 : i32
    return %c0_i32, %arg1 : i32, i32
  }
  func.func @transform_3(%arg0: i32, %arg1: i32, %arg2: i32) -> (i32, i32) {
    %c0_i32 = arith.constant 0 : i32
    %c0_i32_0 = arith.constant 0 : i32
    return %c0_i32, %arg1 : i32, i32
  }
  func.func @transform_4(%arg0: i32, %arg1: i32, %arg2: i32) -> (i32, i32) {
    %c0_i32 = arith.constant 0 : i32
    return %arg0, %arg1 : i32, i32
  }
}

module attributes {stable_mosaic.version = 11 : i64} {
  func.func @_matmul_affine_kernel(%arg0: i32, %arg1: i32, %arg2: i32, %arg3: memref<128x2304xbf16, #tpu.memory_space<vmem>>, %arg4: memref<2304x256xbf16, #tpu.memory_space<vmem>>, %arg5: memref<1x256xf32, #tpu.memory_space<vmem>>, %arg6: memref<1x256xf32, #tpu.memory_space<vmem>>, %arg7: memref<128x256xf32, #tpu.memory_space<vmem>>, %arg8: memref<128x256xf32, #tpu.memory_space<vmem>>) attributes {dimension_semantics = [#tpu.dimension_semantics<parallel>, #tpu.dimension_semantics<parallel>, #tpu.dimension_semantics<arbitrary>], iteration_bounds = array<i64: 1, 1, 1>, scalar_prefetch = 0 : i64, scratch_operands = 1 : i64, tpu.core_type = #tpu.core_type<tc>, window_params = [{transform_indices = @transform_0, window_bounds = array<i64: 128, 2304>}, {transform_indices = @transform_1, window_bounds = array<i64: 2304, 256>}, {transform_indices = @transform_2, window_bounds = array<i64: 1, 256>}, {transform_indices = @transform_3, window_bounds = array<i64: 1, 256>}, {transform_indices = @transform_4, window_bounds = array<i64: 128, 256>}]} {
    %c0_i32 = arith.constant 0 : i32
    %0 = arith.cmpi eq, %arg2, %c0_i32 : i32
    %1 = arith.extui %0 : i1 to i32
    %c0_i32_0 = arith.constant 0 : i32
    %2 = arith.cmpi ne, %1, %c0_i32_0 : i32
    scf.if %2 {
      %cst_10 = arith.constant 0.000000e+00 : f32
      %12 = vector.broadcast %cst_10 : f32 to vector<128x256xf32>
      %c0_11 = arith.constant 0 : index
      %c0_12 = arith.constant 0 : index
      %13 = vector.load %arg8[%c0_11, %c0_12] : memref<128x256xf32, #tpu.memory_space<vmem>>, vector<128x256xf32>
      tpu.vector_store %arg8[%c0_11, %c0_12], %12 {strides = array<i32>} : memref<128x256xf32, #tpu.memory_space<vmem>>, vector<128x256xf32>,
    } else {
    }
    %c0 = arith.constant 0 : index
    %c0_1 = arith.constant 0 : index
    %3 = vector.load %arg8[%c0, %c0_1] : memref<128x256xf32, #tpu.memory_space<vmem>>, vector<128x256xf32>
    %c0_2 = arith.constant 0 : index
    %c0_3 = arith.constant 0 : index
    %4 = vector.load %arg3[%c0_2, %c0_3] : memref<128x2304xbf16, #tpu.memory_space<vmem>>, vector<128x2304xbf16>
    %c0_4 = arith.constant 0 : index
    %c0_5 = arith.constant 0 : index
    %5 = vector.load %arg4[%c0_4, %c0_5] : memref<2304x256xbf16, #tpu.memory_space<vmem>>, vector<2304x256xbf16>
    %cst = arith.constant dense<0.000000e+00> : vector<128x256xf32>
    %6 = tpu.matmul %4, %5, %cst {dimension_numbers = #tpu.dot_dimension_numbers<[1], [0], [0], [1], [0, 0, 1, 1], [], []>} : vector<128x2304xbf16>, vector<2304x256xbf16>, vector<128x256xf32> -> vector<128x256xf32>
    %7 = arith.addf %3, %6 : vector<128x256xf32>
    %c0_6 = arith.constant 0 : index
    %c0_7 = arith.constant 0 : index
    %8 = vector.load %arg8[%c0_6, %c0_7] : memref<128x256xf32, #tpu.memory_space<vmem>>, vector<128x256xf32>
    tpu.vector_store %arg8[%c0_6, %c0_7], %7 {strides = array<i32>} : memref<128x256xf32, #tpu.memory_space<vmem>>, vector<128x256xf32>,
    %c0_i32_8 = arith.constant 0 : i32
    %9 = arith.cmpi eq, %arg2, %c0_i32_8 : i32
    %10 = arith.extui %9 : i1 to i32
    %c0_i32_9 = arith.constant 0 : i32
    %11 = arith.cmpi ne, %10, %c0_i32_9 : i32
    scf.if %11 {
      %c0_10 = arith.constant 0 : index
      %c0_11 = arith.constant 0 : index
      %12 = vector.load %arg8[%c0_10, %c0_11] : memref<128x256xf32, #tpu.memory_space<vmem>>, vector<128x256xf32>
      %c0_12 = arith.constant 0 : index
      %c0_13 = arith.constant 0 : index
      %13 = vector.load %arg5[%c0_12, %c0_13] : memref<1x256xf32, #tpu.memory_space<vmem>>, vector<1x256xf32>
      %14 = vector.broadcast %13 : vector<1x256xf32> to vector<128x256xf32>
      %15 = arith.mulf %12, %14 : vector<128x256xf32>
      %c0_14 = arith.constant 0 : index
      %c0_15 = arith.constant 0 : index
      %16 = vector.load %arg6[%c0_14, %c0_15] : memref<1x256xf32, #tpu.memory_space<vmem>>, vector<1x256xf32>
      %17 = vector.broadcast %16 : vector<1x256xf32> to vector<128x256xf32>
      %18 = arith.addf %15, %17 : vector<128x256xf32>
      %cst_16 = arith.constant 0.000000e+00 : f32
      %19 = vector.broadcast %cst_16 : f32 to vector<128x256xf32>
      %20 = arith.maximumf %18, %19 : vector<128x256xf32>
      %c0_17 = arith.constant 0 : index
      %c0_18 = arith.constant 0 : index
      %21 = vector.load %arg7[%c0_17, %c0_18] : memref<128x256xf32, #tpu.memory_space<vmem>>, vector<128x256xf32>
      tpu.vector_store %arg7[%c0_17, %c0_18], %20 {strides = array<i32>} : memref<128x256xf32, #tpu.memory_space<vmem>>, vector<128x256xf32>,
    } else {
    }
    return
  }
  func.func @transform_0(%arg0: i32, %arg1: i32, %arg2: i32) -> (i32, i32) {
    %c0_i32 = arith.constant 0 : i32
    return %arg0, %arg2 : i32, i32
  }
  func.func @transform_1(%arg0: i32, %arg1: i32, %arg2: i32) -> (i32, i32) {
    %c0_i32 = arith.constant 0 : i32
    return %arg2, %arg1 : i32, i32
  }
  func.func @transform_2(%arg0: i32, %arg1: i32, %arg2: i32) -> (i32, i32) {
    %c0_i32 = arith.constant 0 : i32
    %c0_i32_0 = arith.constant 0 : i32
    return %c0_i32, %arg1 : i32, i32
  }
  func.func @transform_3(%arg0: i32, %arg1: i32, %arg2: i32) -> (i32, i32) {
    %c0_i32 = arith.constant 0 : i32
    %c0_i32_0 = arith.constant 0 : i32
    return %c0_i32, %arg1 : i32, i32
  }
  func.func @transform_4(%arg0: i32, %arg1: i32, %arg2: i32) -> (i32, i32) {
    %c0_i32 = arith.constant 0 : i32
    return %arg0, %arg1 : i32, i32
  }
}

module attributes {stable_mosaic.version = 11 : i64} {
  func.func @_matmul_affine_kernel(%arg0: i32, %arg1: i32, %arg2: i32, %arg3: memref<128x256xbf16, #tpu.memory_space<vmem>>, %arg4: memref<256x128xbf16, #tpu.memory_space<vmem>>, %arg5: memref<1x128xf32, #tpu.memory_space<vmem>>, %arg6: memref<1x128xf32, #tpu.memory_space<vmem>>, %arg7: memref<128x128xbf16, #tpu.memory_space<vmem>>, %arg8: memref<128x128xf32, #tpu.memory_space<vmem>>) attributes {dimension_semantics = [#tpu.dimension_semantics<parallel>, #tpu.dimension_semantics<parallel>, #tpu.dimension_semantics<arbitrary>], iteration_bounds = array<i64: 1, 1, 1>, scalar_prefetch = 0 : i64, scratch_operands = 1 : i64, tpu.core_type = #tpu.core_type<tc>, window_params = [{transform_indices = @transform_0, window_bounds = array<i64: 128, 256>}, {transform_indices = @transform_1, window_bounds = array<i64: 256, 128>}, {transform_indices = @transform_2, window_bounds = array<i64: 1, 128>}, {transform_indices = @transform_3, window_bounds = array<i64: 1, 128>}, {transform_indices = @transform_4, window_bounds = array<i64: 128, 128>}]} {
    %c0_i32 = arith.constant 0 : i32
    %0 = arith.cmpi eq, %arg2, %c0_i32 : i32
    %1 = arith.extui %0 : i1 to i32
    %c0_i32_0 = arith.constant 0 : i32
    %2 = arith.cmpi ne, %1, %c0_i32_0 : i32
    scf.if %2 {
      %cst_10 = arith.constant 0.000000e+00 : f32
      %12 = vector.broadcast %cst_10 : f32 to vector<128x128xf32>
      %c0_11 = arith.constant 0 : index
      %c0_12 = arith.constant 0 : index
      %13 = vector.load %arg8[%c0_11, %c0_12] : memref<128x128xf32, #tpu.memory_space<vmem>>, vector<128x128xf32>
      tpu.vector_store %arg8[%c0_11, %c0_12], %12 {strides = array<i32>} : memref<128x128xf32, #tpu.memory_space<vmem>>, vector<128x128xf32>,
    } else {
    }
    %c0 = arith.constant 0 : index
    %c0_1 = arith.constant 0 : index
    %3 = vector.load %arg8[%c0, %c0_1] : memref<128x128xf32, #tpu.memory_space<vmem>>, vector<128x128xf32>
    %c0_2 = arith.constant 0 : index
    %c0_3 = arith.constant 0 : index
    %4 = vector.load %arg3[%c0_2, %c0_3] : memref<128x256xbf16, #tpu.memory_space<vmem>>, vector<128x256xbf16>
    %c0_4 = arith.constant 0 : index
    %c0_5 = arith.constant 0 : index
    %5 = vector.load %arg4[%c0_4, %c0_5] : memref<256x128xbf16, #tpu.memory_space<vmem>>, vector<256x128xbf16>
    %cst = arith.constant dense<0.000000e+00> : vector<128x128xf32>
    %6 = tpu.matmul %4, %5, %cst {dimension_numbers = #tpu.dot_dimension_numbers<[1], [0], [0], [1], [0, 0, 1, 1], [], []>} : vector<128x256xbf16>, vector<256x128xbf16>, vector<128x128xf32> -> vector<128x128xf32>
    %7 = arith.addf %3, %6 : vector<128x128xf32>
    %c0_6 = arith.constant 0 : index
    %c0_7 = arith.constant 0 : index
    %8 = vector.load %arg8[%c0_6, %c0_7] : memref<128x128xf32, #tpu.memory_space<vmem>>, vector<128x128xf32>
    tpu.vector_store %arg8[%c0_6, %c0_7], %7 {strides = array<i32>} : memref<128x128xf32, #tpu.memory_space<vmem>>, vector<128x128xf32>,
    %c0_i32_8 = arith.constant 0 : i32
    %9 = arith.cmpi eq, %arg2, %c0_i32_8 : i32
    %10 = arith.extui %9 : i1 to i32
    %c0_i32_9 = arith.constant 0 : i32
    %11 = arith.cmpi ne, %10, %c0_i32_9 : i32
    scf.if %11 {
      %c0_10 = arith.constant 0 : index
      %c0_11 = arith.constant 0 : index
      %12 = vector.load %arg8[%c0_10, %c0_11] : memref<128x128xf32, #tpu.memory_space<vmem>>, vector<128x128xf32>
      %c0_12 = arith.constant 0 : index
      %c0_13 = arith.constant 0 : index
      %13 = vector.load %arg5[%c0_12, %c0_13] : memref<1x128xf32, #tpu.memory_space<vmem>>, vector<1x128xf32>
      %14 = vector.broadcast %13 : vector<1x128xf32> to vector<128x128xf32>
      %15 = arith.mulf %12, %14 : vector<128x128xf32>
      %c0_14 = arith.constant 0 : index
      %c0_15 = arith.constant 0 : index
      %16 = vector.load %arg6[%c0_14, %c0_15] : memref<1x128xf32, #tpu.memory_space<vmem>>, vector<1x128xf32>
      %17 = vector.broadcast %16 : vector<1x128xf32> to vector<128x128xf32>
      %18 = arith.addf %15, %17 : vector<128x128xf32>
      %cst_16 = arith.constant 0.000000e+00 : f32
      %19 = vector.broadcast %cst_16 : f32 to vector<128x128xf32>
      %20 = arith.maximumf %18, %19 : vector<128x128xf32>
      %21 = arith.truncf %20 : vector<128x128xf32> to vector<128x128xbf16>
      %c0_17 = arith.constant 0 : index
      %c0_18 = arith.constant 0 : index
      %22 = vector.load %arg7[%c0_17, %c0_18] : memref<128x128xbf16, #tpu.memory_space<vmem>>, vector<128x128xbf16>
      tpu.vector_store %arg7[%c0_17, %c0_18], %21 {strides = array<i32>} : memref<128x128xbf16, #tpu.memory_space<vmem>>, vector<128x128xbf16>,
    } else {
    }
    return
  }
  func.func @transform_0(%arg0: i32, %arg1: i32, %arg2: i32) -> (i32, i32) {
    %c0_i32 = arith.constant 0 : i32
    return %arg0, %arg2 : i32, i32
  }
  func.func @transform_1(%arg0: i32, %arg1: i32, %arg2: i32) -> (i32, i32) {
    %c0_i32 = arith.constant 0 : i32
    return %arg2, %arg1 : i32, i32
  }
  func.func @transform_2(%arg0: i32, %arg1: i32, %arg2: i32) -> (i32, i32) {
    %c0_i32 = arith.constant 0 : i32
    %c0_i32_0 = arith.constant 0 : i32
    return %c0_i32, %arg1 : i32, i32
  }
  func.func @transform_3(%arg0: i32, %arg1: i32, %arg2: i32) -> (i32, i32) {
    %c0_i32 = arith.constant 0 : i32
    %c0_i32_0 = arith.constant 0 : i32
    return %c0_i32, %arg1 : i32, i32
  }
  func.func @transform_4(%arg0: i32, %arg1: i32, %arg2: i32) -> (i32, i32) {
    %c0_i32 = arith.constant 0 : i32
    return %arg0, %arg1 : i32, i32
  }
}

module attributes {stable_mosaic.version = 11 : i64} {
  func.func @_matmul_affine_kernel(%arg0: i32, %arg1: i32, %arg2: i32, %arg3: memref<128x1152xbf16, #tpu.memory_space<vmem>>, %arg4: memref<1152x256xbf16, #tpu.memory_space<vmem>>, %arg5: memref<1x256xf32, #tpu.memory_space<vmem>>, %arg6: memref<1x256xf32, #tpu.memory_space<vmem>>, %arg7: memref<128x256xf32, #tpu.memory_space<vmem>>, %arg8: memref<128x256xf32, #tpu.memory_space<vmem>>) attributes {dimension_semantics = [#tpu.dimension_semantics<parallel>, #tpu.dimension_semantics<parallel>, #tpu.dimension_semantics<arbitrary>], iteration_bounds = array<i64: 1, 1, 1>, scalar_prefetch = 0 : i64, scratch_operands = 1 : i64, tpu.core_type = #tpu.core_type<tc>, window_params = [{transform_indices = @transform_0, window_bounds = array<i64: 128, 1152>}, {transform_indices = @transform_1, window_bounds = array<i64: 1152, 256>}, {transform_indices = @transform_2, window_bounds = array<i64: 1, 256>}, {transform_indices = @transform_3, window_bounds = array<i64: 1, 256>}, {transform_indices = @transform_4, window_bounds = array<i64: 128, 256>}]} {
    %c0_i32 = arith.constant 0 : i32
    %0 = arith.cmpi eq, %arg2, %c0_i32 : i32
    %1 = arith.extui %0 : i1 to i32
    %c0_i32_0 = arith.constant 0 : i32
    %2 = arith.cmpi ne, %1, %c0_i32_0 : i32
    scf.if %2 {
      %cst_10 = arith.constant 0.000000e+00 : f32
      %12 = vector.broadcast %cst_10 : f32 to vector<128x256xf32>
      %c0_11 = arith.constant 0 : index
      %c0_12 = arith.constant 0 : index
      %13 = vector.load %arg8[%c0_11, %c0_12] : memref<128x256xf32, #tpu.memory_space<vmem>>, vector<128x256xf32>
      tpu.vector_store %arg8[%c0_11, %c0_12], %12 {strides = array<i32>} : memref<128x256xf32, #tpu.memory_space<vmem>>, vector<128x256xf32>,
    } else {
    }
    %c0 = arith.constant 0 : index
    %c0_1 = arith.constant 0 : index
    %3 = vector.load %arg8[%c0, %c0_1] : memref<128x256xf32, #tpu.memory_space<vmem>>, vector<128x256xf32>
    %c0_2 = arith.constant 0 : index
    %c0_3 = arith.constant 0 : index
    %4 = vector.load %arg3[%c0_2, %c0_3] : memref<128x1152xbf16, #tpu.memory_space<vmem>>, vector<128x1152xbf16>
    %c0_4 = arith.constant 0 : index
    %c0_5 = arith.constant 0 : index
    %5 = vector.load %arg4[%c0_4, %c0_5] : memref<1152x256xbf16, #tpu.memory_space<vmem>>, vector<1152x256xbf16>
    %cst = arith.constant dense<0.000000e+00> : vector<128x256xf32>
    %6 = tpu.matmul %4, %5, %cst {dimension_numbers = #tpu.dot_dimension_numbers<[1], [0], [0], [1], [0, 0, 1, 1], [], []>} : vector<128x1152xbf16>, vector<1152x256xbf16>, vector<128x256xf32> -> vector<128x256xf32>
    %7 = arith.addf %3, %6 : vector<128x256xf32>
    %c0_6 = arith.constant 0 : index
    %c0_7 = arith.constant 0 : index
    %8 = vector.load %arg8[%c0_6, %c0_7] : memref<128x256xf32, #tpu.memory_space<vmem>>, vector<128x256xf32>
    tpu.vector_store %arg8[%c0_6, %c0_7], %7 {strides = array<i32>} : memref<128x256xf32, #tpu.memory_space<vmem>>, vector<128x256xf32>,
    %c0_i32_8 = arith.constant 0 : i32
    %9 = arith.cmpi eq, %arg2, %c0_i32_8 : i32
    %10 = arith.extui %9 : i1 to i32
    %c0_i32_9 = arith.constant 0 : i32
    %11 = arith.cmpi ne, %10, %c0_i32_9 : i32
    scf.if %11 {
      %c0_10 = arith.constant 0 : index
      %c0_11 = arith.constant 0 : index
      %12 = vector.load %arg8[%c0_10, %c0_11] : memref<128x256xf32, #tpu.memory_space<vmem>>, vector<128x256xf32>
      %c0_12 = arith.constant 0 : index
      %c0_13 = arith.constant 0 : index
      %13 = vector.load %arg5[%c0_12, %c0_13] : memref<1x256xf32, #tpu.memory_space<vmem>>, vector<1x256xf32>
      %14 = vector.broadcast %13 : vector<1x256xf32> to vector<128x256xf32>
      %15 = arith.mulf %12, %14 : vector<128x256xf32>
      %c0_14 = arith.constant 0 : index
      %c0_15 = arith.constant 0 : index
      %16 = vector.load %arg6[%c0_14, %c0_15] : memref<1x256xf32, #tpu.memory_space<vmem>>, vector<1x256xf32>
      %17 = vector.broadcast %16 : vector<1x256xf32> to vector<128x256xf32>
      %18 = arith.addf %15, %17 : vector<128x256xf32>
      %cst_16 = arith.constant 0.000000e+00 : f32
      %19 = vector.broadcast %cst_16 : f32 to vector<128x256xf32>
      %20 = arith.maximumf %18, %19 : vector<128x256xf32>
      %c0_17 = arith.constant 0 : index
      %c0_18 = arith.constant 0 : index
      %21 = vector.load %arg7[%c0_17, %c0_18] : memref<128x256xf32, #tpu.memory_space<vmem>>, vector<128x256xf32>
      tpu.vector_store %arg7[%c0_17, %c0_18], %20 {strides = array<i32>} : memref<128x256xf32, #tpu.memory_space<vmem>>, vector<128x256xf32>,
    } else {
    }
    return
  }
  func.func @transform_0(%arg0: i32, %arg1: i32, %arg2: i32) -> (i32, i32) {
    %c0_i32 = arith.constant 0 : i32
    return %arg0, %arg2 : i32, i32
  }
  func.func @transform_1(%arg0: i32, %arg1: i32, %arg2: i32) -> (i32, i32) {
    %c0_i32 = arith.constant 0 : i32
    return %arg2, %arg1 : i32, i32
  }
  func.func @transform_2(%arg0: i32, %arg1: i32, %arg2: i32) -> (i32, i32) {
    %c0_i32 = arith.constant 0 : i32
    %c0_i32_0 = arith.constant 0 : i32
    return %c0_i32, %arg1 : i32, i32
  }
  func.func @transform_3(%arg0: i32, %arg1: i32, %arg2: i32) -> (i32, i32) {
    %c0_i32 = arith.constant 0 : i32
    %c0_i32_0 = arith.constant 0 : i32
    return %c0_i32, %arg1 : i32, i32
  }
  func.func @transform_4(%arg0: i32, %arg1: i32, %arg2: i32) -> (i32, i32) {
    %c0_i32 = arith.constant 0 : i32
    return %arg0, %arg1 : i32, i32
  }
}

</mosaic_0001>

<llo_original>
// kernel: extra_layers_forward.6
$region0: #{extra_layers_forward.6}
  #allocation0 [shape = 'u32[]', space=smem, size = 0x4, offset = 0x4, fixed_abs, tag = 'smem constant byte address 0x4 - core index']
  #allocation1 [shape = 'u32[144,128]{1,0:T(1,128)}', space=vmem, size = 0x12000, scoped, tag = 'internal scratch']
  #allocation2 [shape = 'f32[256,256]{1,0:T(8,128)}', space=vmem, size = 0x40000, scoped, tag = 'scratch operand']
  %s0 = inlined_call_operand.vmem [shape: bf16[256,128], index: 0, kind: input, shape index: {}]
  %s1 = inlined_call_operand.vmem [shape: bf16[128,256], index: 1, kind: input, shape index: {}]
  %s2 = inlined_call_operand.hbm [shape: f32[1,256], index: 2, kind: input, shape index: {}]
  %s3 = inlined_call_operand.hbm [shape: f32[1,256], index: 3, kind: input, shape index: {}]
  %s4 = inlined_call_operand.vmem [shape: bf16[256,256], index: 4, kind: output, shape index: {}]
  %s5 = sld [smem:[#allocation0]]
  $region42: #{extra_layers_forward.6} parent=0
    _
  %s7 = ssub.s32 1, %s5
  %s8 = scalar_select 0, %s7, %s5
  $region1: #{extra_layers_forward.6} parent=0
    #allocation3 [shape = 'u8[1024]{0}', space=vmem, size = 0x400, scoped, tag = 'input window, operand 2, single buffered']
    #allocation4 [shape = 's32[1]{0}', space=sflag, size = 0x4, scoped, tag = 'scoped memory for extra_layers_forward.6']
    #allocation5 [shape = 'u8[1024]{0}', space=vmem, size = 0x400, scoped, tag = 'input window, operand 3, single buffered']
    #allocation6 [shape = 's32[1]{0}', space=sflag, size = 0x4, scoped, tag = 'scoped memory for extra_layers_forward.6']
    %9 = vsyncpa [#allocation4], 0
    %10 = vsyncpa [#allocation6], 0
    // Predicated region
    $region2: #{extra_layers_forward.6} parent=1 // pred_check
      _
    $region3: #{extra_layers_forward.6} parent=1 // pred_check_branch
      %12 = sbr.rel (0) target = $region5
    $region4: #{extra_layers_forward.6} parent=1 // pred_region
      _
    $region5: #{extra_layers_forward.6} parent=1 // pred_fallthru
      _
    // Predicated region
    $region6: #{extra_layers_forward.6} parent=1 // pred_check
      _
    $region7: #{extra_layers_forward.6} parent=1 // pred_check_branch
      %14 = sbr.rel (0) target = $region9
    $region8: #{extra_layers_forward.6} parent=1 // pred_region
      _
    $region9: #{extra_layers_forward.6} parent=1 // pred_fallthru
      _
    // Predicated region
    $region10: #{extra_layers_forward.6} parent=1 // pred_check
      _
    $region11: #{extra_layers_forward.6} parent=1 // pred_check_branch
      %16 = sbr.rel (0) target = $region13
    $region12: #{extra_layers_forward.6} parent=1 // pred_region
      %s18 = ssub.s32 32, 32
      %19 = vsyncadd [#allocation4], %s18
      %s21 = sshll.u32 [#allocation3], 4
      %s22 = int_to_ptr.vmem [resolvable:$true] %s21
      %24 = dma.hbm_to_vmem [thread:$0]  %s2, 32, %s22, [#allocation4]
    $region13: #{extra_layers_forward.6} parent=1 // pred_fallthru
      _
    // Predicated region
    $region14: #{extra_layers_forward.6} parent=1 // pred_check
      _
    $region15: #{extra_layers_forward.6} parent=1 // pred_check_branch
      %26 = sbr.rel (0) target = $region17
    $region16: #{extra_layers_forward.6} parent=1 // pred_region
      %s28 = ssub.s32 32, 32
      %29 = vsyncadd [#allocation6], %s28
      %s31 = sshll.u32 [#allocation5], 4
      %s32 = int_to_ptr.vmem [resolvable:$true] %s31
      %34 = dma.hbm_to_vmem [thread:$0]  %s3, 32, %s32, [#allocation6]
    $region17: #{extra_layers_forward.6} parent=1 // pred_fallthru
      _
    // Predicated region
    $region18: #{extra_layers_forward.6} parent=1 // pred_check
      _
    $region19: #{extra_layers_forward.6} parent=1 // pred_check_branch
      %36 = sbr.rel (0) target = $region21
    $region20: #{extra_layers_forward.6} parent=1 // pred_region
      %37 = dma.done [#allocation4], 32
    $region21: #{extra_layers_forward.6} parent=1 // pred_fallthru
      _
    // Predicated region
    $region22: #{extra_layers_forward.6} parent=1 // pred_check
      _
    $region23: #{extra_layers_forward.6} parent=1 // pred_check_branch
      %39 = sbr.rel (0) target = $region25
    $region24: #{extra_layers_forward.6} parent=1 // pred_region
      %40 = dma.done [#allocation6], 32
    $region25: #{extra_layers_forward.6} parent=1 // pred_fallthru
      _
    %p42 = scmp.eq.s32.totalorder 0, 0
    // Predicated region
    $region26: #{extra_layers_forward.6} parent=1 // pred_check
      %p43 = pneg %p42
    $region27: #{extra_layers_forward.6} parent=1 // pred_check_branch
      %45 = sbr.rel (%p43) target = $region29
    $region28: #{extra_layers_forward.6} parent=1 // pred_region
      %46 = vst [vmem:[#allocation2] sm:$0xff] 0.0
      %47 = vst [vmem:[#allocation2 + $0x8] sm:$0xff] 0.0
      %48 = vst [vmem:[#allocation2 + $0x10] sm:$0xff] 0.0
      %49 = vst [vmem:[#allocation2 + $0x18] sm:$0xff] 0.0
      %50 = vst [vmem:[#allocation2 + $0x20] sm:$0xff] 0.0
      %51 = vst [vmem:[#allocation2 + $0x28] sm:$0xff] 0.0
      %52 = vst [vmem:[#allocation2 + $0x30] sm:$0xff] 0.0
      %53 = vst [vmem:[#allocation2 + $0x38] sm:$0xff] 0.0
      %54 = vst [vmem:[#allocation2 + $0x40] sm:$0xff] 0.0
      %55 = vst [vmem:[#allocation2 + $0x48] sm:$0xff] 0.0
      %56 = vst [vmem:[#allocation2 + $0x50] sm:$0xff] 0.0
      %57 = vst [vmem:[#allocation2 + $0x58] sm:$0xff] 0.0
      %58 = vst [vmem:[#allocation2 + $0x60] sm:$0xff] 0.0
      %59 = vst [vmem:[#allocation2 + $0x68] sm:$0xff] 0.0
      %60 = vst [vmem:[#allocation2 + $0x70] sm:$0xff] 0.0
      %61 = vst [vmem:[#allocation2 + $0x78] sm:$0xff] 0.0
      %62 = vst [vmem:[#allocation2 + $0x80] sm:$0xff] 0.0
      %63 = vst [vmem:[#allocation2 + $0x88] sm:$0xff] 0.0
      %64 = vst [vmem:[#allocation2 + $0x90] sm:$0xff] 0.0
      %65 = vst [vmem:[#allocation2 + $0x98] sm:$0xff] 0.0
      %66 = vst [vmem:[#allocation2 + $0xa0] sm:$0xff] 0.0
      %67 = vst [vmem:[#allocation2 + $0xa8] sm:$0xff] 0.0
      %68 = vst [vmem:[#allocation2 + $0xb0] sm:$0xff] 0.0
      %69 = vst [vmem:[#allocation2 + $0xb8] sm:$0xff] 0.0
      %70 = vst [vmem:[#allocation2 + $0xc0] sm:$0xff] 0.0
      %71 = vst [vmem:[#allocation2 + $0xc8] sm:$0xff] 0.0
      %72 = vst [vmem:[#allocation2 + $0xd0] sm:$0xff] 0.0
      %73 = vst [vmem:[#allocation2 + $0xd8] sm:$0xff] 0.0
      %74 = vst [vmem:[#allocation2 + $0xe0] sm:$0xff] 0.0
      %75 = vst [vmem:[#allocation2 + $0xe8] sm:$0xff] 0.0
      %76 = vst [vmem:[#allocation2 + $0xf0] sm:$0xff] 0.0
      %77 = vst [vmem:[#allocation2 + $0xf8] sm:$0xff] 0.0
      %78 = vst [vmem:[#allocation2 + $0x100] sm:$0xff] 0.0
      %79 = vst [vmem:[#allocation2 + $0x108] sm:$0xff] 0.0
      %80 = vst [vmem:[#allocation2 + $0x110] sm:$0xff] 0.0
      %81 = vst [vmem:[#allocation2 + $0x118] sm:$0xff] 0.0
      %82 = vst [vmem:[#allocation2 + $0x120] sm:$0xff] 0.0
      %83 = vst [vmem:[#allocation2 + $0x128] sm:$0xff] 0.0
      %84 = vst [vmem:[#allocation2 + $0x130] sm:$0xff] 0.0
      %85 = vst [vmem:[#allocation2 + $0x138] sm:$0xff] 0.0
      %86 = vst [vmem:[#allocation2 + $0x140] sm:$0xff] 0.0
      %87 = vst [vmem:[#allocation2 + $0x148] sm:$0xff] 0.0
      %88 = vst [vmem:[#allocation2 + $0x150] sm:$0xff] 0.0
      %89 = vst [vmem:[#allocation2 + $0x158] sm:$0xff] 0.0
      %90 = vst [vmem:[#allocation2 + $0x160] sm:$0xff] 0.0
      %91 = vst [vmem:[#allocation2 + $0x168] sm:$0xff] 0.0
      %92 = vst [vmem:[#allocation2 + $0x170] sm:$0xff] 0.0
      %93 = vst [vmem:[#allocation2 + $0x178] sm:$0xff] 0.0
      %94 = vst [vmem:[#allocation2 + $0x180] sm:$0xff] 0.0
      %95 = vst [vmem:[#allocation2 + $0x188] sm:$0xff] 0.0
      %96 = vst [vmem:[#allocation2 + $0x190] sm:$0xff] 0.0
      %97 = vst [vmem:[#allocation2 + $0x198] sm:$0xff] 0.0
      %98 = vst [vmem:[#allocation2 + $0x1a0] sm:$0xff] 0.0
      %99 = vst [vmem:[#allocation2 + $0x1a8] sm:$0xff] 0.0
      %100 = vst [vmem:[#allocation2 + $0x1b0] sm:$0xff] 0.0
      %101 = vst [vmem:[#allocation2 + $0x1b8] sm:$0xff] 0.0
      %102 = vst [vmem:[#allocation2 + $0x1c0] sm:$0xff] 0.0
      %103 = vst [vmem:[#allocation2 + $0x1c8] sm:$0xff] 0.0
      %104 = vst [vmem:[#allocation2 + $0x1d0] sm:$0xff] 0.0
      %105 = vst [vmem:[#allocation2 + $0x1d8] sm:$0xff] 0.0
      %106 = vst [vmem:[#allocation2 + $0x1e0] sm:$0xff] 0.0
      %107 = vst [vmem:[#allocation2 + $0x1e8] sm:$0xff] 0.0
      %108 = vst [vmem:[#allocation2 + $0x1f0] sm:$0xff] 0.0
      %109 = vst [vmem:[#allocation2 + $0x1f8] sm:$0xff] 0.0
    $region29: #{extra_layers_forward.6} parent=1 // pred_fallthru
      _
    %v110 = vld [vmem:[#allocation2] sm:$0xff]
    %v111 = vld [vmem:[#allocation2 + $0x8] sm:$0xff]
    %v112 = vld [vmem:[#allocation2 + $0x10] sm:$0xff]
    %v113 = vld [vmem:[#allocation2 + $0x18] sm:$0xff]
    %v114 = vld [vmem:[#allocation2 + $0x20] sm:$0xff]
    %v115 = vld [vmem:[#allocation2 + $0x28] sm:$0xff]
    %v116 = vld [vmem:[#allocation2 + $0x30] sm:$0xff]
    %v117 = vld [vmem:[#allocation2 + $0x38] sm:$0xff]
    %v118 = vld [vmem:[#allocation2 + $0x40] sm:$0xff]
    %v119 = vld [vmem:[#allocation2 + $0x48] sm:$0xff]
    %v120 = vld [vmem:[#allocation2 + $0x50] sm:$0xff]
    %v121 = vld [vmem:[#allocation2 + $0x58] sm:$0xff]
    %v122 = vld [vmem:[#allocation2 + $0x60] sm:$0xff]
    %v123 = vld [vmem:[#allocation2 + $0x68] sm:$0xff]
    %v124 = vld [vmem:[#allocation2 + $0x70] sm:$0xff]
    %v125 = vld [vmem:[#allocation2 + $0x78] sm:$0xff]
    %v126 = vld [vmem:[#allocation2 + $0x80] sm:$0xff]
    %v127 = vld [vmem:[#allocation2 + $0x88] sm:$0xff]
    %v128 = vld [vmem:[#allocation2 + $0x90] sm:$0xff]
    %v129 = vld [vmem:[#allocation2 + $0x98] sm:$0xff]
    %v130 = vld [vmem:[#allocation2 + $0xa0] sm:$0xff]
    %v131 = vld [vmem:[#allocation2 + $0xa8] sm:$0xff]
    %v132 = vld [vmem:[#allocation2 + $0xb0] sm:$0xff]
    %v133 = vld [vmem:[#allocation2 + $0xb8] sm:$0xff]
    %v134 = vld [vmem:[#allocation2 + $0xc0] sm:$0xff]
    %v135 = vld [vmem:[#allocation2 + $0xc8] sm:$0xff]
    %v136 = vld [vmem:[#allocation2 + $0xd0] sm:$0xff]
    %v137 = vld [vmem:[#allocation2 + $0xd8] sm:$0xff]
    %v138 = vld [vmem:[#allocation2 + $0xe0] sm:$0xff]
    %v139 = vld [vmem:[#allocation2 + $0xe8] sm:$0xff]
    %v140 = vld [vmem:[#allocation2 + $0xf0] sm:$0xff]
    %v141 = vld [vmem:[#allocation2 + $0xf8] sm:$0xff]
    %v142 = vld [vmem:[#allocation2 + $0x100] sm:$0xff]
    %v143 = vld [vmem:[#allocation2 + $0x108] sm:$0xff]
    %v144 = vld [vmem:[#allocation2 + $0x110] sm:$0xff]
    %v145 = vld [vmem:[#allocation2 + $0x118] sm:$0xff]
    %v146 = vld [vmem:[#allocation2 + $0x120] sm:$0xff]
    %v147 = vld [vmem:[#allocation2 + $0x128] sm:$0xff]
    %v148 = vld [vmem:[#allocation2 + $0x130] sm:$0xff]
    %v149 = vld [vmem:[#allocation2 + $0x138] sm:$0xff]
    %v150 = vld [vmem:[#allocation2 + $0x140] sm:$0xff]
    %v151 = vld [vmem:[#allocation2 + $0x148] sm:$0xff]
    %v152 = vld [vmem:[#allocation2 + $0x150] sm:$0xff]
    %v153 = vld [vmem:[#allocation2 + $0x158] sm:$0xff]
    %v154 = vld [vmem:[#allocation2 + $0x160] sm:$0xff]
    %v155 = vld [vmem:[#allocation2 + $0x168] sm:$0xff]
    %v156 = vld [vmem:[#allocation2 + $0x170] sm:$0xff]
    %v157 = vld [vmem:[#allocation2 + $0x178] sm:$0xff]
    %v158 = vld [vmem:[#allocation2 + $0x180] sm:$0xff]
    %v159 = vld [vmem:[#allocation2 + $0x188] sm:$0xff]
    %v160 = vld [vmem:[#allocation2 + $0x190] sm:$0xff]
    %v161 = vld [vmem:[#allocation2 + $0x198] sm:$0xff]
    %v162 = vld [vmem:[#allocation2 + $0x1a0] sm:$0xff]
    %v163 = vld [vmem:[#allocation2 + $0x1a8] sm:$0xff]
    %v164 = vld [vmem:[#allocation2 + $0x1b0] sm:$0xff]
    %v165 = vld [vmem:[#allocation2 + $0x1b8] sm:$0xff]
    %v166 = vld [vmem:[#allocation2 + $0x1c0] sm:$0xff]
    %v167 = vld [vmem:[#allocation2 + $0x1c8] sm:$0xff]
    %v168 = vld [vmem:[#allocation2 + $0x1d0] sm:$0xff]
    %v169 = vld [vmem:[#allocation2 + $0x1d8] sm:$0xff]
    %v170 = vld [vmem:[#allocation2 + $0x1e0] sm:$0xff]
    %v171 = vld [vmem:[#allocation2 + $0x1e8] sm:$0xff]
    %v172 = vld [vmem:[#allocation2 + $0x1f0] sm:$0xff]
    %v173 = vld [vmem:[#allocation2 + $0x1f8] sm:$0xff]
    %v174 = vld [vmem:[%s0] sm:$0xf]
    %v175 = vld [vmem:[%s0 + $0x4] sm:$0xf]
    %v176 = vld [vmem:[%s0 + $0x8] sm:$0xf]
    %v177 = vld [vmem:[%s0 + $0xc] sm:$0xf]
    %v178 = vld [vmem:[%s0 + $0x10] sm:$0xf]
    %v179 = vld [vmem:[%s0 + $0x14] sm:$0xf]
    %v180 = vld [vmem:[%s0 + $0x18] sm:$0xf]
    %v181 = vld [vmem:[%s0 + $0x1c] sm:$0xf]
    %v182 = vld [vmem:[%s0 + $0x20] sm:$0xf]
    %v183 = vld [vmem:[%s0 + $0x24] sm:$0xf]
    %v184 = vld [vmem:[%s0 + $0x28] sm:$0xf]
    %v185 = vld [vmem:[%s0 + $0x2c] sm:$0xf]
    %v186 = vld [vmem:[%s0 + $0x30] sm:$0xf]
    %v187 = vld [vmem:[%s0 + $0x34] sm:$0xf]
    %v188 = vld [vmem:[%s0 + $0x38] sm:$0xf]
    %v189 = vld [vmem:[%s0 + $0x3c] sm:$0xf]
    %v190 = vld [vmem:[%s0 + $0x40] sm:$0xf]
    %v191 = vld [vmem:[%s0 + $0x44] sm:$0xf]
    %v192 = vld [vmem:[%s0 + $0x48] sm:$0xf]
    %v193 = vld [vmem:[%s0 + $0x4c] sm:$0xf]
    %v194 = vld [vmem:[%s0 + $0x50] sm:$0xf]
    %v195 = vld [vmem:[%s0 + $0x54] sm:$0xf]
    %v196 = vld [vmem:[%s0 + $0x58] sm:$0xf]
    %v197 = vld [vmem:[%s0 + $0x5c] sm:$0xf]
    %v198 = vld [vmem:[%s0 + $0x60] sm:$0xf]
    %v199 = vld [vmem:[%s0 + $0x64] sm:$0xf]
    %v200 = vld [vmem:[%s0 + $0x68] sm:$0xf]
    %v201 = vld [vmem:[%s0 + $0x6c] sm:$0xf]
    %v202 = vld [vmem:[%s0 + $0x70] sm:$0xf]
    %v203 = vld [vmem:[%s0 + $0x74] sm:$0xf]
    %v204 = vld [vmem:[%s0 + $0x78] sm:$0xf]
    %v205 = vld [vmem:[%s0 + $0x7c] sm:$0xf]
    %v206 = vld [vmem:[%s1] sm:$0xff]
    %v207 = vld [vmem:[%s1 + $0x8] sm:$0xff]
    %v208 = vld [vmem:[%s1 + $0x10] sm:$0xff]
    %v209 = vld [vmem:[%s1 + $0x18] sm:$0xff]
    %v210 = vld [vmem:[%s1 + $0x20] sm:$0xff]
    %v211 = vld [vmem:[%s1 + $0x28] sm:$0xff]
    %v212 = vld [vmem:[%s1 + $0x30] sm:$0xff]
    %v213 = vld [vmem:[%s1 + $0x38] sm:$0xff]
    %v214 = vld [vmem:[%s1 + $0x40] sm:$0xff]
    %v215 = vld [vmem:[%s1 + $0x48] sm:$0xff]
    %v216 = vld [vmem:[%s1 + $0x50] sm:$0xff]
    %v217 = vld [vmem:[%s1 + $0x58] sm:$0xff]
    %v218 = vld [vmem:[%s1 + $0x60] sm:$0xff]
    %v219 = vld [vmem:[%s1 + $0x68] sm:$0xff]
    %v220 = vld [vmem:[%s1 + $0x70] sm:$0xff]
    %v221 = vld [vmem:[%s1 + $0x78] sm:$0xff]
    %v254 = vunpack.c.l.b16 %v174
    %v255 = vunpack.c.l.b16 %v175
    %v256 = vunpack.c.l.b16 %v176
    %v257 = vunpack.c.l.b16 %v177
    %v258 = vunpack.c.l.b16 %v178
    %v259 = vunpack.c.l.b16 %v179
    %v260 = vunpack.c.l.b16 %v180
    %v261 = vunpack.c.l.b16 %v181
    %v262 = vunpack.c.l.b16 %v182
    %v263 = vunpack.c.l.b16 %v183
    %v264 = vunpack.c.l.b16 %v184
    %v265 = vunpack.c.l.b16 %v185
    %v266 = vunpack.c.l.b16 %v186
    %v267 = vunpack.c.l.b16 %v187
    %v268 = vunpack.c.l.b16 %v188
    %v269 = vunpack.c.l.b16 %v189
    %v270 = vunpack.c.l.b16 %v190
    %v271 = vunpack.c.l.b16 %v191
    %v272 = vunpack.c.l.b16 %v192
    %v273 = vunpack.c.l.b16 %v193
    %v274 = vunpack.c.l.b16 %v194
    %v275 = vunpack.c.l.b16 %v195
    %v276 = vunpack.c.l.b16 %v196
    %v277 = vunpack.c.l.b16 %v197
    %v278 = vunpack.c.l.b16 %v198
    %v279 = vunpack.c.l.b16 %v199
    %v280 = vunpack.c.l.b16 %v200
    %v281 = vunpack.c.l.b16 %v201
    %v282 = vunpack.c.l.b16 %v202
    %v283 = vunpack.c.l.b16 %v203
    %v284 = vunpack.c.l.b16 %v204
    %v285 = vunpack.c.l.b16 %v205
    %v286 = vpack.c.b16 %v255, %v254
    %v287 = vpack.c.b16 %v257, %v256
    %v288 = vpack.c.b16 %v259, %v258
    %v289 = vpack.c.b16 %v261, %v260
    %v290 = vpack.c.b16 %v263, %v262
    %v291 = vpack.c.b16 %v265, %v264
    %v292 = vpack.c.b16 %v267, %v266
    %v293 = vpack.c.b16 %v269, %v268
    %v294 = vpack.c.b16 %v271, %v270
    %v295 = vpack.c.b16 %v273, %v272
    %v296 = vpack.c.b16 %v275, %v274
    %v297 = vpack.c.b16 %v277, %v276
    %v298 = vpack.c.b16 %v279, %v278
    %v299 = vpack.c.b16 %v281, %v280
    %v300 = vpack.c.b16 %v283, %v282
    %v301 = vpack.c.b16 %v285, %v284
    %v334 = vunpack.c.l.b16 %v206
    %v335 = vunpack.c.h.b16 %v206
    %v336 = vunpack.c.l.b16 %v207
    %v337 = vunpack.c.h.b16 %v207
    %v338 = vunpack.c.l.b16 %v208
    %v339 = vunpack.c.h.b16 %v208
    %v340 = vunpack.c.l.b16 %v209
    %v341 = vunpack.c.h.b16 %v209
    %v342 = vunpack.c.l.b16 %v210
    %v343 = vunpack.c.h.b16 %v210
    %v344 = vunpack.c.l.b16 %v211
    %v345 = vunpack.c.h.b16 %v211
    %v346 = vunpack.c.l.b16 %v212
    %v347 = vunpack.c.h.b16 %v212
    %v348 = vunpack.c.l.b16 %v213
    %v349 = vunpack.c.h.b16 %v213
    %v350 = vunpack.c.l.b16 %v214
    %v351 = vunpack.c.h.b16 %v214
    %v352 = vunpack.c.l.b16 %v215
    %v353 = vunpack.c.h.b16 %v215
    %v354 = vunpack.c.l.b16 %v216
    %v355 = vunpack.c.h.b16 %v216
    %v356 = vunpack.c.l.b16 %v217
    %v357 = vunpack.c.h.b16 %v217
    %v358 = vunpack.c.l.b16 %v218
    %v359 = vunpack.c.h.b16 %v218
    %v360 = vunpack.c.l.b16 %v219
    %v361 = vunpack.c.h.b16 %v219
    %v362 = vunpack.c.l.b16 %v220
    %v363 = vunpack.c.h.b16 %v220
    %v364 = vunpack.c.l.b16 %v221
    %v365 = vunpack.c.h.b16 %v221
    %v366 = vpack.c.b16 %v336, %v334
    %v367 = vpack.c.b16 %v337, %v335
    %v368 = vpack.c.b16 %v340, %v338
    %v369 = vpack.c.b16 %v341, %v339
    %v370 = vpack.c.b16 %v344, %v342
    %v371 = vpack.c.b16 %v345, %v343
    %v372 = vpack.c.b16 %v348, %v346
    %v373 = vpack.c.b16 %v349, %v347
    %v374 = vpack.c.b16 %v352, %v350
    %v375 = vpack.c.b16 %v353, %v351
    %v376 = vpack.c.b16 %v356, %v354
    %v377 = vpack.c.b16 %v357, %v355
    %v378 = vpack.c.b16 %v360, %v358
    %v379 = vpack.c.b16 %v361, %v359
    %v380 = vpack.c.b16 %v364, %v362
    %v381 = vpack.c.b16 %v365, %v363
    %398 = vmatprep.subr.bf16.mxu0 %v367
    %399 = vmatpush1.bf16.msra.mxu0 %v366
    %400 = vmatprep.subr.bf16.mxu0 %v369
    %401 = vmatpush1.bf16.msra.mxu0 %v368
    %402 = vmatprep.subr.bf16.mxu0 %v371
    %403 = vmatpush1.bf16.msra.mxu0 %v370
    %404 = vmatprep.subr.bf16.mxu0 %v373
    %405 = vmatpush1.bf16.msra.mxu0 %v372
    %406 = vmatprep.subr.bf16.mxu0 %v375
    %407 = vmatpush1.bf16.msra.mxu0 %v374
    %408 = vmatprep.subr.bf16.mxu0 %v377
    %409 = vmatpush1.bf16.msra.mxu0 %v376
    %410 = vmatprep.subr.bf16.mxu0 %v379
    %411 = vmatpush1.bf16.msra.mxu0 %v378
    %412 = vmatprep.subr.bf16.mxu0 %v381
    %413 = vmatpush1.bf16.msra.mxu0 %v380
    %414 = vmatprep.subr.bf16.mxu0 0
    %415 = vmatpush1.bf16.msra.mxu0 0
    %416 = vmatprep.subr.bf16.mxu0 0
    %417 = vmatpush1.bf16.msra.mxu0 0
    %418 = vmatprep.subr.bf16.mxu0 0
    %419 = vmatpush1.bf16.msra.mxu0 0
    %420 = vmatprep.subr.bf16.mxu0 0
    %421 = vmatpush1.bf16.msra.mxu0 0
    %422 = vmatprep.subr.bf16.mxu0 0
    %423 = vmatpush1.bf16.msra.mxu0 0
    %424 = vmatprep.subr.bf16.mxu0 0
    %425 = vmatpush1.bf16.msra.mxu0 0
    %426 = vmatprep.subr.bf16.mxu0 0
    %427 = vmatpush1.bf16.msra.mxu0 0
    %428 = vmatprep.subr.bf16.mxu0 0
    %429 = vmatpush1.bf16.msra.mxu0 0
    %430 = vmatprep.mubr.bf16.mxu0 0
    %431 = vmatmul.mubr.bf16.gmra.mrb[0].mxu0 %v286
    %v432 = vpop.f32.mrb[0].mxu0
    %v433 = vadd.f32 0.0, %v432
    %v434 = vpop.f32.mrb[0].mxu0
    %v435 = vadd.f32 0.0, %v434
    %v436 = vpop.f32.mrb[0].mxu0
    %v437 = vadd.f32 0.0, %v436
    %v438 = vpop.f32.mrb[0].mxu0
    %v439 = vadd.f32 0.0, %v438
    %440 = vmatprep.mubr.bf16.mxu0 0
    %441 = vmatmul.mubr.bf16.gmra.mrb[0].mxu0 %v287
    %v442 = vpop.f32.mrb[0].mxu0
    %v443 = vadd.f32 0.0, %v442
    %v444 = vpop.f32.mrb[0].mxu0
    %v445 = vadd.f32 0.0, %v444
    %v446 = vpop.f32.mrb[0].mxu0
    %v447 = vadd.f32 0.0, %v446
    %v448 = vpop.f32.mrb[0].mxu0
    %v449 = vadd.f32 0.0, %v448
    %450 = vmatprep.mubr.bf16.mxu0 0
    %451 = vmatmul.mubr.bf16.gmra.mrb[0].mxu0 %v288
    %v452 = vpop.f32.mrb[0].mxu0
    %v453 = vadd.f32 0.0, %v452
    %v454 = vpop.f32.mrb[0].mxu0
    %v455 = vadd.f32 0.0, %v454
    %v456 = vpop.f32.mrb[0].mxu0
    %v457 = vadd.f32 0.0, %v456
    %v458 = vpop.f32.mrb[0].mxu0
    %v459 = vadd.f32 0.0, %v458
    %460 = vmatprep.mubr.bf16.mxu0 0
    %461 = vmatmul.mubr.bf16.gmra.mrb[0].mxu0 %v289
    %v462 = vpop.f32.mrb[0].mxu0
    %v463 = vadd.f32 0.0, %v462
    %v464 = vpop.f32.mrb[0].mxu0
    %v465 = vadd.f32 0.0, %v464
    %v466 = vpop.f32.mrb[0].mxu0
    %v467 = vadd.f32 0.0, %v466
    %v468 = vpop.f32.mrb[0].mxu0
    %v469 = vadd.f32 0.0, %v468
    %470 = vmatprep.mubr.bf16.mxu0 0
    %471 = vmatmul.mubr.bf16.gmra.mrb[0].mxu0 %v290
    %v472 = vpop.f32.mrb[0].mxu0
    %v473 = vadd.f32 0.0, %v472
    %v474 = vpop.f32.mrb[0].mxu0
    %v475 = vadd.f32 0.0, %v474
    %v476 = vpop.f32.mrb[0].mxu0
    %v477 = vadd.f32 0.0, %v476
    %v478 = vpop.f32.mrb[0].mxu0
    %v479 = vadd.f32 0.0, %v478
    %480 = vmatprep.mubr.bf16.mxu0 0
    %481 = vmatmul.mubr.bf16.gmra.mrb[0].mxu0 %v291
    %v482 = vpop.f32.mrb[0].mxu0
    %v483 = vadd.f32 0.0, %v482
    %v484 = vpop.f32.mrb[0].mxu0
    %v485 = vadd.f32 0.0, %v484
    %v486 = vpop.f32.mrb[0].mxu0
    %v487 = vadd.f32 0.0, %v486
    %v488 = vpop.f32.mrb[0].mxu0
    %v489 = vadd.f32 0.0, %v488
    %490 = vmatprep.mubr.bf16.mxu0 0
    %491 = vmatmul.mubr.bf16.gmra.mrb[0].mxu0 %v292
    %v492 = vpop.f32.mrb[0].mxu0
    %v493 = vadd.f32 0.0, %v492
    %v494 = vpop.f32.mrb[0].mxu0
    %v495 = vadd.f32 0.0, %v494
    %v496 = vpop.f32.mrb[0].mxu0
    %v497 = vadd.f32 0.0, %v496
    %v498 = vpop.f32.mrb[0].mxu0
    %v499 = vadd.f32 0.0, %v498
    %500 = vmatprep.mubr.bf16.mxu0 0
    %501 = vmatmul.mubr.bf16.gmra.mrb[0].mxu0 %v293
    %v502 = vpop.f32.mrb[0].mxu0
    %v503 = vadd.f32 0.0, %v502
    %v504 = vpop.f32.mrb[0].mxu0
    %v505 = vadd.f32 0.0, %v504
    %v506 = vpop.f32.mrb[0].mxu0
    %v507 = vadd.f32 0.0, %v506
    %v508 = vpop.f32.mrb[0].mxu0
    %v509 = vadd.f32 0.0, %v508
    %510 = vmatprep.mubr.bf16.mxu0 0
    %511 = vmatmul.mubr.bf16.gmra.mrb[0].mxu0 %v294
    %v512 = vpop.f32.mrb[0].mxu0
    %v513 = vadd.f32 0.0, %v512
    %v514 = vpop.f32.mrb[0].mxu0
    %v515 = vadd.f32 0.0, %v514
    %v516 = vpop.f32.mrb[0].mxu0
    %v517 = vadd.f32 0.0, %v516
    %v518 = vpop.f32.mrb[0].mxu0
    %v519 = vadd.f32 0.0, %v518
    %520 = vmatprep.mubr.bf16.mxu0 0
    %521 = vmatmul.mubr.bf16.gmra.mrb[0].mxu0 %v295
    %v522 = vpop.f32.mrb[0].mxu0
    %v523 = vadd.f32 0.0, %v522
    %v524 = vpop.f32.mrb[0].mxu0
    %v525 = vadd.f32 0.0, %v524
    %v526 = vpop.f32.mrb[0].mxu0
    %v527 = vadd.f32 0.0, %v526
    %v528 = vpop.f32.mrb[0].mxu0
    %v529 = vadd.f32 0.0, %v528
    %530 = vmatprep.mubr.bf16.mxu0 0
    %531 = vmatmul.mubr.bf16.gmra.mrb[0].mxu0 %v296
    %v532 = vpop.f32.mrb[0].mxu0
    %v533 = vadd.f32 0.0, %v532
    %v534 = vpop.f32.mrb[0].mxu0
    %v535 = vadd.f32 0.0, %v534
    %v536 = vpop.f32.mrb[0].mxu0
    %v537 = vadd.f32 0.0, %v536
    %v538 = vpop.f32.mrb[0].mxu0
    %v539 = vadd.f32 0.0, %v538
    %540 = vmatprep.mubr.bf16.mxu0 0
    %541 = vmatmul.mubr.bf16.gmra.mrb[0].mxu0 %v297
    %v542 = vpop.f32.mrb[0].mxu0
    %v543 = vadd.f32 0.0, %v542
    %v544 = vpop.f32.mrb[0].mxu0
    %v545 = vadd.f32 0.0, %v544
    %v546 = vpop.f32.mrb[0].mxu0
    %v547 = vadd.f32 0.0, %v546
    %v548 = vpop.f32.mrb[0].mxu0
    %v549 = vadd.f32 0.0, %v548
    %550 = vmatprep.mubr.bf16.mxu0 0
    %551 = vmatmul.mubr.bf16.gmra.mrb[0].mxu0 %v298
    %v552 = vpop.f32.mrb[0].mxu0
    %v553 = vadd.f32 0.0, %v552
    %v554 = vpop.f32.mrb[0].mxu0
    %v555 = vadd.f32 0.0, %v554
    %v556 = vpop.f32.mrb[0].mxu0
    %v557 = vadd.f32 0.0, %v556
    %v558 = vpop.f32.mrb[0].mxu0
    %v559 = vadd.f32 0.0, %v558
    %560 = vmatprep.mubr.bf16.mxu0 0
    %561 = vmatmul.mubr.bf16.gmra.mrb[0].mxu0 %v299
    %v562 = vpop.f32.mrb[0].mxu0
    %v563 = vadd.f32 0.0, %v562
    %v564 = vpop.f32.mrb[0].mxu0
    %v565 = vadd.f32 0.0, %v564
    %v566 = vpop.f32.mrb[0].mxu0
    %v567 = vadd.f32 0.0, %v566
    %v568 = vpop.f32.mrb[0].mxu0
    %v569 = vadd.f32 0.0, %v568
    %570 = vmatprep.mubr.bf16.mxu0 0
    %571 = vmatmul.mubr.bf16.gmra.mrb[0].mxu0 %v300
    %v572 = vpop.f32.mrb[0].mxu0
    %v573 = vadd.f32 0.0, %v572
    %v574 = vpop.f32.mrb[0].mxu0
    %v575 = vadd.f32 0.0, %v574
    %v576 = vpop.f32.mrb[0].mxu0
    %v577 = vadd.f32 0.0, %v576
    %v578 = vpop.f32.mrb[0].mxu0
    %v579 = vadd.f32 0.0, %v578
    %580 = vmatprep.mubr.bf16.mxu0 0
    %581 = vmatmul.mubr.bf16.gmra.mrb[0].mxu0 %v301
    %v582 = vpop.f32.mrb[0].mxu0
    %v583 = vadd.f32 0.0, %v582
    %v584 = vpop.f32.mrb[0].mxu0
    %v585 = vadd.f32 0.0, %v584
    %v586 = vpop.f32.mrb[0].mxu0
    %v587 = vadd.f32 0.0, %v586
    %v588 = vpop.f32.mrb[0].mxu0
    %v589 = vadd.f32 0.0, %v588
    %590 = vdwg.mxu0
    %v591 = vadd.f32 %v110, %v433
    %v592 = vadd.f32 %v111, %v435
    %v593 = vadd.f32 %v112, %v437
    %v594 = vadd.f32 %v113, %v439
    %v595 = vadd.f32 %v114, %v443
    %v596 = vadd.f32 %v115, %v445
    %v597 = vadd.f32 %v116, %v447
    %v598 = vadd.f32 %v117, %v449
    %v599 = vadd.f32 %v118, %v453
    %v600 = vadd.f32 %v119, %v455
    %v601 = vadd.f32 %v120, %v457
    %v602 = vadd.f32 %v121, %v459
    %v603 = vadd.f32 %v122, %v463
    %v604 = vadd.f32 %v123, %v465
    %v605 = vadd.f32 %v124, %v467
    %v606 = vadd.f32 %v125, %v469
    %v607 = vadd.f32 %v126, %v473
    %v608 = vadd.f32 %v127, %v475
    %v609 = vadd.f32 %v128, %v477
    %v610 = vadd.f32 %v129, %v479
    %v611 = vadd.f32 %v130, %v483
    %v612 = vadd.f32 %v131, %v485
    %v613 = vadd.f32 %v132, %v487
    %v614 = vadd.f32 %v133, %v489
    %v615 = vadd.f32 %v134, %v493
    %v616 = vadd.f32 %v135, %v495
    %v617 = vadd.f32 %v136, %v497
    %v618 = vadd.f32 %v137, %v499
    %v619 = vadd.f32 %v138, %v503
    %v620 = vadd.f32 %v139, %v505
    %v621 = vadd.f32 %v140, %v507
    %v622 = vadd.f32 %v141, %v509
    %v623 = vadd.f32 %v142, %v513
    %v624 = vadd.f32 %v143, %v515
    %v625 = vadd.f32 %v144, %v517
    %v626 = vadd.f32 %v145, %v519
    %v627 = vadd.f32 %v146, %v523
    %v628 = vadd.f32 %v147, %v525
    %v629 = vadd.f32 %v148, %v527
    %v630 = vadd.f32 %v149, %v529
    %v631 = vadd.f32 %v150, %v533
    %v632 = vadd.f32 %v151, %v535
    %v633 = vadd.f32 %v152, %v537
    %v634 = vadd.f32 %v153, %v539
    %v635 = vadd.f32 %v154, %v543
    %v636 = vadd.f32 %v155, %v545
    %v637 = vadd.f32 %v156, %v547
    %v638 = vadd.f32 %v157, %v549
    %v639 = vadd.f32 %v158, %v553
    %v640 = vadd.f32 %v159, %v555
    %v641 = vadd.f32 %v160, %v557
    %v642 = vadd.f32 %v161, %v559
    %v643 = vadd.f32 %v162, %v563
    %v644 = vadd.f32 %v163, %v565
    %v645 = vadd.f32 %v164, %v567
    %v646 = vadd.f32 %v165, %v569
    %v647 = vadd.f32 %v166, %v573
    %v648 = vadd.f32 %v167, %v575
    %v649 = vadd.f32 %v168, %v577
    %v650 = vadd.f32 %v169, %v579
    %v651 = vadd.f32 %v170, %v583
    %v652 = vadd.f32 %v171, %v585
    %v653 = vadd.f32 %v172, %v587
    %v654 = vadd.f32 %v173, %v589
    %655 = vst [vmem:[#allocation2] sm:$0xff] %v591
    %656 = vst [vmem:[#allocation2 + $0x8] sm:$0xff] %v592
    %657 = vst [vmem:[#allocation2 + $0x10] sm:$0xff] %v593
    %658 = vst [vmem:[#allocation2 + $0x18] sm:$0xff] %v594
    %659 = vst [vmem:[#allocation2 + $0x20] sm:$0xff] %v595
    %660 = vst [vmem:[#allocation2 + $0x28] sm:$0xff] %v596
    %661 = vst [vmem:[#allocation2 + $0x30] sm:$0xff] %v597
    %662 = vst [vmem:[#allocation2 + $0x38] sm:$0xff] %v598
    %663 = vst [vmem:[#allocation2 + $0x40] sm:$0xff] %v599
    %664 = vst [vmem:[#allocation2 + $0x48] sm:$0xff] %v600
    %665 = vst [vmem:[#allocation2 + $0x50] sm:$0xff] %v601
    %666 = vst [vmem:[#allocation2 + $0x58] sm:$0xff] %v602
    %667 = vst [vmem:[#allocation2 + $0x60] sm:$0xff] %v603
    %668 = vst [vmem:[#allocation2 + $0x68] sm:$0xff] %v604
    %669 = vst [vmem:[#allocation2 + $0x70] sm:$0xff] %v605
    %670 = vst [vmem:[#allocation2 + $0x78] sm:$0xff] %v606
    %671 = vst [vmem:[#allocation2 + $0x80] sm:$0xff] %v607
    %672 = vst [vmem:[#allocation2 + $0x88] sm:$0xff] %v608
    %673 = vst [vmem:[#allocation2 + $0x90] sm:$0xff] %v609
    %674 = vst [vmem:[#allocation2 + $0x98] sm:$0xff] %v610
    %675 = vst [vmem:[#allocation2 + $0xa0] sm:$0xff] %v611
    %676 = vst [vmem:[#allocation2 + $0xa8] sm:$0xff] %v612
    %677 = vst [vmem:[#allocation2 + $0xb0] sm:$0xff] %v613
    %678 = vst [vmem:[#allocation2 + $0xb8] sm:$0xff] %v614
    %679 = vst [vmem:[#allocation2 + $0xc0] sm:$0xff] %v615
    %680 = vst [vmem:[#allocation2 + $0xc8] sm:$0xff] %v616
    %681 = vst [vmem:[#allocation2 + $0xd0] sm:$0xff] %v617
    %682 = vst [vmem:[#allocation2 + $0xd8] sm:$0xff] %v618
    %683 = vst [vmem:[#allocation2 + $0xe0] sm:$0xff] %v619
    %684 = vst [vmem:[#allocation2 + $0xe8] sm:$0xff] %v620
    %685 = vst [vmem:[#allocation2 + $0xf0] sm:$0xff] %v621
    %686 = vst [vmem:[#allocation2 + $0xf8] sm:$0xff] %v622
    %687 = vst [vmem:[#allocation2 + $0x100] sm:$0xff] %v623
    %688 = vst [vmem:[#allocation2 + $0x108] sm:$0xff] %v624
    %689 = vst [vmem:[#allocation2 + $0x110] sm:$0xff] %v625
    %690 = vst [vmem:[#allocation2 + $0x118] sm:$0xff] %v626
    %691 = vst [vmem:[#allocation2 + $0x120] sm:$0xff] %v627
    %692 = vst [vmem:[#allocation2 + $0x128] sm:$0xff] %v628
    %693 = vst [vmem:[#allocation2 + $0x130] sm:$0xff] %v629
    %694 = vst [vmem:[#allocation2 + $0x138] sm:$0xff] %v630
    %695 = vst [vmem:[#allocation2 + $0x140] sm:$0xff] %v631
    %696 = vst [vmem:[#allocation2 + $0x148] sm:$0xff] %v632
    %697 = vst [vmem:[#allocation2 + $0x150] sm:$0xff] %v633
    %698 = vst [vmem:[#allocation2 + $0x158] sm:$0xff] %v634
    %699 = vst [vmem:[#allocation2 + $0x160] sm:$0xff] %v635
    %700 = vst [vmem:[#allocation2 + $0x168] sm:$0xff] %v636
    %701 = vst [vmem:[#allocation2 + $0x170] sm:$0xff] %v637
    %702 = vst [vmem:[#allocation2 + $0x178] sm:$0xff] %v638
    %703 = vst [vmem:[#allocation2 + $0x180] sm:$0xff] %v639
    %704 = vst [vmem:[#allocation2 + $0x188] sm:$0xff] %v640
    %705 = vst [vmem:[#allocation2 + $0x190] sm:$0xff] %v641
    %706 = vst [vmem:[#allocation2 + $0x198] sm:$0xff] %v642
    %707 = vst [vmem:[#allocation2 + $0x1a0] sm:$0xff] %v643
    %708 = vst [vmem:[#allocation2 + $0x1a8] sm:$0xff] %v644
    %709 = vst [vmem:[#allocation2 + $0x1b0] sm:$0xff] %v645
    %710 = vst [vmem:[#allocation2 + $0x1b8] sm:$0xff] %v646
    %711 = vst [vmem:[#allocation2 + $0x1c0] sm:$0xff] %v647
    %712 = vst [vmem:[#allocation2 + $0x1c8] sm:$0xff] %v648
    %713 = vst [vmem:[#allocation2 + $0x1d0] sm:$0xff] %v649
    %714 = vst [vmem:[#allocation2 + $0x1d8] sm:$0xff] %v650
    %715 = vst [vmem:[#allocation2 + $0x1e0] sm:$0xff] %v651
    %716 = vst [vmem:[#allocation2 + $0x1e8] sm:$0xff] %v652
    %717 = vst [vmem:[#allocation2 + $0x1f0] sm:$0xff] %v653
    %718 = vst [vmem:[#allocation2 + $0x1f8] sm:$0xff] %v654
    // Predicated region
    $region30: #{extra_layers_forward.6} parent=1 // pred_check
      %p719 = pneg %p42
    $region31: #{extra_layers_forward.6} parent=1 // pred_check_branch
      %721 = sbr.rel (%p719) target = $region33
    $region32: #{extra_layers_forward.6} parent=1 // pred_region
      %v722 = vld [vmem:[#allocation2] sm:$0xff]
      %v723 = vld [vmem:[#allocation2 + $0x8] sm:$0xff]
      %v724 = vld [vmem:[#allocation2 + $0x10] sm:$0xff]
      %v725 = vld [vmem:[#allocation2 + $0x18] sm:$0xff]
      %v726 = vld [vmem:[#allocation2 + $0x20] sm:$0xff]
      %v727 = vld [vmem:[#allocation2 + $0x28] sm:$0xff]
      %v728 = vld [vmem:[#allocation2 + $0x30] sm:$0xff]
      %v729 = vld [vmem:[#allocation2 + $0x38] sm:$0xff]
      %v730 = vld [vmem:[#allocation2 + $0x40] sm:$0xff]
      %v731 = vld [vmem:[#allocation2 + $0x48] sm:$0xff]
      %v732 = vld [vmem:[#allocation2 + $0x50] sm:$0xff]
      %v733 = vld [vmem:[#allocation2 + $0x58] sm:$0xff]
      %v734 = vld [vmem:[#allocation2 + $0x60] sm:$0xff]
      %v735 = vld [vmem:[#allocation2 + $0x68] sm:$0xff]
      %v736 = vld [vmem:[#allocation2 + $0x70] sm:$0xff]
      %v737 = vld [vmem:[#allocation2 + $0x78] sm:$0xff]
      %v738 = vld [vmem:[#allocation2 + $0x80] sm:$0xff]
      %v739 = vld [vmem:[#allocation2 + $0x88] sm:$0xff]
      %v740 = vld [vmem:[#allocation2 + $0x90] sm:$0xff]
      %v741 = vld [vmem:[#allocation2 + $0x98] sm:$0xff]
      %v742 = vld [vmem:[#allocation2 + $0xa0] sm:$0xff]
      %v743 = vld [vmem:[#allocation2 + $0xa8] sm:$0xff]
      %v744 = vld [vmem:[#allocation2 + $0xb0] sm:$0xff]
      %v745 = vld [vmem:[#allocation2 + $0xb8] sm:$0xff]
      %v746 = vld [vmem:[#allocation2 + $0xc0] sm:$0xff]
      %v747 = vld [vmem:[#allocation2 + $0xc8] sm:$0xff]
      %v748 = vld [vmem:[#allocation2 + $0xd0] sm:$0xff]
      %v749 = vld [vmem:[#allocation2 + $0xd8] sm:$0xff]
      %v750 = vld [vmem:[#allocation2 + $0xe0] sm:$0xff]
      %v751 = vld [vmem:[#allocation2 + $0xe8] sm:$0xff]
      %v752 = vld [vmem:[#allocation2 + $0xf0] sm:$0xff]
      %v753 = vld [vmem:[#allocation2 + $0xf8] sm:$0xff]
      %v754 = vld [vmem:[#allocation2 + $0x100] sm:$0xff]
      %v755 = vld [vmem:[#allocation2 + $0x108] sm:$0xff]
      %v756 = vld [vmem:[#allocation2 + $0x110] sm:$0xff]
      %v757 = vld [vmem:[#allocation2 + $0x118] sm:$0xff]
      %v758 = vld [vmem:[#allocation2 + $0x120] sm:$0xff]
      %v759 = vld [vmem:[#allocation2 + $0x128] sm:$0xff]
      %v760 = vld [vmem:[#allocation2 + $0x130] sm:$0xff]
      %v761 = vld [vmem:[#allocation2 + $0x138] sm:$0xff]
      %v762 = vld [vmem:[#allocation2 + $0x140] sm:$0xff]
      %v763 = vld [vmem:[#allocation2 + $0x148] sm:$0xff]
      %v764 = vld [vmem:[#allocation2 + $0x150] sm:$0xff]
      %v765 = vld [vmem:[#allocation2 + $0x158] sm:$0xff]
      %v766 = vld [vmem:[#allocation2 + $0x160] sm:$0xff]
      %v767 = vld [vmem:[#allocation2 + $0x168] sm:$0xff]
      %v768 = vld [vmem:[#allocation2 + $0x170] sm:$0xff]
      %v769 = vld [vmem:[#allocation2 + $0x178] sm:$0xff]
      %v770 = vld [vmem:[#allocation2 + $0x180] sm:$0xff]
      %v771 = vld [vmem:[#allocation2 + $0x188] sm:$0xff]
      %v772 = vld [vmem:[#allocation2 + $0x190] sm:$0xff]
      %v773 = vld [vmem:[#allocation2 + $0x198] sm:$0xff]
      %v774 = vld [vmem:[#allocation2 + $0x1a0] sm:$0xff]
      %v775 = vld [vmem:[#allocation2 + $0x1a8] sm:$0xff]
      %v776 = vld [vmem:[#allocation2 + $0x1b0] sm:$0xff]
      %v777 = vld [vmem:[#allocation2 + $0x1b8] sm:$0xff]
      %v778 = vld [vmem:[#allocation2 + $0x1c0] sm:$0xff]
      %v779 = vld [vmem:[#allocation2 + $0x1c8] sm:$0xff]
      %v780 = vld [vmem:[#allocation2 + $0x1d0] sm:$0xff]
      %v781 = vld [vmem:[#allocation2 + $0x1d8] sm:$0xff]
      %v782 = vld [vmem:[#allocation2 + $0x1e0] sm:$0xff]
      %v783 = vld [vmem:[#allocation2 + $0x1e8] sm:$0xff]
      %v784 = vld [vmem:[#allocation2 + $0x1f0] sm:$0xff]
      %v785 = vld [vmem:[#allocation2 + $0x1f8] sm:$0xff]
      %v786 = vld [vmem:[#allocation3] sm:$0x3]
      %v788 = vlaneseq
      %v789 = vshrl.u32 %v788, 7
      %v790 = vsub.s32 0, %v789
      %v791 = vrot.slane %v786, %v790
      %v792 = vlaneseq
      %v793 = vshrl.u32 %v792, 7
      %v794 = vsub.s32 1, %v793
      %v795 = vrot.slane %v786, %v794
      %v798 = vmul.f32 %v722, %v791
      %v799 = vmul.f32 %v723, %v795
      %v800 = vmul.f32 %v724, %v791
      %v801 = vmul.f32 %v725, %v795
      %v802 = vmul.f32 %v726, %v791
      %v803 = vmul.f32 %v727, %v795
      %v804 = vmul.f32 %v728, %v791
      %v805 = vmul.f32 %v729, %v795
      %v806 = vmul.f32 %v730, %v791
      %v807 = vmul.f32 %v731, %v795
      %v808 = vmul.f32 %v732, %v791
      %v809 = vmul.f32 %v733, %v795
      %v810 = vmul.f32 %v734, %v791
      %v811 = vmul.f32 %v735, %v795
      %v812 = vmul.f32 %v736, %v791
      %v813 = vmul.f32 %v737, %v795
      %v814 = vmul.f32 %v738, %v791
      %v815 = vmul.f32 %v739, %v795
      %v816 = vmul.f32 %v740, %v791
      %v817 = vmul.f32 %v741, %v795
      %v818 = vmul.f32 %v742, %v791
      %v819 = vmul.f32 %v743, %v795
      %v820 = vmul.f32 %v744, %v791
      %v821 = vmul.f32 %v745, %v795
      %v822 = vmul.f32 %v746, %v791
      %v823 = vmul.f32 %v747, %v795
      %v824 = vmul.f32 %v748, %v791
      %v825 = vmul.f32 %v749, %v795
      %v826 = vmul.f32 %v750, %v791
      %v827 = vmul.f32 %v751, %v795
      %v828 = vmul.f32 %v752, %v791
      %v829 = vmul.f32 %v753, %v795
      %v830 = vmul.f32 %v754, %v791
      %v831 = vmul.f32 %v755, %v795
      %v832 = vmul.f32 %v756, %v791
      %v833 = vmul.f32 %v757, %v795
      %v834 = vmul.f32 %v758, %v791
      %v835 = vmul.f32 %v759, %v795
      %v836 = vmul.f32 %v760, %v791
      %v837 = vmul.f32 %v761, %v795
      %v838 = vmul.f32 %v762, %v791
      %v839 = vmul.f32 %v763, %v795
      %v840 = vmul.f32 %v764, %v791
      %v841 = vmul.f32 %v765, %v795
      %v842 = vmul.f32 %v766, %v791
      %v843 = vmul.f32 %v767, %v795
      %v844 = vmul.f32 %v768, %v791
      %v845 = vmul.f32 %v769, %v795
      %v846 = vmul.f32 %v770, %v791
      %v847 = vmul.f32 %v771, %v795
      %v848 = vmul.f32 %v772, %v791
      %v849 = vmul.f32 %v773, %v795
      %v850 = vmul.f32 %v774, %v791
      %v851 = vmul.f32 %v775, %v795
      %v852 = vmul.f32 %v776, %v791
      %v853 = vmul.f32 %v777, %v795
      %v854 = vmul.f32 %v778, %v791
      %v855 = vmul.f32 %v779, %v795
      %v856 = vmul.f32 %v780, %v791
      %v857 = vmul.f32 %v781, %v795
      %v858 = vmul.f32 %v782, %v791
      %v859 = vmul.f32 %v783, %v795
      %v860 = vmul.f32 %v784, %v791
      %v861 = vmul.f32 %v785, %v795
      %v862 = vld [vmem:[#allocation5] sm:$0x3]
      %v864 = vlaneseq
      %v865 = vshrl.u32 %v864, 7
      %v866 = vsub.s32 0, %v865
      %v867 = vrot.slane %v862, %v866
      %v868 = vlaneseq
      %v869 = vshrl.u32 %v868, 7
      %v870 = vsub.s32 1, %v869
      %v871 = vrot.slane %v862, %v870
      %v874 = vadd.f32 %v798, %v867
      %v875 = vadd.f32 %v799, %v871
      %v876 = vadd.f32 %v800, %v867
      %v877 = vadd.f32 %v801, %v871
      %v878 = vadd.f32 %v802, %v867
      %v879 = vadd.f32 %v803, %v871
      %v880 = vadd.f32 %v804, %v867
      %v881 = vadd.f32 %v805, %v871
      %v882 = vadd.f32 %v806, %v867
      %v883 = vadd.f32 %v807, %v871
      %v884 = vadd.f32 %v808, %v867
      %v885 = vadd.f32 %v809, %v871
      %v886 = vadd.f32 %v810, %v867
      %v887 = vadd.f32 %v811, %v871
      %v888 = vadd.f32 %v812, %v867
      %v889 = vadd.f32 %v813, %v871
      %v890 = vadd.f32 %v814, %v867
      %v891 = vadd.f32 %v815, %v871
      %v892 = vadd.f32 %v816, %v867
      %v893 = vadd.f32 %v817, %v871
      %v894 = vadd.f32 %v818, %v867
      %v895 = vadd.f32 %v819, %v871
      %v896 = vadd.f32 %v820, %v867
      %v897 = vadd.f32 %v821, %v871
      %v898 = vadd.f32 %v822, %v867
      %v899 = vadd.f32 %v823, %v871
      %v900 = vadd.f32 %v824, %v867
      %v901 = vadd.f32 %v825, %v871
      %v902 = vadd.f32 %v826, %v867
      %v903 = vadd.f32 %v827, %v871
      %v904 = vadd.f32 %v828, %v867
      %v905 = vadd.f32 %v829, %v871
      %v906 = vadd.f32 %v830, %v867
      %v907 = vadd.f32 %v831, %v871
      %v908 = vadd.f32 %v832, %v867
      %v909 = vadd.f32 %v833, %v871
      %v910 = vadd.f32 %v834, %v867
      %v911 = vadd.f32 %v835, %v871
      %v912 = vadd.f32 %v836, %v867
      %v913 = vadd.f32 %v837, %v871
      %v914 = vadd.f32 %v838, %v867
      %v915 = vadd.f32 %v839, %v871
      %v916 = vadd.f32 %v840, %v867
      %v917 = vadd.f32 %v841, %v871
      %v918 = vadd.f32 %v842, %v867
      %v919 = vadd.f32 %v843, %v871
      %v920 = vadd.f32 %v844, %v867
      %v921 = vadd.f32 %v845, %v871
      %v922 = vadd.f32 %v846, %v867
      %v923 = vadd.f32 %v847, %v871
      %v924 = vadd.f32 %v848, %v867
      %v925 = vadd.f32 %v849, %v871
      %v926 = vadd.f32 %v850, %v867
      %v927 = vadd.f32 %v851, %v871
      %v928 = vadd.f32 %v852, %v867
      %v929 = vadd.f32 %v853, %v871
      %v930 = vadd.f32 %v854, %v867
      %v931 = vadd.f32 %v855, %v871
      %v932 = vadd.f32 %v856, %v867
      %v933 = vadd.f32 %v857, %v871
      %v934 = vadd.f32 %v858, %v867
      %v935 = vadd.f32 %v859, %v871
      %v936 = vadd.f32 %v860, %v867
      %v937 = vadd.f32 %v861, %v871
      %v938 = vmax.f32 %v874, 0.0
      %v939 = vmax.f32 %v875, 0.0
      %v940 = vmax.f32 %v876, 0.0
      %v941 = vmax.f32 %v877, 0.0
      %v942 = vmax.f32 %v878, 0.0
      %v943 = vmax.f32 %v879, 0.0
      %v944 = vmax.f32 %v880, 0.0
      %v945 = vmax.f32 %v881, 0.0
      %v946 = vmax.f32 %v882, 0.0
      %v947 = vmax.f32 %v883, 0.0
      %v948 = vmax.f32 %v884, 0.0
      %v949 = vmax.f32 %v885, 0.0
      %v950 = vmax.f32 %v886, 0.0
      %v951 = vmax.f32 %v887, 0.0
      %v952 = vmax.f32 %v888, 0.0
      %v953 = vmax.f32 %v889, 0.0
      %v954 = vmax.f32 %v890, 0.0
      %v955 = vmax.f32 %v891, 0.0
      %v956 = vmax.f32 %v892, 0.0
      %v957 = vmax.f32 %v893, 0.0
      %v958 = vmax.f32 %v894, 0.0
      %v959 = vmax.f32 %v895, 0.0
      %v960 = vmax.f32 %v896, 0.0
      %v961 = vmax.f32 %v897, 0.0
      %v962 = vmax.f32 %v898, 0.0
      %v963 = vmax.f32 %v899, 0.0
      %v964 = vmax.f32 %v900, 0.0
      %v965 = vmax.f32 %v901, 0.0
      %v966 = vmax.f32 %v902, 0.0
      %v967 = vmax.f32 %v903, 0.0
      %v968 = vmax.f32 %v904, 0.0
      %v969 = vmax.f32 %v905, 0.0
      %v970 = vmax.f32 %v906, 0.0
      %v971 = vmax.f32 %v907, 0.0
      %v972 = vmax.f32 %v908, 0.0
      %v973 = vmax.f32 %v909, 0.0
      %v974 = vmax.f32 %v910, 0.0
      %v975 = vmax.f32 %v911, 0.0
      %v976 = vmax.f32 %v912, 0.0
      %v977 = vmax.f32 %v913, 0.0
      %v978 = vmax.f32 %v914, 0.0
      %v979 = vmax.f32 %v915, 0.0
      %v980 = vmax.f32 %v916, 0.0
      %v981 = vmax.f32 %v917, 0.0
      %v982 = vmax.f32 %v918, 0.0
      %v983 = vmax.f32 %v919, 0.0
      %v984 = vmax.f32 %v920, 0.0
      %v985 = vmax.f32 %v921, 0.0
      %v986 = vmax.f32 %v922, 0.0
      %v987 = vmax.f32 %v923, 0.0
      %v988 = vmax.f32 %v924, 0.0
      %v989 = vmax.f32 %v925, 0.0
      %v990 = vmax.f32 %v926, 0.0
      %v991 = vmax.f32 %v927, 0.0
      %v992 = vmax.f32 %v928, 0.0
      %v993 = vmax.f32 %v929, 0.0
      %v994 = vmax.f32 %v930, 0.0
      %v995 = vmax.f32 %v931, 0.0
      %v996 = vmax.f32 %v932, 0.0
      %v997 = vmax.f32 %v933, 0.0
      %v998 = vmax.f32 %v934, 0.0
      %v999 = vmax.f32 %v935, 0.0
      %v1000 = vmax.f32 %v936, 0.0
      %v1001 = vmax.f32 %v937, 0.0
      %v1002 = vpack.c.bf16 %v940, %v938
      %v1003 = vpack.c.bf16 %v941, %v939
      %v1004 = vpack.c.bf16 %v944, %v942
      %v1005 = vpack.c.bf16 %v945, %v943
      %v1006 = vpack.c.bf16 %v948, %v946
      %v1007 = vpack.c.bf16 %v949, %v947
      %v1008 = vpack.c.bf16 %v952, %v950
      %v1009 = vpack.c.bf16 %v953, %v951
      %v1010 = vpack.c.bf16 %v956, %v954
      %v1011 = vpack.c.bf16 %v957, %v955
      %v1012 = vpack.c.bf16 %v960, %v958
      %v1013 = vpack.c.bf16 %v961, %v959
      %v1014 = vpack.c.bf16 %v964, %v962
      %v1015 = vpack.c.bf16 %v965, %v963
      %v1016 = vpack.c.bf16 %v968, %v966
      %v1017 = vpack.c.bf16 %v969, %v967
      %v1018 = vpack.c.bf16 %v972, %v970
      %v1019 = vpack.c.bf16 %v973, %v971
      %v1020 = vpack.c.bf16 %v976, %v974
      %v1021 = vpack.c.bf16 %v977, %v975
      %v1022 = vpack.c.bf16 %v980, %v978
      %v1023 = vpack.c.bf16 %v981, %v979
      %v1024 = vpack.c.bf16 %v984, %v982
      %v1025 = vpack.c.bf16 %v985, %v983
      %v1026 = vpack.c.bf16 %v988, %v986
      %v1027 = vpack.c.bf16 %v989, %v987
      %v1028 = vpack.c.bf16 %v992, %v990
      %v1029 = vpack.c.bf16 %v993, %v991
      %v1030 = vpack.c.bf16 %v996, %v994
      %v1031 = vpack.c.bf16 %v997, %v995
      %v1032 = vpack.c.bf16 %v1000, %v998
      %v1033 = vpack.c.bf16 %v1001, %v999
      %v1066 = vunpack.c.l.b16 %v1002
      %v1067 = vunpack.c.l.b16 %v1003
      %v1068 = vunpack.c.h.b16 %v1002
      %v1069 = vunpack.c.h.b16 %v1003
      %v1070 = vunpack.c.l.b16 %v1004
      %v1071 = vunpack.c.l.b16 %v1005
      %v1072 = vunpack.c.h.b16 %v1004
      %v1073 = vunpack.c.h.b16 %v1005
      %v1074 = vunpack.c.l.b16 %v1006
      %v1075 = vunpack.c.l.b16 %v1007
      %v1076 = vunpack.c.h.b16 %v1006
      %v1077 = vunpack.c.h.b16 %v1007
      %v1078 = vunpack.c.l.b16 %v1008
      %v1079 = vunpack.c.l.b16 %v1009
      %v1080 = vunpack.c.h.b16 %v1008
      %v1081 = vunpack.c.h.b16 %v1009
      %v1082 = vunpack.c.l.b16 %v1010
      %v1083 = vunpack.c.l.b16 %v1011
      %v1084 = vunpack.c.h.b16 %v1010
      %v1085 = vunpack.c.h.b16 %v1011
      %v1086 = vunpack.c.l.b16 %v1012
      %v1087 = vunpack.c.l.b16 %v1013
      %v1088 = vunpack.c.h.b16 %v1012
      %v1089 = vunpack.c.h.b16 %v1013
      %v1090 = vunpack.c.l.b16 %v1014
      %v1091 = vunpack.c.l.b16 %v1015
      %v1092 = vunpack.c.h.b16 %v1014
      %v1093 = vunpack.c.h.b16 %v1015
      %v1094 = vunpack.c.l.b16 %v1016
      %v1095 = vunpack.c.l.b16 %v1017
      %v1096 = vunpack.c.h.b16 %v1016
      %v1097 = vunpack.c.h.b16 %v1017
      %v1098 = vunpack.c.l.b16 %v1018
      %v1099 = vunpack.c.l.b16 %v1019
      %v1100 = vunpack.c.h.b16 %v1018
      %v1101 = vunpack.c.h.b16 %v1019
      %v1102 = vunpack.c.l.b16 %v1020
      %v1103 = vunpack.c.l.b16 %v1021
      %v1104 = vunpack.c.h.b16 %v1020
      %v1105 = vunpack.c.h.b16 %v1021
      %v1106 = vunpack.c.l.b16 %v1022
      %v1107 = vunpack.c.l.b16 %v1023
      %v1108 = vunpack.c.h.b16 %v1022
      %v1109 = vunpack.c.h.b16 %v1023
      %v1110 = vunpack.c.l.b16 %v1024
      %v1111 = vunpack.c.l.b16 %v1025
      %v1112 = vunpack.c.h.b16 %v1024
      %v1113 = vunpack.c.h.b16 %v1025
      %v1114 = vunpack.c.l.b16 %v1026
      %v1115 = vunpack.c.l.b16 %v1027
      %v1116 = vunpack.c.h.b16 %v1026
      %v1117 = vunpack.c.h.b16 %v1027
      %v1118 = vunpack.c.l.b16 %v1028
      %v1119 = vunpack.c.l.b16 %v1029
      %v1120 = vunpack.c.h.b16 %v1028
      %v1121 = vunpack.c.h.b16 %v1029
      %v1122 = vunpack.c.l.b16 %v1030
      %v1123 = vunpack.c.l.b16 %v1031
      %v1124 = vunpack.c.h.b16 %v1030
      %v1125 = vunpack.c.h.b16 %v1031
      %v1126 = vunpack.c.l.b16 %v1032
      %v1127 = vunpack.c.l.b16 %v1033
      %v1128 = vunpack.c.h.b16 %v1032
      %v1129 = vunpack.c.h.b16 %v1033
      %v1130 = vpack.c.b16 %v1067, %v1066
      %v1131 = vpack.c.b16 %v1069, %v1068
      %v1132 = vpack.c.b16 %v1071, %v1070
      %v1133 = vpack.c.b16 %v1073, %v1072
      %v1134 = vpack.c.b16 %v1075, %v1074
      %v1135 = vpack.c.b16 %v1077, %v1076
      %v1136 = vpack.c.b16 %v1079, %v1078
      %v1137 = vpack.c.b16 %v1081, %v1080
      %v1138 = vpack.c.b16 %v1083, %v1082
      %v1139 = vpack.c.b16 %v1085, %v1084
      %v1140 = vpack.c.b16 %v1087, %v1086
      %v1141 = vpack.c.b16 %v1089, %v1088
      %v1142 = vpack.c.b16 %v1091, %v1090
      %v1143 = vpack.c.b16 %v1093, %v1092
      %v1144 = vpack.c.b16 %v1095, %v1094
      %v1145 = vpack.c.b16 %v1097, %v1096
      %v1146 = vpack.c.b16 %v1099, %v1098
      %v1147 = vpack.c.b16 %v1101, %v1100
      %v1148 = vpack.c.b16 %v1103, %v1102
      %v1149 = vpack.c.b16 %v1105, %v1104
      %v1150 = vpack.c.b16 %v1107, %v1106
      %v1151 = vpack.c.b16 %v1109, %v1108
      %v1152 = vpack.c.b16 %v1111, %v1110
      %v1153 = vpack.c.b16 %v1113, %v1112
      %v1154 = vpack.c.b16 %v1115, %v1114
      %v1155 = vpack.c.b16 %v1117, %v1116
      %v1156 = vpack.c.b16 %v1119, %v1118
      %v1157 = vpack.c.b16 %v1121, %v1120
      %v1158 = vpack.c.b16 %v1123, %v1122
      %v1159 = vpack.c.b16 %v1125, %v1124
      %v1160 = vpack.c.b16 %v1127, %v1126
      %v1161 = vpack.c.b16 %v1129, %v1128
      %1194 = vst [vmem:[%s4] sm:$0xff] %v1130
      %1195 = vst [vmem:[%s4 + $0x8] sm:$0xff] %v1131
      %1196 = vst [vmem:[%s4 + $0x10] sm:$0xff] %v1132
      %1197 = vst [vmem:[%s4 + $0x18] sm:$0xff] %v1133
      %1198 = vst [vmem:[%s4 + $0x20] sm:$0xff] %v1134
      %1199 = vst [vmem:[%s4 + $0x28] sm:$0xff] %v1135
      %1200 = vst [vmem:[%s4 + $0x30] sm:$0xff] %v1136
      %1201 = vst [vmem:[%s4 + $0x38] sm:$0xff] %v1137
      %1202 = vst [vmem:[%s4 + $0x40] sm:$0xff] %v1138
      %1203 = vst [vmem:[%s4 + $0x48] sm:$0xff] %v1139
      %1204 = vst [vmem:[%s4 + $0x50] sm:$0xff] %v1140
      %1205 = vst [vmem:[%s4 + $0x58] sm:$0xff] %v1141
      %1206 = vst [vmem:[%s4 + $0x60] sm:$0xff] %v1142
      %1207 = vst [vmem:[%s4 + $0x68] sm:$0xff] %v1143
      %1208 = vst [vmem:[%s4 + $0x70] sm:$0xff] %v1144
      %1209 = vst [vmem:[%s4 + $0x78] sm:$0xff] %v1145
      %1210 = vst [vmem:[%s4 + $0x80] sm:$0xff] %v1146
      %1211 = vst [vmem:[%s4 + $0x88] sm:$0xff] %v1147
      %1212 = vst [vmem:[%s4 + $0x90] sm:$0xff] %v1148
      %1213 = vst [vmem:[%s4 + $0x98] sm:$0xff] %v1149
      %1214 = vst [vmem:[%s4 + $0xa0] sm:$0xff] %v1150
      %1215 = vst [vmem:[%s4 + $0xa8] sm:$0xff] %v1151
      %1216 = vst [vmem:[%s4 + $0xb0] sm:$0xff] %v1152
      %1217 = vst [vmem:[%s4 + $0xb8] sm:$0xff] %v1153
      %1218 = vst [vmem:[%s4 + $0xc0] sm:$0xff] %v1154
      %1219 = vst [vmem:[%s4 + $0xc8] sm:$0xff] %v1155
      %1220 = vst [vmem:[%s4 + $0xd0] sm:$0xff] %v1156
      %1221 = vst [vmem:[%s4 + $0xd8] sm:$0xff] %v1157
      %1222 = vst [vmem:[%s4 + $0xe0] sm:$0xff] %v1158
      %1223 = vst [vmem:[%s4 + $0xe8] sm:$0xff] %v1159
      %1224 = vst [vmem:[%s4 + $0xf0] sm:$0xff] %v1160
      %1225 = vst [vmem:[%s4 + $0xf8] sm:$0xff] %v1161
    $region33: #{extra_layers_forward.6} parent=1 // pred_fallthru
      _
    // Predicated region
    $region34: #{extra_layers_forward.6} parent=1 // pred_check
      _
    $region35: #{extra_layers_forward.6} parent=1 // pred_check_branch
      %1227 = sbr.rel (0) target = $region37
    $region36: #{extra_layers_forward.6} parent=1 // pred_region
      _
    $region37: #{extra_layers_forward.6} parent=1 // pred_fallthru
      _
    // Predicated region
    $region38: #{extra_layers_forward.6} parent=1 // pred_check
      _
    $region39: #{extra_layers_forward.6} parent=1 // pred_check_branch
      %1229 = sbr.rel (0) target = $region41
    $region40: #{extra_layers_forward.6} parent=1 // pred_region
      _
    $region41: #{extra_layers_forward.6} parent=1 // pred_fallthru
      _
    %1230 = vsyncpa [#allocation4], 1
    %1231 = vsyncpa [#allocation6], 1

// kernel: extra_layers_forward.8
$region0: #{extra_layers_forward.8}
  #allocation0 [shape = 'u32[]', space=smem, size = 0x4, offset = 0x4, fixed_abs, tag = 'smem constant byte address 0x4 - core index']
  #allocation1 [shape = 'u32[144,128]{1,0:T(1,128)}', space=vmem, size = 0x12000, scoped, tag = 'internal scratch']
  #allocation2 [shape = 'f32[128,128]{1,0:T(8,128)}', space=vmem, size = 0x10000, scoped, tag = 'scratch operand']
  %s0 = inlined_call_operand.vmem [shape: bf16[128,256], index: 0, kind: input, shape index: {}]
  %s1 = inlined_call_operand.vmem [shape: bf16[256,128], index: 1, kind: input, shape index: {}]
  %s2 = inlined_call_operand.vmem [shape: f32[1,128], index: 2, kind: input, shape index: {}]
  %s3 = inlined_call_operand.vmem [shape: f32[1,128], index: 3, kind: input, shape index: {}]
  %s4 = inlined_call_operand.vmem [shape: bf16[128,128], index: 4, kind: output, shape index: {}]
  %s5 = sld [smem:[#allocation0]]
  $region34: #{extra_layers_forward.8} parent=0
    _
  %s7 = ssub.s32 1, %s5
  %s8 = scalar_select 0, %s7, %s5
  // Predicated region
  $region2: #{extra_layers_forward.8} parent=0 // pred_check
    _
  $region3: #{extra_layers_forward.8} parent=0 // pred_check_branch
    %10 = sbr.rel (0) target = $region5
  $region4: #{extra_layers_forward.8} parent=0 // pred_region
    _
  $region5: #{extra_layers_forward.8} parent=0 // pred_fallthru
    _
  // Predicated region
  $region6: #{extra_layers_forward.8} parent=0 // pred_check
    _
  $region7: #{extra_layers_forward.8} parent=0 // pred_check_branch
    %12 = sbr.rel (0) target = $region9
  $region8: #{extra_layers_forward.8} parent=0 // pred_region
    _
  $region9: #{extra_layers_forward.8} parent=0 // pred_fallthru
    _
  // Predicated region
  $region10: #{extra_layers_forward.8} parent=0 // pred_check
    _
  $region11: #{extra_layers_forward.8} parent=0 // pred_check_branch
    %14 = sbr.rel (0) target = $region13
  $region12: #{extra_layers_forward.8} parent=0 // pred_region
    _
  $region13: #{extra_layers_forward.8} parent=0 // pred_fallthru
    _
  // Predicated region
  $region14: #{extra_layers_forward.8} parent=0 // pred_check
    _
  $region15: #{extra_layers_forward.8} parent=0 // pred_check_branch
    %16 = sbr.rel (0) target = $region17
  $region16: #{extra_layers_forward.8} parent=0 // pred_region
    _
  $region17: #{extra_layers_forward.8} parent=0 // pred_fallthru
    _
  %p18 = scmp.eq.s32.totalorder 0, 0
  // Predicated region
  $region18: #{extra_layers_forward.8} parent=0 // pred_check
    %p19 = pneg %p18
  $region19: #{extra_layers_forward.8} parent=0 // pred_check_branch
    %21 = sbr.rel (%p19) target = $region21
  $region20: #{extra_layers_forward.8} parent=0 // pred_region
    %22 = vst [vmem:[#allocation2] sm:$0xff] 0.0
    %23 = vst [vmem:[#allocation2 + $0x8] sm:$0xff] 0.0
    %24 = vst [vmem:[#allocation2 + $0x10] sm:$0xff] 0.0
    %25 = vst [vmem:[#allocation2 + $0x18] sm:$0xff] 0.0
    %26 = vst [vmem:[#allocation2 + $0x20] sm:$0xff] 0.0
    %27 = vst [vmem:[#allocation2 + $0x28] sm:$0xff] 0.0
    %28 = vst [vmem:[#allocation2 + $0x30] sm:$0xff] 0.0
    %29 = vst [vmem:[#allocation2 + $0x38] sm:$0xff] 0.0
    %30 = vst [vmem:[#allocation2 + $0x40] sm:$0xff] 0.0
    %31 = vst [vmem:[#allocation2 + $0x48] sm:$0xff] 0.0
    %32 = vst [vmem:[#allocation2 + $0x50] sm:$0xff] 0.0
    %33 = vst [vmem:[#allocation2 + $0x58] sm:$0xff] 0.0
    %34 = vst [vmem:[#allocation2 + $0x60] sm:$0xff] 0.0
    %35 = vst [vmem:[#allocation2 + $0x68] sm:$0xff] 0.0
    %36 = vst [vmem:[#allocation2 + $0x70] sm:$0xff] 0.0
    %37 = vst [vmem:[#allocation2 + $0x78] sm:$0xff] 0.0
  $region21: #{extra_layers_forward.8} parent=0 // pred_fallthru
    _
  %v38 = vld [vmem:[#allocation2] sm:$0xff]
  %v39 = vld [vmem:[#allocation2 + $0x8] sm:$0xff]
  %v40 = vld [vmem:[#allocation2 + $0x10] sm:$0xff]
  %v41 = vld [vmem:[#allocation2 + $0x18] sm:$0xff]
  %v42 = vld [vmem:[#allocation2 + $0x20] sm:$0xff]
  %v43 = vld [vmem:[#allocation2 + $0x28] sm:$0xff]
  %v44 = vld [vmem:[#allocation2 + $0x30] sm:$0xff]
  %v45 = vld [vmem:[#allocation2 + $0x38] sm:$0xff]
  %v46 = vld [vmem:[#allocation2 + $0x40] sm:$0xff]
  %v47 = vld [vmem:[#allocation2 + $0x48] sm:$0xff]
  %v48 = vld [vmem:[#allocation2 + $0x50] sm:$0xff]
  %v49 = vld [vmem:[#allocation2 + $0x58] sm:$0xff]
  %v50 = vld [vmem:[#allocation2 + $0x60] sm:$0xff]
  %v51 = vld [vmem:[#allocation2 + $0x68] sm:$0xff]
  %v52 = vld [vmem:[#allocation2 + $0x70] sm:$0xff]
  %v53 = vld [vmem:[#allocation2 + $0x78] sm:$0xff]
  %v54 = vld [vmem:[%s0] sm:$0xff]
  %v55 = vld [vmem:[%s0 + $0x8] sm:$0xff]
  %v56 = vld [vmem:[%s0 + $0x10] sm:$0xff]
  %v57 = vld [vmem:[%s0 + $0x18] sm:$0xff]
  %v58 = vld [vmem:[%s0 + $0x20] sm:$0xff]
  %v59 = vld [vmem:[%s0 + $0x28] sm:$0xff]
  %v60 = vld [vmem:[%s0 + $0x30] sm:$0xff]
  %v61 = vld [vmem:[%s0 + $0x38] sm:$0xff]
  %v62 = vld [vmem:[%s0 + $0x40] sm:$0xff]
  %v63 = vld [vmem:[%s0 + $0x48] sm:$0xff]
  %v64 = vld [vmem:[%s0 + $0x50] sm:$0xff]
  %v65 = vld [vmem:[%s0 + $0x58] sm:$0xff]
  %v66 = vld [vmem:[%s0 + $0x60] sm:$0xff]
  %v67 = vld [vmem:[%s0 + $0x68] sm:$0xff]
  %v68 = vld [vmem:[%s0 + $0x70] sm:$0xff]
  %v69 = vld [vmem:[%s0 + $0x78] sm:$0xff]
  %v70 = vld [vmem:[%s1] sm:$0xf]
  %v71 = vld [vmem:[%s1 + $0x4] sm:$0xf]
  %v72 = vld [vmem:[%s1 + $0x8] sm:$0xf]
  %v73 = vld [vmem:[%s1 + $0xc] sm:$0xf]
  %v74 = vld [vmem:[%s1 + $0x10] sm:$0xf]
  %v75 = vld [vmem:[%s1 + $0x14] sm:$0xf]
  %v76 = vld [vmem:[%s1 + $0x18] sm:$0xf]
  %v77 = vld [vmem:[%s1 + $0x1c] sm:$0xf]
  %v78 = vld [vmem:[%s1 + $0x20] sm:$0xf]
  %v79 = vld [vmem:[%s1 + $0x24] sm:$0xf]
  %v80 = vld [vmem:[%s1 + $0x28] sm:$0xf]
  %v81 = vld [vmem:[%s1 + $0x2c] sm:$0xf]
  %v82 = vld [vmem:[%s1 + $0x30] sm:$0xf]
  %v83 = vld [vmem:[%s1 + $0x34] sm:$0xf]
  %v84 = vld [vmem:[%s1 + $0x38] sm:$0xf]
  %v85 = vld [vmem:[%s1 + $0x3c] sm:$0xf]
  %v86 = vld [vmem:[%s1 + $0x40] sm:$0xf]
  %v87 = vld [vmem:[%s1 + $0x44] sm:$0xf]
  %v88 = vld [vmem:[%s1 + $0x48] sm:$0xf]
  %v89 = vld [vmem:[%s1 + $0x4c] sm:$0xf]
  %v90 = vld [vmem:[%s1 + $0x50] sm:$0xf]
  %v91 = vld [vmem:[%s1 + $0x54] sm:$0xf]
  %v92 = vld [vmem:[%s1 + $0x58] sm:$0xf]
  %v93 = vld [vmem:[%s1 + $0x5c] sm:$0xf]
  %v94 = vld [vmem:[%s1 + $0x60] sm:$0xf]
  %v95 = vld [vmem:[%s1 + $0x64] sm:$0xf]
  %v96 = vld [vmem:[%s1 + $0x68] sm:$0xf]
  %v97 = vld [vmem:[%s1 + $0x6c] sm:$0xf]
  %v98 = vld [vmem:[%s1 + $0x70] sm:$0xf]
  %v99 = vld [vmem:[%s1 + $0x74] sm:$0xf]
  %v100 = vld [vmem:[%s1 + $0x78] sm:$0xf]
  %v101 = vld [vmem:[%s1 + $0x7c] sm:$0xf]
  %v118 = vunpack.c.l.b16 %v54
  %v119 = vunpack.c.h.b16 %v54
  %v120 = vunpack.c.l.b16 %v55
  %v121 = vunpack.c.h.b16 %v55
  %v122 = vunpack.c.l.b16 %v56
  %v123 = vunpack.c.h.b16 %v56
  %v124 = vunpack.c.l.b16 %v57
  %v125 = vunpack.c.h.b16 %v57
  %v126 = vunpack.c.l.b16 %v58
  %v127 = vunpack.c.h.b16 %v58
  %v128 = vunpack.c.l.b16 %v59
  %v129 = vunpack.c.h.b16 %v59
  %v130 = vunpack.c.l.b16 %v60
  %v131 = vunpack.c.h.b16 %v60
  %v132 = vunpack.c.l.b16 %v61
  %v133 = vunpack.c.h.b16 %v61
  %v134 = vunpack.c.l.b16 %v62
  %v135 = vunpack.c.h.b16 %v62
  %v136 = vunpack.c.l.b16 %v63
  %v137 = vunpack.c.h.b16 %v63
  %v138 = vunpack.c.l.b16 %v64
  %v139 = vunpack.c.h.b16 %v64
  %v140 = vunpack.c.l.b16 %v65
  %v141 = vunpack.c.h.b16 %v65
  %v142 = vunpack.c.l.b16 %v66
  %v143 = vunpack.c.h.b16 %v66
  %v144 = vunpack.c.l.b16 %v67
  %v145 = vunpack.c.h.b16 %v67
  %v146 = vunpack.c.l.b16 %v68
  %v147 = vunpack.c.h.b16 %v68
  %v148 = vunpack.c.l.b16 %v69
  %v149 = vunpack.c.h.b16 %v69
  %v150 = vpack.c.b16 %v120, %v118
  %v151 = vpack.c.b16 %v121, %v119
  %v152 = vpack.c.b16 %v124, %v122
  %v153 = vpack.c.b16 %v125, %v123
  %v154 = vpack.c.b16 %v128, %v126
  %v155 = vpack.c.b16 %v129, %v127
  %v156 = vpack.c.b16 %v132, %v130
  %v157 = vpack.c.b16 %v133, %v131
  %v158 = vpack.c.b16 %v136, %v134
  %v159 = vpack.c.b16 %v137, %v135
  %v160 = vpack.c.b16 %v140, %v138
  %v161 = vpack.c.b16 %v141, %v139
  %v162 = vpack.c.b16 %v144, %v142
  %v163 = vpack.c.b16 %v145, %v143
  %v164 = vpack.c.b16 %v148, %v146
  %v165 = vpack.c.b16 %v149, %v147
  %v214 = vunpack.c.l.b16 %v70
  %v215 = vunpack.c.l.b16 %v71
  %v216 = vunpack.c.l.b16 %v72
  %v217 = vunpack.c.l.b16 %v73
  %v218 = vunpack.c.l.b16 %v74
  %v219 = vunpack.c.l.b16 %v75
  %v220 = vunpack.c.l.b16 %v76
  %v221 = vunpack.c.l.b16 %v77
  %v222 = vunpack.c.l.b16 %v78
  %v223 = vunpack.c.l.b16 %v79
  %v224 = vunpack.c.l.b16 %v80
  %v225 = vunpack.c.l.b16 %v81
  %v226 = vunpack.c.l.b16 %v82
  %v227 = vunpack.c.l.b16 %v83
  %v228 = vunpack.c.l.b16 %v84
  %v229 = vunpack.c.l.b16 %v85
  %v230 = vunpack.c.l.b16 %v86
  %v231 = vunpack.c.l.b16 %v87
  %v232 = vunpack.c.l.b16 %v88
  %v233 = vunpack.c.l.b16 %v89
  %v234 = vunpack.c.l.b16 %v90
  %v235 = vunpack.c.l.b16 %v91
  %v236 = vunpack.c.l.b16 %v92
  %v237 = vunpack.c.l.b16 %v93
  %v238 = vunpack.c.l.b16 %v94
  %v239 = vunpack.c.l.b16 %v95
  %v240 = vunpack.c.l.b16 %v96
  %v241 = vunpack.c.l.b16 %v97
  %v242 = vunpack.c.l.b16 %v98
  %v243 = vunpack.c.l.b16 %v99
  %v244 = vunpack.c.l.b16 %v100
  %v245 = vunpack.c.l.b16 %v101
  %v246 = vpack.c.b16 %v215, %v214
  %v247 = vpack.c.b16 %v217, %v216
  %v248 = vpack.c.b16 %v219, %v218
  %v249 = vpack.c.b16 %v221, %v220
  %v250 = vpack.c.b16 %v223, %v222
  %v251 = vpack.c.b16 %v225, %v224
  %v252 = vpack.c.b16 %v227, %v226
  %v253 = vpack.c.b16 %v229, %v228
  %v254 = vpack.c.b16 %v231, %v230
  %v255 = vpack.c.b16 %v233, %v232
  %v256 = vpack.c.b16 %v235, %v234
  %v257 = vpack.c.b16 %v237, %v236
  %v258 = vpack.c.b16 %v239, %v238
  %v259 = vpack.c.b16 %v241, %v240
  %v260 = vpack.c.b16 %v243, %v242
  %v261 = vpack.c.b16 %v245, %v244
  %278 = vmatprep.subr.bf16.mxu0 0
  %279 = vmatpush1.bf16.msra.mxu0 %v246
  %280 = vmatprep.subr.bf16.mxu0 0
  %281 = vmatpush1.bf16.msra.mxu0 %v247
  %282 = vmatprep.subr.bf16.mxu0 0
  %283 = vmatpush1.bf16.msra.mxu0 %v248
  %284 = vmatprep.subr.bf16.mxu0 0
  %285 = vmatpush1.bf16.msra.mxu0 %v249
  %286 = vmatprep.subr.bf16.mxu0 0
  %287 = vmatpush1.bf16.msra.mxu0 %v250
  %288 = vmatprep.subr.bf16.mxu0 0
  %289 = vmatpush1.bf16.msra.mxu0 %v251
  %290 = vmatprep.subr.bf16.mxu0 0
  %291 = vmatpush1.bf16.msra.mxu0 %v252
  %292 = vmatprep.subr.bf16.mxu0 0
  %293 = vmatpush1.bf16.msra.mxu0 %v253
  %294 = vmatprep.subr.bf16.mxu0 0
  %295 = vmatpush1.bf16.msra.mxu0 %v254
  %296 = vmatprep.subr.bf16.mxu0 0
  %297 = vmatpush1.bf16.msra.mxu0 %v255
  %298 = vmatprep.subr.bf16.mxu0 0
  %299 = vmatpush1.bf16.msra.mxu0 %v256
  %300 = vmatprep.subr.bf16.mxu0 0
  %301 = vmatpush1.bf16.msra.mxu0 %v257
  %302 = vmatprep.subr.bf16.mxu0 0
  %303 = vmatpush1.bf16.msra.mxu0 %v258
  %304 = vmatprep.subr.bf16.mxu0 0
  %305 = vmatpush1.bf16.msra.mxu0 %v259
  %306 = vmatprep.subr.bf16.mxu0 0
  %307 = vmatpush1.bf16.msra.mxu0 %v260
  %308 = vmatprep.subr.bf16.mxu0 0
  %309 = vmatpush1.bf16.msra.mxu0 %v261
  %310 = vmatprep.mubr.bf16.mxu0 %v151
  %311 = vmatmul.mubr.bf16.gmra.mrb[0].mxu0 %v150
  %v312 = vpop.f32.mrb[0].mxu0
  %v313 = vadd.f32 0.0, %v312
  %v314 = vpop.f32.mrb[0].mxu0
  %v315 = vpop.f32.mrb[0].mxu0
  %v316 = vadd.f32 0.0, %v315
  %v317 = vpop.f32.mrb[0].mxu0
  %318 = vmatprep.mubr.bf16.mxu0 %v153
  %319 = vmatmul.mubr.bf16.gmra.mrb[0].mxu0 %v152
  %v320 = vpop.f32.mrb[0].mxu0
  %v321 = vadd.f32 0.0, %v320
  %v322 = vpop.f32.mrb[0].mxu0
  %v323 = vpop.f32.mrb[0].mxu0
  %v324 = vadd.f32 0.0, %v323
  %v325 = vpop.f32.mrb[0].mxu0
  %326 = vmatprep.mubr.bf16.mxu0 %v155
  %327 = vmatmul.mubr.bf16.gmra.mrb[0].mxu0 %v154
  %v328 = vpop.f32.mrb[0].mxu0
  %v329 = vadd.f32 0.0, %v328
  %v330 = vpop.f32.mrb[0].mxu0
  %v331 = vpop.f32.mrb[0].mxu0
  %v332 = vadd.f32 0.0, %v331
  %v333 = vpop.f32.mrb[0].mxu0
  %334 = vmatprep.mubr.bf16.mxu0 %v157
  %335 = vmatmul.mubr.bf16.gmra.mrb[0].mxu0 %v156
  %v336 = vpop.f32.mrb[0].mxu0
  %v337 = vadd.f32 0.0, %v336
  %v338 = vpop.f32.mrb[0].mxu0
  %v339 = vpop.f32.mrb[0].mxu0
  %v340 = vadd.f32 0.0, %v339
  %v341 = vpop.f32.mrb[0].mxu0
  %342 = vmatprep.mubr.bf16.mxu0 %v159
  %343 = vmatmul.mubr.bf16.gmra.mrb[0].mxu0 %v158
  %v344 = vpop.f32.mrb[0].mxu0
  %v345 = vadd.f32 0.0, %v344
  %v346 = vpop.f32.mrb[0].mxu0
  %v347 = vpop.f32.mrb[0].mxu0
  %v348 = vadd.f32 0.0, %v347
  %v349 = vpop.f32.mrb[0].mxu0
  %350 = vmatprep.mubr.bf16.mxu0 %v161
  %351 = vmatmul.mubr.bf16.gmra.mrb[0].mxu0 %v160
  %v352 = vpop.f32.mrb[0].mxu0
  %v353 = vadd.f32 0.0, %v352
  %v354 = vpop.f32.mrb[0].mxu0
  %v355 = vpop.f32.mrb[0].mxu0
  %v356 = vadd.f32 0.0, %v355
  %v357 = vpop.f32.mrb[0].mxu0
  %358 = vmatprep.mubr.bf16.mxu0 %v163
  %359 = vmatmul.mubr.bf16.gmra.mrb[0].mxu0 %v162
  %v360 = vpop.f32.mrb[0].mxu0
  %v361 = vadd.f32 0.0, %v360
  %v362 = vpop.f32.mrb[0].mxu0
  %v363 = vpop.f32.mrb[0].mxu0
  %v364 = vadd.f32 0.0, %v363
  %v365 = vpop.f32.mrb[0].mxu0
  %366 = vmatprep.mubr.bf16.mxu0 %v165
  %367 = vmatmul.mubr.bf16.gmra.mrb[0].mxu0 %v164
  %v368 = vpop.f32.mrb[0].mxu0
  %v369 = vadd.f32 0.0, %v368
  %v370 = vpop.f32.mrb[0].mxu0
  %v371 = vpop.f32.mrb[0].mxu0
  %v372 = vadd.f32 0.0, %v371
  %v373 = vpop.f32.mrb[0].mxu0
  %374 = vdwg.mxu0
  %v375 = vadd.f32 %v38, %v313
  %v376 = vadd.f32 %v39, %v316
  %v377 = vadd.f32 %v40, %v321
  %v378 = vadd.f32 %v41, %v324
  %v379 = vadd.f32 %v42, %v329
  %v380 = vadd.f32 %v43, %v332
  %v381 = vadd.f32 %v44, %v337
  %v382 = vadd.f32 %v45, %v340
  %v383 = vadd.f32 %v46, %v345
  %v384 = vadd.f32 %v47, %v348
  %v385 = vadd.f32 %v48, %v353
  %v386 = vadd.f32 %v49, %v356
  %v387 = vadd.f32 %v50, %v361
  %v388 = vadd.f32 %v51, %v364
  %v389 = vadd.f32 %v52, %v369
  %v390 = vadd.f32 %v53, %v372
  %391 = vst [vmem:[#allocation2] sm:$0xff] %v375
  %392 = vst [vmem:[#allocation2 + $0x8] sm:$0xff] %v376
  %393 = vst [vmem:[#allocation2 + $0x10] sm:$0xff] %v377
  %394 = vst [vmem:[#allocation2 + $0x18] sm:$0xff] %v378
  %395 = vst [vmem:[#allocation2 + $0x20] sm:$0xff] %v379
  %396 = vst [vmem:[#allocation2 + $0x28] sm:$0xff] %v380
  %397 = vst [vmem:[#allocation2 + $0x30] sm:$0xff] %v381
  %398 = vst [vmem:[#allocation2 + $0x38] sm:$0xff] %v382
  %399 = vst [vmem:[#allocation2 + $0x40] sm:$0xff] %v383
  %400 = vst [vmem:[#allocation2 + $0x48] sm:$0xff] %v384
  %401 = vst [vmem:[#allocation2 + $0x50] sm:$0xff] %v385
  %402 = vst [vmem:[#allocation2 + $0x58] sm:$0xff] %v386
  %403 = vst [vmem:[#allocation2 + $0x60] sm:$0xff] %v387
  %404 = vst [vmem:[#allocation2 + $0x68] sm:$0xff] %v388
  %405 = vst [vmem:[#allocation2 + $0x70] sm:$0xff] %v389
  %406 = vst [vmem:[#allocation2 + $0x78] sm:$0xff] %v390
  // Predicated region
  $region22: #{extra_layers_forward.8} parent=0 // pred_check
    %p407 = pneg %p18
  $region23: #{extra_layers_forward.8} parent=0 // pred_check_branch
    %409 = sbr.rel (%p407) target = $region25
  $region24: #{extra_layers_forward.8} parent=0 // pred_region
    %v410 = vld [vmem:[#allocation2] sm:$0xff]
    %v411 = vld [vmem:[#allocation2 + $0x8] sm:$0xff]
    %v412 = vld [vmem:[#allocation2 + $0x10] sm:$0xff]
    %v413 = vld [vmem:[#allocation2 + $0x18] sm:$0xff]
    %v414 = vld [vmem:[#allocation2 + $0x20] sm:$0xff]
    %v415 = vld [vmem:[#allocation2 + $0x28] sm:$0xff]
    %v416 = vld [vmem:[#allocation2 + $0x30] sm:$0xff]
    %v417 = vld [vmem:[#allocation2 + $0x38] sm:$0xff]
    %v418 = vld [vmem:[#allocation2 + $0x40] sm:$0xff]
    %v419 = vld [vmem:[#allocation2 + $0x48] sm:$0xff]
    %v420 = vld [vmem:[#allocation2 + $0x50] sm:$0xff]
    %v421 = vld [vmem:[#allocation2 + $0x58] sm:$0xff]
    %v422 = vld [vmem:[#allocation2 + $0x60] sm:$0xff]
    %v423 = vld [vmem:[#allocation2 + $0x68] sm:$0xff]
    %v424 = vld [vmem:[#allocation2 + $0x70] sm:$0xff]
    %v425 = vld [vmem:[#allocation2 + $0x78] sm:$0xff]
    %v426 = vld [vmem:[%s2] sm:$0x1]
    %v428 = vlaneseq
    %v429 = vshrl.u32 %v428, 7
    %v430 = vsub.s32 0, %v429
    %v431 = vrot.slane %v426, %v430
    %v433 = vmul.f32 %v410, %v431
    %v434 = vmul.f32 %v411, %v431
    %v435 = vmul.f32 %v412, %v431
    %v436 = vmul.f32 %v413, %v431
    %v437 = vmul.f32 %v414, %v431
    %v438 = vmul.f32 %v415, %v431
    %v439 = vmul.f32 %v416, %v431
    %v440 = vmul.f32 %v417, %v431
    %v441 = vmul.f32 %v418, %v431
    %v442 = vmul.f32 %v419, %v431
    %v443 = vmul.f32 %v420, %v431
    %v444 = vmul.f32 %v421, %v431
    %v445 = vmul.f32 %v422, %v431
    %v446 = vmul.f32 %v423, %v431
    %v447 = vmul.f32 %v424, %v431
    %v448 = vmul.f32 %v425, %v431
    %v449 = vld [vmem:[%s3] sm:$0x1]
    %v451 = vlaneseq
    %v452 = vshrl.u32 %v451, 7
    %v453 = vsub.s32 0, %v452
    %v454 = vrot.slane %v449, %v453
    %v456 = vadd.f32 %v433, %v454
    %v457 = vadd.f32 %v434, %v454
    %v458 = vadd.f32 %v435, %v454
    %v459 = vadd.f32 %v436, %v454
    %v460 = vadd.f32 %v437, %v454
    %v461 = vadd.f32 %v438, %v454
    %v462 = vadd.f32 %v439, %v454
    %v463 = vadd.f32 %v440, %v454
    %v464 = vadd.f32 %v441, %v454
    %v465 = vadd.f32 %v442, %v454
    %v466 = vadd.f32 %v443, %v454
    %v467 = vadd.f32 %v444, %v454
    %v468 = vadd.f32 %v445, %v454
    %v469 = vadd.f32 %v446, %v454
    %v470 = vadd.f32 %v447, %v454
    %v471 = vadd.f32 %v448, %v454
    %v472 = vmax.f32 %v456, 0.0
    %v473 = vmax.f32 %v457, 0.0
    %v474 = vmax.f32 %v458, 0.0
    %v475 = vmax.f32 %v459, 0.0
    %v476 = vmax.f32 %v460, 0.0
    %v477 = vmax.f32 %v461, 0.0
    %v478 = vmax.f32 %v462, 0.0
    %v479 = vmax.f32 %v463, 0.0
    %v480 = vmax.f32 %v464, 0.0
    %v481 = vmax.f32 %v465, 0.0
    %v482 = vmax.f32 %v466, 0.0
    %v483 = vmax.f32 %v467, 0.0
    %v484 = vmax.f32 %v468, 0.0
    %v485 = vmax.f32 %v469, 0.0
    %v486 = vmax.f32 %v470, 0.0
    %v487 = vmax.f32 %v471, 0.0
    %v488 = vpack.c.bf16 %v473, %v472
    %v489 = vpack.c.bf16 %v475, %v474
    %v490 = vpack.c.bf16 %v477, %v476
    %v491 = vpack.c.bf16 %v479, %v478
    %v492 = vpack.c.bf16 %v481, %v480
    %v493 = vpack.c.bf16 %v483, %v482
    %v494 = vpack.c.bf16 %v485, %v484
    %v495 = vpack.c.bf16 %v487, %v486
    %v504 = vunpack.c.l.b16 %v488
    %v505 = vunpack.c.h.b16 %v488
    %v506 = vunpack.c.l.b16 %v489
    %v507 = vunpack.c.h.b16 %v489
    %v508 = vunpack.c.l.b16 %v490
    %v509 = vunpack.c.h.b16 %v490
    %v510 = vunpack.c.l.b16 %v491
    %v511 = vunpack.c.h.b16 %v491
    %v512 = vunpack.c.l.b16 %v492
    %v513 = vunpack.c.h.b16 %v492
    %v514 = vunpack.c.l.b16 %v493
    %v515 = vunpack.c.h.b16 %v493
    %v516 = vunpack.c.l.b16 %v494
    %v517 = vunpack.c.h.b16 %v494
    %v518 = vunpack.c.l.b16 %v495
    %v519 = vunpack.c.h.b16 %v495
    %v520 = vpack.c.b16 %v504, %v504
    %v521 = vpack.c.b16 %v505, %v505
    %v522 = vpack.c.b16 %v506, %v506
    %v523 = vpack.c.b16 %v507, %v507
    %v524 = vpack.c.b16 %v508, %v508
    %v525 = vpack.c.b16 %v509, %v509
    %v526 = vpack.c.b16 %v510, %v510
    %v527 = vpack.c.b16 %v511, %v511
    %v528 = vpack.c.b16 %v512, %v512
    %v529 = vpack.c.b16 %v513, %v513
    %v530 = vpack.c.b16 %v514, %v514
    %v531 = vpack.c.b16 %v515, %v515
    %v532 = vpack.c.b16 %v516, %v516
    %v533 = vpack.c.b16 %v517, %v517
    %v534 = vpack.c.b16 %v518, %v518
    %v535 = vpack.c.b16 %v519, %v519
    %552 = vst [vmem:[%s4] sm:$0xf] %v520
    %553 = vst [vmem:[%s4 + $0x4] sm:$0xf] %v521
    %554 = vst [vmem:[%s4 + $0x8] sm:$0xf] %v522
    %555 = vst [vmem:[%s4 + $0xc] sm:$0xf] %v523
    %556 = vst [vmem:[%s4 + $0x10] sm:$0xf] %v524
    %557 = vst [vmem:[%s4 + $0x14] sm:$0xf] %v525
    %558 = vst [vmem:[%s4 + $0x18] sm:$0xf] %v526
    %559 = vst [vmem:[%s4 + $0x1c] sm:$0xf] %v527
    %560 = vst [vmem:[%s4 + $0x20] sm:$0xf] %v528
    %561 = vst [vmem:[%s4 + $0x24] sm:$0xf] %v529
    %562 = vst [vmem:[%s4 + $0x28] sm:$0xf] %v530
    %563 = vst [vmem:[%s4 + $0x2c] sm:$0xf] %v531
    %564 = vst [vmem:[%s4 + $0x30] sm:$0xf] %v532
    %565 = vst [vmem:[%s4 + $0x34] sm:$0xf] %v533
    %566 = vst [vmem:[%s4 + $0x38] sm:$0xf] %v534
    %567 = vst [vmem:[%s4 + $0x3c] sm:$0xf] %v535
  $region25: #{extra_layers_forward.8} parent=0 // pred_fallthru
    _
  // Predicated region
  $region26: #{extra_layers_forward.8} parent=0 // pred_check
    _
  $region27: #{extra_layers_forward.8} parent=0 // pred_check_branch
    %569 = sbr.rel (0) target = $region29
  $region28: #{extra_layers_forward.8} parent=0 // pred_region
    _
  $region29: #{extra_layers_forward.8} parent=0 // pred_fallthru
    _
  // Predicated region
  $region30: #{extra_layers_forward.8} parent=0 // pred_check
    _
  $region31: #{extra_layers_forward.8} parent=0 // pred_check_branch
    %571 = sbr.rel (0) target = $region33
  $region32: #{extra_layers_forward.8} parent=0 // pred_region
    _
  $region33: #{extra_layers_forward.8} parent=0 // pred_fallthru
    _

// kernel: extra_layers_forward.7
$region0: #{extra_layers_forward.7}
  #allocation0 [shape = 'u32[]', space=smem, size = 0x4, offset = 0x4, fixed_abs, tag = 'smem constant byte address 0x4 - core index']
  #allocation1 [shape = 'u32[144,128]{1,0:T(1,128)}', space=vmem, size = 0x12000, scoped, tag = 'internal scratch']
  #allocation2 [shape = 'f32[128,256]{1,0:T(8,128)}', space=vmem, size = 0x20000, scoped, tag = 'scratch operand']
  %s0 = inlined_call_operand.vmem [shape: bf16[128,2304], index: 0, kind: input, shape index: {}]
  %s1 = inlined_call_operand.vmem [shape: bf16[2304,256], index: 1, kind: input, shape index: {}]
  %s2 = inlined_call_operand.vmem [shape: f32[1,256], index: 2, kind: input, shape index: {}]
  %s3 = inlined_call_operand.vmem [shape: f32[1,256], index: 3, kind: input, shape index: {}]
  %s4 = inlined_call_operand.vmem [shape: f32[128,256], index: 4, kind: output, shape index: {}]
  %s5 = sld [smem:[#allocation0]]
  $region34: #{extra_layers_forward.7} parent=0
    _
  %s7 = ssub.s32 1, %s5
  %s8 = scalar_select 0, %s7, %s5
  // Predicated region
  $region2: #{extra_layers_forward.7} parent=0 // pred_check
    _
  $region3: #{extra_layers_forward.7} parent=0 // pred_check_branch
    %10 = sbr.rel (0) target = $region5
  $region4: #{extra_layers_forward.7} parent=0 // pred_region
    _
  $region5: #{extra_layers_forward.7} parent=0 // pred_fallthru
    _
  // Predicated region
  $region6: #{extra_layers_forward.7} parent=0 // pred_check
    _
  $region7: #{extra_layers_forward.7} parent=0 // pred_check_branch
    %12 = sbr.rel (0) target = $region9
  $region8: #{extra_layers_forward.7} parent=0 // pred_region
    _
  $region9: #{extra_layers_forward.7} parent=0 // pred_fallthru
    _
  // Predicated region
  $region10: #{extra_layers_forward.7} parent=0 // pred_check
    _
  $region11: #{extra_layers_forward.7} parent=0 // pred_check_branch
    %14 = sbr.rel (0) target = $region13
  $region12: #{extra_layers_forward.7} parent=0 // pred_region
    _
  $region13: #{extra_layers_forward.7} parent=0 // pred_fallthru
    _
  // Predicated region
  $region14: #{extra_layers_forward.7} parent=0 // pred_check
    _
  $region15: #{extra_layers_forward.7} parent=0 // pred_check_branch
    %16 = sbr.rel (0) target = $region17
  $region16: #{extra_layers_forward.7} parent=0 // pred_region
    _
  $region17: #{extra_layers_forward.7} parent=0 // pred_fallthru
    _
  %p17 = scmp.eq.s32.totalorder 0, 0
  // Predicated region
  $region18: #{extra_layers_forward.7} parent=0 // pred_check
    %p18 = pneg %p17
  $region19: #{extra_layers_forward.7} parent=0 // pred_check_branch
    %20 = sbr.rel (%p18) target = $region21
  $region20: #{extra_layers_forward.7} parent=0 // pred_region
    %21 = vst [vmem:[#allocation2] sm:$0xff] 0.0
    %22 = vst [vmem:[#allocation2 + $0x8] sm:$0xff] 0.0
    %23 = vst [vmem:[#allocation2 + $0x10] sm:$0xff] 0.0
    %24 = vst [vmem:[#allocation2 + $0x18] sm:$0xff] 0.0
    %25 = vst [vmem:[#allocation2 + $0x20] sm:$0xff] 0.0
    %26 = vst [vmem:[#allocation2 + $0x28] sm:$0xff] 0.0
    %27 = vst [vmem:[#allocation2 + $0x30] sm:$0xff] 0.0
    %28 = vst [vmem:[#allocation2 + $0x38] sm:$0xff] 0.0
    %29 = vst [vmem:[#allocation2 + $0x40] sm:$0xff] 0.0
    %30 = vst [vmem:[#allocation2 + $0x48] sm:$0xff] 0.0
    %31 = vst [vmem:[#allocation2 + $0x50] sm:$0xff] 0.0
    %32 = vst [vmem:[#allocation2 + $0x58] sm:$0xff] 0.0
    %33 = vst [vmem:[#allocation2 + $0x60] sm:$0xff] 0.0
    %34 = vst [vmem:[#allocation2 + $0x68] sm:$0xff] 0.0
    %35 = vst [vmem:[#allocation2 + $0x70] sm:$0xff] 0.0
    %36 = vst [vmem:[#allocation2 + $0x78] sm:$0xff] 0.0
    %37 = vst [vmem:[#allocation2 + $0x80] sm:$0xff] 0.0
    %38 = vst [vmem:[#allocation2 + $0x88] sm:$0xff] 0.0
    %39 = vst [vmem:[#allocation2 + $0x90] sm:$0xff] 0.0
    %40 = vst [vmem:[#allocation2 + $0x98] sm:$0xff] 0.0
    %41 = vst [vmem:[#allocation2 + $0xa0] sm:$0xff] 0.0
    %42 = vst [vmem:[#allocation2 + $0xa8] sm:$0xff] 0.0
    %43 = vst [vmem:[#allocation2 + $0xb0] sm:$0xff] 0.0
    %44 = vst [vmem:[#allocation2 + $0xb8] sm:$0xff] 0.0
    %45 = vst [vmem:[#allocation2 + $0xc0] sm:$0xff] 0.0
    %46 = vst [vmem:[#allocation2 + $0xc8] sm:$0xff] 0.0
    %47 = vst [vmem:[#allocation2 + $0xd0] sm:$0xff] 0.0
    %48 = vst [vmem:[#allocation2 + $0xd8] sm:$0xff] 0.0
    %49 = vst [vmem:[#allocation2 + $0xe0] sm:$0xff] 0.0
    %50 = vst [vmem:[#allocation2 + $0xe8] sm:$0xff] 0.0
    %51 = vst [vmem:[#allocation2 + $0xf0] sm:$0xff] 0.0
    %52 = vst [vmem:[#allocation2 + $0xf8] sm:$0xff] 0.0
  $region21: #{extra_layers_forward.7} parent=0 // pred_fallthru
    _
  %v53 = vld [vmem:[#allocation2] sm:$0xff]
  %v54 = vld [vmem:[#allocation2 + $0x8] sm:$0xff]
  %v55 = vld [vmem:[#allocation2 + $0x10] sm:$0xff]
  %v56 = vld [vmem:[#allocation2 + $0x18] sm:$0xff]
  %v57 = vld [vmem:[#allocation2 + $0x20] sm:$0xff]
  %v58 = vld [vmem:[#allocation2 + $0x28] sm:$0xff]
  %v59 = vld [vmem:[#allocation2 + $0x30] sm:$0xff]
  %v60 = vld [vmem:[#allocation2 + $0x38] sm:$0xff]
  %v61 = vld [vmem:[#allocation2 + $0x40] sm:$0xff]
  %v62 = vld [vmem:[#allocation2 + $0x48] sm:$0xff]
  %v63 = vld [vmem:[#allocation2 + $0x50] sm:$0xff]
  %v64 = vld [vmem:[#allocation2 + $0x58] sm:$0xff]
  %v65 = vld [vmem:[#allocation2 + $0x60] sm:$0xff]
  %v66 = vld [vmem:[#allocation2 + $0x68] sm:$0xff]
  %v67 = vld [vmem:[#allocation2 + $0x70] sm:$0xff]
  %v68 = vld [vmem:[#allocation2 + $0x78] sm:$0xff]
  %v69 = vld [vmem:[#allocation2 + $0x80] sm:$0xff]
  %v70 = vld [vmem:[#allocation2 + $0x88] sm:$0xff]
  %v71 = vld [vmem:[#allocation2 + $0x90] sm:$0xff]
  %v72 = vld [vmem:[#allocation2 + $0x98] sm:$0xff]
  %v73 = vld [vmem:[#allocation2 + $0xa0] sm:$0xff]
  %v74 = vld [vmem:[#allocation2 + $0xa8] sm:$0xff]
  %v75 = vld [vmem:[#allocation2 + $0xb0] sm:$0xff]
  %v76 = vld [vmem:[#allocation2 + $0xb8] sm:$0xff]
  %v77 = vld [vmem:[#allocation2 + $0xc0] sm:$0xff]
  %v78 = vld [vmem:[#allocation2 + $0xc8] sm:$0xff]
  %v79 = vld [vmem:[#allocation2 + $0xd0] sm:$0xff]
  %v80 = vld [vmem:[#allocation2 + $0xd8] sm:$0xff]
  %v81 = vld [vmem:[#allocation2 + $0xe0] sm:$0xff]
  %v82 = vld [vmem:[#allocation2 + $0xe8] sm:$0xff]
  %v83 = vld [vmem:[#allocation2 + $0xf0] sm:$0xff]
  %v84 = vld [vmem:[#allocation2 + $0xf8] sm:$0xff]
  %v85 = vld [vmem:[%s0] sm:$0xff]
  %v86 = vld [vmem:[%s0 + $0x8] sm:$0xff]
  %v87 = vld [vmem:[%s0 + $0x10] sm:$0xff]
  %v88 = vld [vmem:[%s0 + $0x18] sm:$0xff]
  %v89 = vld [vmem:[%s0 + $0x20] sm:$0xff]
  %v90 = vld [vmem:[%s0 + $0x28] sm:$0xff]
  %v91 = vld [vmem:[%s0 + $0x30] sm:$0xff]
  %v92 = vld [vmem:[%s0 + $0x38] sm:$0xff]
  %v93 = vld [vmem:[%s0 + $0x40] sm:$0xff]
  %v94 = vld [vmem:[%s0 + $0x48] sm:$0xff]
  %v95 = vld [vmem:[%s0 + $0x50] sm:$0xff]
  %v96 = vld [vmem:[%s0 + $0x58] sm:$0xff]
  %v97 = vld [vmem:[%s0 + $0x60] sm:$0xff]
  %v98 = vld [vmem:[%s0 + $0x68] sm:$0xff]
  %v99 = vld [vmem:[%s0 + $0x70] sm:$0xff]
  %v100 = vld [vmem:[%s0 + $0x78] sm:$0xff]
  %v101 = vld [vmem:[%s0 + $0x80] sm:$0xff]
  %v102 = vld [vmem:[%s0 + $0x88] sm:$0xff]
  %v103 = vld [vmem:[%s0 + $0x90] sm:$0xff]
  %v104 = vld [vmem:[%s0 + $0x98] sm:$0xff]
  %v105 = vld [vmem:[%s0 + $0xa0] sm:$0xff]
  %v106 = vld [vmem:[%s0 + $0xa8] sm:$0xff]
  %v107 = vld [vmem:[%s0 + $0xb0] sm:$0xff]
  %v108 = vld [vmem:[%s0 + $0xb8] sm:$0xff]
  %v109 = vld [vmem:[%s0 + $0xc0] sm:$0xff]
  %v110 = vld [vmem:[%s0 + $0xc8] sm:$0xff]
  %v111 = vld [vmem:[%s0 + $0xd0] sm:$0xff]
  %v112 = vld [vmem:[%s0 + $0xd8] sm:$0xff]
  %v113 = vld [vmem:[%s0 + $0xe0] sm:$0xff]
  %v114 = vld [vmem:[%s0 + $0xe8] sm:$0xff]
  %v115 = vld [vmem:[%s0 + $0xf0] sm:$0xff]
  %v116 = vld [vmem:[%s0 + $0xf8] sm:$0xff]
  %v117 = vld [vmem:[%s0 + $0x100] sm:$0xff]
  %v118 = vld [vmem:[%s0 + $0x108] sm:$0xff]
  %v119 = vld [vmem:[%s0 + $0x110] sm:$0xff]
  %v120 = vld [vmem:[%s0 + $0x118] sm:$0xff]
  %v121 = vld [vmem:[%s0 + $0x120] sm:$0xff]
  %v122 = vld [vmem:[%s0 + $0x128] sm:$0xff]
  %v123 = vld [vmem:[%s0 + $0x130] sm:$0xff]
  %v124 = vld [vmem:[%s0 + $0x138] sm:$0xff]
  %v125 = vld [vmem:[%s0 + $0x140] sm:$0xff]
  %v126 = vld [vmem:[%s0 + $0x148] sm:$0xff]
  %v127 = vld [vmem:[%s0 + $0x150] sm:$0xff]
  %v128 = vld [vmem:[%s0 + $0x158] sm:$0xff]
  %v129 = vld [vmem:[%s0 + $0x160] sm:$0xff]
  %v130 = vld [vmem:[%s0 + $0x168] sm:$0xff]
  %v131 = vld [vmem:[%s0 + $0x170] sm:$0xff]
  %v132 = vld [vmem:[%s0 + $0x178] sm:$0xff]
  %v133 = vld [vmem:[%s0 + $0x180] sm:$0xff]
  %v134 = vld [vmem:[%s0 + $0x188] sm:$0xff]
  %v135 = vld [vmem:[%s0 + $0x190] sm:$0xff]
  %v136 = vld [vmem:[%s0 + $0x198] sm:$0xff]
  %v137 = vld [vmem:[%s0 + $0x1a0] sm:$0xff]
  %v138 = vld [vmem:[%s0 + $0x1a8] sm:$0xff]
  %v139 = vld [vmem:[%s0 + $0x1b0] sm:$0xff]
  %v140 = vld [vmem:[%s0 + $0x1b8] sm:$0xff]
  %v141 = vld [vmem:[%s0 + $0x1c0] sm:$0xff]
  %v142 = vld [vmem:[%s0 + $0x1c8] sm:$0xff]
  %v143 = vld [vmem:[%s0 + $0x1d0] sm:$0xff]
  %v144 = vld [vmem:[%s0 + $0x1d8] sm:$0xff]
  %v145 = vld [vmem:[%s0 + $0x1e0] sm:$0xff]
  %v146 = vld [vmem:[%s0 + $0x1e8] sm:$0xff]
  %v147 = vld [vmem:[%s0 + $0x1f0] sm:$0xff]
  %v148 = vld [vmem:[%s0 + $0x1f8] sm:$0xff]
  %v149 = vld [vmem:[%s0 + $0x200] sm:$0xff]
  %v150 = vld [vmem:[%s0 + $0x208] sm:$0xff]
  %v151 = vld [vmem:[%s0 + $0x210] sm:$0xff]
  %v152 = vld [vmem:[%s0 + $0x218] sm:$0xff]
  %v153 = vld [vmem:[%s0 + $0x220] sm:$0xff]
  %v154 = vld [vmem:[%s0 + $0x228] sm:$0xff]
  %v155 = vld [vmem:[%s0 + $0x230] sm:$0xff]
  %v156 = vld [vmem:[%s0 + $0x238] sm:$0xff]
  %v157 = vld [vmem:[%s0 + $0x240] sm:$0xff]
  %v158 = vld [vmem:[%s0 + $0x248] sm:$0xff]
  %v159 = vld [vmem:[%s0 + $0x250] sm:$0xff]
  %v160 = vld [vmem:[%s0 + $0x258] sm:$0xff]
  %v161 = vld [vmem:[%s0 + $0x260] sm:$0xff]
  %v162 = vld [vmem:[%s0 + $0x268] sm:$0xff]
  %v163 = vld [vmem:[%s0 + $0x270] sm:$0xff]
  %v164 = vld [vmem:[%s0 + $0x278] sm:$0xff]
  %v165 = vld [vmem:[%s0 + $0x280] sm:$0xff]
  %v166 = vld [vmem:[%s0 + $0x288] sm:$0xff]
  %v167 = vld [vmem:[%s0 + $0x290] sm:$0xff]
  %v168 = vld [vmem:[%s0 + $0x298] sm:$0xff]
  %v169 = vld [vmem:[%s0 + $0x2a0] sm:$0xff]
  %v170 = vld [vmem:[%s0 + $0x2a8] sm:$0xff]
  %v171 = vld [vmem:[%s0 + $0x2b0] sm:$0xff]
  %v172 = vld [vmem:[%s0 + $0x2b8] sm:$0xff]
  %v173 = vld [vmem:[%s0 + $0x2c0] sm:$0xff]
  %v174 = vld [vmem:[%s0 + $0x2c8] sm:$0xff]
  %v175 = vld [vmem:[%s0 + $0x2d0] sm:$0xff]
  %v176 = vld [vmem:[%s0 + $0x2d8] sm:$0xff]
  %v177 = vld [vmem:[%s0 + $0x2e0] sm:$0xff]
  %v178 = vld [vmem:[%s0 + $0x2e8] sm:$0xff]
  %v179 = vld [vmem:[%s0 + $0x2f0] sm:$0xff]
  %v180 = vld [vmem:[%s0 + $0x2f8] sm:$0xff]
  %v181 = vld [vmem:[%s0 + $0x300] sm:$0xff]
  %v182 = vld [vmem:[%s0 + $0x308] sm:$0xff]
  %v183 = vld [vmem:[%s0 + $0x310] sm:$0xff]
  %v184 = vld [vmem:[%s0 + $0x318] sm:$0xff]
  %v185 = vld [vmem:[%s0 + $0x320] sm:$0xff]
  %v186 = vld [vmem:[%s0 + $0x328] sm:$0xff]
  %v187 = vld [vmem:[%s0 + $0x330] sm:$0xff]
  %v188 = vld [vmem:[%s0 + $0x338] sm:$0xff]
  %v189 = vld [vmem:[%s0 + $0x340] sm:$0xff]
  %v190 = vld [vmem:[%s0 + $0x348] sm:$0xff]
  %v191 = vld [vmem:[%s0 + $0x350] sm:$0xff]
  %v192 = vld [vmem:[%s0 + $0x358] sm:$0xff]
  %v193 = vld [vmem:[%s0 + $0x360] sm:$0xff]
  %v194 = vld [vmem:[%s0 + $0x368] sm:$0xff]
  %v195 = vld [vmem:[%s0 + $0x370] sm:$0xff]
  %v196 = vld [vmem:[%s0 + $0x378] sm:$0xff]
  %v197 = vld [vmem:[%s0 + $0x380] sm:$0xff]
  %v198 = vld [vmem:[%s0 + $0x388] sm:$0xff]
  %v199 = vld [vmem:[%s0 + $0x390] sm:$0xff]
  %v200 = vld [vmem:[%s0 + $0x398] sm:$0xff]
  %v201 = vld [vmem:[%s0 + $0x3a0] sm:$0xff]
  %v202 = vld [vmem:[%s0 + $0x3a8] sm:$0xff]
  %v203 = vld [vmem:[%s0 + $0x3b0] sm:$0xff]
  %v204 = vld [vmem:[%s0 + $0x3b8] sm:$0xff]
  %v205 = vld [vmem:[%s0 + $0x3c0] sm:$0xff]
  %v206 = vld [vmem:[%s0 + $0x3c8] sm:$0xff]
  %v207 = vld [vmem:[%s0 + $0x3d0] sm:$0xff]
  %v208 = vld [vmem:[%s0 + $0x3d8] sm:$0xff]
  %v209 = vld [vmem:[%s0 + $0x3e0] sm:$0xff]
  %v210 = vld [vmem:[%s0 + $0x3e8] sm:$0xff]
  %v211 = vld [vmem:[%s0 + $0x3f0] sm:$0xff]
  %v212 = vld [vmem:[%s0 + $0x3f8] sm:$0xff]
  %v213 = vld [vmem:[%s0 + $0x400] sm:$0xff]
  %v214 = vld [vmem:[%s0 + $0x408] sm:$0xff]
  %v215 = vld [vmem:[%s0 + $0x410] sm:$0xff]
  %v216 = vld [vmem:[%s0 + $0x418] sm:$0xff]
  %v217 = vld [vmem:[%s0 + $0x420] sm:$0xff]
  %v218 = vld [vmem:[%s0 + $0x428] sm:$0xff]
  %v219 = vld [vmem:[%s0 + $0x430] sm:$0xff]
  %v220 = vld [vmem:[%s0 + $0x438] sm:$0xff]
  %v221 = vld [vmem:[%s0 + $0x440] sm:$0xff]
  %v222 = vld [vmem:[%s0 + $0x448] sm:$0xff]
  %v223 = vld [vmem:[%s0 + $0x450] sm:$0xff]
  %v224 = vld [vmem:[%s0 + $0x458] sm:$0xff]
  %v225 = vld [vmem:[%s0 + $0x460] sm:$0xff]
  %v226 = vld [vmem:[%s0 + $0x468] sm:$0xff]
  %v227 = vld [vmem:[%s0 + $0x470] sm:$0xff]
  %v228 = vld [vmem:[%s0 + $0x478] sm:$0xff]
  %v229 = vld [vmem:[%s1] sm:$0xff]
  %v230 = vld [vmem:[%s1 + $0x8] sm:$0xff]
  %v231 = vld [vmem:[%s1 + $0x10] sm:$0xff]
  %v232 = vld [vmem:[%s1 + $0x18] sm:$0xff]
  %v233 = vld [vmem:[%s1 + $0x20] sm:$0xff]
  %v234 = vld [vmem:[%s1 + $0x28] sm:$0xff]
  %v235 = vld [vmem:[%s1 + $0x30] sm:$0xff]
  %v236 = vld [vmem:[%s1 + $0x38] sm:$0xff]
  %v237 = vld [vmem:[%s1 + $0x40] sm:$0xff]
  %v238 = vld [vmem:[%s1 + $0x48] sm:$0xff]
  %v239 = vld [vmem:[%s1 + $0x50] sm:$0xff]
  %v240 = vld [vmem:[%s1 + $0x58] sm:$0xff]
  %v241 = vld [vmem:[%s1 + $0x60] sm:$0xff]
  %v242 = vld [vmem:[%s1 + $0x68] sm:$0xff]
  %v243 = vld [vmem:[%s1 + $0x70] sm:$0xff]
  %v244 = vld [vmem:[%s1 + $0x78] sm:$0xff]
  %v245 = vld [vmem:[%s1 + $0x80] sm:$0xff]
  %v246 = vld [vmem:[%s1 + $0x88] sm:$0xff]
  %v247 = vld [vmem:[%s1 + $0x90] sm:$0xff]
  %v248 = vld [vmem:[%s1 + $0x98] sm:$0xff]
  %v249 = vld [vmem:[%s1 + $0xa0] sm:$0xff]
  %v250 = vld [vmem:[%s1 + $0xa8] sm:$0xff]
  %v251 = vld [vmem:[%s1 + $0xb0] sm:$0xff]
  %v252 = vld [vmem:[%s1 + $0xb8] sm:$0xff]
  %v253 = vld [vmem:[%s1 + $0xc0] sm:$0xff]
  %v254 = vld [vmem:[%s1 + $0xc8] sm:$0xff]
  %v255 = vld [vmem:[%s1 + $0xd0] sm:$0xff]
  %v256 = vld [vmem:[%s1 + $0xd8] sm:$0xff]
  %v257 = vld [vmem:[%s1 + $0xe0] sm:$0xff]
  %v258 = vld [vmem:[%s1 + $0xe8] sm:$0xff]
  %v259 = vld [vmem:[%s1 + $0xf0] sm:$0xff]
  %v260 = vld [vmem:[%s1 + $0xf8] sm:$0xff]
  %v261 = vld [vmem:[%s1 + $0x100] sm:$0xff]
  %v262 = vld [vmem:[%s1 + $0x108] sm:$0xff]
  %v263 = vld [vmem:[%s1 + $0x110] sm:$0xff]
  %v264 = vld [vmem:[%s1 + $0x118] sm:$0xff]
  %v265 = vld [vmem:[%s1 + $0x120] sm:$0xff]
  %v266 = vld [vmem:[%s1 + $0x128] sm:$0xff]
  %v267 = vld [vmem:[%s1 + $0x130] sm:$0xff]
  %v268 = vld [vmem:[%s1 + $0x138] sm:$0xff]
  %v269 = vld [vmem:[%s1 + $0x140] sm:$0xff]
  %v270 = vld [vmem:[%s1 + $0x148] sm:$0xff]
  %v271 = vld [vmem:[%s1 + $0x150] sm:$0xff]
  %v272 = vld [vmem:[%s1 + $0x158] sm:$0xff]
  %v273 = vld [vmem:[%s1 + $0x160] sm:$0xff]
  %v274 = vld [vmem:[%s1 + $0x168] sm:$0xff]
  %v275 = vld [vmem:[%s1 + $0x170] sm:$0xff]
  %v276 = vld [vmem:[%s1 + $0x178] sm:$0xff]
  %v277 = vld [vmem:[%s1 + $0x180] sm:$0xff]
  %v278 = vld [vmem:[%s1 + $0x188] sm:$0xff]
  %v279 = vld [vmem:[%s1 + $0x190] sm:$0xff]
  %v280 = vld [vmem:[%s1 + $0x198] sm:$0xff]
  %v281 = vld [vmem:[%s1 + $0x1a0] sm:$0xff]
  %v282 = vld [vmem:[%s1 + $0x1a8] sm:$0xff]
  %v283 = vld [vmem:[%s1 + $0x1b0] sm:$0xff]
  %v284 = vld [vmem:[%s1 + $0x1b8] sm:$0xff]
  %v285 = vld [vmem:[%s1 + $0x1c0] sm:$0xff]
  %v286 = vld [vmem:[%s1 + $0x1c8] sm:$0xff]
  %v287 = vld [vmem:[%s1 + $0x1d0] sm:$0xff]
  %v288 = vld [vmem:[%s1 + $0x1d8] sm:$0xff]
  %v289 = vld [vmem:[%s1 + $0x1e0] sm:$0xff]
  %v290 = vld [vmem:[%s1 + $0x1e8] sm:$0xff]
  %v291 = vld [vmem:[%s1 + $0x1f0] sm:$0xff]
  %v292 = vld [vmem:[%s1 + $0x1f8] sm:$0xff]
  %v293 = vld [vmem:[%s1 + $0x200] sm:$0xff]
  %v294 = vld [vmem:[%s1 + $0x208] sm:$0xff]
  %v295 = vld [vmem:[%s1 + $0x210] sm:$0xff]
  %v296 = vld [vmem:[%s1 + $0x218] sm:$0xff]
  %v297 = vld [vmem:[%s1 + $0x220] sm:$0xff]
  %v298 = vld [vmem:[%s1 + $0x228] sm:$0xff]
  %v299 = vld [vmem:[%s1 + $0x230] sm:$0xff]
  %v300 = vld [vmem:[%s1 + $0x238] sm:$0xff]
  %v301 = vld [vmem:[%s1 + $0x240] sm:$0xff]
  %v302 = vld [vmem:[%s1 + $0x248] sm:$0xff]
  %v303 = vld [vmem:[%s1 + $0x250] sm:$0xff]
  %v304 = vld [vmem:[%s1 + $0x258] sm:$0xff]
  %v305 = vld [vmem:[%s1 + $0x260] sm:$0xff]
  %v306 = vld [vmem:[%s1 + $0x268] sm:$0xff]
  %v307 = vld [vmem:[%s1 + $0x270] sm:$0xff]
  %v308 = vld [vmem:[%s1 + $0x278] sm:$0xff]
  %v309 = vld [vmem:[%s1 + $0x280] sm:$0xff]
  %v310 = vld [vmem:[%s1 + $0x288] sm:$0xff]
  %v311 = vld [vmem:[%s1 + $0x290] sm:$0xff]
  %v312 = vld [vmem:[%s1 + $0x298] sm:$0xff]
  %v313 = vld [vmem:[%s1 + $0x2a0] sm:$0xff]
  %v314 = vld [vmem:[%s1 + $0x2a8] sm:$0xff]
  %v315 = vld [vmem:[%s1 + $0x2b0] sm:$0xff]
  %v316 = vld [vmem:[%s1 + $0x2b8] sm:$0xff]
  %v317 = vld [vmem:[%s1 + $0x2c0] sm:$0xff]
  %v318 = vld [vmem:[%s1 + $0x2c8] sm:$0xff]
  %v319 = vld [vmem:[%s1 + $0x2d0] sm:$0xff]
  %v320 = vld [vmem:[%s1 + $0x2d8] sm:$0xff]
  %v321 = vld [vmem:[%s1 + $0x2e0] sm:$0xff]
  %v322 = vld [vmem:[%s1 + $0x2e8] sm:$0xff]
  %v323 = vld [vmem:[%s1 + $0x2f0] sm:$0xff]
  %v324 = vld [vmem:[%s1 + $0x2f8] sm:$0xff]
  %v325 = vld [vmem:[%s1 + $0x300] sm:$0xff]
  %v326 = vld [vmem:[%s1 + $0x308] sm:$0xff]
  %v327 = vld [vmem:[%s1 + $0x310] sm:$0xff]
  %v328 = vld [vmem:[%s1 + $0x318] sm:$0xff]
  %v329 = vld [vmem:[%s1 + $0x320] sm:$0xff]
  %v330 = vld [vmem:[%s1 + $0x328] sm:$0xff]
  %v331 = vld [vmem:[%s1 + $0x330] sm:$0xff]
  %v332 = vld [vmem:[%s1 + $0x338] sm:$0xff]
  %v333 = vld [vmem:[%s1 + $0x340] sm:$0xff]
  %v334 = vld [vmem:[%s1 + $0x348] sm:$0xff]
  %v335 = vld [vmem:[%s1 + $0x350] sm:$0xff]
  %v336 = vld [vmem:[%s1 + $0x358] sm:$0xff]
  %v337 = vld [vmem:[%s1 + $0x360] sm:$0xff]
  %v338 = vld [vmem:[%s1 + $0x368] sm:$0xff]
  %v339 = vld [vmem:[%s1 + $0x370] sm:$0xff]
  %v340 = vld [vmem:[%s1 + $0x378] sm:$0xff]
  %v341 = vld [vmem:[%s1 + $0x380] sm:$0xff]
  %v342 = vld [vmem:[%s1 + $0x388] sm:$0xff]
  %v343 = vld [vmem:[%s1 + $0x390] sm:$0xff]
  %v344 = vld [vmem:[%s1 + $0x398] sm:$0xff]
  %v345 = vld [vmem:[%s1 + $0x3a0] sm:$0xff]
  %v346 = vld [vmem:[%s1 + $0x3a8] sm:$0xff]
  %v347 = vld [vmem:[%s1 + $0x3b0] sm:$0xff]
  %v348 = vld [vmem:[%s1 + $0x3b8] sm:$0xff]
  %v349 = vld [vmem:[%s1 + $0x3c0] sm:$0xff]
  %v350 = vld [vmem:[%s1 + $0x3c8] sm:$0xff]
  %v351 = vld [vmem:[%s1 + $0x3d0] sm:$0xff]
  %v352 = vld [vmem:[%s1 + $0x3d8] sm:$0xff]
  %v353 = vld [vmem:[%s1 + $0x3e0] sm:$0xff]
  %v354 = vld [vmem:[%s1 + $0x3e8] sm:$0xff]
  %v355 = vld [vmem:[%s1 + $0x3f0] sm:$0xff]
  %v356 = vld [vmem:[%s1 + $0x3f8] sm:$0xff]
  %v357 = vld [vmem:[%s1 + $0x400] sm:$0xff]
  %v358 = vld [vmem:[%s1 + $0x408] sm:$0xff]
  %v359 = vld [vmem:[%s1 + $0x410] sm:$0xff]
  %v360 = vld [vmem:[%s1 + $0x418] sm:$0xff]
  %v361 = vld [vmem:[%s1 + $0x420] sm:$0xff]
  %v362 = vld [vmem:[%s1 + $0x428] sm:$0xff]
  %v363 = vld [vmem:[%s1 + $0x430] sm:$0xff]
  %v364 = vld [vmem:[%s1 + $0x438] sm:$0xff]
  %v365 = vld [vmem:[%s1 + $0x440] sm:$0xff]
  %v366 = vld [vmem:[%s1 + $0x448] sm:$0xff]
  %v367 = vld [vmem:[%s1 + $0x450] sm:$0xff]
  %v368 = vld [vmem:[%s1 + $0x458] sm:$0xff]
  %v369 = vld [vmem:[%s1 + $0x460] sm:$0xff]
  %v370 = vld [vmem:[%s1 + $0x468] sm:$0xff]
  %v371 = vld [vmem:[%s1 + $0x470] sm:$0xff]
  %v372 = vld [vmem:[%s1 + $0x478] sm:$0xff]
  %v373 = vld [vmem:[%s1 + $0x480] sm:$0xff]
  %v374 = vld [vmem:[%s1 + $0x488] sm:$0xff]
  %v375 = vld [vmem:[%s1 + $0x490] sm:$0xff]
  %v376 = vld [vmem:[%s1 + $0x498] sm:$0xff]
  %v377 = vld [vmem:[%s1 + $0x4a0] sm:$0xff]
  %v378 = vld [vmem:[%s1 + $0x4a8] sm:$0xff]
  %v379 = vld [vmem:[%s1 + $0x4b0] sm:$0xff]
  %v380 = vld [vmem:[%s1 + $0x4b8] sm:$0xff]
  %v381 = vld [vmem:[%s1 + $0x4c0] sm:$0xff]
  %v382 = vld [vmem:[%s1 + $0x4c8] sm:$0xff]
  %v383 = vld [vmem:[%s1 + $0x4d0] sm:$0xff]
  %v384 = vld [vmem:[%s1 + $0x4d8] sm:$0xff]
  %v385 = vld [vmem:[%s1 + $0x4e0] sm:$0xff]
  %v386 = vld [vmem:[%s1 + $0x4e8] sm:$0xff]
  %v387 = vld [vmem:[%s1 + $0x4f0] sm:$0xff]
  %v388 = vld [vmem:[%s1 + $0x4f8] sm:$0xff]
  %v389 = vld [vmem:[%s1 + $0x500] sm:$0xff]
  %v390 = vld [vmem:[%s1 + $0x508] sm:$0xff]
  %v391 = vld [vmem:[%s1 + $0x510] sm:$0xff]
  %v392 = vld [vmem:[%s1 + $0x518] sm:$0xff]
  %v393 = vld [vmem:[%s1 + $0x520] sm:$0xff]
  %v394 = vld [vmem:[%s1 + $0x528] sm:$0xff]
  %v395 = vld [vmem:[%s1 + $0x530] sm:$0xff]
  %v396 = vld [vmem:[%s1 + $0x538] sm:$0xff]
  %v397 = vld [vmem:[%s1 + $0x540] sm:$0xff]
  %v398 = vld [vmem:[%s1 + $0x548] sm:$0xff]
  %v399 = vld [vmem:[%s1 + $0x550] sm:$0xff]
  %v400 = vld [vmem:[%s1 + $0x558] sm:$0xff]
  %v401 = vld [vmem:[%s1 + $0x560] sm:$0xff]
  %v402 = vld [vmem:[%s1 + $0x568] sm:$0xff]
  %v403 = vld [vmem:[%s1 + $0x570] sm:$0xff]
  %v404 = vld [vmem:[%s1 + $0x578] sm:$0xff]
  %v405 = vld [vmem:[%s1 + $0x580] sm:$0xff]
  %v406 = vld [vmem:[%s1 + $0x588] sm:$0xff]
  %v407 = vld [vmem:[%s1 + $0x590] sm:$0xff]
  %v408 = vld [vmem:[%s1 + $0x598] sm:$0xff]
  %v409 = vld [vmem:[%s1 + $0x5a0] sm:$0xff]
  %v410 = vld [vmem:[%s1 + $0x5a8] sm:$0xff]
  %v411 = vld [vmem:[%s1 + $0x5b0] sm:$0xff]
  %v412 = vld [vmem:[%s1 + $0x5b8] sm:$0xff]
  %v413 = vld [vmem:[%s1 + $0x5c0] sm:$0xff]
  %v414 = vld [vmem:[%s1 + $0x5c8] sm:$0xff]
  %v415 = vld [vmem:[%s1 + $0x5d0] sm:$0xff]
  %v416 = vld [vmem:[%s1 + $0x5d8] sm:$0xff]
  %v417 = vld [vmem:[%s1 + $0x5e0] sm:$0xff]
  %v418 = vld [vmem:[%s1 + $0x5e8] sm:$0xff]
  %v419 = vld [vmem:[%s1 + $0x5f0] sm:$0xff]
  %v420 = vld [vmem:[%s1 + $0x5f8] sm:$0xff]
  %v421 = vld [vmem:[%s1 + $0x600] sm:$0xff]
  %v422 = vld [vmem:[%s1 + $0x608] sm:$0xff]
  %v423 = vld [vmem:[%s1 + $0x610] sm:$0xff]
  %v424 = vld [vmem:[%s1 + $0x618] sm:$0xff]
  %v425 = vld [vmem:[%s1 + $0x620] sm:$0xff]
  %v426 = vld [vmem:[%s1 + $0x628] sm:$0xff]
  %v427 = vld [vmem:[%s1 + $0x630] sm:$0xff]
  %v428 = vld [vmem:[%s1 + $0x638] sm:$0xff]
  %v429 = vld [vmem:[%s1 + $0x640] sm:$0xff]
  %v430 = vld [vmem:[%s1 + $0x648] sm:$0xff]
  %v431 = vld [vmem:[%s1 + $0x650] sm:$0xff]
  %v432 = vld [vmem:[%s1 + $0x658] sm:$0xff]
  %v433 = vld [vmem:[%s1 + $0x660] sm:$0xff]
  %v434 = vld [vmem:[%s1 + $0x668] sm:$0xff]
  %v435 = vld [vmem:[%s1 + $0x670] sm:$0xff]
  %v436 = vld [vmem:[%s1 + $0x678] sm:$0xff]
  %v437 = vld [vmem:[%s1 + $0x680] sm:$0xff]
  %v438 = vld [vmem:[%s1 + $0x688] sm:$0xff]
  %v439 = vld [vmem:[%s1 + $0x690] sm:$0xff]
  %v440 = vld [vmem:[%s1 + $0x698] sm:$0xff]
  %v441 = vld [vmem:[%s1 + $0x6a0] sm:$0xff]
  %v442 = vld [vmem:[%s1 + $0x6a8] sm:$0xff]
  %v443 = vld [vmem:[%s1 + $0x6b0] sm:$0xff]
  %v444 = vld [vmem:[%s1 + $0x6b8] sm:$0xff]
  %v445 = vld [vmem:[%s1 + $0x6c0] sm:$0xff]
  %v446 = vld [vmem:[%s1 + $0x6c8] sm:$0xff]
  %v447 = vld [vmem:[%s1 + $0x6d0] sm:$0xff]
  %v448 = vld [vmem:[%s1 + $0x6d8] sm:$0xff]
  %v449 = vld [vmem:[%s1 + $0x6e0] sm:$0xff]
  %v450 = vld [vmem:[%s1 + $0x6e8] sm:$0xff]
  %v451 = vld [vmem:[%s1 + $0x6f0] sm:$0xff]
  %v452 = vld [vmem:[%s1 + $0x6f8] sm:$0xff]
  %v453 = vld [vmem:[%s1 + $0x700] sm:$0xff]
  %v454 = vld [vmem:[%s1 + $0x708] sm:$0xff]
  %v455 = vld [vmem:[%s1 + $0x710] sm:$0xff]
  %v456 = vld [vmem:[%s1 + $0x718] sm:$0xff]
  %v457 = vld [vmem:[%s1 + $0x720] sm:$0xff]
  %v458 = vld [vmem:[%s1 + $0x728] sm:$0xff]
  %v459 = vld [vmem:[%s1 + $0x730] sm:$0xff]
  %v460 = vld [vmem:[%s1 + $0x738] sm:$0xff]
  %v461 = vld [vmem:[%s1 + $0x740] sm:$0xff]
  %v462 = vld [vmem:[%s1 + $0x748] sm:$0xff]
  %v463 = vld [vmem:[%s1 + $0x750] sm:$0xff]
  %v464 = vld [vmem:[%s1 + $0x758] sm:$0xff]
  %v465 = vld [vmem:[%s1 + $0x760] sm:$0xff]
  %v466 = vld [vmem:[%s1 + $0x768] sm:$0xff]
  %v467 = vld [vmem:[%s1 + $0x770] sm:$0xff]
  %v468 = vld [vmem:[%s1 + $0x778] sm:$0xff]
  %v469 = vld [vmem:[%s1 + $0x780] sm:$0xff]
  %v470 = vld [vmem:[%s1 + $0x788] sm:$0xff]
  %v471 = vld [vmem:[%s1 + $0x790] sm:$0xff]
  %v472 = vld [vmem:[%s1 + $0x798] sm:$0xff]
  %v473 = vld [vmem:[%s1 + $0x7a0] sm:$0xff]
  %v474 = vld [vmem:[%s1 + $0x7a8] sm:$0xff]
  %v475 = vld [vmem:[%s1 + $0x7b0] sm:$0xff]
  %v476 = vld [vmem:[%s1 + $0x7b8] sm:$0xff]
  %v477 = vld [vmem:[%s1 + $0x7c0] sm:$0xff]
  %v478 = vld [vmem:[%s1 + $0x7c8] sm:$0xff]
  %v479 = vld [vmem:[%s1 + $0x7d0] sm:$0xff]
  %v480 = vld [vmem:[%s1 + $0x7d8] sm:$0xff]
  %v481 = vld [vmem:[%s1 + $0x7e0] sm:$0xff]
  %v482 = vld [vmem:[%s1 + $0x7e8] sm:$0xff]
  %v483 = vld [vmem:[%s1 + $0x7f0] sm:$0xff]
  %v484 = vld [vmem:[%s1 + $0x7f8] sm:$0xff]
  %v485 = vld [vmem:[%s1 + $0x800] sm:$0xff]
  %v486 = vld [vmem:[%s1 + $0x808] sm:$0xff]
  %v487 = vld [vmem:[%s1 + $0x810] sm:$0xff]
  %v488 = vld [vmem:[%s1 + $0x818] sm:$0xff]
  %v489 = vld [vmem:[%s1 + $0x820] sm:$0xff]
  %v490 = vld [vmem:[%s1 + $0x828] sm:$0xff]
  %v491 = vld [vmem:[%s1 + $0x830] sm:$0xff]
  %v492 = vld [vmem:[%s1 + $0x838] sm:$0xff]
  %v493 = vld [vmem:[%s1 + $0x840] sm:$0xff]
  %v494 = vld [vmem:[%s1 + $0x848] sm:$0xff]
  %v495 = vld [vmem:[%s1 + $0x850] sm:$0xff]
  %v496 = vld [vmem:[%s1 + $0x858] sm:$0xff]
  %v497 = vld [vmem:[%s1 + $0x860] sm:$0xff]
  %v498 = vld [vmem:[%s1 + $0x868] sm:$0xff]
  %v499 = vld [vmem:[%s1 + $0x870] sm:$0xff]
  %v500 = vld [vmem:[%s1 + $0x878] sm:$0xff]
  %v501 = vld [vmem:[%s1 + $0x880] sm:$0xff]
  %v502 = vld [vmem:[%s1 + $0x888] sm:$0xff]
  %v503 = vld [vmem:[%s1 + $0x890] sm:$0xff]
  %v504 = vld [vmem:[%s1 + $0x898] sm:$0xff]
  %v505 = vld [vmem:[%s1 + $0x8a0] sm:$0xff]
  %v506 = vld [vmem:[%s1 + $0x8a8] sm:$0xff]
  %v507 = vld [vmem:[%s1 + $0x8b0] sm:$0xff]
  %v508 = vld [vmem:[%s1 + $0x8b8] sm:$0xff]
  %v509 = vld [vmem:[%s1 + $0x8c0] sm:$0xff]
  %v510 = vld [vmem:[%s1 + $0x8c8] sm:$0xff]
  %v511 = vld [vmem:[%s1 + $0x8d0] sm:$0xff]
  %v512 = vld [vmem:[%s1 + $0x8d8] sm:$0xff]
  %v513 = vld [vmem:[%s1 + $0x8e0] sm:$0xff]
  %v514 = vld [vmem:[%s1 + $0x8e8] sm:$0xff]
  %v515 = vld [vmem:[%s1 + $0x8f0] sm:$0xff]
  %v516 = vld [vmem:[%s1 + $0x8f8] sm:$0xff]
  %v661 = vunpack.c.l.b16 %v85
  %v662 = vunpack.c.h.b16 %v85
  %v663 = vunpack.c.l.b16 %v86
  %v664 = vunpack.c.h.b16 %v86
  %v665 = vunpack.c.l.b16 %v87
  %v666 = vunpack.c.h.b16 %v87
  %v667 = vunpack.c.l.b16 %v88
  %v668 = vunpack.c.h.b16 %v88
  %v669 = vunpack.c.l.b16 %v89
  %v670 = vunpack.c.h.b16 %v89
  %v671 = vunpack.c.l.b16 %v90
  %v672 = vunpack.c.h.b16 %v90
  %v673 = vunpack.c.l.b16 %v91
  %v674 = vunpack.c.h.b16 %v91
  %v675 = vunpack.c.l.b16 %v92
  %v676 = vunpack.c.h.b16 %v92
  %v677 = vunpack.c.l.b16 %v93
  %v678 = vunpack.c.h.b16 %v93
  %v679 = vunpack.c.l.b16 %v94
  %v680 = vunpack.c.h.b16 %v94
  %v681 = vunpack.c.l.b16 %v95
  %v682 = vunpack.c.h.b16 %v95
  %v683 = vunpack.c.l.b16 %v96
  %v684 = vunpack.c.h.b16 %v96
  %v685 = vunpack.c.l.b16 %v97
  %v686 = vunpack.c.h.b16 %v97
  %v687 = vunpack.c.l.b16 %v98
  %v688 = vunpack.c.h.b16 %v98
  %v689 = vunpack.c.l.b16 %v99
  %v690 = vunpack.c.h.b16 %v99
  %v691 = vunpack.c.l.b16 %v100
  %v692 = vunpack.c.h.b16 %v100
  %v693 = vunpack.c.l.b16 %v101
  %v694 = vunpack.c.h.b16 %v101
  %v695 = vunpack.c.l.b16 %v102
  %v696 = vunpack.c.h.b16 %v102
  %v697 = vunpack.c.l.b16 %v103
  %v698 = vunpack.c.h.b16 %v103
  %v699 = vunpack.c.l.b16 %v104
  %v700 = vunpack.c.h.b16 %v104
  %v701 = vunpack.c.l.b16 %v105
  %v702 = vunpack.c.h.b16 %v105
  %v703 = vunpack.c.l.b16 %v106
  %v704 = vunpack.c.h.b16 %v106
  %v705 = vunpack.c.l.b16 %v107
  %v706 = vunpack.c.h.b16 %v107
  %v707 = vunpack.c.l.b16 %v108
  %v708 = vunpack.c.h.b16 %v108
  %v709 = vunpack.c.l.b16 %v109
  %v710 = vunpack.c.h.b16 %v109
  %v711 = vunpack.c.l.b16 %v110
  %v712 = vunpack.c.h.b16 %v110
  %v713 = vunpack.c.l.b16 %v111
  %v714 = vunpack.c.h.b16 %v111
  %v715 = vunpack.c.l.b16 %v112
  %v716 = vunpack.c.h.b16 %v112
  %v717 = vunpack.c.l.b16 %v113
  %v718 = vunpack.c.h.b16 %v113
  %v719 = vunpack.c.l.b16 %v114
  %v720 = vunpack.c.h.b16 %v114
  %v721 = vunpack.c.l.b16 %v115
  %v722 = vunpack.c.h.b16 %v115
  %v723 = vunpack.c.l.b16 %v116
  %v724 = vunpack.c.h.b16 %v116
  %v725 = vunpack.c.l.b16 %v117
  %v726 = vunpack.c.h.b16 %v117
  %v727 = vunpack.c.l.b16 %v118
  %v728 = vunpack.c.h.b16 %v118
  %v729 = vunpack.c.l.b16 %v119
  %v730 = vunpack.c.h.b16 %v119
  %v731 = vunpack.c.l.b16 %v120
  %v732 = vunpack.c.h.b16 %v120
  %v733 = vunpack.c.l.b16 %v121
  %v734 = vunpack.c.h.b16 %v121
  %v735 = vunpack.c.l.b16 %v122
  %v736 = vunpack.c.h.b16 %v122
  %v737 = vunpack.c.l.b16 %v123
  %v738 = vunpack.c.h.b16 %v123
  %v739 = vunpack.c.l.b16 %v124
  %v740 = vunpack.c.h.b16 %v124
  %v741 = vunpack.c.l.b16 %v125
  %v742 = vunpack.c.h.b16 %v125
  %v743 = vunpack.c.l.b16 %v126
  %v744 = vunpack.c.h.b16 %v126
  %v745 = vunpack.c.l.b16 %v127
  %v746 = vunpack.c.h.b16 %v127
  %v747 = vunpack.c.l.b16 %v128
  %v748 = vunpack.c.h.b16 %v128
  %v749 = vunpack.c.l.b16 %v129
  %v750 = vunpack.c.h.b16 %v129
  %v751 = vunpack.c.l.b16 %v130
  %v752 = vunpack.c.h.b16 %v130
  %v753 = vunpack.c.l.b16 %v131
  %v754 = vunpack.c.h.b16 %v131
  %v755 = vunpack.c.l.b16 %v132
  %v756 = vunpack.c.h.b16 %v132
  %v757 = vunpack.c.l.b16 %v133
  %v758 = vunpack.c.h.b16 %v133
  %v759 = vunpack.c.l.b16 %v134
  %v760 = vunpack.c.h.b16 %v134
  %v761 = vunpack.c.l.b16 %v135
  %v762 = vunpack.c.h.b16 %v135
  %v763 = vunpack.c.l.b16 %v136
  %v764 = vunpack.c.h.b16 %v136
  %v765 = vunpack.c.l.b16 %v137
  %v766 = vunpack.c.h.b16 %v137
  %v767 = vunpack.c.l.b16 %v138
  %v768 = vunpack.c.h.b16 %v138
  %v769 = vunpack.c.l.b16 %v139
  %v770 = vunpack.c.h.b16 %v139
  %v771 = vunpack.c.l.b16 %v140
  %v772 = vunpack.c.h.b16 %v140
  %v773 = vunpack.c.l.b16 %v141
  %v774 = vunpack.c.h.b16 %v141
  %v775 = vunpack.c.l.b16 %v142
  %v776 = vunpack.c.h.b16 %v142
  %v777 = vunpack.c.l.b16 %v143
  %v778 = vunpack.c.h.b16 %v143
  %v779 = vunpack.c.l.b16 %v144
  %v780 = vunpack.c.h.b16 %v144
  %v781 = vunpack.c.l.b16 %v145
  %v782 = vunpack.c.h.b16 %v145
  %v783 = vunpack.c.l.b16 %v146
  %v784 = vunpack.c.h.b16 %v146
  %v785 = vunpack.c.l.b16 %v147
  %v786 = vunpack.c.h.b16 %v147
  %v787 = vunpack.c.l.b16 %v148
  %v788 = vunpack.c.h.b16 %v148
  %v789 = vunpack.c.l.b16 %v149
  %v790 = vunpack.c.h.b16 %v149
  %v791 = vunpack.c.l.b16 %v150
  %v792 = vunpack.c.h.b16 %v150
  %v793 = vunpack.c.l.b16 %v151
  %v794 = vunpack.c.h.b16 %v151
  %v795 = vunpack.c.l.b16 %v152
  %v796 = vunpack.c.h.b16 %v152
  %v797 = vunpack.c.l.b16 %v153
  %v798 = vunpack.c.h.b16 %v153
  %v799 = vunpack.c.l.b16 %v154
  %v800 = vunpack.c.h.b16 %v154
  %v801 = vunpack.c.l.b16 %v155
  %v802 = vunpack.c.h.b16 %v155
  %v803 = vunpack.c.l.b16 %v156
  %v804 = vunpack.c.h.b16 %v156
  %v805 = vunpack.c.l.b16 %v157
  %v806 = vunpack.c.h.b16 %v157
  %v807 = vunpack.c.l.b16 %v158
  %v808 = vunpack.c.h.b16 %v158
  %v809 = vunpack.c.l.b16 %v159
  %v810 = vunpack.c.h.b16 %v159
  %v811 = vunpack.c.l.b16 %v160
  %v812 = vunpack.c.h.b16 %v160
  %v813 = vunpack.c.l.b16 %v161
  %v814 = vunpack.c.h.b16 %v161
  %v815 = vunpack.c.l.b16 %v162
  %v816 = vunpack.c.h.b16 %v162
  %v817 = vunpack.c.l.b16 %v163
  %v818 = vunpack.c.h.b16 %v163
  %v819 = vunpack.c.l.b16 %v164
  %v820 = vunpack.c.h.b16 %v164
  %v821 = vunpack.c.l.b16 %v165
  %v822 = vunpack.c.h.b16 %v165
  %v823 = vunpack.c.l.b16 %v166
  %v824 = vunpack.c.h.b16 %v166
  %v825 = vunpack.c.l.b16 %v167
  %v826 = vunpack.c.h.b16 %v167
  %v827 = vunpack.c.l.b16 %v168
  %v828 = vunpack.c.h.b16 %v168
  %v829 = vunpack.c.l.b16 %v169
  %v830 = vunpack.c.h.b16 %v169
  %v831 = vunpack.c.l.b16 %v170
  %v832 = vunpack.c.h.b16 %v170
  %v833 = vunpack.c.l.b16 %v171
  %v834 = vunpack.c.h.b16 %v171
  %v835 = vunpack.c.l.b16 %v172
  %v836 = vunpack.c.h.b16 %v172
  %v837 = vunpack.c.l.b16 %v173
  %v838 = vunpack.c.h.b16 %v173
  %v839 = vunpack.c.l.b16 %v174
  %v840 = vunpack.c.h.b16 %v174
  %v841 = vunpack.c.l.b16 %v175
  %v842 = vunpack.c.h.b16 %v175
  %v843 = vunpack.c.l.b16 %v176
  %v844 = vunpack.c.h.b16 %v176
  %v845 = vunpack.c.l.b16 %v177
  %v846 = vunpack.c.h.b16 %v177
  %v847 = vunpack.c.l.b16 %v178
  %v848 = vunpack.c.h.b16 %v178
  %v849 = vunpack.c.l.b16 %v179
  %v850 = vunpack.c.h.b16 %v179
  %v851 = vunpack.c.l.b16 %v180
  %v852 = vunpack.c.h.b16 %v180
  %v853 = vunpack.c.l.b16 %v181
  %v854 = vunpack.c.h.b16 %v181
  %v855 = vunpack.c.l.b16 %v182
  %v856 = vunpack.c.h.b16 %v182
  %v857 = vunpack.c.l.b16 %v183
  %v858 = vunpack.c.h.b16 %v183
  %v859 = vunpack.c.l.b16 %v184
  %v860 = vunpack.c.h.b16 %v184
  %v861 = vunpack.c.l.b16 %v185
  %v862 = vunpack.c.h.b16 %v185
  %v863 = vunpack.c.l.b16 %v186
  %v864 = vunpack.c.h.b16 %v186
  %v865 = vunpack.c.l.b16 %v187
  %v866 = vunpack.c.h.b16 %v187
  %v867 = vunpack.c.l.b16 %v188
  %v868 = vunpack.c.h.b16 %v188
  %v869 = vunpack.c.l.b16 %v189
  %v870 = vunpack.c.h.b16 %v189
  %v871 = vunpack.c.l.b16 %v190
  %v872 = vunpack.c.h.b16 %v190
  %v873 = vunpack.c.l.b16 %v191
  %v874 = vunpack.c.h.b16 %v191
  %v875 = vunpack.c.l.b16 %v192
  %v876 = vunpack.c.h.b16 %v192
  %v877 = vunpack.c.l.b16 %v193
  %v878 = vunpack.c.h.b16 %v193
  %v879 = vunpack.c.l.b16 %v194
  %v880 = vunpack.c.h.b16 %v194
  %v881 = vunpack.c.l.b16 %v195
  %v882 = vunpack.c.h.b16 %v195
  %v883 = vunpack.c.l.b16 %v196
  %v884 = vunpack.c.h.b16 %v196
  %v885 = vunpack.c.l.b16 %v197
  %v886 = vunpack.c.h.b16 %v197
  %v887 = vunpack.c.l.b16 %v198
  %v888 = vunpack.c.h.b16 %v198
  %v889 = vunpack.c.l.b16 %v199
  %v890 = vunpack.c.h.b16 %v199
  %v891 = vunpack.c.l.b16 %v200
  %v892 = vunpack.c.h.b16 %v200
  %v893 = vunpack.c.l.b16 %v201
  %v894 = vunpack.c.h.b16 %v201
  %v895 = vunpack.c.l.b16 %v202
  %v896 = vunpack.c.h.b16 %v202
  %v897 = vunpack.c.l.b16 %v203
  %v898 = vunpack.c.h.b16 %v203
  %v899 = vunpack.c.l.b16 %v204
  %v900 = vunpack.c.h.b16 %v204
  %v901 = vunpack.c.l.b16 %v205
  %v902 = vunpack.c.h.b16 %v205
  %v903 = vunpack.c.l.b16 %v206
  %v904 = vunpack.c.h.b16 %v206
  %v905 = vunpack.c.l.b16 %v207
  %v906 = vunpack.c.h.b16 %v207
  %v907 = vunpack.c.l.b16 %v208
  %v908 = vunpack.c.h.b16 %v208
  %v909 = vunpack.c.l.b16 %v209
  %v910 = vunpack.c.h.b16 %v209
  %v911 = vunpack.c.l.b16 %v210
  %v912 = vunpack.c.h.b16 %v210
  %v913 = vunpack.c.l.b16 %v211
  %v914 = vunpack.c.h.b16 %v211
  %v915 = vunpack.c.l.b16 %v212
  %v916 = vunpack.c.h.b16 %v212
  %v917 = vunpack.c.l.b16 %v213
  %v918 = vunpack.c.h.b16 %v213
  %v919 = vunpack.c.l.b16 %v214
  %v920 = vunpack.c.h.b16 %v214
  %v921 = vunpack.c.l.b16 %v215
  %v922 = vunpack.c.h.b16 %v215
  %v923 = vunpack.c.l.b16 %v216
  %v924 = vunpack.c.h.b16 %v216
  %v925 = vunpack.c.l.b16 %v217
  %v926 = vunpack.c.h.b16 %v217
  %v927 = vunpack.c.l.b16 %v218
  %v928 = vunpack.c.h.b16 %v218
  %v929 = vunpack.c.l.b16 %v219
  %v930 = vunpack.c.h.b16 %v219
  %v931 = vunpack.c.l.b16 %v220
  %v932 = vunpack.c.h.b16 %v220
  %v933 = vunpack.c.l.b16 %v221
  %v934 = vunpack.c.h.b16 %v221
  %v935 = vunpack.c.l.b16 %v222
  %v936 = vunpack.c.h.b16 %v222
  %v937 = vunpack.c.l.b16 %v223
  %v938 = vunpack.c.h.b16 %v223
  %v939 = vunpack.c.l.b16 %v224
  %v940 = vunpack.c.h.b16 %v224
  %v941 = vunpack.c.l.b16 %v225
  %v942 = vunpack.c.h.b16 %v225
  %v943 = vunpack.c.l.b16 %v226
  %v944 = vunpack.c.h.b16 %v226
  %v945 = vunpack.c.l.b16 %v227
  %v946 = vunpack.c.h.b16 %v227
  %v947 = vunpack.c.l.b16 %v228
  %v948 = vunpack.c.h.b16 %v228
  %v949 = vpack.c.b16 %v679, %v661
  %v950 = vpack.c.b16 %v680, %v662
  %v951 = vpack.c.b16 %v681, %v663
  %v952 = vpack.c.b16 %v682, %v664
  %v953 = vpack.c.b16 %v683, %v665
  %v954 = vpack.c.b16 %v684, %v666
  %v955 = vpack.c.b16 %v685, %v667
  %v956 = vpack.c.b16 %v686, %v668
  %v957 = vpack.c.b16 %v687, %v669
  %v958 = vpack.c.b16 %v688, %v670
  %v959 = vpack.c.b16 %v689, %v671
  %v960 = vpack.c.b16 %v690, %v672
  %v961 = vpack.c.b16 %v691, %v673
  %v962 = vpack.c.b16 %v692, %v674
  %v963 = vpack.c.b16 %v693, %v675
  %v964 = vpack.c.b16 %v694, %v676
  %v965 = vpack.c.b16 %v695, %v677
  %v966 = vpack.c.b16 %v696, %v678
  %v967 = vpack.c.b16 %v715, %v697
  %v968 = vpack.c.b16 %v716, %v698
  %v969 = vpack.c.b16 %v717, %v699
  %v970 = vpack.c.b16 %v718, %v700
  %v971 = vpack.c.b16 %v719, %v701
  %v972 = vpack.c.b16 %v720, %v702
  %v973 = vpack.c.b16 %v721, %v703
  %v974 = vpack.c.b16 %v722, %v704
  %v975 = vpack.c.b16 %v723, %v705
  %v976 = vpack.c.b16 %v724, %v706
  %v977 = vpack.c.b16 %v725, %v707
  %v978 = vpack.c.b16 %v726, %v708
  %v979 = vpack.c.b16 %v727, %v709
  %v980 = vpack.c.b16 %v728, %v710
  %v981 = vpack.c.b16 %v729, %v711
  %v982 = vpack.c.b16 %v730, %v712
  %v983 = vpack.c.b16 %v731, %v713
  %v984 = vpack.c.b16 %v732, %v714
  %v985 = vpack.c.b16 %v751, %v733
  %v986 = vpack.c.b16 %v752, %v734
  %v987 = vpack.c.b16 %v753, %v735
  %v988 = vpack.c.b16 %v754, %v736
  %v989 = vpack.c.b16 %v755, %v737
  %v990 = vpack.c.b16 %v756, %v738
  %v991 = vpack.c.b16 %v757, %v739
  %v992 = vpack.c.b16 %v758, %v740
  %v993 = vpack.c.b16 %v759, %v741
  %v994 = vpack.c.b16 %v760, %v742
  %v995 = vpack.c.b16 %v761, %v743
  %v996 = vpack.c.b16 %v762, %v744
  %v997 = vpack.c.b16 %v763, %v745
  %v998 = vpack.c.b16 %v764, %v746
  %v999 = vpack.c.b16 %v765, %v747
  %v1000 = vpack.c.b16 %v766, %v748
  %v1001 = vpack.c.b16 %v767, %v749
  %v1002 = vpack.c.b16 %v768, %v750
  %v1003 = vpack.c.b16 %v787, %v769
  %v1004 = vpack.c.b16 %v788, %v770
  %v1005 = vpack.c.b16 %v789, %v771
  %v1006 = vpack.c.b16 %v790, %v772
  %v1007 = vpack.c.b16 %v791, %v773
  %v1008 = vpack.c.b16 %v792, %v774
  %v1009 = vpack.c.b16 %v793, %v775
  %v1010 = vpack.c.b16 %v794, %v776
  %v1011 = vpack.c.b16 %v795, %v777
  %v1012 = vpack.c.b16 %v796, %v778
  %v1013 = vpack.c.b16 %v797, %v779
  %v1014 = vpack.c.b16 %v798, %v780
  %v1015 = vpack.c.b16 %v799, %v781
  %v1016 = vpack.c.b16 %v800, %v782
  %v1017 = vpack.c.b16 %v801, %v783
  %v1018 = vpack.c.b16 %v802, %v784
  %v1019 = vpack.c.b16 %v803, %v785
  %v1020 = vpack.c.b16 %v804, %v786
  %v1021 = vpack.c.b16 %v823, %v805
  %v1022 = vpack.c.b16 %v824, %v806
  %v1023 = vpack.c.b16 %v825, %v807
  %v1024 = vpack.c.b16 %v826, %v808
  %v1025 = vpack.c.b16 %v827, %v809
  %v1026 = vpack.c.b16 %v828, %v810
  %v1027 = vpack.c.b16 %v829, %v811
  %v1028 = vpack.c.b16 %v830, %v812
  %v1029 = vpack.c.b16 %v831, %v813
  %v1030 = vpack.c.b16 %v832, %v814
  %v1031 = vpack.c.b16 %v833, %v815
  %v1032 = vpack.c.b16 %v834, %v816
  %v1033 = vpack.c.b16 %v835, %v817
  %v1034 = vpack.c.b16 %v836, %v818
  %v1035 = vpack.c.b16 %v837, %v819
  %v1036 = vpack.c.b16 %v838, %v820
  %v1037 = vpack.c.b16 %v839, %v821
  %v1038 = vpack.c.b16 %v840, %v822
  %v1039 = vpack.c.b16 %v859, %v841
  %v1040 = vpack.c.b16 %v860, %v842
  %v1041 = vpack.c.b16 %v861, %v843
  %v1042 = vpack.c.b16 %v862, %v844
  %v1043 = vpack.c.b16 %v863, %v845
  %v1044 = vpack.c.b16 %v864, %v846
  %v1045 = vpack.c.b16 %v865, %v847
  %v1046 = vpack.c.b16 %v866, %v848
  %v1047 = vpack.c.b16 %v867, %v849
  %v1048 = vpack.c.b16 %v868, %v850
  %v1049 = vpack.c.b16 %v869, %v851
  %v1050 = vpack.c.b16 %v870, %v852
  %v1051 = vpack.c.b16 %v871, %v853
  %v1052 = vpack.c.b16 %v872, %v854
  %v1053 = vpack.c.b16 %v873, %v855
  %v1054 = vpack.c.b16 %v874, %v856
  %v1055 = vpack.c.b16 %v875, %v857
  %v1056 = vpack.c.b16 %v876, %v858
  %v1057 = vpack.c.b16 %v895, %v877
  %v1058 = vpack.c.b16 %v896, %v878
  %v1059 = vpack.c.b16 %v897, %v879
  %v1060 = vpack.c.b16 %v898, %v880
  %v1061 = vpack.c.b16 %v899, %v881
  %v1062 = vpack.c.b16 %v900, %v882
  %v1063 = vpack.c.b16 %v901, %v883
  %v1064 = vpack.c.b16 %v902, %v884
  %v1065 = vpack.c.b16 %v903, %v885
  %v1066 = vpack.c.b16 %v904, %v886
  %v1067 = vpack.c.b16 %v905, %v887
  %v1068 = vpack.c.b16 %v906, %v888
  %v1069 = vpack.c.b16 %v907, %v889
  %v1070 = vpack.c.b16 %v908, %v890
  %v1071 = vpack.c.b16 %v909, %v891
  %v1072 = vpack.c.b16 %v910, %v892
  %v1073 = vpack.c.b16 %v911, %v893
  %v1074 = vpack.c.b16 %v912, %v894
  %v1075 = vpack.c.b16 %v931, %v913
  %v1076 = vpack.c.b16 %v932, %v914
  %v1077 = vpack.c.b16 %v933, %v915
  %v1078 = vpack.c.b16 %v934, %v916
  %v1079 = vpack.c.b16 %v935, %v917
  %v1080 = vpack.c.b16 %v936, %v918
  %v1081 = vpack.c.b16 %v937, %v919
  %v1082 = vpack.c.b16 %v938, %v920
  %v1083 = vpack.c.b16 %v939, %v921
  %v1084 = vpack.c.b16 %v940, %v922
  %v1085 = vpack.c.b16 %v941, %v923
  %v1086 = vpack.c.b16 %v942, %v924
  %v1087 = vpack.c.b16 %v943, %v925
  %v1088 = vpack.c.b16 %v944, %v926
  %v1089 = vpack.c.b16 %v945, %v927
  %v1090 = vpack.c.b16 %v946, %v928
  %v1091 = vpack.c.b16 %v947, %v929
  %v1092 = vpack.c.b16 %v948, %v930
  %v1525 = vunpack.c.l.b16 %v229
  %v1526 = vunpack.c.h.b16 %v229
  %v1527 = vunpack.c.l.b16 %v230
  %v1528 = vunpack.c.h.b16 %v230
  %v1529 = vunpack.c.l.b16 %v231
  %v1530 = vunpack.c.h.b16 %v231
  %v1531 = vunpack.c.l.b16 %v232
  %v1532 = vunpack.c.h.b16 %v232
  %v1533 = vunpack.c.l.b16 %v233
  %v1534 = vunpack.c.h.b16 %v233
  %v1535 = vunpack.c.l.b16 %v234
  %v1536 = vunpack.c.h.b16 %v234
  %v1537 = vunpack.c.l.b16 %v235
  %v1538 = vunpack.c.h.b16 %v235
  %v1539 = vunpack.c.l.b16 %v236
  %v1540 = vunpack.c.h.b16 %v236
  %v1541 = vunpack.c.l.b16 %v237
  %v1542 = vunpack.c.h.b16 %v237
  %v1543 = vunpack.c.l.b16 %v238
  %v1544 = vunpack.c.h.b16 %v238
  %v1545 = vunpack.c.l.b16 %v239
  %v1546 = vunpack.c.h.b16 %v239
  %v1547 = vunpack.c.l.b16 %v240
  %v1548 = vunpack.c.h.b16 %v240
  %v1549 = vunpack.c.l.b16 %v241
  %v1550 = vunpack.c.h.b16 %v241
  %v1551 = vunpack.c.l.b16 %v242
  %v1552 = vunpack.c.h.b16 %v242
  %v1553 = vunpack.c.l.b16 %v243
  %v1554 = vunpack.c.h.b16 %v243
  %v1555 = vunpack.c.l.b16 %v244
  %v1556 = vunpack.c.h.b16 %v244
  %v1557 = vunpack.c.l.b16 %v245
  %v1558 = vunpack.c.h.b16 %v245
  %v1559 = vunpack.c.l.b16 %v246
  %v1560 = vunpack.c.h.b16 %v246
  %v1561 = vunpack.c.l.b16 %v247
  %v1562 = vunpack.c.h.b16 %v247
  %v1563 = vunpack.c.l.b16 %v248
  %v1564 = vunpack.c.h.b16 %v248
  %v1565 = vunpack.c.l.b16 %v249
  %v1566 = vunpack.c.h.b16 %v249
  %v1567 = vunpack.c.l.b16 %v250
  %v1568 = vunpack.c.h.b16 %v250
  %v1569 = vunpack.c.l.b16 %v251
  %v1570 = vunpack.c.h.b16 %v251
  %v1571 = vunpack.c.l.b16 %v252
  %v1572 = vunpack.c.h.b16 %v252
  %v1573 = vunpack.c.l.b16 %v253
  %v1574 = vunpack.c.h.b16 %v253
  %v1575 = vunpack.c.l.b16 %v254
  %v1576 = vunpack.c.h.b16 %v254
  %v1577 = vunpack.c.l.b16 %v255
  %v1578 = vunpack.c.h.b16 %v255
  %v1579 = vunpack.c.l.b16 %v256
  %v1580 = vunpack.c.h.b16 %v256
  %v1581 = vunpack.c.l.b16 %v257
  %v1582 = vunpack.c.h.b16 %v257
  %v1583 = vunpack.c.l.b16 %v258
  %v1584 = vunpack.c.h.b16 %v258
  %v1585 = vunpack.c.l.b16 %v259
  %v1586 = vunpack.c.h.b16 %v259
  %v1587 = vunpack.c.l.b16 %v260
  %v1588 = vunpack.c.h.b16 %v260
  %v1589 = vunpack.c.l.b16 %v261
  %v1590 = vunpack.c.h.b16 %v261
  %v1591 = vunpack.c.l.b16 %v262
  %v1592 = vunpack.c.h.b16 %v262
  %v1593 = vunpack.c.l.b16 %v263
  %v1594 = vunpack.c.h.b16 %v263
  %v1595 = vunpack.c.l.b16 %v264
  %v1596 = vunpack.c.h.b16 %v264
  %v1597 = vunpack.c.l.b16 %v265
  %v1598 = vunpack.c.h.b16 %v265
  %v1599 = vunpack.c.l.b16 %v266
  %v1600 = vunpack.c.h.b16 %v266
  %v1601 = vunpack.c.l.b16 %v267
  %v1602 = vunpack.c.h.b16 %v267
  %v1603 = vunpack.c.l.b16 %v268
  %v1604 = vunpack.c.h.b16 %v268
  %v1605 = vunpack.c.l.b16 %v269
  %v1606 = vunpack.c.h.b16 %v269
  %v1607 = vunpack.c.l.b16 %v270
  %v1608 = vunpack.c.h.b16 %v270
  %v1609 = vunpack.c.l.b16 %v271
  %v1610 = vunpack.c.h.b16 %v271
  %v1611 = vunpack.c.l.b16 %v272
  %v1612 = vunpack.c.h.b16 %v272
  %v1613 = vunpack.c.l.b16 %v273
  %v1614 = vunpack.c.h.b16 %v273
  %v1615 = vunpack.c.l.b16 %v274
  %v1616 = vunpack.c.h.b16 %v274
  %v1617 = vunpack.c.l.b16 %v275
  %v1618 = vunpack.c.h.b16 %v275
  %v1619 = vunpack.c.l.b16 %v276
  %v1620 = vunpack.c.h.b16 %v276
  %v1621 = vunpack.c.l.b16 %v277
  %v1622 = vunpack.c.h.b16 %v277
  %v1623 = vunpack.c.l.b16 %v278
  %v1624 = vunpack.c.h.b16 %v278
  %v1625 = vunpack.c.l.b16 %v279
  %v1626 = vunpack.c.h.b16 %v279
  %v1627 = vunpack.c.l.b16 %v280
  %v1628 = vunpack.c.h.b16 %v280
  %v1629 = vunpack.c.l.b16 %v281
  %v1630 = vunpack.c.h.b16 %v281
  %v1631 = vunpack.c.l.b16 %v282
  %v1632 = vunpack.c.h.b16 %v282
  %v1633 = vunpack.c.l.b16 %v283
  %v1634 = vunpack.c.h.b16 %v283
  %v1635 = vunpack.c.l.b16 %v284
  %v1636 = vunpack.c.h.b16 %v284
  %v1637 = vunpack.c.l.b16 %v285
  %v1638 = vunpack.c.h.b16 %v285
  %v1639 = vunpack.c.l.b16 %v286
  %v1640 = vunpack.c.h.b16 %v286
  %v1641 = vunpack.c.l.b16 %v287
  %v1642 = vunpack.c.h.b16 %v287
  %v1643 = vunpack.c.l.b16 %v288
  %v1644 = vunpack.c.h.b16 %v288
  %v1645 = vunpack.c.l.b16 %v289
  %v1646 = vunpack.c.h.b16 %v289
  %v1647 = vunpack.c.l.b16 %v290
  %v1648 = vunpack.c.h.b16 %v290
  %v1649 = vunpack.c.l.b16 %v291
  %v1650 = vunpack.c.h.b16 %v291
  %v1651 = vunpack.c.l.b16 %v292
  %v1652 = vunpack.c.h.b16 %v292
  %v1653 = vunpack.c.l.b16 %v293
  %v1654 = vunpack.c.h.b16 %v293
  %v1655 = vunpack.c.l.b16 %v294
  %v1656 = vunpack.c.h.b16 %v294
  %v1657 = vunpack.c.l.b16 %v295
  %v1658 = vunpack.c.h.b16 %v295
  %v1659 = vunpack.c.l.b16 %v296
  %v1660 = vunpack.c.h.b16 %v296
  %v1661 = vunpack.c.l.b16 %v297
  %v1662 = vunpack.c.h.b16 %v297
  %v1663 = vunpack.c.l.b16 %v298
  %v1664 = vunpack.c.h.b16 %v298
  %v1665 = vunpack.c.l.b16 %v299
  %v1666 = vunpack.c.h.b16 %v299
  %v1667 = vunpack.c.l.b16 %v300
  %v1668 = vunpack.c.h.b16 %v300
  %v1669 = vunpack.c.l.b16 %v301
  %v1670 = vunpack.c.h.b16 %v301
  %v1671 = vunpack.c.l.b16 %v302
  %v1672 = vunpack.c.h.b16 %v302
  %v1673 = vunpack.c.l.b16 %v303
  %v1674 = vunpack.c.h.b16 %v303
  %v1675 = vunpack.c.l.b16 %v304
  %v1676 = vunpack.c.h.b16 %v304
  %v1677 = vunpack.c.l.b16 %v305
  %v1678 = vunpack.c.h.b16 %v305
  %v1679 = vunpack.c.l.b16 %v306
  %v1680 = vunpack.c.h.b16 %v306
  %v1681 = vunpack.c.l.b16 %v307
  %v1682 = vunpack.c.h.b16 %v307
  %v1683 = vunpack.c.l.b16 %v308
  %v1684 = vunpack.c.h.b16 %v308
  %v1685 = vunpack.c.l.b16 %v309
  %v1686 = vunpack.c.h.b16 %v309
  %v1687 = vunpack.c.l.b16 %v310
  %v1688 = vunpack.c.h.b16 %v310
  %v1689 = vunpack.c.l.b16 %v311
  %v1690 = vunpack.c.h.b16 %v311
  %v1691 = vunpack.c.l.b16 %v312
  %v1692 = vunpack.c.h.b16 %v312
  %v1693 = vunpack.c.l.b16 %v313
  %v1694 = vunpack.c.h.b16 %v313
  %v1695 = vunpack.c.l.b16 %v314
  %v1696 = vunpack.c.h.b16 %v314
  %v1697 = vunpack.c.l.b16 %v315
  %v1698 = vunpack.c.h.b16 %v315
  %v1699 = vunpack.c.l.b16 %v316
  %v1700 = vunpack.c.h.b16 %v316
  %v1701 = vunpack.c.l.b16 %v317
  %v1702 = vunpack.c.h.b16 %v317
  %v1703 = vunpack.c.l.b16 %v318
  %v1704 = vunpack.c.h.b16 %v318
  %v1705 = vunpack.c.l.b16 %v319
  %v1706 = vunpack.c.h.b16 %v319
  %v1707 = vunpack.c.l.b16 %v320
  %v1708 = vunpack.c.h.b16 %v320
  %v1709 = vunpack.c.l.b16 %v321
  %v1710 = vunpack.c.h.b16 %v321
  %v1711 = vunpack.c.l.b16 %v322
  %v1712 = vunpack.c.h.b16 %v322
  %v1713 = vunpack.c.l.b16 %v323
  %v1714 = vunpack.c.h.b16 %v323
  %v1715 = vunpack.c.l.b16 %v324
  %v1716 = vunpack.c.h.b16 %v324
  %v1717 = vunpack.c.l.b16 %v325
  %v1718 = vunpack.c.h.b16 %v325
  %v1719 = vunpack.c.l.b16 %v326
  %v1720 = vunpack.c.h.b16 %v326
  %v1721 = vunpack.c.l.b16 %v327
  %v1722 = vunpack.c.h.b16 %v327
  %v1723 = vunpack.c.l.b16 %v328
  %v1724 = vunpack.c.h.b16 %v328
  %v1725 = vunpack.c.l.b16 %v329
  %v1726 = vunpack.c.h.b16 %v329
  %v1727 = vunpack.c.l.b16 %v330
  %v1728 = vunpack.c.h.b16 %v330
  %v1729 = vunpack.c.l.b16 %v331
  %v1730 = vunpack.c.h.b16 %v331
  %v1731 = vunpack.c.l.b16 %v332
  %v1732 = vunpack.c.h.b16 %v332
  %v1733 = vunpack.c.l.b16 %v333
  %v1734 = vunpack.c.h.b16 %v333
  %v1735 = vunpack.c.l.b16 %v334
  %v1736 = vunpack.c.h.b16 %v334
  %v1737 = vunpack.c.l.b16 %v335
  %v1738 = vunpack.c.h.b16 %v335
  %v1739 = vunpack.c.l.b16 %v336
  %v1740 = vunpack.c.h.b16 %v336
  %v1741 = vunpack.c.l.b16 %v337
  %v1742 = vunpack.c.h.b16 %v337
  %v1743 = vunpack.c.l.b16 %v338
  %v1744 = vunpack.c.h.b16 %v338
  %v1745 = vunpack.c.l.b16 %v339
  %v1746 = vunpack.c.h.b16 %v339
  %v1747 = vunpack.c.l.b16 %v340
  %v1748 = vunpack.c.h.b16 %v340
  %v1749 = vunpack.c.l.b16 %v341
  %v1750 = vunpack.c.h.b16 %v341
  %v1751 = vunpack.c.l.b16 %v342
  %v1752 = vunpack.c.h.b16 %v342
  %v1753 = vunpack.c.l.b16 %v343
  %v1754 = vunpack.c.h.b16 %v343
  %v1755 = vunpack.c.l.b16 %v344
  %v1756 = vunpack.c.h.b16 %v344
  %v1757 = vunpack.c.l.b16 %v345
  %v1758 = vunpack.c.h.b16 %v345
  %v1759 = vunpack.c.l.b16 %v346
  %v1760 = vunpack.c.h.b16 %v346
  %v1761 = vunpack.c.l.b16 %v347
  %v1762 = vunpack.c.h.b16 %v347
  %v1763 = vunpack.c.l.b16 %v348
  %v1764 = vunpack.c.h.b16 %v348
  %v1765 = vunpack.c.l.b16 %v349
  %v1766 = vunpack.c.h.b16 %v349
  %v1767 = vunpack.c.l.b16 %v350
  %v1768 = vunpack.c.h.b16 %v350
  %v1769 = vunpack.c.l.b16 %v351
  %v1770 = vunpack.c.h.b16 %v351
  %v1771 = vunpack.c.l.b16 %v352
  %v1772 = vunpack.c.h.b16 %v352
  %v1773 = vunpack.c.l.b16 %v353
  %v1774 = vunpack.c.h.b16 %v353
  %v1775 = vunpack.c.l.b16 %v354
  %v1776 = vunpack.c.h.b16 %v354
  %v1777 = vunpack.c.l.b16 %v355
  %v1778 = vunpack.c.h.b16 %v355
  %v1779 = vunpack.c.l.b16 %v356
  %v1780 = vunpack.c.h.b16 %v356
  %v1781 = vunpack.c.l.b16 %v357
  %v1782 = vunpack.c.h.b16 %v357
  %v1783 = vunpack.c.l.b16 %v358
  %v1784 = vunpack.c.h.b16 %v358
  %v1785 = vunpack.c.l.b16 %v359
  %v1786 = vunpack.c.h.b16 %v359
  %v1787 = vunpack.c.l.b16 %v360
  %v1788 = vunpack.c.h.b16 %v360
  %v1789 = vunpack.c.l.b16 %v361
  %v1790 = vunpack.c.h.b16 %v361
  %v1791 = vunpack.c.l.b16 %v362
  %v1792 = vunpack.c.h.b16 %v362
  %v1793 = vunpack.c.l.b16 %v363
  %v1794 = vunpack.c.h.b16 %v363
  %v1795 = vunpack.c.l.b16 %v364
  %v1796 = vunpack.c.h.b16 %v364
  %v1797 = vunpack.c.l.b16 %v365
  %v1798 = vunpack.c.h.b16 %v365
  %v1799 = vunpack.c.l.b16 %v366
  %v1800 = vunpack.c.h.b16 %v366
  %v1801 = vunpack.c.l.b16 %v367
  %v1802 = vunpack.c.h.b16 %v367
  %v1803 = vunpack.c.l.b16 %v368
  %v1804 = vunpack.c.h.b16 %v368
  %v1805 = vunpack.c.l.b16 %v369
  %v1806 = vunpack.c.h.b16 %v369
  %v1807 = vunpack.c.l.b16 %v370
  %v1808 = vunpack.c.h.b16 %v370
  %v1809 = vunpack.c.l.b16 %v371
  %v1810 = vunpack.c.h.b16 %v371
  %v1811 = vunpack.c.l.b16 %v372
  %v1812 = vunpack.c.h.b16 %v372
  %v1813 = vunpack.c.l.b16 %v373
  %v1814 = vunpack.c.h.b16 %v373
  %v1815 = vunpack.c.l.b16 %v374
  %v1816 = vunpack.c.h.b16 %v374
  %v1817 = vunpack.c.l.b16 %v375
  %v1818 = vunpack.c.h.b16 %v375
  %v1819 = vunpack.c.l.b16 %v376
  %v1820 = vunpack.c.h.b16 %v376
  %v1821 = vunpack.c.l.b16 %v377
  %v1822 = vunpack.c.h.b16 %v377
  %v1823 = vunpack.c.l.b16 %v378
  %v1824 = vunpack.c.h.b16 %v378
  %v1825 = vunpack.c.l.b16 %v379
  %v1826 = vunpack.c.h.b16 %v379
  %v1827 = vunpack.c.l.b16 %v380
  %v1828 = vunpack.c.h.b16 %v380
  %v1829 = vunpack.c.l.b16 %v381
  %v1830 = vunpack.c.h.b16 %v381
  %v1831 = vunpack.c.l.b16 %v382
  %v1832 = vunpack.c.h.b16 %v382
  %v1833 = vunpack.c.l.b16 %v383
  %v1834 = vunpack.c.h.b16 %v383
  %v1835 = vunpack.c.l.b16 %v384
  %v1836 = vunpack.c.h.b16 %v384
  %v1837 = vunpack.c.l.b16 %v385
  %v1838 = vunpack.c.h.b16 %v385
  %v1839 = vunpack.c.l.b16 %v386
  %v1840 = vunpack.c.h.b16 %v386
  %v1841 = vunpack.c.l.b16 %v387
  %v1842 = vunpack.c.h.b16 %v387
  %v1843 = vunpack.c.l.b16 %v388
  %v1844 = vunpack.c.h.b16 %v388
  %v1845 = vunpack.c.l.b16 %v389
  %v1846 = vunpack.c.h.b16 %v389
  %v1847 = vunpack.c.l.b16 %v390
  %v1848 = vunpack.c.h.b16 %v390
  %v1849 = vunpack.c.l.b16 %v391
  %v1850 = vunpack.c.h.b16 %v391
  %v1851 = vunpack.c.l.b16 %v392
  %v1852 = vunpack.c.h.b16 %v392
  %v1853 = vunpack.c.l.b16 %v393
  %v1854 = vunpack.c.h.b16 %v393
  %v1855 = vunpack.c.l.b16 %v394
  %v1856 = vunpack.c.h.b16 %v394
  %v1857 = vunpack.c.l.b16 %v395
  %v1858 = vunpack.c.h.b16 %v395
  %v1859 = vunpack.c.l.b16 %v396
  %v1860 = vunpack.c.h.b16 %v396
  %v1861 = vunpack.c.l.b16 %v397
  %v1862 = vunpack.c.h.b16 %v397
  %v1863 = vunpack.c.l.b16 %v398
  %v1864 = vunpack.c.h.b16 %v398
  %v1865 = vunpack.c.l.b16 %v399
  %v1866 = vunpack.c.h.b16 %v399
  %v1867 = vunpack.c.l.b16 %v400
  %v1868 = vunpack.c.h.b16 %v400
  %v1869 = vunpack.c.l.b16 %v401
  %v1870 = vunpack.c.h.b16 %v401
  %v1871 = vunpack.c.l.b16 %v402
  %v1872 = vunpack.c.h.b16 %v402
  %v1873 = vunpack.c.l.b16 %v403
  %v1874 = vunpack.c.h.b16 %v403
  %v1875 = vunpack.c.l.b16 %v404
  %v1876 = vunpack.c.h.b16 %v404
  %v1877 = vunpack.c.l.b16 %v405
  %v1878 = vunpack.c.h.b16 %v405
  %v1879 = vunpack.c.l.b16 %v406
  %v1880 = vunpack.c.h.b16 %v406
  %v1881 = vunpack.c.l.b16 %v407
  %v1882 = vunpack.c.h.b16 %v407
  %v1883 = vunpack.c.l.b16 %v408
  %v1884 = vunpack.c.h.b16 %v408
  %v1885 = vunpack.c.l.b16 %v409
  %v1886 = vunpack.c.h.b16 %v409
  %v1887 = vunpack.c.l.b16 %v410
  %v1888 = vunpack.c.h.b16 %v410
  %v1889 = vunpack.c.l.b16 %v411
  %v1890 = vunpack.c.h.b16 %v411
  %v1891 = vunpack.c.l.b16 %v412
  %v1892 = vunpack.c.h.b16 %v412
  %v1893 = vunpack.c.l.b16 %v413
  %v1894 = vunpack.c.h.b16 %v413
  %v1895 = vunpack.c.l.b16 %v414
  %v1896 = vunpack.c.h.b16 %v414
  %v1897 = vunpack.c.l.b16 %v415
  %v1898 = vunpack.c.h.b16 %v415
  %v1899 = vunpack.c.l.b16 %v416
  %v1900 = vunpack.c.h.b16 %v416
  %v1901 = vunpack.c.l.b16 %v417
  %v1902 = vunpack.c.h.b16 %v417
  %v1903 = vunpack.c.l.b16 %v418
  %v1904 = vunpack.c.h.b16 %v418
  %v1905 = vunpack.c.l.b16 %v419
  %v1906 = vunpack.c.h.b16 %v419
  %v1907 = vunpack.c.l.b16 %v420
  %v1908 = vunpack.c.h.b16 %v420
  %v1909 = vunpack.c.l.b16 %v421
  %v1910 = vunpack.c.h.b16 %v421
  %v1911 = vunpack.c.l.b16 %v422
  %v1912 = vunpack.c.h.b16 %v422
  %v1913 = vunpack.c.l.b16 %v423
  %v1914 = vunpack.c.h.b16 %v423
  %v1915 = vunpack.c.l.b16 %v424
  %v1916 = vunpack.c.h.b16 %v424
  %v1917 = vunpack.c.l.b16 %v425
  %v1918 = vunpack.c.h.b16 %v425
  %v1919 = vunpack.c.l.b16 %v426
  %v1920 = vunpack.c.h.b16 %v426
  %v1921 = vunpack.c.l.b16 %v427
  %v1922 = vunpack.c.h.b16 %v427
  %v1923 = vunpack.c.l.b16 %v428
  %v1924 = vunpack.c.h.b16 %v428
  %v1925 = vunpack.c.l.b16 %v429
  %v1926 = vunpack.c.h.b16 %v429
  %v1927 = vunpack.c.l.b16 %v430
  %v1928 = vunpack.c.h.b16 %v430
  %v1929 = vunpack.c.l.b16 %v431
  %v1930 = vunpack.c.h.b16 %v431
  %v1931 = vunpack.c.l.b16 %v432
  %v1932 = vunpack.c.h.b16 %v432
  %v1933 = vunpack.c.l.b16 %v433
  %v1934 = vunpack.c.h.b16 %v433
  %v1935 = vunpack.c.l.b16 %v434
  %v1936 = vunpack.c.h.b16 %v434
  %v1937 = vunpack.c.l.b16 %v435
  %v1938 = vunpack.c.h.b16 %v435
  %v1939 = vunpack.c.l.b16 %v436
  %v1940 = vunpack.c.h.b16 %v436
  %v1941 = vunpack.c.l.b16 %v437
  %v1942 = vunpack.c.h.b16 %v437
  %v1943 = vunpack.c.l.b16 %v438
  %v1944 = vunpack.c.h.b16 %v438
  %v1945 = vunpack.c.l.b16 %v439
  %v1946 = vunpack.c.h.b16 %v439
  %v1947 = vunpack.c.l.b16 %v440
  %v1948 = vunpack.c.h.b16 %v440
  %v1949 = vunpack.c.l.b16 %v441
  %v1950 = vunpack.c.h.b16 %v441
  %v1951 = vunpack.c.l.b16 %v442
  %v1952 = vunpack.c.h.b16 %v442
  %v1953 = vunpack.c.l.b16 %v443
  %v1954 = vunpack.c.h.b16 %v443
  %v1955 = vunpack.c.l.b16 %v444
  %v1956 = vunpack.c.h.b16 %v444
  %v1957 = vunpack.c.l.b16 %v445
  %v1958 = vunpack.c.h.b16 %v445
  %v1959 = vunpack.c.l.b16 %v446
  %v1960 = vunpack.c.h.b16 %v446
  %v1961 = vunpack.c.l.b16 %v447
  %v1962 = vunpack.c.h.b16 %v447
  %v1963 = vunpack.c.l.b16 %v448
  %v1964 = vunpack.c.h.b16 %v448
  %v1965 = vunpack.c.l.b16 %v449
  %v1966 = vunpack.c.h.b16 %v449
  %v1967 = vunpack.c.l.b16 %v450
  %v1968 = vunpack.c.h.b16 %v450
  %v1969 = vunpack.c.l.b16 %v451
  %v1970 = vunpack.c.h.b16 %v451
  %v1971 = vunpack.c.l.b16 %v452
  %v1972 = vunpack.c.h.b16 %v452
  %v1973 = vunpack.c.l.b16 %v453
  %v1974 = vunpack.c.h.b16 %v453
  %v1975 = vunpack.c.l.b16 %v454
  %v1976 = vunpack.c.h.b16 %v454
  %v1977 = vunpack.c.l.b16 %v455
  %v1978 = vunpack.c.h.b16 %v455
  %v1979 = vunpack.c.l.b16 %v456
  %v1980 = vunpack.c.h.b16 %v456
  %v1981 = vunpack.c.l.b16 %v457
  %v1982 = vunpack.c.h.b16 %v457
  %v1983 = vunpack.c.l.b16 %v458
  %v1984 = vunpack.c.h.b16 %v458
  %v1985 = vunpack.c.l.b16 %v459
  %v1986 = vunpack.c.h.b16 %v459
  %v1987 = vunpack.c.l.b16 %v460
  %v1988 = vunpack.c.h.b16 %v460
  %v1989 = vunpack.c.l.b16 %v461
  %v1990 = vunpack.c.h.b16 %v461
  %v1991 = vunpack.c.l.b16 %v462
  %v1992 = vunpack.c.h.b16 %v462
  %v1993 = vunpack.c.l.b16 %v463
  %v1994 = vunpack.c.h.b16 %v463
  %v1995 = vunpack.c.l.b16 %v464
  %v1996 = vunpack.c.h.b16 %v464
  %v1997 = vunpack.c.l.b16 %v465
  %v1998 = vunpack.c.h.b16 %v465
  %v1999 = vunpack.c.l.b16 %v466
  %v2000 = vunpack.c.h.b16 %v466
  %v2001 = vunpack.c.l.b16 %v467
  %v2002 = vunpack.c.h.b16 %v467
  %v2003 = vunpack.c.l.b16 %v468
  %v2004 = vunpack.c.h.b16 %v468
  %v2005 = vunpack.c.l.b16 %v469
  %v2006 = vunpack.c.h.b16 %v469
  %v2007 = vunpack.c.l.b16 %v470
  %v2008 = vunpack.c.h.b16 %v470
  %v2009 = vunpack.c.l.b16 %v471
  %v2010 = vunpack.c.h.b16 %v471
  %v2011 = vunpack.c.l.b16 %v472
  %v2012 = vunpack.c.h.b16 %v472
  %v2013 = vunpack.c.l.b16 %v473
  %v2014 = vunpack.c.h.b16 %v473
  %v2015 = vunpack.c.l.b16 %v474
  %v2016 = vunpack.c.h.b16 %v474
  %v2017 = vunpack.c.l.b16 %v475
  %v2018 = vunpack.c.h.b16 %v475
  %v2019 = vunpack.c.l.b16 %v476
  %v2020 = vunpack.c.h.b16 %v476
  %v2021 = vunpack.c.l.b16 %v477
  %v2022 = vunpack.c.h.b16 %v477
  %v2023 = vunpack.c.l.b16 %v478
  %v2024 = vunpack.c.h.b16 %v478
  %v2025 = vunpack.c.l.b16 %v479
  %v2026 = vunpack.c.h.b16 %v479
  %v2027 = vunpack.c.l.b16 %v480
  %v2028 = vunpack.c.h.b16 %v480
  %v2029 = vunpack.c.l.b16 %v481
  %v2030 = vunpack.c.h.b16 %v481
  %v2031 = vunpack.c.l.b16 %v482
  %v2032 = vunpack.c.h.b16 %v482
  %v2033 = vunpack.c.l.b16 %v483
  %v2034 = vunpack.c.h.b16 %v483
  %v2035 = vunpack.c.l.b16 %v484
  %v2036 = vunpack.c.h.b16 %v484
  %v2037 = vunpack.c.l.b16 %v485
  %v2038 = vunpack.c.h.b16 %v485
  %v2039 = vunpack.c.l.b16 %v486
  %v2040 = vunpack.c.h.b16 %v486
  %v2041 = vunpack.c.l.b16 %v487
  %v2042 = vunpack.c.h.b16 %v487
  %v2043 = vunpack.c.l.b16 %v488
  %v2044 = vunpack.c.h.b16 %v488
  %v2045 = vunpack.c.l.b16 %v489
  %v2046 = vunpack.c.h.b16 %v489
  %v2047 = vunpack.c.l.b16 %v490
  %v2048 = vunpack.c.h.b16 %v490
  %v2049 = vunpack.c.l.b16 %v491
  %v2050 = vunpack.c.h.b16 %v491
  %v2051 = vunpack.c.l.b16 %v492
  %v2052 = vunpack.c.h.b16 %v492
  %v2053 = vunpack.c.l.b16 %v493
  %v2054 = vunpack.c.h.b16 %v493
  %v2055 = vunpack.c.l.b16 %v494
  %v2056 = vunpack.c.h.b16 %v494
  %v2057 = vunpack.c.l.b16 %v495
  %v2058 = vunpack.c.h.b16 %v495
  %v2059 = vunpack.c.l.b16 %v496
  %v2060 = vunpack.c.h.b16 %v496
  %v2061 = vunpack.c.l.b16 %v497
  %v2062 = vunpack.c.h.b16 %v497
  %v2063 = vunpack.c.l.b16 %v498
  %v2064 = vunpack.c.h.b16 %v498
  %v2065 = vunpack.c.l.b16 %v499
  %v2066 = vunpack.c.h.b16 %v499
  %v2067 = vunpack.c.l.b16 %v500
  %v2068 = vunpack.c.h.b16 %v500
  %v2069 = vunpack.c.l.b16 %v501
  %v2070 = vunpack.c.h.b16 %v501
  %v2071 = vunpack.c.l.b16 %v502
  %v2072 = vunpack.c.h.b16 %v502
  %v2073 = vunpack.c.l.b16 %v503
  %v2074 = vunpack.c.h.b16 %v503
  %v2075 = vunpack.c.l.b16 %v504
  %v2076 = vunpack.c.h.b16 %v504
  %v2077 = vunpack.c.l.b16 %v505
  %v2078 = vunpack.c.h.b16 %v505
  %v2079 = vunpack.c.l.b16 %v506
  %v2080 = vunpack.c.h.b16 %v506
  %v2081 = vunpack.c.l.b16 %v507
  %v2082 = vunpack.c.h.b16 %v507
  %v2083 = vunpack.c.l.b16 %v508
  %v2084 = vunpack.c.h.b16 %v508
  %v2085 = vunpack.c.l.b16 %v509
  %v2086 = vunpack.c.h.b16 %v509
  %v2087 = vunpack.c.l.b16 %v510
  %v2088 = vunpack.c.h.b16 %v510
  %v2089 = vunpack.c.l.b16 %v511
  %v2090 = vunpack.c.h.b16 %v511
  %v2091 = vunpack.c.l.b16 %v512
  %v2092 = vunpack.c.h.b16 %v512
  %v2093 = vunpack.c.l.b16 %v513
  %v2094 = vunpack.c.h.b16 %v513
  %v2095 = vunpack.c.l.b16 %v514
  %v2096 = vunpack.c.h.b16 %v514
  %v2097 = vunpack.c.l.b16 %v515
  %v2098 = vunpack.c.h.b16 %v515
  %v2099 = vunpack.c.l.b16 %v516
  %v2100 = vunpack.c.h.b16 %v516
  %v2101 = vpack.c.b16 %v1527, %v1525
  %v2102 = vpack.c.b16 %v1528, %v1526
  %v2103 = vpack.c.b16 %v1531, %v1529
  %v2104 = vpack.c.b16 %v1532, %v1530
  %v2105 = vpack.c.b16 %v1535, %v1533
  %v2106 = vpack.c.b16 %v1536, %v1534
  %v2107 = vpack.c.b16 %v1539, %v1537
  %v2108 = vpack.c.b16 %v1540, %v1538
  %v2109 = vpack.c.b16 %v1543, %v1541
  %v2110 = vpack.c.b16 %v1544, %v1542
  %v2111 = vpack.c.b16 %v1547, %v1545
  %v2112 = vpack.c.b16 %v1548, %v1546
  %v2113 = vpack.c.b16 %v1551, %v1549
  %v2114 = vpack.c.b16 %v1552, %v1550
  %v2115 = vpack.c.b16 %v1555, %v1553
  %v2116 = vpack.c.b16 %v1556, %v1554
  %v2117 = vpack.c.b16 %v1559, %v1557
  %v2118 = vpack.c.b16 %v1560, %v1558
  %v2119 = vpack.c.b16 %v1563, %v1561
  %v2120 = vpack.c.b16 %v1564, %v1562
  %v2121 = vpack.c.b16 %v1567, %v1565
  %v2122 = vpack.c.b16 %v1568, %v1566
  %v2123 = vpack.c.b16 %v1571, %v1569
  %v2124 = vpack.c.b16 %v1572, %v1570
  %v2125 = vpack.c.b16 %v1575, %v1573
  %v2126 = vpack.c.b16 %v1576, %v1574
  %v2127 = vpack.c.b16 %v1579, %v1577
  %v2128 = vpack.c.b16 %v1580, %v1578
  %v2129 = vpack.c.b16 %v1583, %v1581
  %v2130 = vpack.c.b16 %v1584, %v1582
  %v2131 = vpack.c.b16 %v1587, %v1585
  %v2132 = vpack.c.b16 %v1588, %v1586
  %v2133 = vpack.c.b16 %v1591, %v1589
  %v2134 = vpack.c.b16 %v1592, %v1590
  %v2135 = vpack.c.b16 %v1595, %v1593
  %v2136 = vpack.c.b16 %v1596, %v1594
  %v2137 = vpack.c.b16 %v1599, %v1597
  %v2138 = vpack.c.b16 %v1600, %v1598
  %v2139 = vpack.c.b16 %v1603, %v1601
  %v2140 = vpack.c.b16 %v1604, %v1602
  %v2141 = vpack.c.b16 %v1607, %v1605
  %v2142 = vpack.c.b16 %v1608, %v1606
  %v2143 = vpack.c.b16 %v1611, %v1609
  %v2144 = vpack.c.b16 %v1612, %v1610
  %v2145 = vpack.c.b16 %v1615, %v1613
  %v2146 = vpack.c.b16 %v1616, %v1614
  %v2147 = vpack.c.b16 %v1619, %v1617
  %v2148 = vpack.c.b16 %v1620, %v1618
  %v2149 = vpack.c.b16 %v1623, %v1621
  %v2150 = vpack.c.b16 %v1624, %v1622
  %v2151 = vpack.c.b16 %v1627, %v1625
  %v2152 = vpack.c.b16 %v1628, %v1626
  %v2153 = vpack.c.b16 %v1631, %v1629
  %v2154 = vpack.c.b16 %v1632, %v1630
  %v2155 = vpack.c.b16 %v1635, %v1633
  %v2156 = vpack.c.b16 %v1636, %v1634
  %v2157 = vpack.c.b16 %v1639, %v1637
  %v2158 = vpack.c.b16 %v1640, %v1638
  %v2159 = vpack.c.b16 %v1643, %v1641
  %v2160 = vpack.c.b16 %v1644, %v1642
  %v2161 = vpack.c.b16 %v1647, %v1645
  %v2162 = vpack.c.b16 %v1648, %v1646
  %v2163 = vpack.c.b16 %v1651, %v1649
  %v2164 = vpack.c.b16 %v1652, %v1650
  %v2165 = vpack.c.b16 %v1655, %v1653
  %v2166 = vpack.c.b16 %v1656, %v1654
  %v2167 = vpack.c.b16 %v1659, %v1657
  %v2168 = vpack.c.b16 %v1660, %v1658
  %v2169 = vpack.c.b16 %v1663, %v1661
  %v2170 = vpack.c.b16 %v1664, %v1662
  %v2171 = vpack.c.b16 %v1667, %v1665
  %v2172 = vpack.c.b16 %v1668, %v1666
  %v2173 = vpack.c.b16 %v1671, %v1669
  %v2174 = vpack.c.b16 %v1672, %v1670
  %v2175 = vpack.c.b16 %v1675, %v1673
  %v2176 = vpack.c.b16 %v1676, %v1674
  %v2177 = vpack.c.b16 %v1679, %v1677
  %v2178 = vpack.c.b16 %v1680, %v1678
  %v2179 = vpack.c.b16 %v1683, %v1681
  %v2180 = vpack.c.b16 %v1684, %v1682
  %v2181 = vpack.c.b16 %v1687, %v1685
  %v2182 = vpack.c.b16 %v1688, %v1686
  %v2183 = vpack.c.b16 %v1691, %v1689
  %v2184 = vpack.c.b16 %v1692, %v1690
  %v2185 = vpack.c.b16 %v1695, %v1693
  %v2186 = vpack.c.b16 %v1696, %v1694
  %v2187 = vpack.c.b16 %v1699, %v1697
  %v2188 = vpack.c.b16 %v1700, %v1698
  %v2189 = vpack.c.b16 %v1703, %v1701
  %v2190 = vpack.c.b16 %v1704, %v1702
  %v2191 = vpack.c.b16 %v1707, %v1705
  %v2192 = vpack.c.b16 %v1708, %v1706
  %v2193 = vpack.c.b16 %v1711, %v1709
  %v2194 = vpack.c.b16 %v1712, %v1710
  %v2195 = vpack.c.b16 %v1715, %v1713
  %v2196 = vpack.c.b16 %v1716, %v1714
  %v2197 = vpack.c.b16 %v1719, %v1717
  %v2198 = vpack.c.b16 %v1720, %v1718
  %v2199 = vpack.c.b16 %v1723, %v1721
  %v2200 = vpack.c.b16 %v1724, %v1722
  %v2201 = vpack.c.b16 %v1727, %v1725
  %v2202 = vpack.c.b16 %v1728, %v1726
  %v2203 = vpack.c.b16 %v1731, %v1729
  %v2204 = vpack.c.b16 %v1732, %v1730
  %v2205 = vpack.c.b16 %v1735, %v1733
  %v2206 = vpack.c.b16 %v1736, %v1734
  %v2207 = vpack.c.b16 %v1739, %v1737
  %v2208 = vpack.c.b16 %v1740, %v1738
  %v2209 = vpack.c.b16 %v1743, %v1741
  %v2210 = vpack.c.b16 %v1744, %v1742
  %v2211 = vpack.c.b16 %v1747, %v1745
  %v2212 = vpack.c.b16 %v1748, %v1746
  %v2213 = vpack.c.b16 %v1751, %v1749
  %v2214 = vpack.c.b16 %v1752, %v1750
  %v2215 = vpack.c.b16 %v1755, %v1753
  %v2216 = vpack.c.b16 %v1756, %v1754
  %v2217 = vpack.c.b16 %v1759, %v1757
  %v2218 = vpack.c.b16 %v1760, %v1758
  %v2219 = vpack.c.b16 %v1763, %v1761
  %v2220 = vpack.c.b16 %v1764, %v1762
  %v2221 = vpack.c.b16 %v1767, %v1765
  %v2222 = vpack.c.b16 %v1768, %v1766
  %v2223 = vpack.c.b16 %v1771, %v1769
  %v2224 = vpack.c.b16 %v1772, %v1770
  %v2225 = vpack.c.b16 %v1775, %v1773
  %v2226 = vpack.c.b16 %v1776, %v1774
  %v2227 = vpack.c.b16 %v1779, %v1777
  %v2228 = vpack.c.b16 %v1780, %v1778
  %v2229 = vpack.c.b16 %v1783, %v1781
  %v2230 = vpack.c.b16 %v1784, %v1782
  %v2231 = vpack.c.b16 %v1787, %v1785
  %v2232 = vpack.c.b16 %v1788, %v1786
  %v2233 = vpack.c.b16 %v1791, %v1789
  %v2234 = vpack.c.b16 %v1792, %v1790
  %v2235 = vpack.c.b16 %v1795, %v1793
  %v2236 = vpack.c.b16 %v1796, %v1794
  %v2237 = vpack.c.b16 %v1799, %v1797
  %v2238 = vpack.c.b16 %v1800, %v1798
  %v2239 = vpack.c.b16 %v1803, %v1801
  %v2240 = vpack.c.b16 %v1804, %v1802
  %v2241 = vpack.c.b16 %v1807, %v1805
  %v2242 = vpack.c.b16 %v1808, %v1806
  %v2243 = vpack.c.b16 %v1811, %v1809
  %v2244 = vpack.c.b16 %v1812, %v1810
  %v2245 = vpack.c.b16 %v1815, %v1813
  %v2246 = vpack.c.b16 %v1816, %v1814
  %v2247 = vpack.c.b16 %v1819, %v1817
  %v2248 = vpack.c.b16 %v1820, %v1818
  %v2249 = vpack.c.b16 %v1823, %v1821
  %v2250 = vpack.c.b16 %v1824, %v1822
  %v2251 = vpack.c.b16 %v1827, %v1825
  %v2252 = vpack.c.b16 %v1828, %v1826
  %v2253 = vpack.c.b16 %v1831, %v1829
  %v2254 = vpack.c.b16 %v1832, %v1830
  %v2255 = vpack.c.b16 %v1835, %v1833
  %v2256 = vpack.c.b16 %v1836, %v1834
  %v2257 = vpack.c.b16 %v1839, %v1837
  %v2258 = vpack.c.b16 %v1840, %v1838
  %v2259 = vpack.c.b16 %v1843, %v1841
  %v2260 = vpack.c.b16 %v1844, %v1842
  %v2261 = vpack.c.b16 %v1847, %v1845
  %v2262 = vpack.c.b16 %v1848, %v1846
  %v2263 = vpack.c.b16 %v1851, %v1849
  %v2264 = vpack.c.b16 %v1852, %v1850
  %v2265 = vpack.c.b16 %v1855, %v1853
  %v2266 = vpack.c.b16 %v1856, %v1854
  %v2267 = vpack.c.b16 %v1859, %v1857
  %v2268 = vpack.c.b16 %v1860, %v1858
  %v2269 = vpack.c.b16 %v1863, %v1861
  %v2270 = vpack.c.b16 %v1864, %v1862
  %v2271 = vpack.c.b16 %v1867, %v1865
  %v2272 = vpack.c.b16 %v1868, %v1866
  %v2273 = vpack.c.b16 %v1871, %v1869
  %v2274 = vpack.c.b16 %v1872, %v1870
  %v2275 = vpack.c.b16 %v1875, %v1873
  %v2276 = vpack.c.b16 %v1876, %v1874
  %v2277 = vpack.c.b16 %v1879, %v1877
  %v2278 = vpack.c.b16 %v1880, %v1878
  %v2279 = vpack.c.b16 %v1883, %v1881
  %v2280 = vpack.c.b16 %v1884, %v1882
  %v2281 = vpack.c.b16 %v1887, %v1885
  %v2282 = vpack.c.b16 %v1888, %v1886
  %v2283 = vpack.c.b16 %v1891, %v1889
  %v2284 = vpack.c.b16 %v1892, %v1890
  %v2285 = vpack.c.b16 %v1895, %v1893
  %v2286 = vpack.c.b16 %v1896, %v1894
  %v2287 = vpack.c.b16 %v1899, %v1897
  %v2288 = vpack.c.b16 %v1900, %v1898
  %v2289 = vpack.c.b16 %v1903, %v1901
  %v2290 = vpack.c.b16 %v1904, %v1902
  %v2291 = vpack.c.b16 %v1907, %v1905
  %v2292 = vpack.c.b16 %v1908, %v1906
  %v2293 = vpack.c.b16 %v1911, %v1909
  %v2294 = vpack.c.b16 %v1912, %v1910
  %v2295 = vpack.c.b16 %v1915, %v1913
  %v2296 = vpack.c.b16 %v1916, %v1914
  %v2297 = vpack.c.b16 %v1919, %v1917
  %v2298 = vpack.c.b16 %v1920, %v1918
  %v2299 = vpack.c.b16 %v1923, %v1921
  %v2300 = vpack.c.b16 %v1924, %v1922
  %v2301 = vpack.c.b16 %v1927, %v1925
  %v2302 = vpack.c.b16 %v1928, %v1926
  %v2303 = vpack.c.b16 %v1931, %v1929
  %v2304 = vpack.c.b16 %v1932, %v1930
  %v2305 = vpack.c.b16 %v1935, %v1933
  %v2306 = vpack.c.b16 %v1936, %v1934
  %v2307 = vpack.c.b16 %v1939, %v1937
  %v2308 = vpack.c.b16 %v1940, %v1938
  %v2309 = vpack.c.b16 %v1943, %v1941
  %v2310 = vpack.c.b16 %v1944, %v1942
  %v2311 = vpack.c.b16 %v1947, %v1945
  %v2312 = vpack.c.b16 %v1948, %v1946
  %v2313 = vpack.c.b16 %v1951, %v1949
  %v2314 = vpack.c.b16 %v1952, %v1950
  %v2315 = vpack.c.b16 %v1955, %v1953
  %v2316 = vpack.c.b16 %v1956, %v1954
  %v2317 = vpack.c.b16 %v1959, %v1957
  %v2318 = vpack.c.b16 %v1960, %v1958
  %v2319 = vpack.c.b16 %v1963, %v1961
  %v2320 = vpack.c.b16 %v1964, %v1962
  %v2321 = vpack.c.b16 %v1967, %v1965
  %v2322 = vpack.c.b16 %v1968, %v1966
  %v2323 = vpack.c.b16 %v1971, %v1969
  %v2324 = vpack.c.b16 %v1972, %v1970
  %v2325 = vpack.c.b16 %v1975, %v1973
  %v2326 = vpack.c.b16 %v1976, %v1974
  %v2327 = vpack.c.b16 %v1979, %v1977
  %v2328 = vpack.c.b16 %v1980, %v1978
  %v2329 = vpack.c.b16 %v1983, %v1981
  %v2330 = vpack.c.b16 %v1984, %v1982
  %v2331 = vpack.c.b16 %v1987, %v1985
  %v2332 = vpack.c.b16 %v1988, %v1986
  %v2333 = vpack.c.b16 %v1991, %v1989
  %v2334 = vpack.c.b16 %v1992, %v1990
  %v2335 = vpack.c.b16 %v1995, %v1993
  %v2336 = vpack.c.b16 %v1996, %v1994
  %v2337 = vpack.c.b16 %v1999, %v1997
  %v2338 = vpack.c.b16 %v2000, %v1998
  %v2339 = vpack.c.b16 %v2003, %v2001
  %v2340 = vpack.c.b16 %v2004, %v2002
  %v2341 = vpack.c.b16 %v2007, %v2005
  %v2342 = vpack.c.b16 %v2008, %v2006
  %v2343 = vpack.c.b16 %v2011, %v2009
  %v2344 = vpack.c.b16 %v2012, %v2010
  %v2345 = vpack.c.b16 %v2015, %v2013
  %v2346 = vpack.c.b16 %v2016, %v2014
  %v2347 = vpack.c.b16 %v2019, %v2017
  %v2348 = vpack.c.b16 %v2020, %v2018
  %v2349 = vpack.c.b16 %v2023, %v2021
  %v2350 = vpack.c.b16 %v2024, %v2022
  %v2351 = vpack.c.b16 %v2027, %v2025
  %v2352 = vpack.c.b16 %v2028, %v2026
  %v2353 = vpack.c.b16 %v2031, %v2029
  %v2354 = vpack.c.b16 %v2032, %v2030
  %v2355 = vpack.c.b16 %v2035, %v2033
  %v2356 = vpack.c.b16 %v2036, %v2034
  %v2357 = vpack.c.b16 %v2039, %v2037
  %v2358 = vpack.c.b16 %v2040, %v2038
  %v2359 = vpack.c.b16 %v2043, %v2041
  %v2360 = vpack.c.b16 %v2044, %v2042
  %v2361 = vpack.c.b16 %v2047, %v2045
  %v2362 = vpack.c.b16 %v2048, %v2046
  %v2363 = vpack.c.b16 %v2051, %v2049
  %v2364 = vpack.c.b16 %v2052, %v2050
  %v2365 = vpack.c.b16 %v2055, %v2053
  %v2366 = vpack.c.b16 %v2056, %v2054
  %v2367 = vpack.c.b16 %v2059, %v2057
  %v2368 = vpack.c.b16 %v2060, %v2058
  %v2369 = vpack.c.b16 %v2063, %v2061
  %v2370 = vpack.c.b16 %v2064, %v2062
  %v2371 = vpack.c.b16 %v2067, %v2065
  %v2372 = vpack.c.b16 %v2068, %v2066
  %v2373 = vpack.c.b16 %v2071, %v2069
  %v2374 = vpack.c.b16 %v2072, %v2070
  %v2375 = vpack.c.b16 %v2075, %v2073
  %v2376 = vpack.c.b16 %v2076, %v2074
  %v2377 = vpack.c.b16 %v2079, %v2077
  %v2378 = vpack.c.b16 %v2080, %v2078
  %v2379 = vpack.c.b16 %v2083, %v2081
  %v2380 = vpack.c.b16 %v2084, %v2082
  %v2381 = vpack.c.b16 %v2087, %v2085
  %v2382 = vpack.c.b16 %v2088, %v2086
  %v2383 = vpack.c.b16 %v2091, %v2089
  %v2384 = vpack.c.b16 %v2092, %v2090
  %v2385 = vpack.c.b16 %v2095, %v2093
  %v2386 = vpack.c.b16 %v2096, %v2094
  %v2387 = vpack.c.b16 %v2099, %v2097
  %v2388 = vpack.c.b16 %v2100, %v2098
  %2677 = vmatprep.subr.bf16.mxu0 %v2102
  %2678 = vmatpush1.bf16.msra.mxu0 %v2101
  %2679 = vmatprep.subr.bf16.mxu0 %v2104
  %2680 = vmatpush1.bf16.msra.mxu0 %v2103
  %2681 = vmatprep.subr.bf16.mxu0 %v2106
  %2682 = vmatpush1.bf16.msra.mxu0 %v2105
  %2683 = vmatprep.subr.bf16.mxu0 %v2108
  %2684 = vmatpush1.bf16.msra.mxu0 %v2107
  %2685 = vmatprep.subr.bf16.mxu0 %v2110
  %2686 = vmatpush1.bf16.msra.mxu0 %v2109
  %2687 = vmatprep.subr.bf16.mxu0 %v2112
  %2688 = vmatpush1.bf16.msra.mxu0 %v2111
  %2689 = vmatprep.subr.bf16.mxu0 %v2114
  %2690 = vmatpush1.bf16.msra.mxu0 %v2113
  %2691 = vmatprep.subr.bf16.mxu0 %v2116
  %2692 = vmatpush1.bf16.msra.mxu0 %v2115
  %2693 = vmatprep.subr.bf16.mxu0 %v2118
  %2694 = vmatpush1.bf16.msra.mxu0 %v2117
  %2695 = vmatprep.subr.bf16.mxu0 %v2120
  %2696 = vmatpush1.bf16.msra.mxu0 %v2119
  %2697 = vmatprep.subr.bf16.mxu0 %v2122
  %2698 = vmatpush1.bf16.msra.mxu0 %v2121
  %2699 = vmatprep.subr.bf16.mxu0 %v2124
  %2700 = vmatpush1.bf16.msra.mxu0 %v2123
  %2701 = vmatprep.subr.bf16.mxu0 %v2126
  %2702 = vmatpush1.bf16.msra.mxu0 %v2125
  %2703 = vmatprep.subr.bf16.mxu0 %v2128
  %2704 = vmatpush1.bf16.msra.mxu0 %v2127
  %2705 = vmatprep.subr.bf16.mxu0 %v2130
  %2706 = vmatpush1.bf16.msra.mxu0 %v2129
  %2707 = vmatprep.subr.bf16.mxu0 %v2132
  %2708 = vmatpush1.bf16.msra.mxu0 %v2131
  %2709 = vmatprep.mubr.bf16.mxu0 %v950
  %2710 = vmatmul.mubr.bf16.gmra.mrb[0].mxu0 %v949
  %v2711 = vpop.f32.mrb[0].mxu0
  %v2712 = vadd.f32 0.0, %v2711
  %v2713 = vpop.f32.mrb[0].mxu0
  %v2714 = vadd.f32 0.0, %v2713
  %v2715 = vpop.f32.mrb[0].mxu0
  %v2716 = vadd.f32 0.0, %v2715
  %v2717 = vpop.f32.mrb[0].mxu0
  %v2718 = vadd.f32 0.0, %v2717
  %2719 = vmatprep.mubr.bf16.mxu0 %v968
  %2720 = vmatmul.mubr.bf16.gmra.mrb[0].mxu0 %v967
  %v2721 = vpop.f32.mrb[0].mxu0
  %v2722 = vadd.f32 0.0, %v2721
  %v2723 = vpop.f32.mrb[0].mxu0
  %v2724 = vadd.f32 0.0, %v2723
  %v2725 = vpop.f32.mrb[0].mxu0
  %v2726 = vadd.f32 0.0, %v2725
  %v2727 = vpop.f32.mrb[0].mxu0
  %v2728 = vadd.f32 0.0, %v2727
  %2729 = vmatprep.mubr.bf16.mxu0 %v986
  %2730 = vmatmul.mubr.bf16.gmra.mrb[0].mxu0 %v985
  %v2731 = vpop.f32.mrb[0].mxu0
  %v2732 = vadd.f32 0.0, %v2731
  %v2733 = vpop.f32.mrb[0].mxu0
  %v2734 = vadd.f32 0.0, %v2733
  %v2735 = vpop.f32.mrb[0].mxu0
  %v2736 = vadd.f32 0.0, %v2735
  %v2737 = vpop.f32.mrb[0].mxu0
  %v2738 = vadd.f32 0.0, %v2737
  %2739 = vmatprep.mubr.bf16.mxu0 %v1004
  %2740 = vmatmul.mubr.bf16.gmra.mrb[0].mxu0 %v1003
  %v2741 = vpop.f32.mrb[0].mxu0
  %v2742 = vadd.f32 0.0, %v2741
  %v2743 = vpop.f32.mrb[0].mxu0
  %v2744 = vadd.f32 0.0, %v2743
  %v2745 = vpop.f32.mrb[0].mxu0
  %v2746 = vadd.f32 0.0, %v2745
  %v2747 = vpop.f32.mrb[0].mxu0
  %v2748 = vadd.f32 0.0, %v2747
  %2749 = vmatprep.mubr.bf16.mxu0 %v1022
  %2750 = vmatmul.mubr.bf16.gmra.mrb[0].mxu0 %v1021
  %v2751 = vpop.f32.mrb[0].mxu0
  %v2752 = vadd.f32 0.0, %v2751
  %v2753 = vpop.f32.mrb[0].mxu0
  %v2754 = vadd.f32 0.0, %v2753
  %v2755 = vpop.f32.mrb[0].mxu0
  %v2756 = vadd.f32 0.0, %v2755
  %v2757 = vpop.f32.mrb[0].mxu0
  %v2758 = vadd.f32 0.0, %v2757
  %2759 = vmatprep.mubr.bf16.mxu0 %v1040
  %2760 = vmatmul.mubr.bf16.gmra.mrb[0].mxu0 %v1039
  %v2761 = vpop.f32.mrb[0].mxu0
  %v2762 = vadd.f32 0.0, %v2761
  %v2763 = vpop.f32.mrb[0].mxu0
  %v2764 = vadd.f32 0.0, %v2763
  %v2765 = vpop.f32.mrb[0].mxu0
  %v2766 = vadd.f32 0.0, %v2765
  %v2767 = vpop.f32.mrb[0].mxu0
  %v2768 = vadd.f32 0.0, %v2767
  %2769 = vmatprep.mubr.bf16.mxu0 %v1058
  %2770 = vmatmul.mubr.bf16.gmra.mrb[0].mxu0 %v1057
  %v2771 = vpop.f32.mrb[0].mxu0
  %v2772 = vadd.f32 0.0, %v2771
  %v2773 = vpop.f32.mrb[0].mxu0
  %v2774 = vadd.f32 0.0, %v2773
  %v2775 = vpop.f32.mrb[0].mxu0
  %v2776 = vadd.f32 0.0, %v2775
  %v2777 = vpop.f32.mrb[0].mxu0
  %v2778 = vadd.f32 0.0, %v2777
  %2779 = vmatprep.mubr.bf16.mxu0 %v1076
  %2780 = vmatmul.mubr.bf16.gmra.mrb[0].mxu0 %v1075
  %v2781 = vpop.f32.mrb[0].mxu0
  %v2782 = vadd.f32 0.0, %v2781
  %v2783 = vpop.f32.mrb[0].mxu0
  %v2784 = vadd.f32 0.0, %v2783
  %v2785 = vpop.f32.mrb[0].mxu0
  %v2786 = vadd.f32 0.0, %v2785
  %v2787 = vpop.f32.mrb[0].mxu0
  %v2788 = vadd.f32 0.0, %v2787
  %2789 = vdwg.mxu0
  %2790 = vmatprep.subr.bf16.mxu0 %v2134
  %2791 = vmatpush1.bf16.msra.mxu0 %v2133
  %2792 = vmatprep.subr.bf16.mxu0 %v2136
  %2793 = vmatpush1.bf16.msra.mxu0 %v2135
  %2794 = vmatprep.subr.bf16.mxu0 %v2138
  %2795 = vmatpush1.bf16.msra.mxu0 %v2137
  %2796 = vmatprep.subr.bf16.mxu0 %v2140
  %2797 = vmatpush1.bf16.msra.mxu0 %v2139
  %2798 = vmatprep.subr.bf16.mxu0 %v2142
  %2799 = vmatpush1.bf16.msra.mxu0 %v2141
  %2800 = vmatprep.subr.bf16.mxu0 %v2144
  %2801 = vmatpush1.bf16.msra.mxu0 %v2143
  %2802 = vmatprep.subr.bf16.mxu0 %v2146
  %2803 = vmatpush1.bf16.msra.mxu0 %v2145
  %2804 = vmatprep.subr.bf16.mxu0 %v2148
  %2805 = vmatpush1.bf16.msra.mxu0 %v2147
  %2806 = vmatprep.subr.bf16.mxu0 %v2150
  %2807 = vmatpush1.bf16.msra.mxu0 %v2149
  %2808 = vmatprep.subr.bf16.mxu0 %v2152
  %2809 = vmatpush1.bf16.msra.mxu0 %v2151
  %2810 = vmatprep.subr.bf16.mxu0 %v2154
  %2811 = vmatpush1.bf16.msra.mxu0 %v2153
  %2812 = vmatprep.subr.bf16.mxu0 %v2156
  %2813 = vmatpush1.bf16.msra.mxu0 %v2155
  %2814 = vmatprep.subr.bf16.mxu0 %v2158
  %2815 = vmatpush1.bf16.msra.mxu0 %v2157
  %2816 = vmatprep.subr.bf16.mxu0 %v2160
  %2817 = vmatpush1.bf16.msra.mxu0 %v2159
  %2818 = vmatprep.subr.bf16.mxu0 %v2162
  %2819 = vmatpush1.bf16.msra.mxu0 %v2161
  %2820 = vmatprep.subr.bf16.mxu0 %v2164
  %2821 = vmatpush1.bf16.msra.mxu0 %v2163
  %2822 = vmatprep.mubr.bf16.mxu0 %v952
  %2823 = vmatmul.mubr.bf16.gmra.mrb[0].mxu0 %v951
  %v2824 = vpop.f32.mrb[0].mxu0
  %v2825 = vadd.f32 %v2712, %v2824
  %v2826 = vpop.f32.mrb[0].mxu0
  %v2827 = vadd.f32 %v2714, %v2826
  %v2828 = vpop.f32.mrb[0].mxu0
  %v2829 = vadd.f32 %v2716, %v2828
  %v2830 = vpop.f32.mrb[0].mxu0
  %v2831 = vadd.f32 %v2718, %v2830
  %2832 = vmatprep.mubr.bf16.mxu0 %v970
  %2833 = vmatmul.mubr.bf16.gmra.mrb[0].mxu0 %v969
  %v2834 = vpop.f32.mrb[0].mxu0
  %v2835 = vadd.f32 %v2722, %v2834
  %v2836 = vpop.f32.mrb[0].mxu0
  %v2837 = vadd.f32 %v2724, %v2836
  %v2838 = vpop.f32.mrb[0].mxu0
  %v2839 = vadd.f32 %v2726, %v2838
  %v2840 = vpop.f32.mrb[0].mxu0
  %v2841 = vadd.f32 %v2728, %v2840
  %2842 = vmatprep.mubr.bf16.mxu0 %v988
  %2843 = vmatmul.mubr.bf16.gmra.mrb[0].mxu0 %v987
  %v2844 = vpop.f32.mrb[0].mxu0
  %v2845 = vadd.f32 %v2732, %v2844
  %v2846 = vpop.f32.mrb[0].mxu0
  %v2847 = vadd.f32 %v2734, %v2846
  %v2848 = vpop.f32.mrb[0].mxu0
  %v2849 = vadd.f32 %v2736, %v2848
  %v2850 = vpop.f32.mrb[0].mxu0
  %v2851 = vadd.f32 %v2738, %v2850
  %2852 = vmatprep.mubr.bf16.mxu0 %v1006
  %2853 = vmatmul.mubr.bf16.gmra.mrb[0].mxu0 %v1005
  %v2854 = vpop.f32.mrb[0].mxu0
  %v2855 = vadd.f32 %v2742, %v2854
  %v2856 = vpop.f32.mrb[0].mxu0
  %v2857 = vadd.f32 %v2744, %v2856
  %v2858 = vpop.f32.mrb[0].mxu0
  %v2859 = vadd.f32 %v2746, %v2858
  %v2860 = vpop.f32.mrb[0].mxu0
  %v2861 = vadd.f32 %v2748, %v2860
  %2862 = vmatprep.mubr.bf16.mxu0 %v1024
  %2863 = vmatmul.mubr.bf16.gmra.mrb[0].mxu0 %v1023
  %v2864 = vpop.f32.mrb[0].mxu0
  %v2865 = vadd.f32 %v2752, %v2864
  %v2866 = vpop.f32.mrb[0].mxu0
  %v2867 = vadd.f32 %v2754, %v2866
  %v2868 = vpop.f32.mrb[0].mxu0
  %v2869 = vadd.f32 %v2756, %v2868
  %v2870 = vpop.f32.mrb[0].mxu0
  %v2871 = vadd.f32 %v2758, %v2870
  %2872 = vmatprep.mubr.bf16.mxu0 %v1042
  %2873 = vmatmul.mubr.bf16.gmra.mrb[0].mxu0 %v1041
  %v2874 = vpop.f32.mrb[0].mxu0
  %v2875 = vadd.f32 %v2762, %v2874
  %v2876 = vpop.f32.mrb[0].mxu0
  %v2877 = vadd.f32 %v2764, %v2876
  %v2878 = vpop.f32.mrb[0].mxu0
  %v2879 = vadd.f32 %v2766, %v2878
  %v2880 = vpop.f32.mrb[0].mxu0
  %v2881 = vadd.f32 %v2768, %v2880
  %2882 = vmatprep.mubr.bf16.mxu0 %v1060
  %2883 = vmatmul.mubr.bf16.gmra.mrb[0].mxu0 %v1059
  %v2884 = vpop.f32.mrb[0].mxu0
  %v2885 = vadd.f32 %v2772, %v2884
  %v2886 = vpop.f32.mrb[0].mxu0
  %v2887 = vadd.f32 %v2774, %v2886
  %v2888 = vpop.f32.mrb[0].mxu0
  %v2889 = vadd.f32 %v2776, %v2888
  %v2890 = vpop.f32.mrb[0].mxu0
  %v2891 = vadd.f32 %v2778, %v2890
  %2892 = vmatprep.mubr.bf16.mxu0 %v1078
  %2893 = vmatmul.mubr.bf16.gmra.mrb[0].mxu0 %v1077
  %v2894 = vpop.f32.mrb[0].mxu0
  %v2895 = vadd.f32 %v2782, %v2894
  %v2896 = vpop.f32.mrb[0].mxu0
  %v2897 = vadd.f32 %v2784, %v2896
  %v2898 = vpop.f32.mrb[0].mxu0
  %v2899 = vadd.f32 %v2786, %v2898
  %v2900 = vpop.f32.mrb[0].mxu0
  %v2901 = vadd.f32 %v2788, %v2900
  %2902 = vdwg.mxu0
  %2903 = vmatprep.subr.bf16.mxu0 %v2166
  %2904 = vmatpush1.bf16.msra.mxu0 %v2165
  %2905 = vmatprep.subr.bf16.mxu0 %v2168
  %2906 = vmatpush1.bf16.msra.mxu0 %v2167
  %2907 = vmatprep.subr.bf16.mxu0 %v2170
  %2908 = vmatpush1.bf16.msra.mxu0 %v2169
  %2909 = vmatprep.subr.bf16.mxu0 %v2172
  %2910 = vmatpush1.bf16.msra.mxu0 %v2171
  %2911 = vmatprep.subr.bf16.mxu0 %v2174
  %2912 = vmatpush1.bf16.msra.mxu0 %v2173
  %2913 = vmatprep.subr.bf16.mxu0 %v2176
  %2914 = vmatpush1.bf16.msra.mxu0 %v2175
  %2915 = vmatprep.subr.bf16.mxu0 %v2178
  %2916 = vmatpush1.bf16.msra.mxu0 %v2177
  %2917 = vmatprep.subr.bf16.mxu0 %v2180
  %2918 = vmatpush1.bf16.msra.mxu0 %v2179
  %2919 = vmatprep.subr.bf16.mxu0 %v2182
  %2920 = vmatpush1.bf16.msra.mxu0 %v2181
  %2921 = vmatprep.subr.bf16.mxu0 %v2184
  %2922 = vmatpush1.bf16.msra.mxu0 %v2183
  %2923 = vmatprep.subr.bf16.mxu0 %v2186
  %2924 = vmatpush1.bf16.msra.mxu0 %v2185
  %2925 = vmatprep.subr.bf16.mxu0 %v2188
  %2926 = vmatpush1.bf16.msra.mxu0 %v2187
  %2927 = vmatprep.subr.bf16.mxu0 %v2190
  %2928 = vmatpush1.bf16.msra.mxu0 %v2189
  %2929 = vmatprep.subr.bf16.mxu0 %v2192
  %2930 = vmatpush1.bf16.msra.mxu0 %v2191
  %2931 = vmatprep.subr.bf16.mxu0 %v2194
  %2932 = vmatpush1.bf16.msra.mxu0 %v2193
  %2933 = vmatprep.subr.bf16.mxu0 %v2196
  %2934 = vmatpush1.bf16.msra.mxu0 %v2195
  %2935 = vmatprep.mubr.bf16.mxu0 %v954
  %2936 = vmatmul.mubr.bf16.gmra.mrb[0].mxu0 %v953
  %v2937 = vpop.f32.mrb[0].mxu0
  %v2938 = vadd.f32 %v2825, %v2937
  %v2939 = vpop.f32.mrb[0].mxu0
  %v2940 = vadd.f32 %v2827, %v2939
  %v2941 = vpop.f32.mrb[0].mxu0
  %v2942 = vadd.f32 %v2829, %v2941
  %v2943 = vpop.f32.mrb[0].mxu0
  %v2944 = vadd.f32 %v2831, %v2943
  %2945 = vmatprep.mubr.bf16.mxu0 %v972
  %2946 = vmatmul.mubr.bf16.gmra.mrb[0].mxu0 %v971
  %v2947 = vpop.f32.mrb[0].mxu0
  %v2948 = vadd.f32 %v2835, %v2947
  %v2949 = vpop.f32.mrb[0].mxu0
  %v2950 = vadd.f32 %v2837, %v2949
  %v2951 = vpop.f32.mrb[0].mxu0
  %v2952 = vadd.f32 %v2839, %v2951
  %v2953 = vpop.f32.mrb[0].mxu0
  %v2954 = vadd.f32 %v2841, %v2953
  %2955 = vmatprep.mubr.bf16.mxu0 %v990
  %2956 = vmatmul.mubr.bf16.gmra.mrb[0].mxu0 %v989
  %v2957 = vpop.f32.mrb[0].mxu0
  %v2958 = vadd.f32 %v2845, %v2957
  %v2959 = vpop.f32.mrb[0].mxu0
  %v2960 = vadd.f32 %v2847, %v2959
  %v2961 = vpop.f32.mrb[0].mxu0
  %v2962 = vadd.f32 %v2849, %v2961
  %v2963 = vpop.f32.mrb[0].mxu0
  %v2964 = vadd.f32 %v2851, %v2963
  %2965 = vmatprep.mubr.bf16.mxu0 %v1008
  %2966 = vmatmul.mubr.bf16.gmra.mrb[0].mxu0 %v1007
  %v2967 = vpop.f32.mrb[0].mxu0
  %v2968 = vadd.f32 %v2855, %v2967
  %v2969 = vpop.f32.mrb[0].mxu0
  %v2970 = vadd.f32 %v2857, %v2969
  %v2971 = vpop.f32.mrb[0].mxu0
  %v2972 = vadd.f32 %v2859, %v2971
  %v2973 = vpop.f32.mrb[0].mxu0
  %v2974 = vadd.f32 %v2861, %v2973
  %2975 = vmatprep.mubr.bf16.mxu0 %v1026
  %2976 = vmatmul.mubr.bf16.gmra.mrb[0].mxu0 %v1025
  %v2977 = vpop.f32.mrb[0].mxu0
  %v2978 = vadd.f32 %v2865, %v2977
  %v2979 = vpop.f32.mrb[0].mxu0
  %v2980 = vadd.f32 %v2867, %v2979
  %v2981 = vpop.f32.mrb[0].mxu0
  %v2982 = vadd.f32 %v2869, %v2981
  %v2983 = vpop.f32.mrb[0].mxu0
  %v2984 = vadd.f32 %v2871, %v2983
  %2985 = vmatprep.mubr.bf16.mxu0 %v1044
  %2986 = vmatmul.mubr.bf16.gmra.mrb[0].mxu0 %v1043
  %v2987 = vpop.f32.mrb[0].mxu0
  %v2988 = vadd.f32 %v2875, %v2987
  %v2989 = vpop.f32.mrb[0].mxu0
  %v2990 = vadd.f32 %v2877, %v2989
  %v2991 = vpop.f32.mrb[0].mxu0
  %v2992 = vadd.f32 %v2879, %v2991
  %v2993 = vpop.f32.mrb[0].mxu0
  %v2994 = vadd.f32 %v2881, %v2993
  %2995 = vmatprep.mubr.bf16.mxu0 %v1062
  %2996 = vmatmul.mubr.bf16.gmra.mrb[0].mxu0 %v1061
  %v2997 = vpop.f32.mrb[0].mxu0
  %v2998 = vadd.f32 %v2885, %v2997
  %v2999 = vpop.f32.mrb[0].mxu0
  %v3000 = vadd.f32 %v2887, %v2999
  %v3001 = vpop.f32.mrb[0].mxu0
  %v3002 = vadd.f32 %v2889, %v3001
  %v3003 = vpop.f32.mrb[0].mxu0
  %v3004 = vadd.f32 %v2891, %v3003
  %3005 = vmatprep.mubr.bf16.mxu0 %v1080
  %3006 = vmatmul.mubr.bf16.gmra.mrb[0].mxu0 %v1079
  %v3007 = vpop.f32.mrb[0].mxu0
  %v3008 = vadd.f32 %v2895, %v3007
  %v3009 = vpop.f32.mrb[0].mxu0
  %v3010 = vadd.f32 %v2897, %v3009
  %v3011 = vpop.f32.mrb[0].mxu0
  %v3012 = vadd.f32 %v2899, %v3011
  %v3013 = vpop.f32.mrb[0].mxu0
  %v3014 = vadd.f32 %v2901, %v3013
  %3015 = vdwg.mxu0
  %3016 = vmatprep.subr.bf16.mxu0 %v2198
  %3017 = vmatpush1.bf16.msra.mxu0 %v2197
  %3018 = vmatprep.subr.bf16.mxu0 %v2200
  %3019 = vmatpush1.bf16.msra.mxu0 %v2199
  %3020 = vmatprep.subr.bf16.mxu0 %v2202
  %3021 = vmatpush1.bf16.msra.mxu0 %v2201
  %3022 = vmatprep.subr.bf16.mxu0 %v2204
  %3023 = vmatpush1.bf16.msra.mxu0 %v2203
  %3024 = vmatprep.subr.bf16.mxu0 %v2206
  %3025 = vmatpush1.bf16.msra.mxu0 %v2205
  %3026 = vmatprep.subr.bf16.mxu0 %v2208
  %3027 = vmatpush1.bf16.msra.mxu0 %v2207
  %3028 = vmatprep.subr.bf16.mxu0 %v2210
  %3029 = vmatpush1.bf16.msra.mxu0 %v2209
  %3030 = vmatprep.subr.bf16.mxu0 %v2212
  %3031 = vmatpush1.bf16.msra.mxu0 %v2211
  %3032 = vmatprep.subr.bf16.mxu0 %v2214
  %3033 = vmatpush1.bf16.msra.mxu0 %v2213
  %3034 = vmatprep.subr.bf16.mxu0 %v2216
  %3035 = vmatpush1.bf16.msra.mxu0 %v2215
  %3036 = vmatprep.subr.bf16.mxu0 %v2218
  %3037 = vmatpush1.bf16.msra.mxu0 %v2217
  %3038 = vmatprep.subr.bf16.mxu0 %v2220
  %3039 = vmatpush1.bf16.msra.mxu0 %v2219
  %3040 = vmatprep.subr.bf16.mxu0 %v2222
  %3041 = vmatpush1.bf16.msra.mxu0 %v2221
  %3042 = vmatprep.subr.bf16.mxu0 %v2224
  %3043 = vmatpush1.bf16.msra.mxu0 %v2223
  %3044 = vmatprep.subr.bf16.mxu0 %v2226
  %3045 = vmatpush1.bf16.msra.mxu0 %v2225
  %3046 = vmatprep.subr.bf16.mxu0 %v2228
  %3047 = vmatpush1.bf16.msra.mxu0 %v2227
  %3048 = vmatprep.mubr.bf16.mxu0 %v956
  %3049 = vmatmul.mubr.bf16.gmra.mrb[0].mxu0 %v955
  %v3050 = vpop.f32.mrb[0].mxu0
  %v3051 = vadd.f32 %v2938, %v3050
  %v3052 = vpop.f32.mrb[0].mxu0
  %v3053 = vadd.f32 %v2940, %v3052
  %v3054 = vpop.f32.mrb[0].mxu0
  %v3055 = vadd.f32 %v2942, %v3054
  %v3056 = vpop.f32.mrb[0].mxu0
  %v3057 = vadd.f32 %v2944, %v3056
  %3058 = vmatprep.mubr.bf16.mxu0 %v974
  %3059 = vmatmul.mubr.bf16.gmra.mrb[0].mxu0 %v973
  %v3060 = vpop.f32.mrb[0].mxu0
  %v3061 = vadd.f32 %v2948, %v3060
  %v3062 = vpop.f32.mrb[0].mxu0
  %v3063 = vadd.f32 %v2950, %v3062
  %v3064 = vpop.f32.mrb[0].mxu0
  %v3065 = vadd.f32 %v2952, %v3064
  %v3066 = vpop.f32.mrb[0].mxu0
  %v3067 = vadd.f32 %v2954, %v3066
  %3068 = vmatprep.mubr.bf16.mxu0 %v992
  %3069 = vmatmul.mubr.bf16.gmra.mrb[0].mxu0 %v991
  %v3070 = vpop.f32.mrb[0].mxu0
  %v3071 = vadd.f32 %v2958, %v3070
  %v3072 = vpop.f32.mrb[0].mxu0
  %v3073 = vadd.f32 %v2960, %v3072
  %v3074 = vpop.f32.mrb[0].mxu0
  %v3075 = vadd.f32 %v2962, %v3074
  %v3076 = vpop.f32.mrb[0].mxu0
  %v3077 = vadd.f32 %v2964, %v3076
  %3078 = vmatprep.mubr.bf16.mxu0 %v1010
  %3079 = vmatmul.mubr.bf16.gmra.mrb[0].mxu0 %v1009
  %v3080 = vpop.f32.mrb[0].mxu0
  %v3081 = vadd.f32 %v2968, %v3080
  %v3082 = vpop.f32.mrb[0].mxu0
  %v3083 = vadd.f32 %v2970, %v3082
  %v3084 = vpop.f32.mrb[0].mxu0
  %v3085 = vadd.f32 %v2972, %v3084
  %v3086 = vpop.f32.mrb[0].mxu0
  %v3087 = vadd.f32 %v2974, %v3086
  %3088 = vmatprep.mubr.bf16.mxu0 %v1028
  %3089 = vmatmul.mubr.bf16.gmra.mrb[0].mxu0 %v1027
  %v3090 = vpop.f32.mrb[0].mxu0
  %v3091 = vadd.f32 %v2978, %v3090
  %v3092 = vpop.f32.mrb[0].mxu0
  %v3093 = vadd.f32 %v2980, %v3092
  %v3094 = vpop.f32.mrb[0].mxu0
  %v3095 = vadd.f32 %v2982, %v3094
  %v3096 = vpop.f32.mrb[0].mxu0
  %v3097 = vadd.f32 %v2984, %v3096
  %3098 = vmatprep.mubr.bf16.mxu0 %v1046
  %3099 = vmatmul.mubr.bf16.gmra.mrb[0].mxu0 %v1045
  %v3100 = vpop.f32.mrb[0].mxu0
  %v3101 = vadd.f32 %v2988, %v3100
  %v3102 = vpop.f32.mrb[0].mxu0
  %v3103 = vadd.f32 %v2990, %v3102
  %v3104 = vpop.f32.mrb[0].mxu0
  %v3105 = vadd.f32 %v2992, %v3104
  %v3106 = vpop.f32.mrb[0].mxu0
  %v3107 = vadd.f32 %v2994, %v3106
  %3108 = vmatprep.mubr.bf16.mxu0 %v1064
  %3109 = vmatmul.mubr.bf16.gmra.mrb[0].mxu0 %v1063
  %v3110 = vpop.f32.mrb[0].mxu0
  %v3111 = vadd.f32 %v2998, %v3110
  %v3112 = vpop.f32.mrb[0].mxu0
  %v3113 = vadd.f32 %v3000, %v3112
  %v3114 = vpop.f32.mrb[0].mxu0
  %v3115 = vadd.f32 %v3002, %v3114
  %v3116 = vpop.f32.mrb[0].mxu0
  %v3117 = vadd.f32 %v3004, %v3116
  %3118 = vmatprep.mubr.bf16.mxu0 %v1082
  %3119 = vmatmul.mubr.bf16.gmra.mrb[0].mxu0 %v1081
  %v3120 = vpop.f32.mrb[0].mxu0
  %v3121 = vadd.f32 %v3008, %v3120
  %v3122 = vpop.f32.mrb[0].mxu0
  %v3123 = vadd.f32 %v3010, %v3122
  %v3124 = vpop.f32.mrb[0].mxu0
  %v3125 = vadd.f32 %v3012, %v3124
  %v3126 = vpop.f32.mrb[0].mxu0
  %v3127 = vadd.f32 %v3014, %v3126
  %3128 = vdwg.mxu0
  %3129 = vmatprep.subr.bf16.mxu0 %v2230
  %3130 = vmatpush1.bf16.msra.mxu0 %v2229
  %3131 = vmatprep.subr.bf16.mxu0 %v2232
  %3132 = vmatpush1.bf16.msra.mxu0 %v2231
  %3133 = vmatprep.subr.bf16.mxu0 %v2234
  %3134 = vmatpush1.bf16.msra.mxu0 %v2233
  %3135 = vmatprep.subr.bf16.mxu0 %v2236
  %3136 = vmatpush1.bf16.msra.mxu0 %v2235
  %3137 = vmatprep.subr.bf16.mxu0 %v2238
  %3138 = vmatpush1.bf16.msra.mxu0 %v2237
  %3139 = vmatprep.subr.bf16.mxu0 %v2240
  %3140 = vmatpush1.bf16.msra.mxu0 %v2239
  %3141 = vmatprep.subr.bf16.mxu0 %v2242
  %3142 = vmatpush1.bf16.msra.mxu0 %v2241
  %3143 = vmatprep.subr.bf16.mxu0 %v2244
  %3144 = vmatpush1.bf16.msra.mxu0 %v2243
  %3145 = vmatprep.subr.bf16.mxu0 %v2246
  %3146 = vmatpush1.bf16.msra.mxu0 %v2245
  %3147 = vmatprep.subr.bf16.mxu0 %v2248
  %3148 = vmatpush1.bf16.msra.mxu0 %v2247
  %3149 = vmatprep.subr.bf16.mxu0 %v2250
  %3150 = vmatpush1.bf16.msra.mxu0 %v2249
  %3151 = vmatprep.subr.bf16.mxu0 %v2252
  %3152 = vmatpush1.bf16.msra.mxu0 %v2251
  %3153 = vmatprep.subr.bf16.mxu0 %v2254
  %3154 = vmatpush1.bf16.msra.mxu0 %v2253
  %3155 = vmatprep.subr.bf16.mxu0 %v2256
  %3156 = vmatpush1.bf16.msra.mxu0 %v2255
  %3157 = vmatprep.subr.bf16.mxu0 %v2258
  %3158 = vmatpush1.bf16.msra.mxu0 %v2257
  %3159 = vmatprep.subr.bf16.mxu0 %v2260
  %3160 = vmatpush1.bf16.msra.mxu0 %v2259
  %3161 = vmatprep.mubr.bf16.mxu0 %v958
  %3162 = vmatmul.mubr.bf16.gmra.mrb[0].mxu0 %v957
  %v3163 = vpop.f32.mrb[0].mxu0
  %v3164 = vadd.f32 %v3051, %v3163
  %v3165 = vpop.f32.mrb[0].mxu0
  %v3166 = vadd.f32 %v3053, %v3165
  %v3167 = vpop.f32.mrb[0].mxu0
  %v3168 = vadd.f32 %v3055, %v3167
  %v3169 = vpop.f32.mrb[0].mxu0
  %v3170 = vadd.f32 %v3057, %v3169
  %3171 = vmatprep.mubr.bf16.mxu0 %v976
  %3172 = vmatmul.mubr.bf16.gmra.mrb[0].mxu0 %v975
  %v3173 = vpop.f32.mrb[0].mxu0
  %v3174 = vadd.f32 %v3061, %v3173
  %v3175 = vpop.f32.mrb[0].mxu0
  %v3176 = vadd.f32 %v3063, %v3175
  %v3177 = vpop.f32.mrb[0].mxu0
  %v3178 = vadd.f32 %v3065, %v3177
  %v3179 = vpop.f32.mrb[0].mxu0
  %v3180 = vadd.f32 %v3067, %v3179
  %3181 = vmatprep.mubr.bf16.mxu0 %v994
  %3182 = vmatmul.mubr.bf16.gmra.mrb[0].mxu0 %v993
  %v3183 = vpop.f32.mrb[0].mxu0
  %v3184 = vadd.f32 %v3071, %v3183
  %v3185 = vpop.f32.mrb[0].mxu0
  %v3186 = vadd.f32 %v3073, %v3185
  %v3187 = vpop.f32.mrb[0].mxu0
  %v3188 = vadd.f32 %v3075, %v3187
  %v3189 = vpop.f32.mrb[0].mxu0
  %v3190 = vadd.f32 %v3077, %v3189
  %3191 = vmatprep.mubr.bf16.mxu0 %v1012
  %3192 = vmatmul.mubr.bf16.gmra.mrb[0].mxu0 %v1011
  %v3193 = vpop.f32.mrb[0].mxu0
  %v3194 = vadd.f32 %v3081, %v3193
  %v3195 = vpop.f32.mrb[0].mxu0
  %v3196 = vadd.f32 %v3083, %v3195
  %v3197 = vpop.f32.mrb[0].mxu0
  %v3198 = vadd.f32 %v3085, %v3197
  %v3199 = vpop.f32.mrb[0].mxu0
  %v3200 = vadd.f32 %v3087, %v3199
  %3201 = vmatprep.mubr.bf16.mxu0 %v1030
  %3202 = vmatmul.mubr.bf16.gmra.mrb[0].mxu0 %v1029
  %v3203 = vpop.f32.mrb[0].mxu0
  %v3204 = vadd.f32 %v3091, %v3203
  %v3205 = vpop.f32.mrb[0].mxu0
  %v3206 = vadd.f32 %v3093, %v3205
  %v3207 = vpop.f32.mrb[0].mxu0
  %v3208 = vadd.f32 %v3095, %v3207
  %v3209 = vpop.f32.mrb[0].mxu0
  %v3210 = vadd.f32 %v3097, %v3209
  %3211 = vmatprep.mubr.bf16.mxu0 %v1048
  %3212 = vmatmul.mubr.bf16.gmra.mrb[0].mxu0 %v1047
  %v3213 = vpop.f32.mrb[0].mxu0
  %v3214 = vadd.f32 %v3101, %v3213
  %v3215 = vpop.f32.mrb[0].mxu0
  %v3216 = vadd.f32 %v3103, %v3215
  %v3217 = vpop.f32.mrb[0].mxu0
  %v3218 = vadd.f32 %v3105, %v3217
  %v3219 = vpop.f32.mrb[0].mxu0
  %v3220 = vadd.f32 %v3107, %v3219
  %3221 = vmatprep.mubr.bf16.mxu0 %v1066
  %3222 = vmatmul.mubr.bf16.gmra.mrb[0].mxu0 %v1065
  %v3223 = vpop.f32.mrb[0].mxu0
  %v3224 = vadd.f32 %v3111, %v3223
  %v3225 = vpop.f32.mrb[0].mxu0
  %v3226 = vadd.f32 %v3113, %v3225
  %v3227 = vpop.f32.mrb[0].mxu0
  %v3228 = vadd.f32 %v3115, %v3227
  %v3229 = vpop.f32.mrb[0].mxu0
  %v3230 = vadd.f32 %v3117, %v3229
  %3231 = vmatprep.mubr.bf16.mxu0 %v1084
  %3232 = vmatmul.mubr.bf16.gmra.mrb[0].mxu0 %v1083
  %v3233 = vpop.f32.mrb[0].mxu0
  %v3234 = vadd.f32 %v3121, %v3233
  %v3235 = vpop.f32.mrb[0].mxu0
  %v3236 = vadd.f32 %v3123, %v3235
  %v3237 = vpop.f32.mrb[0].mxu0
  %v3238 = vadd.f32 %v3125, %v3237
  %v3239 = vpop.f32.mrb[0].mxu0
  %v3240 = vadd.f32 %v3127, %v3239
  %3241 = vdwg.mxu0
  %3242 = vmatprep.subr.bf16.mxu0 %v2262
  %3243 = vmatpush1.bf16.msra.mxu0 %v2261
  %3244 = vmatprep.subr.bf16.mxu0 %v2264
  %3245 = vmatpush1.bf16.msra.mxu0 %v2263
  %3246 = vmatprep.subr.bf16.mxu0 %v2266
  %3247 = vmatpush1.bf16.msra.mxu0 %v2265
  %3248 = vmatprep.subr.bf16.mxu0 %v2268
  %3249 = vmatpush1.bf16.msra.mxu0 %v2267
  %3250 = vmatprep.subr.bf16.mxu0 %v2270
  %3251 = vmatpush1.bf16.msra.mxu0 %v2269
  %3252 = vmatprep.subr.bf16.mxu0 %v2272
  %3253 = vmatpush1.bf16.msra.mxu0 %v2271
  %3254 = vmatprep.subr.bf16.mxu0 %v2274
  %3255 = vmatpush1.bf16.msra.mxu0 %v2273
  %3256 = vmatprep.subr.bf16.mxu0 %v2276
  %3257 = vmatpush1.bf16.msra.mxu0 %v2275
  %3258 = vmatprep.subr.bf16.mxu0 %v2278
  %3259 = vmatpush1.bf16.msra.mxu0 %v2277
  %3260 = vmatprep.subr.bf16.mxu0 %v2280
  %3261 = vmatpush1.bf16.msra.mxu0 %v2279
  %3262 = vmatprep.subr.bf16.mxu0 %v2282
  %3263 = vmatpush1.bf16.msra.mxu0 %v2281
  %3264 = vmatprep.subr.bf16.mxu0 %v2284
  %3265 = vmatpush1.bf16.msra.mxu0 %v2283
  %3266 = vmatprep.subr.bf16.mxu0 %v2286
  %3267 = vmatpush1.bf16.msra.mxu0 %v2285
  %3268 = vmatprep.subr.bf16.mxu0 %v2288
  %3269 = vmatpush1.bf16.msra.mxu0 %v2287
  %3270 = vmatprep.subr.bf16.mxu0 %v2290
  %3271 = vmatpush1.bf16.msra.mxu0 %v2289
  %3272 = vmatprep.subr.bf16.mxu0 %v2292
  %3273 = vmatpush1.bf16.msra.mxu0 %v2291
  %3274 = vmatprep.mubr.bf16.mxu0 %v960
  %3275 = vmatmul.mubr.bf16.gmra.mrb[0].mxu0 %v959
  %v3276 = vpop.f32.mrb[0].mxu0
  %v3277 = vadd.f32 %v3164, %v3276
  %v3278 = vpop.f32.mrb[0].mxu0
  %v3279 = vadd.f32 %v3166, %v3278
  %v3280 = vpop.f32.mrb[0].mxu0
  %v3281 = vadd.f32 %v3168, %v3280
  %v3282 = vpop.f32.mrb[0].mxu0
  %v3283 = vadd.f32 %v3170, %v3282
  %3284 = vmatprep.mubr.bf16.mxu0 %v978
  %3285 = vmatmul.mubr.bf16.gmra.mrb[0].mxu0 %v977
  %v3286 = vpop.f32.mrb[0].mxu0
  %v3287 = vadd.f32 %v3174, %v3286
  %v3288 = vpop.f32.mrb[0].mxu0
  %v3289 = vadd.f32 %v3176, %v3288
  %v3290 = vpop.f32.mrb[0].mxu0
  %v3291 = vadd.f32 %v3178, %v3290
  %v3292 = vpop.f32.mrb[0].mxu0
  %v3293 = vadd.f32 %v3180, %v3292
  %3294 = vmatprep.mubr.bf16.mxu0 %v996
  %3295 = vmatmul.mubr.bf16.gmra.mrb[0].mxu0 %v995
  %v3296 = vpop.f32.mrb[0].mxu0
  %v3297 = vadd.f32 %v3184, %v3296
  %v3298 = vpop.f32.mrb[0].mxu0
  %v3299 = vadd.f32 %v3186, %v3298
  %v3300 = vpop.f32.mrb[0].mxu0
  %v3301 = vadd.f32 %v3188, %v3300
  %v3302 = vpop.f32.mrb[0].mxu0
  %v3303 = vadd.f32 %v3190, %v3302
  %3304 = vmatprep.mubr.bf16.mxu0 %v1014
  %3305 = vmatmul.mubr.bf16.gmra.mrb[0].mxu0 %v1013
  %v3306 = vpop.f32.mrb[0].mxu0
  %v3307 = vadd.f32 %v3194, %v3306
  %v3308 = vpop.f32.mrb[0].mxu0
  %v3309 = vadd.f32 %v3196, %v3308
  %v3310 = vpop.f32.mrb[0].mxu0
  %v3311 = vadd.f32 %v3198, %v3310
  %v3312 = vpop.f32.mrb[0].mxu0
  %v3313 = vadd.f32 %v3200, %v3312
  %3314 = vmatprep.mubr.bf16.mxu0 %v1032
  %3315 = vmatmul.mubr.bf16.gmra.mrb[0].mxu0 %v1031
  %v3316 = vpop.f32.mrb[0].mxu0
  %v3317 = vadd.f32 %v3204, %v3316
  %v3318 = vpop.f32.mrb[0].mxu0
  %v3319 = vadd.f32 %v3206, %v3318
  %v3320 = vpop.f32.mrb[0].mxu0
  %v3321 = vadd.f32 %v3208, %v3320
  %v3322 = vpop.f32.mrb[0].mxu0
  %v3323 = vadd.f32 %v3210, %v3322
  %3324 = vmatprep.mubr.bf16.mxu0 %v1050
  %3325 = vmatmul.mubr.bf16.gmra.mrb[0].mxu0 %v1049
  %v3326 = vpop.f32.mrb[0].mxu0
  %v3327 = vadd.f32 %v3214, %v3326
  %v3328 = vpop.f32.mrb[0].mxu0
  %v3329 = vadd.f32 %v3216, %v3328
  %v3330 = vpop.f32.mrb[0].mxu0
  %v3331 = vadd.f32 %v3218, %v3330
  %v3332 = vpop.f32.mrb[0].mxu0
  %v3333 = vadd.f32 %v3220, %v3332
  %3334 = vmatprep.mubr.bf16.mxu0 %v1068
  %3335 = vmatmul.mubr.bf16.gmra.mrb[0].mxu0 %v1067
  %v3336 = vpop.f32.mrb[0].mxu0
  %v3337 = vadd.f32 %v3224, %v3336
  %v3338 = vpop.f32.mrb[0].mxu0
  %v3339 = vadd.f32 %v3226, %v3338
  %v3340 = vpop.f32.mrb[0].mxu0
  %v3341 = vadd.f32 %v3228, %v3340
  %v3342 = vpop.f32.mrb[0].mxu0
  %v3343 = vadd.f32 %v3230, %v3342
  %3344 = vmatprep.mubr.bf16.mxu0 %v1086
  %3345 = vmatmul.mubr.bf16.gmra.mrb[0].mxu0 %v1085
  %v3346 = vpop.f32.mrb[0].mxu0
  %v3347 = vadd.f32 %v3234, %v3346
  %v3348 = vpop.f32.mrb[0].mxu0
  %v3349 = vadd.f32 %v3236, %v3348
  %v3350 = vpop.f32.mrb[0].mxu0
  %v3351 = vadd.f32 %v3238, %v3350
  %v3352 = vpop.f32.mrb[0].mxu0
  %v3353 = vadd.f32 %v3240, %v3352
  %3354 = vdwg.mxu0
  %3355 = vmatprep.subr.bf16.mxu0 %v2294
  %3356 = vmatpush1.bf16.msra.mxu0 %v2293
  %3357 = vmatprep.subr.bf16.mxu0 %v2296
  %3358 = vmatpush1.bf16.msra.mxu0 %v2295
  %3359 = vmatprep.subr.bf16.mxu0 %v2298
  %3360 = vmatpush1.bf16.msra.mxu0 %v2297
  %3361 = vmatprep.subr.bf16.mxu0 %v2300
  %3362 = vmatpush1.bf16.msra.mxu0 %v2299
  %3363 = vmatprep.subr.bf16.mxu0 %v2302
  %3364 = vmatpush1.bf16.msra.mxu0 %v2301
  %3365 = vmatprep.subr.bf16.mxu0 %v2304
  %3366 = vmatpush1.bf16.msra.mxu0 %v2303
  %3367 = vmatprep.subr.bf16.mxu0 %v2306
  %3368 = vmatpush1.bf16.msra.mxu0 %v2305
  %3369 = vmatprep.subr.bf16.mxu0 %v2308
  %3370 = vmatpush1.bf16.msra.mxu0 %v2307
  %3371 = vmatprep.subr.bf16.mxu0 %v2310
  %3372 = vmatpush1.bf16.msra.mxu0 %v2309
  %3373 = vmatprep.subr.bf16.mxu0 %v2312
  %3374 = vmatpush1.bf16.msra.mxu0 %v2311
  %3375 = vmatprep.subr.bf16.mxu0 %v2314
  %3376 = vmatpush1.bf16.msra.mxu0 %v2313
  %3377 = vmatprep.subr.bf16.mxu0 %v2316
  %3378 = vmatpush1.bf16.msra.mxu0 %v2315
  %3379 = vmatprep.subr.bf16.mxu0 %v2318
  %3380 = vmatpush1.bf16.msra.mxu0 %v2317
  %3381 = vmatprep.subr.bf16.mxu0 %v2320
  %3382 = vmatpush1.bf16.msra.mxu0 %v2319
  %3383 = vmatprep.subr.bf16.mxu0 %v2322
  %3384 = vmatpush1.bf16.msra.mxu0 %v2321
  %3385 = vmatprep.subr.bf16.mxu0 %v2324
  %3386 = vmatpush1.bf16.msra.mxu0 %v2323
  %3387 = vmatprep.mubr.bf16.mxu0 %v962
  %3388 = vmatmul.mubr.bf16.gmra.mrb[0].mxu0 %v961
  %v3389 = vpop.f32.mrb[0].mxu0
  %v3390 = vadd.f32 %v3277, %v3389
  %v3391 = vpop.f32.mrb[0].mxu0
  %v3392 = vadd.f32 %v3279, %v3391
  %v3393 = vpop.f32.mrb[0].mxu0
  %v3394 = vadd.f32 %v3281, %v3393
  %v3395 = vpop.f32.mrb[0].mxu0
  %v3396 = vadd.f32 %v3283, %v3395
  %3397 = vmatprep.mubr.bf16.mxu0 %v980
  %3398 = vmatmul.mubr.bf16.gmra.mrb[0].mxu0 %v979
  %v3399 = vpop.f32.mrb[0].mxu0
  %v3400 = vadd.f32 %v3287, %v3399
  %v3401 = vpop.f32.mrb[0].mxu0
  %v3402 = vadd.f32 %v3289, %v3401
  %v3403 = vpop.f32.mrb[0].mxu0
  %v3404 = vadd.f32 %v3291, %v3403
  %v3405 = vpop.f32.mrb[0].mxu0
  %v3406 = vadd.f32 %v3293, %v3405
  %3407 = vmatprep.mubr.bf16.mxu0 %v998
  %3408 = vmatmul.mubr.bf16.gmra.mrb[0].mxu0 %v997
  %v3409 = vpop.f32.mrb[0].mxu0
  %v3410 = vadd.f32 %v3297, %v3409
  %v3411 = vpop.f32.mrb[0].mxu0
  %v3412 = vadd.f32 %v3299, %v3411
  %v3413 = vpop.f32.mrb[0].mxu0
  %v3414 = vadd.f32 %v3301, %v3413
  %v3415 = vpop.f32.mrb[0].mxu0
  %v3416 = vadd.f32 %v3303, %v3415
  %3417 = vmatprep.mubr.bf16.mxu0 %v1016
  %3418 = vmatmul.mubr.bf16.gmra.mrb[0].mxu0 %v1015
  %v3419 = vpop.f32.mrb[0].mxu0
  %v3420 = vadd.f32 %v3307, %v3419
  %v3421 = vpop.f32.mrb[0].mxu0
  %v3422 = vadd.f32 %v3309, %v3421
  %v3423 = vpop.f32.mrb[0].mxu0
  %v3424 = vadd.f32 %v3311, %v3423
  %v3425 = vpop.f32.mrb[0].mxu0
  %v3426 = vadd.f32 %v3313, %v3425
  %3427 = vmatprep.mubr.bf16.mxu0 %v1034
  %3428 = vmatmul.mubr.bf16.gmra.mrb[0].mxu0 %v1033
  %v3429 = vpop.f32.mrb[0].mxu0
  %v3430 = vadd.f32 %v3317, %v3429
  %v3431 = vpop.f32.mrb[0].mxu0
  %v3432 = vadd.f32 %v3319, %v3431
  %v3433 = vpop.f32.mrb[0].mxu0
  %v3434 = vadd.f32 %v3321, %v3433
  %v3435 = vpop.f32.mrb[0].mxu0
  %v3436 = vadd.f32 %v3323, %v3435
  %3437 = vmatprep.mubr.bf16.mxu0 %v1052
  %3438 = vmatmul.mubr.bf16.gmra.mrb[0].mxu0 %v1051
  %v3439 = vpop.f32.mrb[0].mxu0
  %v3440 = vadd.f32 %v3327, %v3439
  %v3441 = vpop.f32.mrb[0].mxu0
  %v3442 = vadd.f32 %v3329, %v3441
  %v3443 = vpop.f32.mrb[0].mxu0
  %v3444 = vadd.f32 %v3331, %v3443
  %v3445 = vpop.f32.mrb[0].mxu0
  %v3446 = vadd.f32 %v3333, %v3445
  %3447 = vmatprep.mubr.bf16.mxu0 %v1070
  %3448 = vmatmul.mubr.bf16.gmra.mrb[0].mxu0 %v1069
  %v3449 = vpop.f32.mrb[0].mxu0
  %v3450 = vadd.f32 %v3337, %v3449
  %v3451 = vpop.f32.mrb[0].mxu0
  %v3452 = vadd.f32 %v3339, %v3451
  %v3453 = vpop.f32.mrb[0].mxu0
  %v3454 = vadd.f32 %v3341, %v3453
  %v3455 = vpop.f32.mrb[0].mxu0
  %v3456 = vadd.f32 %v3343, %v3455
  %3457 = vmatprep.mubr.bf16.mxu0 %v1088
  %3458 = vmatmul.mubr.bf16.gmra.mrb[0].mxu0 %v1087
  %v3459 = vpop.f32.mrb[0].mxu0
  %v3460 = vadd.f32 %v3347, %v3459
  %v3461 = vpop.f32.mrb[0].mxu0
  %v3462 = vadd.f32 %v3349, %v3461
  %v3463 = vpop.f32.mrb[0].mxu0
  %v3464 = vadd.f32 %v3351, %v3463
  %v3465 = vpop.f32.mrb[0].mxu0
  %v3466 = vadd.f32 %v3353, %v3465
  %3467 = vdwg.mxu0
  %3468 = vmatprep.subr.bf16.mxu0 %v2326
  %3469 = vmatpush1.bf16.msra.mxu0 %v2325
  %3470 = vmatprep.subr.bf16.mxu0 %v2328
  %3471 = vmatpush1.bf16.msra.mxu0 %v2327
  %3472 = vmatprep.subr.bf16.mxu0 %v2330
  %3473 = vmatpush1.bf16.msra.mxu0 %v2329
  %3474 = vmatprep.subr.bf16.mxu0 %v2332
  %3475 = vmatpush1.bf16.msra.mxu0 %v2331
  %3476 = vmatprep.subr.bf16.mxu0 %v2334
  %3477 = vmatpush1.bf16.msra.mxu0 %v2333
  %3478 = vmatprep.subr.bf16.mxu0 %v2336
  %3479 = vmatpush1.bf16.msra.mxu0 %v2335
  %3480 = vmatprep.subr.bf16.mxu0 %v2338
  %3481 = vmatpush1.bf16.msra.mxu0 %v2337
  %3482 = vmatprep.subr.bf16.mxu0 %v2340
  %3483 = vmatpush1.bf16.msra.mxu0 %v2339
  %3484 = vmatprep.subr.bf16.mxu0 %v2342
  %3485 = vmatpush1.bf16.msra.mxu0 %v2341
  %3486 = vmatprep.subr.bf16.mxu0 %v2344
  %3487 = vmatpush1.bf16.msra.mxu0 %v2343
  %3488 = vmatprep.subr.bf16.mxu0 %v2346
  %3489 = vmatpush1.bf16.msra.mxu0 %v2345
  %3490 = vmatprep.subr.bf16.mxu0 %v2348
  %3491 = vmatpush1.bf16.msra.mxu0 %v2347
  %3492 = vmatprep.subr.bf16.mxu0 %v2350
  %3493 = vmatpush1.bf16.msra.mxu0 %v2349
  %3494 = vmatprep.subr.bf16.mxu0 %v2352
  %3495 = vmatpush1.bf16.msra.mxu0 %v2351
  %3496 = vmatprep.subr.bf16.mxu0 %v2354
  %3497 = vmatpush1.bf16.msra.mxu0 %v2353
  %3498 = vmatprep.subr.bf16.mxu0 %v2356
  %3499 = vmatpush1.bf16.msra.mxu0 %v2355
  %3500 = vmatprep.mubr.bf16.mxu0 %v964
  %3501 = vmatmul.mubr.bf16.gmra.mrb[0].mxu0 %v963
  %v3502 = vpop.f32.mrb[0].mxu0
  %v3503 = vadd.f32 %v3390, %v3502
  %v3504 = vpop.f32.mrb[0].mxu0
  %v3505 = vadd.f32 %v3392, %v3504
  %v3506 = vpop.f32.mrb[0].mxu0
  %v3507 = vadd.f32 %v3394, %v3506
  %v3508 = vpop.f32.mrb[0].mxu0
  %v3509 = vadd.f32 %v3396, %v3508
  %3510 = vmatprep.mubr.bf16.mxu0 %v982
  %3511 = vmatmul.mubr.bf16.gmra.mrb[0].mxu0 %v981
  %v3512 = vpop.f32.mrb[0].mxu0
  %v3513 = vadd.f32 %v3400, %v3512
  %v3514 = vpop.f32.mrb[0].mxu0
  %v3515 = vadd.f32 %v3402, %v3514
  %v3516 = vpop.f32.mrb[0].mxu0
  %v3517 = vadd.f32 %v3404, %v3516
  %v3518 = vpop.f32.mrb[0].mxu0
  %v3519 = vadd.f32 %v3406, %v3518
  %3520 = vmatprep.mubr.bf16.mxu0 %v1000
  %3521 = vmatmul.mubr.bf16.gmra.mrb[0].mxu0 %v999
  %v3522 = vpop.f32.mrb[0].mxu0
  %v3523 = vadd.f32 %v3410, %v3522
  %v3524 = vpop.f32.mrb[0].mxu0
  %v3525 = vadd.f32 %v3412, %v3524
  %v3526 = vpop.f32.mrb[0].mxu0
  %v3527 = vadd.f32 %v3414, %v3526
  %v3528 = vpop.f32.mrb[0].mxu0
  %v3529 = vadd.f32 %v3416, %v3528
  %3530 = vmatprep.mubr.bf16.mxu0 %v1018
  %3531 = vmatmul.mubr.bf16.gmra.mrb[0].mxu0 %v1017
  %v3532 = vpop.f32.mrb[0].mxu0
  %v3533 = vadd.f32 %v3420, %v3532
  %v3534 = vpop.f32.mrb[0].mxu0
  %v3535 = vadd.f32 %v3422, %v3534
  %v3536 = vpop.f32.mrb[0].mxu0
  %v3537 = vadd.f32 %v3424, %v3536
  %v3538 = vpop.f32.mrb[0].mxu0
  %v3539 = vadd.f32 %v3426, %v3538
  %3540 = vmatprep.mubr.bf16.mxu0 %v1036
  %3541 = vmatmul.mubr.bf16.gmra.mrb[0].mxu0 %v1035
  %v3542 = vpop.f32.mrb[0].mxu0
  %v3543 = vadd.f32 %v3430, %v3542
  %v3544 = vpop.f32.mrb[0].mxu0
  %v3545 = vadd.f32 %v3432, %v3544
  %v3546 = vpop.f32.mrb[0].mxu0
  %v3547 = vadd.f32 %v3434, %v3546
  %v3548 = vpop.f32.mrb[0].mxu0
  %v3549 = vadd.f32 %v3436, %v3548
  %3550 = vmatprep.mubr.bf16.mxu0 %v1054
  %3551 = vmatmul.mubr.bf16.gmra.mrb[0].mxu0 %v1053
  %v3552 = vpop.f32.mrb[0].mxu0
  %v3553 = vadd.f32 %v3440, %v3552
  %v3554 = vpop.f32.mrb[0].mxu0
  %v3555 = vadd.f32 %v3442, %v3554
  %v3556 = vpop.f32.mrb[0].mxu0
  %v3557 = vadd.f32 %v3444, %v3556
  %v3558 = vpop.f32.mrb[0].mxu0
  %v3559 = vadd.f32 %v3446, %v3558
  %3560 = vmatprep.mubr.bf16.mxu0 %v1072
  %3561 = vmatmul.mubr.bf16.gmra.mrb[0].mxu0 %v1071
  %v3562 = vpop.f32.mrb[0].mxu0
  %v3563 = vadd.f32 %v3450, %v3562
  %v3564 = vpop.f32.mrb[0].mxu0
  %v3565 = vadd.f32 %v3452, %v3564
  %v3566 = vpop.f32.mrb[0].mxu0
  %v3567 = vadd.f32 %v3454, %v3566
  %v3568 = vpop.f32.mrb[0].mxu0
  %v3569 = vadd.f32 %v3456, %v3568
  %3570 = vmatprep.mubr.bf16.mxu0 %v1090
  %3571 = vmatmul.mubr.bf16.gmra.mrb[0].mxu0 %v1089
  %v3572 = vpop.f32.mrb[0].mxu0
  %v3573 = vadd.f32 %v3460, %v3572
  %v3574 = vpop.f32.mrb[0].mxu0
  %v3575 = vadd.f32 %v3462, %v3574
  %v3576 = vpop.f32.mrb[0].mxu0
  %v3577 = vadd.f32 %v3464, %v3576
  %v3578 = vpop.f32.mrb[0].mxu0
  %v3579 = vadd.f32 %v3466, %v3578
  %3580 = vdwg.mxu0
  %3581 = vmatprep.subr.bf16.mxu0 %v2358
  %3582 = vmatpush1.bf16.msra.mxu0 %v2357
  %3583 = vmatprep.subr.bf16.mxu0 %v2360
  %3584 = vmatpush1.bf16.msra.mxu0 %v2359
  %3585 = vmatprep.subr.bf16.mxu0 %v2362
  %3586 = vmatpush1.bf16.msra.mxu0 %v2361
  %3587 = vmatprep.subr.bf16.mxu0 %v2364
  %3588 = vmatpush1.bf16.msra.mxu0 %v2363
  %3589 = vmatprep.subr.bf16.mxu0 %v2366
  %3590 = vmatpush1.bf16.msra.mxu0 %v2365
  %3591 = vmatprep.subr.bf16.mxu0 %v2368
  %3592 = vmatpush1.bf16.msra.mxu0 %v2367
  %3593 = vmatprep.subr.bf16.mxu0 %v2370
  %3594 = vmatpush1.bf16.msra.mxu0 %v2369
  %3595 = vmatprep.subr.bf16.mxu0 %v2372
  %3596 = vmatpush1.bf16.msra.mxu0 %v2371
  %3597 = vmatprep.subr.bf16.mxu0 %v2374
  %3598 = vmatpush1.bf16.msra.mxu0 %v2373
  %3599 = vmatprep.subr.bf16.mxu0 %v2376
  %3600 = vmatpush1.bf16.msra.mxu0 %v2375
  %3601 = vmatprep.subr.bf16.mxu0 %v2378
  %3602 = vmatpush1.bf16.msra.mxu0 %v2377
  %3603 = vmatprep.subr.bf16.mxu0 %v2380
  %3604 = vmatpush1.bf16.msra.mxu0 %v2379
  %3605 = vmatprep.subr.bf16.mxu0 %v2382
  %3606 = vmatpush1.bf16.msra.mxu0 %v2381
  %3607 = vmatprep.subr.bf16.mxu0 %v2384
  %3608 = vmatpush1.bf16.msra.mxu0 %v2383
  %3609 = vmatprep.subr.bf16.mxu0 %v2386
  %3610 = vmatpush1.bf16.msra.mxu0 %v2385
  %3611 = vmatprep.subr.bf16.mxu0 %v2388
  %3612 = vmatpush1.bf16.msra.mxu0 %v2387
  %3613 = vmatprep.mubr.bf16.mxu0 %v966
  %3614 = vmatmul.mubr.bf16.gmra.mrb[0].mxu0 %v965
  %v3615 = vpop.f32.mrb[0].mxu0
  %v3616 = vadd.f32 %v3503, %v3615
  %v3617 = vpop.f32.mrb[0].mxu0
  %v3618 = vadd.f32 %v3505, %v3617
  %v3619 = vpop.f32.mrb[0].mxu0
  %v3620 = vadd.f32 %v3507, %v3619
  %v3621 = vpop.f32.mrb[0].mxu0
  %v3622 = vadd.f32 %v3509, %v3621
  %3623 = vmatprep.mubr.bf16.mxu0 %v984
  %3624 = vmatmul.mubr.bf16.gmra.mrb[0].mxu0 %v983
  %v3625 = vpop.f32.mrb[0].mxu0
  %v3626 = vadd.f32 %v3513, %v3625
  %v3627 = vpop.f32.mrb[0].mxu0
  %v3628 = vadd.f32 %v3515, %v3627
  %v3629 = vpop.f32.mrb[0].mxu0
  %v3630 = vadd.f32 %v3517, %v3629
  %v3631 = vpop.f32.mrb[0].mxu0
  %v3632 = vadd.f32 %v3519, %v3631
  %3633 = vmatprep.mubr.bf16.mxu0 %v1002
  %3634 = vmatmul.mubr.bf16.gmra.mrb[0].mxu0 %v1001
  %v3635 = vpop.f32.mrb[0].mxu0
  %v3636 = vadd.f32 %v3523, %v3635
  %v3637 = vpop.f32.mrb[0].mxu0
  %v3638 = vadd.f32 %v3525, %v3637
  %v3639 = vpop.f32.mrb[0].mxu0
  %v3640 = vadd.f32 %v3527, %v3639
  %v3641 = vpop.f32.mrb[0].mxu0
  %v3642 = vadd.f32 %v3529, %v3641
  %3643 = vmatprep.mubr.bf16.mxu0 %v1020
  %3644 = vmatmul.mubr.bf16.gmra.mrb[0].mxu0 %v1019
  %v3645 = vpop.f32.mrb[0].mxu0
  %v3646 = vadd.f32 %v3533, %v3645
  %v3647 = vpop.f32.mrb[0].mxu0
  %v3648 = vadd.f32 %v3535, %v3647
  %v3649 = vpop.f32.mrb[0].mxu0
  %v3650 = vadd.f32 %v3537, %v3649
  %v3651 = vpop.f32.mrb[0].mxu0
  %v3652 = vadd.f32 %v3539, %v3651
  %3653 = vmatprep.mubr.bf16.mxu0 %v1038
  %3654 = vmatmul.mubr.bf16.gmra.mrb[0].mxu0 %v1037
  %v3655 = vpop.f32.mrb[0].mxu0
  %v3656 = vadd.f32 %v3543, %v3655
  %v3657 = vpop.f32.mrb[0].mxu0
  %v3658 = vadd.f32 %v3545, %v3657
  %v3659 = vpop.f32.mrb[0].mxu0
  %v3660 = vadd.f32 %v3547, %v3659
  %v3661 = vpop.f32.mrb[0].mxu0
  %v3662 = vadd.f32 %v3549, %v3661
  %3663 = vmatprep.mubr.bf16.mxu0 %v1056
  %3664 = vmatmul.mubr.bf16.gmra.mrb[0].mxu0 %v1055
  %v3665 = vpop.f32.mrb[0].mxu0
  %v3666 = vadd.f32 %v3553, %v3665
  %v3667 = vpop.f32.mrb[0].mxu0
  %v3668 = vadd.f32 %v3555, %v3667
  %v3669 = vpop.f32.mrb[0].mxu0
  %v3670 = vadd.f32 %v3557, %v3669
  %v3671 = vpop.f32.mrb[0].mxu0
  %v3672 = vadd.f32 %v3559, %v3671
  %3673 = vmatprep.mubr.bf16.mxu0 %v1074
  %3674 = vmatmul.mubr.bf16.gmra.mrb[0].mxu0 %v1073
  %v3675 = vpop.f32.mrb[0].mxu0
  %v3676 = vadd.f32 %v3563, %v3675
  %v3677 = vpop.f32.mrb[0].mxu0
  %v3678 = vadd.f32 %v3565, %v3677
  %v3679 = vpop.f32.mrb[0].mxu0
  %v3680 = vadd.f32 %v3567, %v3679
  %v3681 = vpop.f32.mrb[0].mxu0
  %v3682 = vadd.f32 %v3569, %v3681
  %3683 = vmatprep.mubr.bf16.mxu0 %v1092
  %3684 = vmatmul.mubr.bf16.gmra.mrb[0].mxu0 %v1091
  %v3685 = vpop.f32.mrb[0].mxu0
  %v3686 = vadd.f32 %v3573, %v3685
  %v3687 = vpop.f32.mrb[0].mxu0
  %v3688 = vadd.f32 %v3575, %v3687
  %v3689 = vpop.f32.mrb[0].mxu0
  %v3690 = vadd.f32 %v3577, %v3689
  %v3691 = vpop.f32.mrb[0].mxu0
  %v3692 = vadd.f32 %v3579, %v3691
  %3693 = vdwg.mxu0
  %v3694 = vadd.f32 %v53, %v3616
  %v3695 = vadd.f32 %v54, %v3618
  %v3696 = vadd.f32 %v55, %v3620
  %v3697 = vadd.f32 %v56, %v3622
  %v3698 = vadd.f32 %v57, %v3626
  %v3699 = vadd.f32 %v58, %v3628
  %v3700 = vadd.f32 %v59, %v3630
  %v3701 = vadd.f32 %v60, %v3632
  %v3702 = vadd.f32 %v61, %v3636
  %v3703 = vadd.f32 %v62, %v3638
  %v3704 = vadd.f32 %v63, %v3640
  %v3705 = vadd.f32 %v64, %v3642
  %v3706 = vadd.f32 %v65, %v3646
  %v3707 = vadd.f32 %v66, %v3648
  %v3708 = vadd.f32 %v67, %v3650
  %v3709 = vadd.f32 %v68, %v3652
  %v3710 = vadd.f32 %v69, %v3656
  %v3711 = vadd.f32 %v70, %v3658
  %v3712 = vadd.f32 %v71, %v3660
  %v3713 = vadd.f32 %v72, %v3662
  %v3714 = vadd.f32 %v73, %v3666
  %v3715 = vadd.f32 %v74, %v3668
  %v3716 = vadd.f32 %v75, %v3670
  %v3717 = vadd.f32 %v76, %v3672
  %v3718 = vadd.f32 %v77, %v3676
  %v3719 = vadd.f32 %v78, %v3678
  %v3720 = vadd.f32 %v79, %v3680
  %v3721 = vadd.f32 %v80, %v3682
  %v3722 = vadd.f32 %v81, %v3686
  %v3723 = vadd.f32 %v82, %v3688
  %v3724 = vadd.f32 %v83, %v3690
  %v3725 = vadd.f32 %v84, %v3692
  %3726 = vst [vmem:[#allocation2] sm:$0xff] %v3694
  %3727 = vst [vmem:[#allocation2 + $0x8] sm:$0xff] %v3695
  %3728 = vst [vmem:[#allocation2 + $0x10] sm:$0xff] %v3696
  %3729 = vst [vmem:[#allocation2 + $0x18] sm:$0xff] %v3697
  %3730 = vst [vmem:[#allocation2 + $0x20] sm:$0xff] %v3698
  %3731 = vst [vmem:[#allocation2 + $0x28] sm:$0xff] %v3699
  %3732 = vst [vmem:[#allocation2 + $0x30] sm:$0xff] %v3700
  %3733 = vst [vmem:[#allocation2 + $0x38] sm:$0xff] %v3701
  %3734 = vst [vmem:[#allocation2 + $0x40] sm:$0xff] %v3702
  %3735 = vst [vmem:[#allocation2 + $0x48] sm:$0xff] %v3703
  %3736 = vst [vmem:[#allocation2 + $0x50] sm:$0xff] %v3704
  %3737 = vst [vmem:[#allocation2 + $0x58] sm:$0xff] %v3705
  %3738 = vst [vmem:[#allocation2 + $0x60] sm:$0xff] %v3706
  %3739 = vst [vmem:[#allocation2 + $0x68] sm:$0xff] %v3707
  %3740 = vst [vmem:[#allocation2 + $0x70] sm:$0xff] %v3708
  %3741 = vst [vmem:[#allocation2 + $0x78] sm:$0xff] %v3709
  %3742 = vst [vmem:[#allocation2 + $0x80] sm:$0xff] %v3710
  %3743 = vst [vmem:[#allocation2 + $0x88] sm:$0xff] %v3711
  %3744 = vst [vmem:[#allocation2 + $0x90] sm:$0xff] %v3712
  %3745 = vst [vmem:[#allocation2 + $0x98] sm:$0xff] %v3713
  %3746 = vst [vmem:[#allocation2 + $0xa0] sm:$0xff] %v3714
  %3747 = vst [vmem:[#allocation2 + $0xa8] sm:$0xff] %v3715
  %3748 = vst [vmem:[#allocation2 + $0xb0] sm:$0xff] %v3716
  %3749 = vst [vmem:[#allocation2 + $0xb8] sm:$0xff] %v3717
  %3750 = vst [vmem:[#allocation2 + $0xc0] sm:$0xff] %v3718
  %3751 = vst [vmem:[#allocation2 + $0xc8] sm:$0xff] %v3719
  %3752 = vst [vmem:[#allocation2 + $0xd0] sm:$0xff] %v3720
  %3753 = vst [vmem:[#allocation2 + $0xd8] sm:$0xff] %v3721
  %3754 = vst [vmem:[#allocation2 + $0xe0] sm:$0xff] %v3722
  %3755 = vst [vmem:[#allocation2 + $0xe8] sm:$0xff] %v3723
  %3756 = vst [vmem:[#allocation2 + $0xf0] sm:$0xff] %v3724
  %3757 = vst [vmem:[#allocation2 + $0xf8] sm:$0xff] %v3725
  // Predicated region
  $region22: #{extra_layers_forward.7} parent=0 // pred_check
    %p3758 = pneg %p17
  $region23: #{extra_layers_forward.7} parent=0 // pred_check_branch
    %3760 = sbr.rel (%p3758) target = $region25
  $region24: #{extra_layers_forward.7} parent=0 // pred_region
    %v3761 = vld [vmem:[#allocation2] sm:$0xff]
    %v3762 = vld [vmem:[#allocation2 + $0x8] sm:$0xff]
    %v3763 = vld [vmem:[#allocation2 + $0x10] sm:$0xff]
    %v3764 = vld [vmem:[#allocation2 + $0x18] sm:$0xff]
    %v3765 = vld [vmem:[#allocation2 + $0x20] sm:$0xff]
    %v3766 = vld [vmem:[#allocation2 + $0x28] sm:$0xff]
    %v3767 = vld [vmem:[#allocation2 + $0x30] sm:$0xff]
    %v3768 = vld [vmem:[#allocation2 + $0x38] sm:$0xff]
    %v3769 = vld [vmem:[#allocation2 + $0x40] sm:$0xff]
    %v3770 = vld [vmem:[#allocation2 + $0x48] sm:$0xff]
    %v3771 = vld [vmem:[#allocation2 + $0x50] sm:$0xff]
    %v3772 = vld [vmem:[#allocation2 + $0x58] sm:$0xff]
    %v3773 = vld [vmem:[#allocation2 + $0x60] sm:$0xff]
    %v3774 = vld [vmem:[#allocation2 + $0x68] sm:$0xff]
    %v3775 = vld [vmem:[#allocation2 + $0x70] sm:$0xff]
    %v3776 = vld [vmem:[#allocation2 + $0x78] sm:$0xff]
    %v3777 = vld [vmem:[#allocation2 + $0x80] sm:$0xff]
    %v3778 = vld [vmem:[#allocation2 + $0x88] sm:$0xff]
    %v3779 = vld [vmem:[#allocation2 + $0x90] sm:$0xff]
    %v3780 = vld [vmem:[#allocation2 + $0x98] sm:$0xff]
    %v3781 = vld [vmem:[#allocation2 + $0xa0] sm:$0xff]
    %v3782 = vld [vmem:[#allocation2 + $0xa8] sm:$0xff]
    %v3783 = vld [vmem:[#allocation2 + $0xb0] sm:$0xff]
    %v3784 = vld [vmem:[#allocation2 + $0xb8] sm:$0xff]
    %v3785 = vld [vmem:[#allocation2 + $0xc0] sm:$0xff]
    %v3786 = vld [vmem:[#allocation2 + $0xc8] sm:$0xff]
    %v3787 = vld [vmem:[#allocation2 + $0xd0] sm:$0xff]
    %v3788 = vld [vmem:[#allocation2 + $0xd8] sm:$0xff]
    %v3789 = vld [vmem:[#allocation2 + $0xe0] sm:$0xff]
    %v3790 = vld [vmem:[#allocation2 + $0xe8] sm:$0xff]
    %v3791 = vld [vmem:[#allocation2 + $0xf0] sm:$0xff]
    %v3792 = vld [vmem:[#allocation2 + $0xf8] sm:$0xff]
    %v3793 = vld [vmem:[%s2] sm:$0x3]
    %v3795 = vlaneseq
    %v3796 = vshrl.u32 %v3795, 7
    %v3797 = vsub.s32 0, %v3796
    %v3798 = vrot.slane %v3793, %v3797
    %v3799 = vlaneseq
    %v3800 = vshrl.u32 %v3799, 7
    %v3801 = vsub.s32 1, %v3800
    %v3802 = vrot.slane %v3793, %v3801
    %v3805 = vmul.f32 %v3761, %v3798
    %v3806 = vmul.f32 %v3762, %v3802
    %v3807 = vmul.f32 %v3763, %v3798
    %v3808 = vmul.f32 %v3764, %v3802
    %v3809 = vmul.f32 %v3765, %v3798
    %v3810 = vmul.f32 %v3766, %v3802
    %v3811 = vmul.f32 %v3767, %v3798
    %v3812 = vmul.f32 %v3768, %v3802
    %v3813 = vmul.f32 %v3769, %v3798
    %v3814 = vmul.f32 %v3770, %v3802
    %v3815 = vmul.f32 %v3771, %v3798
    %v3816 = vmul.f32 %v3772, %v3802
    %v3817 = vmul.f32 %v3773, %v3798
    %v3818 = vmul.f32 %v3774, %v3802
    %v3819 = vmul.f32 %v3775, %v3798
    %v3820 = vmul.f32 %v3776, %v3802
    %v3821 = vmul.f32 %v3777, %v3798
    %v3822 = vmul.f32 %v3778, %v3802
    %v3823 = vmul.f32 %v3779, %v3798
    %v3824 = vmul.f32 %v3780, %v3802
    %v3825 = vmul.f32 %v3781, %v3798
    %v3826 = vmul.f32 %v3782, %v3802
    %v3827 = vmul.f32 %v3783, %v3798
    %v3828 = vmul.f32 %v3784, %v3802
    %v3829 = vmul.f32 %v3785, %v3798
    %v3830 = vmul.f32 %v3786, %v3802
    %v3831 = vmul.f32 %v3787, %v3798
    %v3832 = vmul.f32 %v3788, %v3802
    %v3833 = vmul.f32 %v3789, %v3798
    %v3834 = vmul.f32 %v3790, %v3802
    %v3835 = vmul.f32 %v3791, %v3798
    %v3836 = vmul.f32 %v3792, %v3802
    %v3837 = vld [vmem:[%s3] sm:$0x3]
    %v3839 = vlaneseq
    %v3840 = vshrl.u32 %v3839, 7
    %v3841 = vsub.s32 0, %v3840
    %v3842 = vrot.slane %v3837, %v3841
    %v3843 = vlaneseq
    %v3844 = vshrl.u32 %v3843, 7
    %v3845 = vsub.s32 1, %v3844
    %v3846 = vrot.slane %v3837, %v3845
    %v3849 = vadd.f32 %v3805, %v3842
    %v3850 = vadd.f32 %v3806, %v3846
    %v3851 = vadd.f32 %v3807, %v3842
    %v3852 = vadd.f32 %v3808, %v3846
    %v3853 = vadd.f32 %v3809, %v3842
    %v3854 = vadd.f32 %v3810, %v3846
    %v3855 = vadd.f32 %v3811, %v3842
    %v3856 = vadd.f32 %v3812, %v3846
    %v3857 = vadd.f32 %v3813, %v3842
    %v3858 = vadd.f32 %v3814, %v3846
    %v3859 = vadd.f32 %v3815, %v3842
    %v3860 = vadd.f32 %v3816, %v3846
    %v3861 = vadd.f32 %v3817, %v3842
    %v3862 = vadd.f32 %v3818, %v3846
    %v3863 = vadd.f32 %v3819, %v3842
    %v3864 = vadd.f32 %v3820, %v3846
    %v3865 = vadd.f32 %v3821, %v3842
    %v3866 = vadd.f32 %v3822, %v3846
    %v3867 = vadd.f32 %v3823, %v3842
    %v3868 = vadd.f32 %v3824, %v3846
    %v3869 = vadd.f32 %v3825, %v3842
    %v3870 = vadd.f32 %v3826, %v3846
    %v3871 = vadd.f32 %v3827, %v3842
    %v3872 = vadd.f32 %v3828, %v3846
    %v3873 = vadd.f32 %v3829, %v3842
    %v3874 = vadd.f32 %v3830, %v3846
    %v3875 = vadd.f32 %v3831, %v3842
    %v3876 = vadd.f32 %v3832, %v3846
    %v3877 = vadd.f32 %v3833, %v3842
    %v3878 = vadd.f32 %v3834, %v3846
    %v3879 = vadd.f32 %v3835, %v3842
    %v3880 = vadd.f32 %v3836, %v3846
    %v3881 = vmax.f32 %v3849, 0.0
    %v3882 = vmax.f32 %v3850, 0.0
    %v3883 = vmax.f32 %v3851, 0.0
    %v3884 = vmax.f32 %v3852, 0.0
    %v3885 = vmax.f32 %v3853, 0.0
    %v3886 = vmax.f32 %v3854, 0.0
    %v3887 = vmax.f32 %v3855, 0.0
    %v3888 = vmax.f32 %v3856, 0.0
    %v3889 = vmax.f32 %v3857, 0.0
    %v3890 = vmax.f32 %v3858, 0.0
    %v3891 = vmax.f32 %v3859, 0.0
    %v3892 = vmax.f32 %v3860, 0.0
    %v3893 = vmax.f32 %v3861, 0.0
    %v3894 = vmax.f32 %v3862, 0.0
    %v3895 = vmax.f32 %v3863, 0.0
    %v3896 = vmax.f32 %v3864, 0.0
    %v3897 = vmax.f32 %v3865, 0.0
    %v3898 = vmax.f32 %v3866, 0.0
    %v3899 = vmax.f32 %v3867, 0.0
    %v3900 = vmax.f32 %v3868, 0.0
    %v3901 = vmax.f32 %v3869, 0.0
    %v3902 = vmax.f32 %v3870, 0.0
    %v3903 = vmax.f32 %v3871, 0.0
    %v3904 = vmax.f32 %v3872, 0.0
    %v3905 = vmax.f32 %v3873, 0.0
    %v3906 = vmax.f32 %v3874, 0.0
    %v3907 = vmax.f32 %v3875, 0.0
    %v3908 = vmax.f32 %v3876, 0.0
    %v3909 = vmax.f32 %v3877, 0.0
    %v3910 = vmax.f32 %v3878, 0.0
    %v3911 = vmax.f32 %v3879, 0.0
    %v3912 = vmax.f32 %v3880, 0.0
    %3913 = vst [vmem:[%s4] sm:$0xff] %v3881
    %3914 = vst [vmem:[%s4 + $0x8] sm:$0xff] %v3882
    %3915 = vst [vmem:[%s4 + $0x10] sm:$0xff] %v3883
    %3916 = vst [vmem:[%s4 + $0x18] sm:$0xff] %v3884
    %3917 = vst [vmem:[%s4 + $0x20] sm:$0xff] %v3885
    %3918 = vst [vmem:[%s4 + $0x28] sm:$0xff] %v3886
    %3919 = vst [vmem:[%s4 + $0x30] sm:$0xff] %v3887
    %3920 = vst [vmem:[%s4 + $0x38] sm:$0xff] %v3888
    %3921 = vst [vmem:[%s4 + $0x40] sm:$0xff] %v3889
    %3922 = vst [vmem:[%s4 + $0x48] sm:$0xff] %v3890
    %3923 = vst [vmem:[%s4 + $0x50] sm:$0xff] %v3891
    %3924 = vst [vmem:[%s4 + $0x58] sm:$0xff] %v3892
    %3925 = vst [vmem:[%s4 + $0x60] sm:$0xff] %v3893
    %3926 = vst [vmem:[%s4 + $0x68] sm:$0xff] %v3894
    %3927 = vst [vmem:[%s4 + $0x70] sm:$0xff] %v3895
    %3928 = vst [vmem:[%s4 + $0x78] sm:$0xff] %v3896
    %3929 = vst [vmem:[%s4 + $0x80] sm:$0xff] %v3897
    %3930 = vst [vmem:[%s4 + $0x88] sm:$0xff] %v3898
    %3931 = vst [vmem:[%s4 + $0x90] sm:$0xff] %v3899
    %3932 = vst [vmem:[%s4 + $0x98] sm:$0xff] %v3900
    %3933 = vst [vmem:[%s4 + $0xa0] sm:$0xff] %v3901
    %3934 = vst [vmem:[%s4 + $0xa8] sm:$0xff] %v3902
    %3935 = vst [vmem:[%s4 + $0xb0] sm:$0xff] %v3903
    %3936 = vst [vmem:[%s4 + $0xb8] sm:$0xff] %v3904
    %3937 = vst [vmem:[%s4 + $0xc0] sm:$0xff] %v3905
    %3938 = vst [vmem:[%s4 + $0xc8] sm:$0xff] %v3906
    %3939 = vst [vmem:[%s4 + $0xd0] sm:$0xff] %v3907
    %3940 = vst [vmem:[%s4 + $0xd8] sm:$0xff] %v3908
    %3941 = vst [vmem:[%s4 + $0xe0] sm:$0xff] %v3909
    %3942 = vst [vmem:[%s4 + $0xe8] sm:$0xff] %v3910
    %3943 = vst [vmem:[%s4 + $0xf0] sm:$0xff] %v3911
    %3944 = vst [vmem:[%s4 + $0xf8] sm:$0xff] %v3912
  $region25: #{extra_layers_forward.7} parent=0 // pred_fallthru
    _
  // Predicated region
  $region26: #{extra_layers_forward.7} parent=0 // pred_check
    _
  $region27: #{extra_layers_forward.7} parent=0 // pred_check_branch
    %3946 = sbr.rel (0) target = $region29
  $region28: #{extra_layers_forward.7} parent=0 // pred_region
    _
  $region29: #{extra_layers_forward.7} parent=0 // pred_fallthru
    _
  // Predicated region
  $region30: #{extra_layers_forward.7} parent=0 // pred_check
    _
  $region31: #{extra_layers_forward.7} parent=0 // pred_check_branch
    %3948 = sbr.rel (0) target = $region33
  $region32: #{extra_layers_forward.7} parent=0 // pred_region
    _
  $region33: #{extra_layers_forward.7} parent=0 // pred_fallthru
    _

// kernel: extra_layers_forward.9
$region0: #{extra_layers_forward.9}
  #allocation0 [shape = 'u32[]', space=smem, size = 0x4, offset = 0x4, fixed_abs, tag = 'smem constant byte address 0x4 - core index']
  #allocation1 [shape = 'u32[144,128]{1,0:T(1,128)}', space=vmem, size = 0x12000, scoped, tag = 'internal scratch']
  #allocation2 [shape = 'f32[128,256]{1,0:T(8,128)}', space=vmem, size = 0x20000, scoped, tag = 'scratch operand']
  %s0 = inlined_call_operand.vmem [shape: bf16[128,1152], index: 0, kind: input, shape index: {}]
  %s1 = inlined_call_operand.vmem [shape: bf16[1152,256], index: 1, kind: input, shape index: {}]
  %s2 = inlined_call_operand.vmem [shape: f32[1,256], index: 2, kind: input, shape index: {}]
  %s3 = inlined_call_operand.vmem [shape: f32[1,256], index: 3, kind: input, shape index: {}]
  %s4 = inlined_call_operand.vmem [shape: f32[128,256], index: 4, kind: output, shape index: {}]
  %s5 = sld [smem:[#allocation0]]
  $region34: #{extra_layers_forward.9} parent=0
    _
  %s7 = ssub.s32 1, %s5
  %s8 = scalar_select 0, %s7, %s5
  // Predicated region
  $region2: #{extra_layers_forward.9} parent=0 // pred_check
    _
  $region3: #{extra_layers_forward.9} parent=0 // pred_check_branch
    %10 = sbr.rel (0) target = $region5
  $region4: #{extra_layers_forward.9} parent=0 // pred_region
    _
  $region5: #{extra_layers_forward.9} parent=0 // pred_fallthru
    _
  // Predicated region
  $region6: #{extra_layers_forward.9} parent=0 // pred_check
    _
  $region7: #{extra_layers_forward.9} parent=0 // pred_check_branch
    %12 = sbr.rel (0) target = $region9
  $region8: #{extra_layers_forward.9} parent=0 // pred_region
    _
  $region9: #{extra_layers_forward.9} parent=0 // pred_fallthru
    _
  // Predicated region
  $region10: #{extra_layers_forward.9} parent=0 // pred_check
    _
  $region11: #{extra_layers_forward.9} parent=0 // pred_check_branch
    %14 = sbr.rel (0) target = $region13
  $region12: #{extra_layers_forward.9} parent=0 // pred_region
    _
  $region13: #{extra_layers_forward.9} parent=0 // pred_fallthru
    _
  // Predicated region
  $region14: #{extra_layers_forward.9} parent=0 // pred_check
    _
  $region15: #{extra_layers_forward.9} parent=0 // pred_check_branch
    %16 = sbr.rel (0) target = $region17
  $region16: #{extra_layers_forward.9} parent=0 // pred_region
    _
  $region17: #{extra_layers_forward.9} parent=0 // pred_fallthru
    _
  %p18 = scmp.eq.s32.totalorder 0, 0
  // Predicated region
  $region18: #{extra_layers_forward.9} parent=0 // pred_check
    %p19 = pneg %p18
  $region19: #{extra_layers_forward.9} parent=0 // pred_check_branch
    %21 = sbr.rel (%p19) target = $region21
  $region20: #{extra_layers_forward.9} parent=0 // pred_region
    %22 = vst [vmem:[#allocation2] sm:$0xff] 0.0
    %23 = vst [vmem:[#allocation2 + $0x8] sm:$0xff] 0.0
    %24 = vst [vmem:[#allocation2 + $0x10] sm:$0xff] 0.0
    %25 = vst [vmem:[#allocation2 + $0x18] sm:$0xff] 0.0
    %26 = vst [vmem:[#allocation2 + $0x20] sm:$0xff] 0.0
    %27 = vst [vmem:[#allocation2 + $0x28] sm:$0xff] 0.0
    %28 = vst [vmem:[#allocation2 + $0x30] sm:$0xff] 0.0
    %29 = vst [vmem:[#allocation2 + $0x38] sm:$0xff] 0.0
    %30 = vst [vmem:[#allocation2 + $0x40] sm:$0xff] 0.0
    %31 = vst [vmem:[#allocation2 + $0x48] sm:$0xff] 0.0
    %32 = vst [vmem:[#allocation2 + $0x50] sm:$0xff] 0.0
    %33 = vst [vmem:[#allocation2 + $0x58] sm:$0xff] 0.0
    %34 = vst [vmem:[#allocation2 + $0x60] sm:$0xff] 0.0
    %35 = vst [vmem:[#allocation2 + $0x68] sm:$0xff] 0.0
    %36 = vst [vmem:[#allocation2 + $0x70] sm:$0xff] 0.0
    %37 = vst [vmem:[#allocation2 + $0x78] sm:$0xff] 0.0
    %38 = vst [vmem:[#allocation2 + $0x80] sm:$0xff] 0.0
    %39 = vst [vmem:[#allocation2 + $0x88] sm:$0xff] 0.0
    %40 = vst [vmem:[#allocation2 + $0x90] sm:$0xff] 0.0
    %41 = vst [vmem:[#allocation2 + $0x98] sm:$0xff] 0.0
    %42 = vst [vmem:[#allocation2 + $0xa0] sm:$0xff] 0.0
    %43 = vst [vmem:[#allocation2 + $0xa8] sm:$0xff] 0.0
    %44 = vst [vmem:[#allocation2 + $0xb0] sm:$0xff] 0.0
    %45 = vst [vmem:[#allocation2 + $0xb8] sm:$0xff] 0.0
    %46 = vst [vmem:[#allocation2 + $0xc0] sm:$0xff] 0.0
    %47 = vst [vmem:[#allocation2 + $0xc8] sm:$0xff] 0.0
    %48 = vst [vmem:[#allocation2 + $0xd0] sm:$0xff] 0.0
    %49 = vst [vmem:[#allocation2 + $0xd8] sm:$0xff] 0.0
    %50 = vst [vmem:[#allocation2 + $0xe0] sm:$0xff] 0.0
    %51 = vst [vmem:[#allocation2 + $0xe8] sm:$0xff] 0.0
    %52 = vst [vmem:[#allocation2 + $0xf0] sm:$0xff] 0.0
    %53 = vst [vmem:[#allocation2 + $0xf8] sm:$0xff] 0.0
  $region21: #{extra_layers_forward.9} parent=0 // pred_fallthru
    _
  %v54 = vld [vmem:[#allocation2] sm:$0xff]
  %v55 = vld [vmem:[#allocation2 + $0x8] sm:$0xff]
  %v56 = vld [vmem:[#allocation2 + $0x10] sm:$0xff]
  %v57 = vld [vmem:[#allocation2 + $0x18] sm:$0xff]
  %v58 = vld [vmem:[#allocation2 + $0x20] sm:$0xff]
  %v59 = vld [vmem:[#allocation2 + $0x28] sm:$0xff]
  %v60 = vld [vmem:[#allocation2 + $0x30] sm:$0xff]
  %v61 = vld [vmem:[#allocation2 + $0x38] sm:$0xff]
  %v62 = vld [vmem:[#allocation2 + $0x40] sm:$0xff]
  %v63 = vld [vmem:[#allocation2 + $0x48] sm:$0xff]
  %v64 = vld [vmem:[#allocation2 + $0x50] sm:$0xff]
  %v65 = vld [vmem:[#allocation2 + $0x58] sm:$0xff]
  %v66 = vld [vmem:[#allocation2 + $0x60] sm:$0xff]
  %v67 = vld [vmem:[#allocation2 + $0x68] sm:$0xff]
  %v68 = vld [vmem:[#allocation2 + $0x70] sm:$0xff]
  %v69 = vld [vmem:[#allocation2 + $0x78] sm:$0xff]
  %v70 = vld [vmem:[#allocation2 + $0x80] sm:$0xff]
  %v71 = vld [vmem:[#allocation2 + $0x88] sm:$0xff]
  %v72 = vld [vmem:[#allocation2 + $0x90] sm:$0xff]
  %v73 = vld [vmem:[#allocation2 + $0x98] sm:$0xff]
  %v74 = vld [vmem:[#allocation2 + $0xa0] sm:$0xff]
  %v75 = vld [vmem:[#allocation2 + $0xa8] sm:$0xff]
  %v76 = vld [vmem:[#allocation2 + $0xb0] sm:$0xff]
  %v77 = vld [vmem:[#allocation2 + $0xb8] sm:$0xff]
  %v78 = vld [vmem:[#allocation2 + $0xc0] sm:$0xff]
  %v79 = vld [vmem:[#allocation2 + $0xc8] sm:$0xff]
  %v80 = vld [vmem:[#allocation2 + $0xd0] sm:$0xff]
  %v81 = vld [vmem:[#allocation2 + $0xd8] sm:$0xff]
  %v82 = vld [vmem:[#allocation2 + $0xe0] sm:$0xff]
  %v83 = vld [vmem:[#allocation2 + $0xe8] sm:$0xff]
  %v84 = vld [vmem:[#allocation2 + $0xf0] sm:$0xff]
  %v85 = vld [vmem:[#allocation2 + $0xf8] sm:$0xff]
  %v86 = vld [vmem:[%s0] sm:$0xff]
  %v87 = vld [vmem:[%s0 + $0x8] sm:$0xff]
  %v88 = vld [vmem:[%s0 + $0x10] sm:$0xff]
  %v89 = vld [vmem:[%s0 + $0x18] sm:$0xff]
  %v90 = vld [vmem:[%s0 + $0x20] sm:$0xf]
  %v91 = vld [vmem:[%s0 + $0x24] sm:$0xff]
  %v92 = vld [vmem:[%s0 + $0x2c] sm:$0xff]
  %v93 = vld [vmem:[%s0 + $0x34] sm:$0xff]
  %v94 = vld [vmem:[%s0 + $0x3c] sm:$0xff]
  %v95 = vld [vmem:[%s0 + $0x44] sm:$0xf]
  %v96 = vld [vmem:[%s0 + $0x48] sm:$0xff]
  %v97 = vld [vmem:[%s0 + $0x50] sm:$0xff]
  %v98 = vld [vmem:[%s0 + $0x58] sm:$0xff]
  %v99 = vld [vmem:[%s0 + $0x60] sm:$0xff]
  %v100 = vld [vmem:[%s0 + $0x68] sm:$0xf]
  %v101 = vld [vmem:[%s0 + $0x6c] sm:$0xff]
  %v102 = vld [vmem:[%s0 + $0x74] sm:$0xff]
  %v103 = vld [vmem:[%s0 + $0x7c] sm:$0xff]
  %v104 = vld [vmem:[%s0 + $0x84] sm:$0xff]
  %v105 = vld [vmem:[%s0 + $0x8c] sm:$0xf]
  %v106 = vld [vmem:[%s0 + $0x90] sm:$0xff]
  %v107 = vld [vmem:[%s0 + $0x98] sm:$0xff]
  %v108 = vld [vmem:[%s0 + $0xa0] sm:$0xff]
  %v109 = vld [vmem:[%s0 + $0xa8] sm:$0xff]
  %v110 = vld [vmem:[%s0 + $0xb0] sm:$0xf]
  %v111 = vld [vmem:[%s0 + $0xb4] sm:$0xff]
  %v112 = vld [vmem:[%s0 + $0xbc] sm:$0xff]
  %v113 = vld [vmem:[%s0 + $0xc4] sm:$0xff]
  %v114 = vld [vmem:[%s0 + $0xcc] sm:$0xff]
  %v115 = vld [vmem:[%s0 + $0xd4] sm:$0xf]
  %v116 = vld [vmem:[%s0 + $0xd8] sm:$0xff]
  %v117 = vld [vmem:[%s0 + $0xe0] sm:$0xff]
  %v118 = vld [vmem:[%s0 + $0xe8] sm:$0xff]
  %v119 = vld [vmem:[%s0 + $0xf0] sm:$0xff]
  %v120 = vld [vmem:[%s0 + $0xf8] sm:$0xf]
  %v121 = vld [vmem:[%s0 + $0xfc] sm:$0xff]
  %v122 = vld [vmem:[%s0 + $0x104] sm:$0xff]
  %v123 = vld [vmem:[%s0 + $0x10c] sm:$0xff]
  %v124 = vld [vmem:[%s0 + $0x114] sm:$0xff]
  %v125 = vld [vmem:[%s0 + $0x11c] sm:$0xf]
  %v126 = vld [vmem:[%s0 + $0x120] sm:$0xff]
  %v127 = vld [vmem:[%s0 + $0x128] sm:$0xff]
  %v128 = vld [vmem:[%s0 + $0x130] sm:$0xff]
  %v129 = vld [vmem:[%s0 + $0x138] sm:$0xff]
  %v130 = vld [vmem:[%s0 + $0x140] sm:$0xf]
  %v131 = vld [vmem:[%s0 + $0x144] sm:$0xff]
  %v132 = vld [vmem:[%s0 + $0x14c] sm:$0xff]
  %v133 = vld [vmem:[%s0 + $0x154] sm:$0xff]
  %v134 = vld [vmem:[%s0 + $0x15c] sm:$0xff]
  %v135 = vld [vmem:[%s0 + $0x164] sm:$0xf]
  %v136 = vld [vmem:[%s0 + $0x168] sm:$0xff]
  %v137 = vld [vmem:[%s0 + $0x170] sm:$0xff]
  %v138 = vld [vmem:[%s0 + $0x178] sm:$0xff]
  %v139 = vld [vmem:[%s0 + $0x180] sm:$0xff]
  %v140 = vld [vmem:[%s0 + $0x188] sm:$0xf]
  %v141 = vld [vmem:[%s0 + $0x18c] sm:$0xff]
  %v142 = vld [vmem:[%s0 + $0x194] sm:$0xff]
  %v143 = vld [vmem:[%s0 + $0x19c] sm:$0xff]
  %v144 = vld [vmem:[%s0 + $0x1a4] sm:$0xff]
  %v145 = vld [vmem:[%s0 + $0x1ac] sm:$0xf]
  %v146 = vld [vmem:[%s0 + $0x1b0] sm:$0xff]
  %v147 = vld [vmem:[%s0 + $0x1b8] sm:$0xff]
  %v148 = vld [vmem:[%s0 + $0x1c0] sm:$0xff]
  %v149 = vld [vmem:[%s0 + $0x1c8] sm:$0xff]
  %v150 = vld [vmem:[%s0 + $0x1d0] sm:$0xf]
  %v151 = vld [vmem:[%s0 + $0x1d4] sm:$0xff]
  %v152 = vld [vmem:[%s0 + $0x1dc] sm:$0xff]
  %v153 = vld [vmem:[%s0 + $0x1e4] sm:$0xff]
  %v154 = vld [vmem:[%s0 + $0x1ec] sm:$0xff]
  %v155 = vld [vmem:[%s0 + $0x1f4] sm:$0xf]
  %v156 = vld [vmem:[%s0 + $0x1f8] sm:$0xff]
  %v157 = vld [vmem:[%s0 + $0x200] sm:$0xff]
  %v158 = vld [vmem:[%s0 + $0x208] sm:$0xff]
  %v159 = vld [vmem:[%s0 + $0x210] sm:$0xff]
  %v160 = vld [vmem:[%s0 + $0x218] sm:$0xf]
  %v161 = vld [vmem:[%s0 + $0x21c] sm:$0xff]
  %v162 = vld [vmem:[%s0 + $0x224] sm:$0xff]
  %v163 = vld [vmem:[%s0 + $0x22c] sm:$0xff]
  %v164 = vld [vmem:[%s0 + $0x234] sm:$0xff]
  %v165 = vld [vmem:[%s0 + $0x23c] sm:$0xf]
  %v166 = vld [vmem:[%s1] sm:$0xff]
  %v167 = vld [vmem:[%s1 + $0x8] sm:$0xff]
  %v168 = vld [vmem:[%s1 + $0x10] sm:$0xff]
  %v169 = vld [vmem:[%s1 + $0x18] sm:$0xff]
  %v170 = vld [vmem:[%s1 + $0x20] sm:$0xff]
  %v171 = vld [vmem:[%s1 + $0x28] sm:$0xff]
  %v172 = vld [vmem:[%s1 + $0x30] sm:$0xff]
  %v173 = vld [vmem:[%s1 + $0x38] sm:$0xff]
  %v174 = vld [vmem:[%s1 + $0x40] sm:$0xff]
  %v175 = vld [vmem:[%s1 + $0x48] sm:$0xff]
  %v176 = vld [vmem:[%s1 + $0x50] sm:$0xff]
  %v177 = vld [vmem:[%s1 + $0x58] sm:$0xff]
  %v178 = vld [vmem:[%s1 + $0x60] sm:$0xff]
  %v179 = vld [vmem:[%s1 + $0x68] sm:$0xff]
  %v180 = vld [vmem:[%s1 + $0x70] sm:$0xff]
  %v181 = vld [vmem:[%s1 + $0x78] sm:$0xff]
  %v182 = vld [vmem:[%s1 + $0x80] sm:$0xff]
  %v183 = vld [vmem:[%s1 + $0x88] sm:$0xff]
  %v184 = vld [vmem:[%s1 + $0x90] sm:$0xff]
  %v185 = vld [vmem:[%s1 + $0x98] sm:$0xff]
  %v186 = vld [vmem:[%s1 + $0xa0] sm:$0xff]
  %v187 = vld [vmem:[%s1 + $0xa8] sm:$0xff]
  %v188 = vld [vmem:[%s1 + $0xb0] sm:$0xff]
  %v189 = vld [vmem:[%s1 + $0xb8] sm:$0xff]
  %v190 = vld [vmem:[%s1 + $0xc0] sm:$0xff]
  %v191 = vld [vmem:[%s1 + $0xc8] sm:$0xff]
  %v192 = vld [vmem:[%s1 + $0xd0] sm:$0xff]
  %v193 = vld [vmem:[%s1 + $0xd8] sm:$0xff]
  %v194 = vld [vmem:[%s1 + $0xe0] sm:$0xff]
  %v195 = vld [vmem:[%s1 + $0xe8] sm:$0xff]
  %v196 = vld [vmem:[%s1 + $0xf0] sm:$0xff]
  %v197 = vld [vmem:[%s1 + $0xf8] sm:$0xff]
  %v198 = vld [vmem:[%s1 + $0x100] sm:$0xff]
  %v199 = vld [vmem:[%s1 + $0x108] sm:$0xff]
  %v200 = vld [vmem:[%s1 + $0x110] sm:$0xff]
  %v201 = vld [vmem:[%s1 + $0x118] sm:$0xff]
  %v202 = vld [vmem:[%s1 + $0x120] sm:$0xff]
  %v203 = vld [vmem:[%s1 + $0x128] sm:$0xff]
  %v204 = vld [vmem:[%s1 + $0x130] sm:$0xff]
  %v205 = vld [vmem:[%s1 + $0x138] sm:$0xff]
  %v206 = vld [vmem:[%s1 + $0x140] sm:$0xff]
  %v207 = vld [vmem:[%s1 + $0x148] sm:$0xff]
  %v208 = vld [vmem:[%s1 + $0x150] sm:$0xff]
  %v209 = vld [vmem:[%s1 + $0x158] sm:$0xff]
  %v210 = vld [vmem:[%s1 + $0x160] sm:$0xff]
  %v211 = vld [vmem:[%s1 + $0x168] sm:$0xff]
  %v212 = vld [vmem:[%s1 + $0x170] sm:$0xff]
  %v213 = vld [vmem:[%s1 + $0x178] sm:$0xff]
  %v214 = vld [vmem:[%s1 + $0x180] sm:$0xff]
  %v215 = vld [vmem:[%s1 + $0x188] sm:$0xff]
  %v216 = vld [vmem:[%s1 + $0x190] sm:$0xff]
  %v217 = vld [vmem:[%s1 + $0x198] sm:$0xff]
  %v218 = vld [vmem:[%s1 + $0x1a0] sm:$0xff]
  %v219 = vld [vmem:[%s1 + $0x1a8] sm:$0xff]
  %v220 = vld [vmem:[%s1 + $0x1b0] sm:$0xff]
  %v221 = vld [vmem:[%s1 + $0x1b8] sm:$0xff]
  %v222 = vld [vmem:[%s1 + $0x1c0] sm:$0xff]
  %v223 = vld [vmem:[%s1 + $0x1c8] sm:$0xff]
  %v224 = vld [vmem:[%s1 + $0x1d0] sm:$0xff]
  %v225 = vld [vmem:[%s1 + $0x1d8] sm:$0xff]
  %v226 = vld [vmem:[%s1 + $0x1e0] sm:$0xff]
  %v227 = vld [vmem:[%s1 + $0x1e8] sm:$0xff]
  %v228 = vld [vmem:[%s1 + $0x1f0] sm:$0xff]
  %v229 = vld [vmem:[%s1 + $0x1f8] sm:$0xff]
  %v230 = vld [vmem:[%s1 + $0x200] sm:$0xff]
  %v231 = vld [vmem:[%s1 + $0x208] sm:$0xff]
  %v232 = vld [vmem:[%s1 + $0x210] sm:$0xff]
  %v233 = vld [vmem:[%s1 + $0x218] sm:$0xff]
  %v234 = vld [vmem:[%s1 + $0x220] sm:$0xff]
  %v235 = vld [vmem:[%s1 + $0x228] sm:$0xff]
  %v236 = vld [vmem:[%s1 + $0x230] sm:$0xff]
  %v237 = vld [vmem:[%s1 + $0x238] sm:$0xff]
  %v238 = vld [vmem:[%s1 + $0x240] sm:$0xff]
  %v239 = vld [vmem:[%s1 + $0x248] sm:$0xff]
  %v240 = vld [vmem:[%s1 + $0x250] sm:$0xff]
  %v241 = vld [vmem:[%s1 + $0x258] sm:$0xff]
  %v242 = vld [vmem:[%s1 + $0x260] sm:$0xff]
  %v243 = vld [vmem:[%s1 + $0x268] sm:$0xff]
  %v244 = vld [vmem:[%s1 + $0x270] sm:$0xff]
  %v245 = vld [vmem:[%s1 + $0x278] sm:$0xff]
  %v246 = vld [vmem:[%s1 + $0x280] sm:$0xff]
  %v247 = vld [vmem:[%s1 + $0x288] sm:$0xff]
  %v248 = vld [vmem:[%s1 + $0x290] sm:$0xff]
  %v249 = vld [vmem:[%s1 + $0x298] sm:$0xff]
  %v250 = vld [vmem:[%s1 + $0x2a0] sm:$0xff]
  %v251 = vld [vmem:[%s1 + $0x2a8] sm:$0xff]
  %v252 = vld [vmem:[%s1 + $0x2b0] sm:$0xff]
  %v253 = vld [vmem:[%s1 + $0x2b8] sm:$0xff]
  %v254 = vld [vmem:[%s1 + $0x2c0] sm:$0xff]
  %v255 = vld [vmem:[%s1 + $0x2c8] sm:$0xff]
  %v256 = vld [vmem:[%s1 + $0x2d0] sm:$0xff]
  %v257 = vld [vmem:[%s1 + $0x2d8] sm:$0xff]
  %v258 = vld [vmem:[%s1 + $0x2e0] sm:$0xff]
  %v259 = vld [vmem:[%s1 + $0x2e8] sm:$0xff]
  %v260 = vld [vmem:[%s1 + $0x2f0] sm:$0xff]
  %v261 = vld [vmem:[%s1 + $0x2f8] sm:$0xff]
  %v262 = vld [vmem:[%s1 + $0x300] sm:$0xff]
  %v263 = vld [vmem:[%s1 + $0x308] sm:$0xff]
  %v264 = vld [vmem:[%s1 + $0x310] sm:$0xff]
  %v265 = vld [vmem:[%s1 + $0x318] sm:$0xff]
  %v266 = vld [vmem:[%s1 + $0x320] sm:$0xff]
  %v267 = vld [vmem:[%s1 + $0x328] sm:$0xff]
  %v268 = vld [vmem:[%s1 + $0x330] sm:$0xff]
  %v269 = vld [vmem:[%s1 + $0x338] sm:$0xff]
  %v270 = vld [vmem:[%s1 + $0x340] sm:$0xff]
  %v271 = vld [vmem:[%s1 + $0x348] sm:$0xff]
  %v272 = vld [vmem:[%s1 + $0x350] sm:$0xff]
  %v273 = vld [vmem:[%s1 + $0x358] sm:$0xff]
  %v274 = vld [vmem:[%s1 + $0x360] sm:$0xff]
  %v275 = vld [vmem:[%s1 + $0x368] sm:$0xff]
  %v276 = vld [vmem:[%s1 + $0x370] sm:$0xff]
  %v277 = vld [vmem:[%s1 + $0x378] sm:$0xff]
  %v278 = vld [vmem:[%s1 + $0x380] sm:$0xff]
  %v279 = vld [vmem:[%s1 + $0x388] sm:$0xff]
  %v280 = vld [vmem:[%s1 + $0x390] sm:$0xff]
  %v281 = vld [vmem:[%s1 + $0x398] sm:$0xff]
  %v282 = vld [vmem:[%s1 + $0x3a0] sm:$0xff]
  %v283 = vld [vmem:[%s1 + $0x3a8] sm:$0xff]
  %v284 = vld [vmem:[%s1 + $0x3b0] sm:$0xff]
  %v285 = vld [vmem:[%s1 + $0x3b8] sm:$0xff]
  %v286 = vld [vmem:[%s1 + $0x3c0] sm:$0xff]
  %v287 = vld [vmem:[%s1 + $0x3c8] sm:$0xff]
  %v288 = vld [vmem:[%s1 + $0x3d0] sm:$0xff]
  %v289 = vld [vmem:[%s1 + $0x3d8] sm:$0xff]
  %v290 = vld [vmem:[%s1 + $0x3e0] sm:$0xff]
  %v291 = vld [vmem:[%s1 + $0x3e8] sm:$0xff]
  %v292 = vld [vmem:[%s1 + $0x3f0] sm:$0xff]
  %v293 = vld [vmem:[%s1 + $0x3f8] sm:$0xff]
  %v294 = vld [vmem:[%s1 + $0x400] sm:$0xff]
  %v295 = vld [vmem:[%s1 + $0x408] sm:$0xff]
  %v296 = vld [vmem:[%s1 + $0x410] sm:$0xff]
  %v297 = vld [vmem:[%s1 + $0x418] sm:$0xff]
  %v298 = vld [vmem:[%s1 + $0x420] sm:$0xff]
  %v299 = vld [vmem:[%s1 + $0x428] sm:$0xff]
  %v300 = vld [vmem:[%s1 + $0x430] sm:$0xff]
  %v301 = vld [vmem:[%s1 + $0x438] sm:$0xff]
  %v302 = vld [vmem:[%s1 + $0x440] sm:$0xff]
  %v303 = vld [vmem:[%s1 + $0x448] sm:$0xff]
  %v304 = vld [vmem:[%s1 + $0x450] sm:$0xff]
  %v305 = vld [vmem:[%s1 + $0x458] sm:$0xff]
  %v306 = vld [vmem:[%s1 + $0x460] sm:$0xff]
  %v307 = vld [vmem:[%s1 + $0x468] sm:$0xff]
  %v308 = vld [vmem:[%s1 + $0x470] sm:$0xff]
  %v309 = vld [vmem:[%s1 + $0x478] sm:$0xff]
  %v390 = vunpack.c.l.b16 %v86
  %v391 = vunpack.c.h.b16 %v86
  %v392 = vunpack.c.l.b16 %v87
  %v393 = vunpack.c.h.b16 %v87
  %v394 = vunpack.c.l.b16 %v88
  %v395 = vunpack.c.h.b16 %v88
  %v396 = vunpack.c.l.b16 %v89
  %v397 = vunpack.c.h.b16 %v89
  %v398 = vunpack.c.l.b16 %v90
  %v399 = vunpack.c.l.b16 %v91
  %v400 = vunpack.c.h.b16 %v91
  %v401 = vunpack.c.l.b16 %v92
  %v402 = vunpack.c.h.b16 %v92
  %v403 = vunpack.c.l.b16 %v93
  %v404 = vunpack.c.h.b16 %v93
  %v405 = vunpack.c.l.b16 %v94
  %v406 = vunpack.c.h.b16 %v94
  %v407 = vunpack.c.l.b16 %v95
  %v408 = vunpack.c.l.b16 %v96
  %v409 = vunpack.c.h.b16 %v96
  %v410 = vunpack.c.l.b16 %v97
  %v411 = vunpack.c.h.b16 %v97
  %v412 = vunpack.c.l.b16 %v98
  %v413 = vunpack.c.h.b16 %v98
  %v414 = vunpack.c.l.b16 %v99
  %v415 = vunpack.c.h.b16 %v99
  %v416 = vunpack.c.l.b16 %v100
  %v417 = vunpack.c.l.b16 %v101
  %v418 = vunpack.c.h.b16 %v101
  %v419 = vunpack.c.l.b16 %v102
  %v420 = vunpack.c.h.b16 %v102
  %v421 = vunpack.c.l.b16 %v103
  %v422 = vunpack.c.h.b16 %v103
  %v423 = vunpack.c.l.b16 %v104
  %v424 = vunpack.c.h.b16 %v104
  %v425 = vunpack.c.l.b16 %v105
  %v426 = vunpack.c.l.b16 %v106
  %v427 = vunpack.c.h.b16 %v106
  %v428 = vunpack.c.l.b16 %v107
  %v429 = vunpack.c.h.b16 %v107
  %v430 = vunpack.c.l.b16 %v108
  %v431 = vunpack.c.h.b16 %v108
  %v432 = vunpack.c.l.b16 %v109
  %v433 = vunpack.c.h.b16 %v109
  %v434 = vunpack.c.l.b16 %v110
  %v435 = vunpack.c.l.b16 %v111
  %v436 = vunpack.c.h.b16 %v111
  %v437 = vunpack.c.l.b16 %v112
  %v438 = vunpack.c.h.b16 %v112
  %v439 = vunpack.c.l.b16 %v113
  %v440 = vunpack.c.h.b16 %v113
  %v441 = vunpack.c.l.b16 %v114
  %v442 = vunpack.c.h.b16 %v114
  %v443 = vunpack.c.l.b16 %v115
  %v444 = vunpack.c.l.b16 %v116
  %v445 = vunpack.c.h.b16 %v116
  %v446 = vunpack.c.l.b16 %v117
  %v447 = vunpack.c.h.b16 %v117
  %v448 = vunpack.c.l.b16 %v118
  %v449 = vunpack.c.h.b16 %v118
  %v450 = vunpack.c.l.b16 %v119
  %v451 = vunpack.c.h.b16 %v119
  %v452 = vunpack.c.l.b16 %v120
  %v453 = vunpack.c.l.b16 %v121
  %v454 = vunpack.c.h.b16 %v121
  %v455 = vunpack.c.l.b16 %v122
  %v456 = vunpack.c.h.b16 %v122
  %v457 = vunpack.c.l.b16 %v123
  %v458 = vunpack.c.h.b16 %v123
  %v459 = vunpack.c.l.b16 %v124
  %v460 = vunpack.c.h.b16 %v124
  %v461 = vunpack.c.l.b16 %v125
  %v462 = vunpack.c.l.b16 %v126
  %v463 = vunpack.c.h.b16 %v126
  %v464 = vunpack.c.l.b16 %v127
  %v465 = vunpack.c.h.b16 %v127
  %v466 = vunpack.c.l.b16 %v128
  %v467 = vunpack.c.h.b16 %v128
  %v468 = vunpack.c.l.b16 %v129
  %v469 = vunpack.c.h.b16 %v129
  %v470 = vunpack.c.l.b16 %v130
  %v471 = vunpack.c.l.b16 %v131
  %v472 = vunpack.c.h.b16 %v131
  %v473 = vunpack.c.l.b16 %v132
  %v474 = vunpack.c.h.b16 %v132
  %v475 = vunpack.c.l.b16 %v133
  %v476 = vunpack.c.h.b16 %v133
  %v477 = vunpack.c.l.b16 %v134
  %v478 = vunpack.c.h.b16 %v134
  %v479 = vunpack.c.l.b16 %v135
  %v480 = vunpack.c.l.b16 %v136
  %v481 = vunpack.c.h.b16 %v136
  %v482 = vunpack.c.l.b16 %v137
  %v483 = vunpack.c.h.b16 %v137
  %v484 = vunpack.c.l.b16 %v138
  %v485 = vunpack.c.h.b16 %v138
  %v486 = vunpack.c.l.b16 %v139
  %v487 = vunpack.c.h.b16 %v139
  %v488 = vunpack.c.l.b16 %v140
  %v489 = vunpack.c.l.b16 %v141
  %v490 = vunpack.c.h.b16 %v141
  %v491 = vunpack.c.l.b16 %v142
  %v492 = vunpack.c.h.b16 %v142
  %v493 = vunpack.c.l.b16 %v143
  %v494 = vunpack.c.h.b16 %v143
  %v495 = vunpack.c.l.b16 %v144
  %v496 = vunpack.c.h.b16 %v144
  %v497 = vunpack.c.l.b16 %v145
  %v498 = vunpack.c.l.b16 %v146
  %v499 = vunpack.c.h.b16 %v146
  %v500 = vunpack.c.l.b16 %v147
  %v501 = vunpack.c.h.b16 %v147
  %v502 = vunpack.c.l.b16 %v148
  %v503 = vunpack.c.h.b16 %v148
  %v504 = vunpack.c.l.b16 %v149
  %v505 = vunpack.c.h.b16 %v149
  %v506 = vunpack.c.l.b16 %v150
  %v507 = vunpack.c.l.b16 %v151
  %v508 = vunpack.c.h.b16 %v151
  %v509 = vunpack.c.l.b16 %v152
  %v510 = vunpack.c.h.b16 %v152
  %v511 = vunpack.c.l.b16 %v153
  %v512 = vunpack.c.h.b16 %v153
  %v513 = vunpack.c.l.b16 %v154
  %v514 = vunpack.c.h.b16 %v154
  %v515 = vunpack.c.l.b16 %v155
  %v516 = vunpack.c.l.b16 %v156
  %v517 = vunpack.c.h.b16 %v156
  %v518 = vunpack.c.l.b16 %v157
  %v519 = vunpack.c.h.b16 %v157
  %v520 = vunpack.c.l.b16 %v158
  %v521 = vunpack.c.h.b16 %v158
  %v522 = vunpack.c.l.b16 %v159
  %v523 = vunpack.c.h.b16 %v159
  %v524 = vunpack.c.l.b16 %v160
  %v525 = vunpack.c.l.b16 %v161
  %v526 = vunpack.c.h.b16 %v161
  %v527 = vunpack.c.l.b16 %v162
  %v528 = vunpack.c.h.b16 %v162
  %v529 = vunpack.c.l.b16 %v163
  %v530 = vunpack.c.h.b16 %v163
  %v531 = vunpack.c.l.b16 %v164
  %v532 = vunpack.c.h.b16 %v164
  %v533 = vunpack.c.l.b16 %v165
  %v534 = vpack.c.b16 %v399, %v390
  %v535 = vpack.c.b16 %v400, %v391
  %v536 = vpack.c.b16 %v401, %v392
  %v537 = vpack.c.b16 %v402, %v393
  %v538 = vpack.c.b16 %v403, %v394
  %v539 = vpack.c.b16 %v404, %v395
  %v540 = vpack.c.b16 %v405, %v396
  %v541 = vpack.c.b16 %v406, %v397
  %v542 = vpack.c.b16 %v407, %v398
  %v543 = vpack.c.b16 %v417, %v408
  %v544 = vpack.c.b16 %v418, %v409
  %v545 = vpack.c.b16 %v419, %v410
  %v546 = vpack.c.b16 %v420, %v411
  %v547 = vpack.c.b16 %v421, %v412
  %v548 = vpack.c.b16 %v422, %v413
  %v549 = vpack.c.b16 %v423, %v414
  %v550 = vpack.c.b16 %v424, %v415
  %v551 = vpack.c.b16 %v425, %v416
  %v552 = vpack.c.b16 %v435, %v426
  %v553 = vpack.c.b16 %v436, %v427
  %v554 = vpack.c.b16 %v437, %v428
  %v555 = vpack.c.b16 %v438, %v429
  %v556 = vpack.c.b16 %v439, %v430
  %v557 = vpack.c.b16 %v440, %v431
  %v558 = vpack.c.b16 %v441, %v432
  %v559 = vpack.c.b16 %v442, %v433
  %v560 = vpack.c.b16 %v443, %v434
  %v561 = vpack.c.b16 %v453, %v444
  %v562 = vpack.c.b16 %v454, %v445
  %v563 = vpack.c.b16 %v455, %v446
  %v564 = vpack.c.b16 %v456, %v447
  %v565 = vpack.c.b16 %v457, %v448
  %v566 = vpack.c.b16 %v458, %v449
  %v567 = vpack.c.b16 %v459, %v450
  %v568 = vpack.c.b16 %v460, %v451
  %v569 = vpack.c.b16 %v461, %v452
  %v570 = vpack.c.b16 %v471, %v462
  %v571 = vpack.c.b16 %v472, %v463
  %v572 = vpack.c.b16 %v473, %v464
  %v573 = vpack.c.b16 %v474, %v465
  %v574 = vpack.c.b16 %v475, %v466
  %v575 = vpack.c.b16 %v476, %v467
  %v576 = vpack.c.b16 %v477, %v468
  %v577 = vpack.c.b16 %v478, %v469
  %v578 = vpack.c.b16 %v479, %v470
  %v579 = vpack.c.b16 %v489, %v480
  %v580 = vpack.c.b16 %v490, %v481
  %v581 = vpack.c.b16 %v491, %v482
  %v582 = vpack.c.b16 %v492, %v483
  %v583 = vpack.c.b16 %v493, %v484
  %v584 = vpack.c.b16 %v494, %v485
  %v585 = vpack.c.b16 %v495, %v486
  %v586 = vpack.c.b16 %v496, %v487
  %v587 = vpack.c.b16 %v497, %v488
  %v588 = vpack.c.b16 %v507, %v498
  %v589 = vpack.c.b16 %v508, %v499
  %v590 = vpack.c.b16 %v509, %v500
  %v591 = vpack.c.b16 %v510, %v501
  %v592 = vpack.c.b16 %v511, %v502
  %v593 = vpack.c.b16 %v512, %v503
  %v594 = vpack.c.b16 %v513, %v504
  %v595 = vpack.c.b16 %v514, %v505
  %v596 = vpack.c.b16 %v515, %v506
  %v597 = vpack.c.b16 %v525, %v516
  %v598 = vpack.c.b16 %v526, %v517
  %v599 = vpack.c.b16 %v527, %v518
  %v600 = vpack.c.b16 %v528, %v519
  %v601 = vpack.c.b16 %v529, %v520
  %v602 = vpack.c.b16 %v530, %v521
  %v603 = vpack.c.b16 %v531, %v522
  %v604 = vpack.c.b16 %v532, %v523
  %v605 = vpack.c.b16 %v533, %v524
  %v822 = vunpack.c.l.b16 %v166
  %v823 = vunpack.c.h.b16 %v166
  %v824 = vunpack.c.l.b16 %v167
  %v825 = vunpack.c.h.b16 %v167
  %v826 = vunpack.c.l.b16 %v168
  %v827 = vunpack.c.h.b16 %v168
  %v828 = vunpack.c.l.b16 %v169
  %v829 = vunpack.c.h.b16 %v169
  %v830 = vunpack.c.l.b16 %v170
  %v831 = vunpack.c.h.b16 %v170
  %v832 = vunpack.c.l.b16 %v171
  %v833 = vunpack.c.h.b16 %v171
  %v834 = vunpack.c.l.b16 %v172
  %v835 = vunpack.c.h.b16 %v172
  %v836 = vunpack.c.l.b16 %v173
  %v837 = vunpack.c.h.b16 %v173
  %v838 = vunpack.c.l.b16 %v174
  %v839 = vunpack.c.h.b16 %v174
  %v840 = vunpack.c.l.b16 %v175
  %v841 = vunpack.c.h.b16 %v175
  %v842 = vunpack.c.l.b16 %v176
  %v843 = vunpack.c.h.b16 %v176
  %v844 = vunpack.c.l.b16 %v177
  %v845 = vunpack.c.h.b16 %v177
  %v846 = vunpack.c.l.b16 %v178
  %v847 = vunpack.c.h.b16 %v178
  %v848 = vunpack.c.l.b16 %v179
  %v849 = vunpack.c.h.b16 %v179
  %v850 = vunpack.c.l.b16 %v180
  %v851 = vunpack.c.h.b16 %v180
  %v852 = vunpack.c.l.b16 %v181
  %v853 = vunpack.c.h.b16 %v181
  %v854 = vunpack.c.l.b16 %v182
  %v855 = vunpack.c.h.b16 %v182
  %v856 = vunpack.c.l.b16 %v183
  %v857 = vunpack.c.h.b16 %v183
  %v858 = vunpack.c.l.b16 %v184
  %v859 = vunpack.c.h.b16 %v184
  %v860 = vunpack.c.l.b16 %v185
  %v861 = vunpack.c.h.b16 %v185
  %v862 = vunpack.c.l.b16 %v186
  %v863 = vunpack.c.h.b16 %v186
  %v864 = vunpack.c.l.b16 %v187
  %v865 = vunpack.c.h.b16 %v187
  %v866 = vunpack.c.l.b16 %v188
  %v867 = vunpack.c.h.b16 %v188
  %v868 = vunpack.c.l.b16 %v189
  %v869 = vunpack.c.h.b16 %v189
  %v870 = vunpack.c.l.b16 %v190
  %v871 = vunpack.c.h.b16 %v190
  %v872 = vunpack.c.l.b16 %v191
  %v873 = vunpack.c.h.b16 %v191
  %v874 = vunpack.c.l.b16 %v192
  %v875 = vunpack.c.h.b16 %v192
  %v876 = vunpack.c.l.b16 %v193
  %v877 = vunpack.c.h.b16 %v193
  %v878 = vunpack.c.l.b16 %v194
  %v879 = vunpack.c.h.b16 %v194
  %v880 = vunpack.c.l.b16 %v195
  %v881 = vunpack.c.h.b16 %v195
  %v882 = vunpack.c.l.b16 %v196
  %v883 = vunpack.c.h.b16 %v196
  %v884 = vunpack.c.l.b16 %v197
  %v885 = vunpack.c.h.b16 %v197
  %v886 = vunpack.c.l.b16 %v198
  %v887 = vunpack.c.h.b16 %v198
  %v888 = vunpack.c.l.b16 %v199
  %v889 = vunpack.c.h.b16 %v199
  %v890 = vunpack.c.l.b16 %v200
  %v891 = vunpack.c.h.b16 %v200
  %v892 = vunpack.c.l.b16 %v201
  %v893 = vunpack.c.h.b16 %v201
  %v894 = vunpack.c.l.b16 %v202
  %v895 = vunpack.c.h.b16 %v202
  %v896 = vunpack.c.l.b16 %v203
  %v897 = vunpack.c.h.b16 %v203
  %v898 = vunpack.c.l.b16 %v204
  %v899 = vunpack.c.h.b16 %v204
  %v900 = vunpack.c.l.b16 %v205
  %v901 = vunpack.c.h.b16 %v205
  %v902 = vunpack.c.l.b16 %v206
  %v903 = vunpack.c.h.b16 %v206
  %v904 = vunpack.c.l.b16 %v207
  %v905 = vunpack.c.h.b16 %v207
  %v906 = vunpack.c.l.b16 %v208
  %v907 = vunpack.c.h.b16 %v208
  %v908 = vunpack.c.l.b16 %v209
  %v909 = vunpack.c.h.b16 %v209
  %v910 = vunpack.c.l.b16 %v210
  %v911 = vunpack.c.h.b16 %v210
  %v912 = vunpack.c.l.b16 %v211
  %v913 = vunpack.c.h.b16 %v211
  %v914 = vunpack.c.l.b16 %v212
  %v915 = vunpack.c.h.b16 %v212
  %v916 = vunpack.c.l.b16 %v213
  %v917 = vunpack.c.h.b16 %v213
  %v918 = vunpack.c.l.b16 %v214
  %v919 = vunpack.c.h.b16 %v214
  %v920 = vunpack.c.l.b16 %v215
  %v921 = vunpack.c.h.b16 %v215
  %v922 = vunpack.c.l.b16 %v216
  %v923 = vunpack.c.h.b16 %v216
  %v924 = vunpack.c.l.b16 %v217
  %v925 = vunpack.c.h.b16 %v217
  %v926 = vunpack.c.l.b16 %v218
  %v927 = vunpack.c.h.b16 %v218
  %v928 = vunpack.c.l.b16 %v219
  %v929 = vunpack.c.h.b16 %v219
  %v930 = vunpack.c.l.b16 %v220
  %v931 = vunpack.c.h.b16 %v220
  %v932 = vunpack.c.l.b16 %v221
  %v933 = vunpack.c.h.b16 %v221
  %v934 = vunpack.c.l.b16 %v222
  %v935 = vunpack.c.h.b16 %v222
  %v936 = vunpack.c.l.b16 %v223
  %v937 = vunpack.c.h.b16 %v223
  %v938 = vunpack.c.l.b16 %v224
  %v939 = vunpack.c.h.b16 %v224
  %v940 = vunpack.c.l.b16 %v225
  %v941 = vunpack.c.h.b16 %v225
  %v942 = vunpack.c.l.b16 %v226
  %v943 = vunpack.c.h.b16 %v226
  %v944 = vunpack.c.l.b16 %v227
  %v945 = vunpack.c.h.b16 %v227
  %v946 = vunpack.c.l.b16 %v228
  %v947 = vunpack.c.h.b16 %v228
  %v948 = vunpack.c.l.b16 %v229
  %v949 = vunpack.c.h.b16 %v229
  %v950 = vunpack.c.l.b16 %v230
  %v951 = vunpack.c.h.b16 %v230
  %v952 = vunpack.c.l.b16 %v231
  %v953 = vunpack.c.h.b16 %v231
  %v954 = vunpack.c.l.b16 %v232
  %v955 = vunpack.c.h.b16 %v232
  %v956 = vunpack.c.l.b16 %v233
  %v957 = vunpack.c.h.b16 %v233
  %v958 = vunpack.c.l.b16 %v234
  %v959 = vunpack.c.h.b16 %v234
  %v960 = vunpack.c.l.b16 %v235
  %v961 = vunpack.c.h.b16 %v235
  %v962 = vunpack.c.l.b16 %v236
  %v963 = vunpack.c.h.b16 %v236
  %v964 = vunpack.c.l.b16 %v237
  %v965 = vunpack.c.h.b16 %v237
  %v966 = vunpack.c.l.b16 %v238
  %v967 = vunpack.c.h.b16 %v238
  %v968 = vunpack.c.l.b16 %v239
  %v969 = vunpack.c.h.b16 %v239
  %v970 = vunpack.c.l.b16 %v240
  %v971 = vunpack.c.h.b16 %v240
  %v972 = vunpack.c.l.b16 %v241
  %v973 = vunpack.c.h.b16 %v241
  %v974 = vunpack.c.l.b16 %v242
  %v975 = vunpack.c.h.b16 %v242
  %v976 = vunpack.c.l.b16 %v243
  %v977 = vunpack.c.h.b16 %v243
  %v978 = vunpack.c.l.b16 %v244
  %v979 = vunpack.c.h.b16 %v244
  %v980 = vunpack.c.l.b16 %v245
  %v981 = vunpack.c.h.b16 %v245
  %v982 = vunpack.c.l.b16 %v246
  %v983 = vunpack.c.h.b16 %v246
  %v984 = vunpack.c.l.b16 %v247
  %v985 = vunpack.c.h.b16 %v247
  %v986 = vunpack.c.l.b16 %v248
  %v987 = vunpack.c.h.b16 %v248
  %v988 = vunpack.c.l.b16 %v249
  %v989 = vunpack.c.h.b16 %v249
  %v990 = vunpack.c.l.b16 %v250
  %v991 = vunpack.c.h.b16 %v250
  %v992 = vunpack.c.l.b16 %v251
  %v993 = vunpack.c.h.b16 %v251
  %v994 = vunpack.c.l.b16 %v252
  %v995 = vunpack.c.h.b16 %v252
  %v996 = vunpack.c.l.b16 %v253
  %v997 = vunpack.c.h.b16 %v253
  %v998 = vunpack.c.l.b16 %v254
  %v999 = vunpack.c.h.b16 %v254
  %v1000 = vunpack.c.l.b16 %v255
  %v1001 = vunpack.c.h.b16 %v255
  %v1002 = vunpack.c.l.b16 %v256
  %v1003 = vunpack.c.h.b16 %v256
  %v1004 = vunpack.c.l.b16 %v257
  %v1005 = vunpack.c.h.b16 %v257
  %v1006 = vunpack.c.l.b16 %v258
  %v1007 = vunpack.c.h.b16 %v258
  %v1008 = vunpack.c.l.b16 %v259
  %v1009 = vunpack.c.h.b16 %v259
  %v1010 = vunpack.c.l.b16 %v260
  %v1011 = vunpack.c.h.b16 %v260
  %v1012 = vunpack.c.l.b16 %v261
  %v1013 = vunpack.c.h.b16 %v261
  %v1014 = vunpack.c.l.b16 %v262
  %v1015 = vunpack.c.h.b16 %v262
  %v1016 = vunpack.c.l.b16 %v263
  %v1017 = vunpack.c.h.b16 %v263
  %v1018 = vunpack.c.l.b16 %v264
  %v1019 = vunpack.c.h.b16 %v264
  %v1020 = vunpack.c.l.b16 %v265
  %v1021 = vunpack.c.h.b16 %v265
  %v1022 = vunpack.c.l.b16 %v266
  %v1023 = vunpack.c.h.b16 %v266
  %v1024 = vunpack.c.l.b16 %v267
  %v1025 = vunpack.c.h.b16 %v267
  %v1026 = vunpack.c.l.b16 %v268
  %v1027 = vunpack.c.h.b16 %v268
  %v1028 = vunpack.c.l.b16 %v269
  %v1029 = vunpack.c.h.b16 %v269
  %v1030 = vunpack.c.l.b16 %v270
  %v1031 = vunpack.c.h.b16 %v270
  %v1032 = vunpack.c.l.b16 %v271
  %v1033 = vunpack.c.h.b16 %v271
  %v1034 = vunpack.c.l.b16 %v272
  %v1035 = vunpack.c.h.b16 %v272
  %v1036 = vunpack.c.l.b16 %v273
  %v1037 = vunpack.c.h.b16 %v273
  %v1038 = vunpack.c.l.b16 %v274
  %v1039 = vunpack.c.h.b16 %v274
  %v1040 = vunpack.c.l.b16 %v275
  %v1041 = vunpack.c.h.b16 %v275
  %v1042 = vunpack.c.l.b16 %v276
  %v1043 = vunpack.c.h.b16 %v276
  %v1044 = vunpack.c.l.b16 %v277
  %v1045 = vunpack.c.h.b16 %v277
  %v1046 = vunpack.c.l.b16 %v278
  %v1047 = vunpack.c.h.b16 %v278
  %v1048 = vunpack.c.l.b16 %v279
  %v1049 = vunpack.c.h.b16 %v279
  %v1050 = vunpack.c.l.b16 %v280
  %v1051 = vunpack.c.h.b16 %v280
  %v1052 = vunpack.c.l.b16 %v281
  %v1053 = vunpack.c.h.b16 %v281
  %v1054 = vunpack.c.l.b16 %v282
  %v1055 = vunpack.c.h.b16 %v282
  %v1056 = vunpack.c.l.b16 %v283
  %v1057 = vunpack.c.h.b16 %v283
  %v1058 = vunpack.c.l.b16 %v284
  %v1059 = vunpack.c.h.b16 %v284
  %v1060 = vunpack.c.l.b16 %v285
  %v1061 = vunpack.c.h.b16 %v285
  %v1062 = vunpack.c.l.b16 %v286
  %v1063 = vunpack.c.h.b16 %v286
  %v1064 = vunpack.c.l.b16 %v287
  %v1065 = vunpack.c.h.b16 %v287
  %v1066 = vunpack.c.l.b16 %v288
  %v1067 = vunpack.c.h.b16 %v288
  %v1068 = vunpack.c.l.b16 %v289
  %v1069 = vunpack.c.h.b16 %v289
  %v1070 = vunpack.c.l.b16 %v290
  %v1071 = vunpack.c.h.b16 %v290
  %v1072 = vunpack.c.l.b16 %v291
  %v1073 = vunpack.c.h.b16 %v291
  %v1074 = vunpack.c.l.b16 %v292
  %v1075 = vunpack.c.h.b16 %v292
  %v1076 = vunpack.c.l.b16 %v293
  %v1077 = vunpack.c.h.b16 %v293
  %v1078 = vunpack.c.l.b16 %v294
  %v1079 = vunpack.c.h.b16 %v294
  %v1080 = vunpack.c.l.b16 %v295
  %v1081 = vunpack.c.h.b16 %v295
  %v1082 = vunpack.c.l.b16 %v296
  %v1083 = vunpack.c.h.b16 %v296
  %v1084 = vunpack.c.l.b16 %v297
  %v1085 = vunpack.c.h.b16 %v297
  %v1086 = vunpack.c.l.b16 %v298
  %v1087 = vunpack.c.h.b16 %v298
  %v1088 = vunpack.c.l.b16 %v299
  %v1089 = vunpack.c.h.b16 %v299
  %v1090 = vunpack.c.l.b16 %v300
  %v1091 = vunpack.c.h.b16 %v300
  %v1092 = vunpack.c.l.b16 %v301
  %v1093 = vunpack.c.h.b16 %v301
  %v1094 = vunpack.c.l.b16 %v302
  %v1095 = vunpack.c.h.b16 %v302
  %v1096 = vunpack.c.l.b16 %v303
  %v1097 = vunpack.c.h.b16 %v303
  %v1098 = vunpack.c.l.b16 %v304
  %v1099 = vunpack.c.h.b16 %v304
  %v1100 = vunpack.c.l.b16 %v305
  %v1101 = vunpack.c.h.b16 %v305
  %v1102 = vunpack.c.l.b16 %v306
  %v1103 = vunpack.c.h.b16 %v306
  %v1104 = vunpack.c.l.b16 %v307
  %v1105 = vunpack.c.h.b16 %v307
  %v1106 = vunpack.c.l.b16 %v308
  %v1107 = vunpack.c.h.b16 %v308
  %v1108 = vunpack.c.l.b16 %v309
  %v1109 = vunpack.c.h.b16 %v309
  %v1110 = vpack.c.b16 %v824, %v822
  %v1111 = vpack.c.b16 %v825, %v823
  %v1112 = vpack.c.b16 %v828, %v826
  %v1113 = vpack.c.b16 %v829, %v827
  %v1114 = vpack.c.b16 %v832, %v830
  %v1115 = vpack.c.b16 %v833, %v831
  %v1116 = vpack.c.b16 %v836, %v834
  %v1117 = vpack.c.b16 %v837, %v835
  %v1118 = vpack.c.b16 %v840, %v838
  %v1119 = vpack.c.b16 %v841, %v839
  %v1120 = vpack.c.b16 %v844, %v842
  %v1121 = vpack.c.b16 %v845, %v843
  %v1122 = vpack.c.b16 %v848, %v846
  %v1123 = vpack.c.b16 %v849, %v847
  %v1124 = vpack.c.b16 %v852, %v850
  %v1125 = vpack.c.b16 %v853, %v851
  %v1126 = vpack.c.b16 %v856, %v854
  %v1127 = vpack.c.b16 %v857, %v855
  %v1128 = vpack.c.b16 %v860, %v858
  %v1129 = vpack.c.b16 %v861, %v859
  %v1130 = vpack.c.b16 %v864, %v862
  %v1131 = vpack.c.b16 %v865, %v863
  %v1132 = vpack.c.b16 %v868, %v866
  %v1133 = vpack.c.b16 %v869, %v867
  %v1134 = vpack.c.b16 %v872, %v870
  %v1135 = vpack.c.b16 %v873, %v871
  %v1136 = vpack.c.b16 %v876, %v874
  %v1137 = vpack.c.b16 %v877, %v875
  %v1138 = vpack.c.b16 %v880, %v878
  %v1139 = vpack.c.b16 %v881, %v879
  %v1140 = vpack.c.b16 %v884, %v882
  %v1141 = vpack.c.b16 %v885, %v883
  %v1142 = vpack.c.b16 %v888, %v886
  %v1143 = vpack.c.b16 %v889, %v887
  %v1144 = vpack.c.b16 %v892, %v890
  %v1145 = vpack.c.b16 %v893, %v891
  %v1146 = vpack.c.b16 %v896, %v894
  %v1147 = vpack.c.b16 %v897, %v895
  %v1148 = vpack.c.b16 %v900, %v898
  %v1149 = vpack.c.b16 %v901, %v899
  %v1150 = vpack.c.b16 %v904, %v902
  %v1151 = vpack.c.b16 %v905, %v903
  %v1152 = vpack.c.b16 %v908, %v906
  %v1153 = vpack.c.b16 %v909, %v907
  %v1154 = vpack.c.b16 %v912, %v910
  %v1155 = vpack.c.b16 %v913, %v911
  %v1156 = vpack.c.b16 %v916, %v914
  %v1157 = vpack.c.b16 %v917, %v915
  %v1158 = vpack.c.b16 %v920, %v918
  %v1159 = vpack.c.b16 %v921, %v919
  %v1160 = vpack.c.b16 %v924, %v922
  %v1161 = vpack.c.b16 %v925, %v923
  %v1162 = vpack.c.b16 %v928, %v926
  %v1163 = vpack.c.b16 %v929, %v927
  %v1164 = vpack.c.b16 %v932, %v930
  %v1165 = vpack.c.b16 %v933, %v931
  %v1166 = vpack.c.b16 %v936, %v934
  %v1167 = vpack.c.b16 %v937, %v935
  %v1168 = vpack.c.b16 %v940, %v938
  %v1169 = vpack.c.b16 %v941, %v939
  %v1170 = vpack.c.b16 %v944, %v942
  %v1171 = vpack.c.b16 %v945, %v943
  %v1172 = vpack.c.b16 %v948, %v946
  %v1173 = vpack.c.b16 %v949, %v947
  %v1174 = vpack.c.b16 %v952, %v950
  %v1175 = vpack.c.b16 %v953, %v951
  %v1176 = vpack.c.b16 %v956, %v954
  %v1177 = vpack.c.b16 %v957, %v955
  %v1178 = vpack.c.b16 %v960, %v958
  %v1179 = vpack.c.b16 %v961, %v959
  %v1180 = vpack.c.b16 %v964, %v962
  %v1181 = vpack.c.b16 %v965, %v963
  %v1182 = vpack.c.b16 %v968, %v966
  %v1183 = vpack.c.b16 %v969, %v967
  %v1184 = vpack.c.b16 %v972, %v970
  %v1185 = vpack.c.b16 %v973, %v971
  %v1186 = vpack.c.b16 %v976, %v974
  %v1187 = vpack.c.b16 %v977, %v975
  %v1188 = vpack.c.b16 %v980, %v978
  %v1189 = vpack.c.b16 %v981, %v979
  %v1190 = vpack.c.b16 %v984, %v982
  %v1191 = vpack.c.b16 %v985, %v983
  %v1192 = vpack.c.b16 %v988, %v986
  %v1193 = vpack.c.b16 %v989, %v987
  %v1194 = vpack.c.b16 %v992, %v990
  %v1195 = vpack.c.b16 %v993, %v991
  %v1196 = vpack.c.b16 %v996, %v994
  %v1197 = vpack.c.b16 %v997, %v995
  %v1198 = vpack.c.b16 %v1000, %v998
  %v1199 = vpack.c.b16 %v1001, %v999
  %v1200 = vpack.c.b16 %v1004, %v1002
  %v1201 = vpack.c.b16 %v1005, %v1003
  %v1202 = vpack.c.b16 %v1008, %v1006
  %v1203 = vpack.c.b16 %v1009, %v1007
  %v1204 = vpack.c.b16 %v1012, %v1010
  %v1205 = vpack.c.b16 %v1013, %v1011
  %v1206 = vpack.c.b16 %v1016, %v1014
  %v1207 = vpack.c.b16 %v1017, %v1015
  %v1208 = vpack.c.b16 %v1020, %v1018
  %v1209 = vpack.c.b16 %v1021, %v1019
  %v1210 = vpack.c.b16 %v1024, %v1022
  %v1211 = vpack.c.b16 %v1025, %v1023
  %v1212 = vpack.c.b16 %v1028, %v1026
  %v1213 = vpack.c.b16 %v1029, %v1027
  %v1214 = vpack.c.b16 %v1032, %v1030
  %v1215 = vpack.c.b16 %v1033, %v1031
  %v1216 = vpack.c.b16 %v1036, %v1034
  %v1217 = vpack.c.b16 %v1037, %v1035
  %v1218 = vpack.c.b16 %v1040, %v1038
  %v1219 = vpack.c.b16 %v1041, %v1039
  %v1220 = vpack.c.b16 %v1044, %v1042
  %v1221 = vpack.c.b16 %v1045, %v1043
  %v1222 = vpack.c.b16 %v1048, %v1046
  %v1223 = vpack.c.b16 %v1049, %v1047
  %v1224 = vpack.c.b16 %v1052, %v1050
  %v1225 = vpack.c.b16 %v1053, %v1051
  %v1226 = vpack.c.b16 %v1056, %v1054
  %v1227 = vpack.c.b16 %v1057, %v1055
  %v1228 = vpack.c.b16 %v1060, %v1058
  %v1229 = vpack.c.b16 %v1061, %v1059
  %v1230 = vpack.c.b16 %v1064, %v1062
  %v1231 = vpack.c.b16 %v1065, %v1063
  %v1232 = vpack.c.b16 %v1068, %v1066
  %v1233 = vpack.c.b16 %v1069, %v1067
  %v1234 = vpack.c.b16 %v1072, %v1070
  %v1235 = vpack.c.b16 %v1073, %v1071
  %v1236 = vpack.c.b16 %v1076, %v1074
  %v1237 = vpack.c.b16 %v1077, %v1075
  %v1238 = vpack.c.b16 %v1080, %v1078
  %v1239 = vpack.c.b16 %v1081, %v1079
  %v1240 = vpack.c.b16 %v1084, %v1082
  %v1241 = vpack.c.b16 %v1085, %v1083
  %v1242 = vpack.c.b16 %v1088, %v1086
  %v1243 = vpack.c.b16 %v1089, %v1087
  %v1244 = vpack.c.b16 %v1092, %v1090
  %v1245 = vpack.c.b16 %v1093, %v1091
  %v1246 = vpack.c.b16 %v1096, %v1094
  %v1247 = vpack.c.b16 %v1097, %v1095
  %v1248 = vpack.c.b16 %v1100, %v1098
  %v1249 = vpack.c.b16 %v1101, %v1099
  %v1250 = vpack.c.b16 %v1104, %v1102
  %v1251 = vpack.c.b16 %v1105, %v1103
  %v1252 = vpack.c.b16 %v1108, %v1106
  %v1253 = vpack.c.b16 %v1109, %v1107
  %1398 = vmatprep.subr.bf16.mxu0 %v1111
  %1399 = vmatpush1.bf16.msra.mxu0 %v1110
  %1400 = vmatprep.subr.bf16.mxu0 %v1113
  %1401 = vmatpush1.bf16.msra.mxu0 %v1112
  %1402 = vmatprep.subr.bf16.mxu0 %v1115
  %1403 = vmatpush1.bf16.msra.mxu0 %v1114
  %1404 = vmatprep.subr.bf16.mxu0 %v1117
  %1405 = vmatpush1.bf16.msra.mxu0 %v1116
  %1406 = vmatprep.subr.bf16.mxu0 %v1119
  %1407 = vmatpush1.bf16.msra.mxu0 %v1118
  %1408 = vmatprep.subr.bf16.mxu0 %v1121
  %1409 = vmatpush1.bf16.msra.mxu0 %v1120
  %1410 = vmatprep.subr.bf16.mxu0 %v1123
  %1411 = vmatpush1.bf16.msra.mxu0 %v1122
  %1412 = vmatprep.subr.bf16.mxu0 %v1125
  %1413 = vmatpush1.bf16.msra.mxu0 %v1124
  %1414 = vmatprep.subr.bf16.mxu0 %v1127
  %1415 = vmatpush1.bf16.msra.mxu0 %v1126
  %1416 = vmatprep.subr.bf16.mxu0 %v1129
  %1417 = vmatpush1.bf16.msra.mxu0 %v1128
  %1418 = vmatprep.subr.bf16.mxu0 %v1131
  %1419 = vmatpush1.bf16.msra.mxu0 %v1130
  %1420 = vmatprep.subr.bf16.mxu0 %v1133
  %1421 = vmatpush1.bf16.msra.mxu0 %v1132
  %1422 = vmatprep.subr.bf16.mxu0 %v1135
  %1423 = vmatpush1.bf16.msra.mxu0 %v1134
  %1424 = vmatprep.subr.bf16.mxu0 %v1137
  %1425 = vmatpush1.bf16.msra.mxu0 %v1136
  %1426 = vmatprep.subr.bf16.mxu0 %v1139
  %1427 = vmatpush1.bf16.msra.mxu0 %v1138
  %1428 = vmatprep.subr.bf16.mxu0 %v1141
  %1429 = vmatpush1.bf16.msra.mxu0 %v1140
  %1430 = vmatprep.mubr.bf16.mxu0 %v535
  %1431 = vmatmul.mubr.bf16.gmra.mrb[0].mxu0 %v534
  %v1432 = vpop.f32.mrb[0].mxu0
  %v1433 = vadd.f32 0.0, %v1432
  %v1434 = vpop.f32.mrb[0].mxu0
  %v1435 = vadd.f32 0.0, %v1434
  %v1436 = vpop.f32.mrb[0].mxu0
  %v1437 = vadd.f32 0.0, %v1436
  %v1438 = vpop.f32.mrb[0].mxu0
  %v1439 = vadd.f32 0.0, %v1438
  %1440 = vmatprep.mubr.bf16.mxu0 %v544
  %1441 = vmatmul.mubr.bf16.gmra.mrb[0].mxu0 %v543
  %v1442 = vpop.f32.mrb[0].mxu0
  %v1443 = vadd.f32 0.0, %v1442
  %v1444 = vpop.f32.mrb[0].mxu0
  %v1445 = vadd.f32 0.0, %v1444
  %v1446 = vpop.f32.mrb[0].mxu0
  %v1447 = vadd.f32 0.0, %v1446
  %v1448 = vpop.f32.mrb[0].mxu0
  %v1449 = vadd.f32 0.0, %v1448
  %1450 = vmatprep.mubr.bf16.mxu0 %v553
  %1451 = vmatmul.mubr.bf16.gmra.mrb[0].mxu0 %v552
  %v1452 = vpop.f32.mrb[0].mxu0
  %v1453 = vadd.f32 0.0, %v1452
  %v1454 = vpop.f32.mrb[0].mxu0
  %v1455 = vadd.f32 0.0, %v1454
  %v1456 = vpop.f32.mrb[0].mxu0
  %v1457 = vadd.f32 0.0, %v1456
  %v1458 = vpop.f32.mrb[0].mxu0
  %v1459 = vadd.f32 0.0, %v1458
  %1460 = vmatprep.mubr.bf16.mxu0 %v562
  %1461 = vmatmul.mubr.bf16.gmra.mrb[0].mxu0 %v561
  %v1462 = vpop.f32.mrb[0].mxu0
  %v1463 = vadd.f32 0.0, %v1462
  %v1464 = vpop.f32.mrb[0].mxu0
  %v1465 = vadd.f32 0.0, %v1464
  %v1466 = vpop.f32.mrb[0].mxu0
  %v1467 = vadd.f32 0.0, %v1466
  %v1468 = vpop.f32.mrb[0].mxu0
  %v1469 = vadd.f32 0.0, %v1468
  %1470 = vmatprep.mubr.bf16.mxu0 %v571
  %1471 = vmatmul.mubr.bf16.gmra.mrb[0].mxu0 %v570
  %v1472 = vpop.f32.mrb[0].mxu0
  %v1473 = vadd.f32 0.0, %v1472
  %v1474 = vpop.f32.mrb[0].mxu0
  %v1475 = vadd.f32 0.0, %v1474
  %v1476 = vpop.f32.mrb[0].mxu0
  %v1477 = vadd.f32 0.0, %v1476
  %v1478 = vpop.f32.mrb[0].mxu0
  %v1479 = vadd.f32 0.0, %v1478
  %1480 = vmatprep.mubr.bf16.mxu0 %v580
  %1481 = vmatmul.mubr.bf16.gmra.mrb[0].mxu0 %v579
  %v1482 = vpop.f32.mrb[0].mxu0
  %v1483 = vadd.f32 0.0, %v1482
  %v1484 = vpop.f32.mrb[0].mxu0
  %v1485 = vadd.f32 0.0, %v1484
  %v1486 = vpop.f32.mrb[0].mxu0
  %v1487 = vadd.f32 0.0, %v1486
  %v1488 = vpop.f32.mrb[0].mxu0
  %v1489 = vadd.f32 0.0, %v1488
  %1490 = vmatprep.mubr.bf16.mxu0 %v589
  %1491 = vmatmul.mubr.bf16.gmra.mrb[0].mxu0 %v588
  %v1492 = vpop.f32.mrb[0].mxu0
  %v1493 = vadd.f32 0.0, %v1492
  %v1494 = vpop.f32.mrb[0].mxu0
  %v1495 = vadd.f32 0.0, %v1494
  %v1496 = vpop.f32.mrb[0].mxu0
  %v1497 = vadd.f32 0.0, %v1496
  %v1498 = vpop.f32.mrb[0].mxu0
  %v1499 = vadd.f32 0.0, %v1498
  %1500 = vmatprep.mubr.bf16.mxu0 %v598
  %1501 = vmatmul.mubr.bf16.gmra.mrb[0].mxu0 %v597
  %v1502 = vpop.f32.mrb[0].mxu0
  %v1503 = vadd.f32 0.0, %v1502
  %v1504 = vpop.f32.mrb[0].mxu0
  %v1505 = vadd.f32 0.0, %v1504
  %v1506 = vpop.f32.mrb[0].mxu0
  %v1507 = vadd.f32 0.0, %v1506
  %v1508 = vpop.f32.mrb[0].mxu0
  %v1509 = vadd.f32 0.0, %v1508
  %1510 = vdwg.mxu0
  %1511 = vmatprep.subr.bf16.mxu0 %v1143
  %1512 = vmatpush1.bf16.msra.mxu0 %v1142
  %1513 = vmatprep.subr.bf16.mxu0 %v1145
  %1514 = vmatpush1.bf16.msra.mxu0 %v1144
  %1515 = vmatprep.subr.bf16.mxu0 %v1147
  %1516 = vmatpush1.bf16.msra.mxu0 %v1146
  %1517 = vmatprep.subr.bf16.mxu0 %v1149
  %1518 = vmatpush1.bf16.msra.mxu0 %v1148
  %1519 = vmatprep.subr.bf16.mxu0 %v1151
  %1520 = vmatpush1.bf16.msra.mxu0 %v1150
  %1521 = vmatprep.subr.bf16.mxu0 %v1153
  %1522 = vmatpush1.bf16.msra.mxu0 %v1152
  %1523 = vmatprep.subr.bf16.mxu0 %v1155
  %1524 = vmatpush1.bf16.msra.mxu0 %v1154
  %1525 = vmatprep.subr.bf16.mxu0 %v1157
  %1526 = vmatpush1.bf16.msra.mxu0 %v1156
  %1527 = vmatprep.subr.bf16.mxu0 %v1159
  %1528 = vmatpush1.bf16.msra.mxu0 %v1158
  %1529 = vmatprep.subr.bf16.mxu0 %v1161
  %1530 = vmatpush1.bf16.msra.mxu0 %v1160
  %1531 = vmatprep.subr.bf16.mxu0 %v1163
  %1532 = vmatpush1.bf16.msra.mxu0 %v1162
  %1533 = vmatprep.subr.bf16.mxu0 %v1165
  %1534 = vmatpush1.bf16.msra.mxu0 %v1164
  %1535 = vmatprep.subr.bf16.mxu0 %v1167
  %1536 = vmatpush1.bf16.msra.mxu0 %v1166
  %1537 = vmatprep.subr.bf16.mxu0 %v1169
  %1538 = vmatpush1.bf16.msra.mxu0 %v1168
  %1539 = vmatprep.subr.bf16.mxu0 %v1171
  %1540 = vmatpush1.bf16.msra.mxu0 %v1170
  %1541 = vmatprep.subr.bf16.mxu0 %v1173
  %1542 = vmatpush1.bf16.msra.mxu0 %v1172
  %1543 = vmatprep.mubr.bf16.mxu0 %v537
  %1544 = vmatmul.mubr.bf16.gmra.mrb[0].mxu0 %v536
  %v1545 = vpop.f32.mrb[0].mxu0
  %v1546 = vadd.f32 %v1433, %v1545
  %v1547 = vpop.f32.mrb[0].mxu0
  %v1548 = vadd.f32 %v1435, %v1547
  %v1549 = vpop.f32.mrb[0].mxu0
  %v1550 = vadd.f32 %v1437, %v1549
  %v1551 = vpop.f32.mrb[0].mxu0
  %v1552 = vadd.f32 %v1439, %v1551
  %1553 = vmatprep.mubr.bf16.mxu0 %v546
  %1554 = vmatmul.mubr.bf16.gmra.mrb[0].mxu0 %v545
  %v1555 = vpop.f32.mrb[0].mxu0
  %v1556 = vadd.f32 %v1443, %v1555
  %v1557 = vpop.f32.mrb[0].mxu0
  %v1558 = vadd.f32 %v1445, %v1557
  %v1559 = vpop.f32.mrb[0].mxu0
  %v1560 = vadd.f32 %v1447, %v1559
  %v1561 = vpop.f32.mrb[0].mxu0
  %v1562 = vadd.f32 %v1449, %v1561
  %1563 = vmatprep.mubr.bf16.mxu0 %v555
  %1564 = vmatmul.mubr.bf16.gmra.mrb[0].mxu0 %v554
  %v1565 = vpop.f32.mrb[0].mxu0
  %v1566 = vadd.f32 %v1453, %v1565
  %v1567 = vpop.f32.mrb[0].mxu0
  %v1568 = vadd.f32 %v1455, %v1567
  %v1569 = vpop.f32.mrb[0].mxu0
  %v1570 = vadd.f32 %v1457, %v1569
  %v1571 = vpop.f32.mrb[0].mxu0
  %v1572 = vadd.f32 %v1459, %v1571
  %1573 = vmatprep.mubr.bf16.mxu0 %v564
  %1574 = vmatmul.mubr.bf16.gmra.mrb[0].mxu0 %v563
  %v1575 = vpop.f32.mrb[0].mxu0
  %v1576 = vadd.f32 %v1463, %v1575
  %v1577 = vpop.f32.mrb[0].mxu0
  %v1578 = vadd.f32 %v1465, %v1577
  %v1579 = vpop.f32.mrb[0].mxu0
  %v1580 = vadd.f32 %v1467, %v1579
  %v1581 = vpop.f32.mrb[0].mxu0
  %v1582 = vadd.f32 %v1469, %v1581
  %1583 = vmatprep.mubr.bf16.mxu0 %v573
  %1584 = vmatmul.mubr.bf16.gmra.mrb[0].mxu0 %v572
  %v1585 = vpop.f32.mrb[0].mxu0
  %v1586 = vadd.f32 %v1473, %v1585
  %v1587 = vpop.f32.mrb[0].mxu0
  %v1588 = vadd.f32 %v1475, %v1587
  %v1589 = vpop.f32.mrb[0].mxu0
  %v1590 = vadd.f32 %v1477, %v1589
  %v1591 = vpop.f32.mrb[0].mxu0
  %v1592 = vadd.f32 %v1479, %v1591
  %1593 = vmatprep.mubr.bf16.mxu0 %v582
  %1594 = vmatmul.mubr.bf16.gmra.mrb[0].mxu0 %v581
  %v1595 = vpop.f32.mrb[0].mxu0
  %v1596 = vadd.f32 %v1483, %v1595
  %v1597 = vpop.f32.mrb[0].mxu0
  %v1598 = vadd.f32 %v1485, %v1597
  %v1599 = vpop.f32.mrb[0].mxu0
  %v1600 = vadd.f32 %v1487, %v1599
  %v1601 = vpop.f32.mrb[0].mxu0
  %v1602 = vadd.f32 %v1489, %v1601
  %1603 = vmatprep.mubr.bf16.mxu0 %v591
  %1604 = vmatmul.mubr.bf16.gmra.mrb[0].mxu0 %v590
  %v1605 = vpop.f32.mrb[0].mxu0
  %v1606 = vadd.f32 %v1493, %v1605
  %v1607 = vpop.f32.mrb[0].mxu0
  %v1608 = vadd.f32 %v1495, %v1607
  %v1609 = vpop.f32.mrb[0].mxu0
  %v1610 = vadd.f32 %v1497, %v1609
  %v1611 = vpop.f32.mrb[0].mxu0
  %v1612 = vadd.f32 %v1499, %v1611
  %1613 = vmatprep.mubr.bf16.mxu0 %v600
  %1614 = vmatmul.mubr.bf16.gmra.mrb[0].mxu0 %v599
  %v1615 = vpop.f32.mrb[0].mxu0
  %v1616 = vadd.f32 %v1503, %v1615
  %v1617 = vpop.f32.mrb[0].mxu0
  %v1618 = vadd.f32 %v1505, %v1617
  %v1619 = vpop.f32.mrb[0].mxu0
  %v1620 = vadd.f32 %v1507, %v1619
  %v1621 = vpop.f32.mrb[0].mxu0
  %v1622 = vadd.f32 %v1509, %v1621
  %1623 = vdwg.mxu0
  %1624 = vmatprep.subr.bf16.mxu0 %v1175
  %1625 = vmatpush1.bf16.msra.mxu0 %v1174
  %1626 = vmatprep.subr.bf16.mxu0 %v1177
  %1627 = vmatpush1.bf16.msra.mxu0 %v1176
  %1628 = vmatprep.subr.bf16.mxu0 %v1179
  %1629 = vmatpush1.bf16.msra.mxu0 %v1178
  %1630 = vmatprep.subr.bf16.mxu0 %v1181
  %1631 = vmatpush1.bf16.msra.mxu0 %v1180
  %1632 = vmatprep.subr.bf16.mxu0 %v1183
  %1633 = vmatpush1.bf16.msra.mxu0 %v1182
  %1634 = vmatprep.subr.bf16.mxu0 %v1185
  %1635 = vmatpush1.bf16.msra.mxu0 %v1184
  %1636 = vmatprep.subr.bf16.mxu0 %v1187
  %1637 = vmatpush1.bf16.msra.mxu0 %v1186
  %1638 = vmatprep.subr.bf16.mxu0 %v1189
  %1639 = vmatpush1.bf16.msra.mxu0 %v1188
  %1640 = vmatprep.subr.bf16.mxu0 %v1191
  %1641 = vmatpush1.bf16.msra.mxu0 %v1190
  %1642 = vmatprep.subr.bf16.mxu0 %v1193
  %1643 = vmatpush1.bf16.msra.mxu0 %v1192
  %1644 = vmatprep.subr.bf16.mxu0 %v1195
  %1645 = vmatpush1.bf16.msra.mxu0 %v1194
  %1646 = vmatprep.subr.bf16.mxu0 %v1197
  %1647 = vmatpush1.bf16.msra.mxu0 %v1196
  %1648 = vmatprep.subr.bf16.mxu0 %v1199
  %1649 = vmatpush1.bf16.msra.mxu0 %v1198
  %1650 = vmatprep.subr.bf16.mxu0 %v1201
  %1651 = vmatpush1.bf16.msra.mxu0 %v1200
  %1652 = vmatprep.subr.bf16.mxu0 %v1203
  %1653 = vmatpush1.bf16.msra.mxu0 %v1202
  %1654 = vmatprep.subr.bf16.mxu0 %v1205
  %1655 = vmatpush1.bf16.msra.mxu0 %v1204
  %1656 = vmatprep.mubr.bf16.mxu0 %v539
  %1657 = vmatmul.mubr.bf16.gmra.mrb[0].mxu0 %v538
  %v1658 = vpop.f32.mrb[0].mxu0
  %v1659 = vadd.f32 %v1546, %v1658
  %v1660 = vpop.f32.mrb[0].mxu0
  %v1661 = vadd.f32 %v1548, %v1660
  %v1662 = vpop.f32.mrb[0].mxu0
  %v1663 = vadd.f32 %v1550, %v1662
  %v1664 = vpop.f32.mrb[0].mxu0
  %v1665 = vadd.f32 %v1552, %v1664
  %1666 = vmatprep.mubr.bf16.mxu0 %v548
  %1667 = vmatmul.mubr.bf16.gmra.mrb[0].mxu0 %v547
  %v1668 = vpop.f32.mrb[0].mxu0
  %v1669 = vadd.f32 %v1556, %v1668
  %v1670 = vpop.f32.mrb[0].mxu0
  %v1671 = vadd.f32 %v1558, %v1670
  %v1672 = vpop.f32.mrb[0].mxu0
  %v1673 = vadd.f32 %v1560, %v1672
  %v1674 = vpop.f32.mrb[0].mxu0
  %v1675 = vadd.f32 %v1562, %v1674
  %1676 = vmatprep.mubr.bf16.mxu0 %v557
  %1677 = vmatmul.mubr.bf16.gmra.mrb[0].mxu0 %v556
  %v1678 = vpop.f32.mrb[0].mxu0
  %v1679 = vadd.f32 %v1566, %v1678
  %v1680 = vpop.f32.mrb[0].mxu0
  %v1681 = vadd.f32 %v1568, %v1680
  %v1682 = vpop.f32.mrb[0].mxu0
  %v1683 = vadd.f32 %v1570, %v1682
  %v1684 = vpop.f32.mrb[0].mxu0
  %v1685 = vadd.f32 %v1572, %v1684
  %1686 = vmatprep.mubr.bf16.mxu0 %v566
  %1687 = vmatmul.mubr.bf16.gmra.mrb[0].mxu0 %v565
  %v1688 = vpop.f32.mrb[0].mxu0
  %v1689 = vadd.f32 %v1576, %v1688
  %v1690 = vpop.f32.mrb[0].mxu0
  %v1691 = vadd.f32 %v1578, %v1690
  %v1692 = vpop.f32.mrb[0].mxu0
  %v1693 = vadd.f32 %v1580, %v1692
  %v1694 = vpop.f32.mrb[0].mxu0
  %v1695 = vadd.f32 %v1582, %v1694
  %1696 = vmatprep.mubr.bf16.mxu0 %v575
  %1697 = vmatmul.mubr.bf16.gmra.mrb[0].mxu0 %v574
  %v1698 = vpop.f32.mrb[0].mxu0
  %v1699 = vadd.f32 %v1586, %v1698
  %v1700 = vpop.f32.mrb[0].mxu0
  %v1701 = vadd.f32 %v1588, %v1700
  %v1702 = vpop.f32.mrb[0].mxu0
  %v1703 = vadd.f32 %v1590, %v1702
  %v1704 = vpop.f32.mrb[0].mxu0
  %v1705 = vadd.f32 %v1592, %v1704
  %1706 = vmatprep.mubr.bf16.mxu0 %v584
  %1707 = vmatmul.mubr.bf16.gmra.mrb[0].mxu0 %v583
  %v1708 = vpop.f32.mrb[0].mxu0
  %v1709 = vadd.f32 %v1596, %v1708
  %v1710 = vpop.f32.mrb[0].mxu0
  %v1711 = vadd.f32 %v1598, %v1710
  %v1712 = vpop.f32.mrb[0].mxu0
  %v1713 = vadd.f32 %v1600, %v1712
  %v1714 = vpop.f32.mrb[0].mxu0
  %v1715 = vadd.f32 %v1602, %v1714
  %1716 = vmatprep.mubr.bf16.mxu0 %v593
  %1717 = vmatmul.mubr.bf16.gmra.mrb[0].mxu0 %v592
  %v1718 = vpop.f32.mrb[0].mxu0
  %v1719 = vadd.f32 %v1606, %v1718
  %v1720 = vpop.f32.mrb[0].mxu0
  %v1721 = vadd.f32 %v1608, %v1720
  %v1722 = vpop.f32.mrb[0].mxu0
  %v1723 = vadd.f32 %v1610, %v1722
  %v1724 = vpop.f32.mrb[0].mxu0
  %v1725 = vadd.f32 %v1612, %v1724
  %1726 = vmatprep.mubr.bf16.mxu0 %v602
  %1727 = vmatmul.mubr.bf16.gmra.mrb[0].mxu0 %v601
  %v1728 = vpop.f32.mrb[0].mxu0
  %v1729 = vadd.f32 %v1616, %v1728
  %v1730 = vpop.f32.mrb[0].mxu0
  %v1731 = vadd.f32 %v1618, %v1730
  %v1732 = vpop.f32.mrb[0].mxu0
  %v1733 = vadd.f32 %v1620, %v1732
  %v1734 = vpop.f32.mrb[0].mxu0
  %v1735 = vadd.f32 %v1622, %v1734
  %1736 = vdwg.mxu0
  %1737 = vmatprep.subr.bf16.mxu0 %v1207
  %1738 = vmatpush1.bf16.msra.mxu0 %v1206
  %1739 = vmatprep.subr.bf16.mxu0 %v1209
  %1740 = vmatpush1.bf16.msra.mxu0 %v1208
  %1741 = vmatprep.subr.bf16.mxu0 %v1211
  %1742 = vmatpush1.bf16.msra.mxu0 %v1210
  %1743 = vmatprep.subr.bf16.mxu0 %v1213
  %1744 = vmatpush1.bf16.msra.mxu0 %v1212
  %1745 = vmatprep.subr.bf16.mxu0 %v1215
  %1746 = vmatpush1.bf16.msra.mxu0 %v1214
  %1747 = vmatprep.subr.bf16.mxu0 %v1217
  %1748 = vmatpush1.bf16.msra.mxu0 %v1216
  %1749 = vmatprep.subr.bf16.mxu0 %v1219
  %1750 = vmatpush1.bf16.msra.mxu0 %v1218
  %1751 = vmatprep.subr.bf16.mxu0 %v1221
  %1752 = vmatpush1.bf16.msra.mxu0 %v1220
  %1753 = vmatprep.subr.bf16.mxu0 %v1223
  %1754 = vmatpush1.bf16.msra.mxu0 %v1222
  %1755 = vmatprep.subr.bf16.mxu0 %v1225
  %1756 = vmatpush1.bf16.msra.mxu0 %v1224
  %1757 = vmatprep.subr.bf16.mxu0 %v1227
  %1758 = vmatpush1.bf16.msra.mxu0 %v1226
  %1759 = vmatprep.subr.bf16.mxu0 %v1229
  %1760 = vmatpush1.bf16.msra.mxu0 %v1228
  %1761 = vmatprep.subr.bf16.mxu0 %v1231
  %1762 = vmatpush1.bf16.msra.mxu0 %v1230
  %1763 = vmatprep.subr.bf16.mxu0 %v1233
  %1764 = vmatpush1.bf16.msra.mxu0 %v1232
  %1765 = vmatprep.subr.bf16.mxu0 %v1235
  %1766 = vmatpush1.bf16.msra.mxu0 %v1234
  %1767 = vmatprep.subr.bf16.mxu0 %v1237
  %1768 = vmatpush1.bf16.msra.mxu0 %v1236
  %1769 = vmatprep.mubr.bf16.mxu0 %v541
  %1770 = vmatmul.mubr.bf16.gmra.mrb[0].mxu0 %v540
  %v1771 = vpop.f32.mrb[0].mxu0
  %v1772 = vadd.f32 %v1659, %v1771
  %v1773 = vpop.f32.mrb[0].mxu0
  %v1774 = vadd.f32 %v1661, %v1773
  %v1775 = vpop.f32.mrb[0].mxu0
  %v1776 = vadd.f32 %v1663, %v1775
  %v1777 = vpop.f32.mrb[0].mxu0
  %v1778 = vadd.f32 %v1665, %v1777
  %1779 = vmatprep.mubr.bf16.mxu0 %v550
  %1780 = vmatmul.mubr.bf16.gmra.mrb[0].mxu0 %v549
  %v1781 = vpop.f32.mrb[0].mxu0
  %v1782 = vadd.f32 %v1669, %v1781
  %v1783 = vpop.f32.mrb[0].mxu0
  %v1784 = vadd.f32 %v1671, %v1783
  %v1785 = vpop.f32.mrb[0].mxu0
  %v1786 = vadd.f32 %v1673, %v1785
  %v1787 = vpop.f32.mrb[0].mxu0
  %v1788 = vadd.f32 %v1675, %v1787
  %1789 = vmatprep.mubr.bf16.mxu0 %v559
  %1790 = vmatmul.mubr.bf16.gmra.mrb[0].mxu0 %v558
  %v1791 = vpop.f32.mrb[0].mxu0
  %v1792 = vadd.f32 %v1679, %v1791
  %v1793 = vpop.f32.mrb[0].mxu0
  %v1794 = vadd.f32 %v1681, %v1793
  %v1795 = vpop.f32.mrb[0].mxu0
  %v1796 = vadd.f32 %v1683, %v1795
  %v1797 = vpop.f32.mrb[0].mxu0
  %v1798 = vadd.f32 %v1685, %v1797
  %1799 = vmatprep.mubr.bf16.mxu0 %v568
  %1800 = vmatmul.mubr.bf16.gmra.mrb[0].mxu0 %v567
  %v1801 = vpop.f32.mrb[0].mxu0
  %v1802 = vadd.f32 %v1689, %v1801
  %v1803 = vpop.f32.mrb[0].mxu0
  %v1804 = vadd.f32 %v1691, %v1803
  %v1805 = vpop.f32.mrb[0].mxu0
  %v1806 = vadd.f32 %v1693, %v1805
  %v1807 = vpop.f32.mrb[0].mxu0
  %v1808 = vadd.f32 %v1695, %v1807
  %1809 = vmatprep.mubr.bf16.mxu0 %v577
  %1810 = vmatmul.mubr.bf16.gmra.mrb[0].mxu0 %v576
  %v1811 = vpop.f32.mrb[0].mxu0
  %v1812 = vadd.f32 %v1699, %v1811
  %v1813 = vpop.f32.mrb[0].mxu0
  %v1814 = vadd.f32 %v1701, %v1813
  %v1815 = vpop.f32.mrb[0].mxu0
  %v1816 = vadd.f32 %v1703, %v1815
  %v1817 = vpop.f32.mrb[0].mxu0
  %v1818 = vadd.f32 %v1705, %v1817
  %1819 = vmatprep.mubr.bf16.mxu0 %v586
  %1820 = vmatmul.mubr.bf16.gmra.mrb[0].mxu0 %v585
  %v1821 = vpop.f32.mrb[0].mxu0
  %v1822 = vadd.f32 %v1709, %v1821
  %v1823 = vpop.f32.mrb[0].mxu0
  %v1824 = vadd.f32 %v1711, %v1823
  %v1825 = vpop.f32.mrb[0].mxu0
  %v1826 = vadd.f32 %v1713, %v1825
  %v1827 = vpop.f32.mrb[0].mxu0
  %v1828 = vadd.f32 %v1715, %v1827
  %1829 = vmatprep.mubr.bf16.mxu0 %v595
  %1830 = vmatmul.mubr.bf16.gmra.mrb[0].mxu0 %v594
  %v1831 = vpop.f32.mrb[0].mxu0
  %v1832 = vadd.f32 %v1719, %v1831
  %v1833 = vpop.f32.mrb[0].mxu0
  %v1834 = vadd.f32 %v1721, %v1833
  %v1835 = vpop.f32.mrb[0].mxu0
  %v1836 = vadd.f32 %v1723, %v1835
  %v1837 = vpop.f32.mrb[0].mxu0
  %v1838 = vadd.f32 %v1725, %v1837
  %1839 = vmatprep.mubr.bf16.mxu0 %v604
  %1840 = vmatmul.mubr.bf16.gmra.mrb[0].mxu0 %v603
  %v1841 = vpop.f32.mrb[0].mxu0
  %v1842 = vadd.f32 %v1729, %v1841
  %v1843 = vpop.f32.mrb[0].mxu0
  %v1844 = vadd.f32 %v1731, %v1843
  %v1845 = vpop.f32.mrb[0].mxu0
  %v1846 = vadd.f32 %v1733, %v1845
  %v1847 = vpop.f32.mrb[0].mxu0
  %v1848 = vadd.f32 %v1735, %v1847
  %1849 = vdwg.mxu0
  %1850 = vmatprep.subr.bf16.mxu0 %v1239
  %1851 = vmatpush1.bf16.msra.mxu0 %v1238
  %1852 = vmatprep.subr.bf16.mxu0 %v1241
  %1853 = vmatpush1.bf16.msra.mxu0 %v1240
  %1854 = vmatprep.subr.bf16.mxu0 %v1243
  %1855 = vmatpush1.bf16.msra.mxu0 %v1242
  %1856 = vmatprep.subr.bf16.mxu0 %v1245
  %1857 = vmatpush1.bf16.msra.mxu0 %v1244
  %1858 = vmatprep.subr.bf16.mxu0 %v1247
  %1859 = vmatpush1.bf16.msra.mxu0 %v1246
  %1860 = vmatprep.subr.bf16.mxu0 %v1249
  %1861 = vmatpush1.bf16.msra.mxu0 %v1248
  %1862 = vmatprep.subr.bf16.mxu0 %v1251
  %1863 = vmatpush1.bf16.msra.mxu0 %v1250
  %1864 = vmatprep.subr.bf16.mxu0 %v1253
  %1865 = vmatpush1.bf16.msra.mxu0 %v1252
  %1866 = vmatprep.subr.bf16.mxu0 0
  %1867 = vmatpush1.bf16.msra.mxu0 0
  %1868 = vmatprep.subr.bf16.mxu0 0
  %1869 = vmatpush1.bf16.msra.mxu0 0
  %1870 = vmatprep.subr.bf16.mxu0 0
  %1871 = vmatpush1.bf16.msra.mxu0 0
  %1872 = vmatprep.subr.bf16.mxu0 0
  %1873 = vmatpush1.bf16.msra.mxu0 0
  %1874 = vmatprep.subr.bf16.mxu0 0
  %1875 = vmatpush1.bf16.msra.mxu0 0
  %1876 = vmatprep.subr.bf16.mxu0 0
  %1877 = vmatpush1.bf16.msra.mxu0 0
  %1878 = vmatprep.subr.bf16.mxu0 0
  %1879 = vmatpush1.bf16.msra.mxu0 0
  %1880 = vmatprep.subr.bf16.mxu0 0
  %1881 = vmatpush1.bf16.msra.mxu0 0
  %1882 = vmatprep.mubr.bf16.mxu0 0
  %1883 = vmatmul.mubr.bf16.gmra.mrb[0].mxu0 %v542
  %v1884 = vpop.f32.mrb[0].mxu0
  %v1885 = vadd.f32 %v1772, %v1884
  %v1886 = vpop.f32.mrb[0].mxu0
  %v1887 = vadd.f32 %v1774, %v1886
  %v1888 = vpop.f32.mrb[0].mxu0
  %v1889 = vadd.f32 %v1776, %v1888
  %v1890 = vpop.f32.mrb[0].mxu0
  %v1891 = vadd.f32 %v1778, %v1890
  %1892 = vmatprep.mubr.bf16.mxu0 0
  %1893 = vmatmul.mubr.bf16.gmra.mrb[0].mxu0 %v551
  %v1894 = vpop.f32.mrb[0].mxu0
  %v1895 = vadd.f32 %v1782, %v1894
  %v1896 = vpop.f32.mrb[0].mxu0
  %v1897 = vadd.f32 %v1784, %v1896
  %v1898 = vpop.f32.mrb[0].mxu0
  %v1899 = vadd.f32 %v1786, %v1898
  %v1900 = vpop.f32.mrb[0].mxu0
  %v1901 = vadd.f32 %v1788, %v1900
  %1902 = vmatprep.mubr.bf16.mxu0 0
  %1903 = vmatmul.mubr.bf16.gmra.mrb[0].mxu0 %v560
  %v1904 = vpop.f32.mrb[0].mxu0
  %v1905 = vadd.f32 %v1792, %v1904
  %v1906 = vpop.f32.mrb[0].mxu0
  %v1907 = vadd.f32 %v1794, %v1906
  %v1908 = vpop.f32.mrb[0].mxu0
  %v1909 = vadd.f32 %v1796, %v1908
  %v1910 = vpop.f32.mrb[0].mxu0
  %v1911 = vadd.f32 %v1798, %v1910
  %1912 = vmatprep.mubr.bf16.mxu0 0
  %1913 = vmatmul.mubr.bf16.gmra.mrb[0].mxu0 %v569
  %v1914 = vpop.f32.mrb[0].mxu0
  %v1915 = vadd.f32 %v1802, %v1914
  %v1916 = vpop.f32.mrb[0].mxu0
  %v1917 = vadd.f32 %v1804, %v1916
  %v1918 = vpop.f32.mrb[0].mxu0
  %v1919 = vadd.f32 %v1806, %v1918
  %v1920 = vpop.f32.mrb[0].mxu0
  %v1921 = vadd.f32 %v1808, %v1920
  %1922 = vmatprep.mubr.bf16.mxu0 0
  %1923 = vmatmul.mubr.bf16.gmra.mrb[0].mxu0 %v578
  %v1924 = vpop.f32.mrb[0].mxu0
  %v1925 = vadd.f32 %v1812, %v1924
  %v1926 = vpop.f32.mrb[0].mxu0
  %v1927 = vadd.f32 %v1814, %v1926
  %v1928 = vpop.f32.mrb[0].mxu0
  %v1929 = vadd.f32 %v1816, %v1928
  %v1930 = vpop.f32.mrb[0].mxu0
  %v1931 = vadd.f32 %v1818, %v1930
  %1932 = vmatprep.mubr.bf16.mxu0 0
  %1933 = vmatmul.mubr.bf16.gmra.mrb[0].mxu0 %v587
  %v1934 = vpop.f32.mrb[0].mxu0
  %v1935 = vadd.f32 %v1822, %v1934
  %v1936 = vpop.f32.mrb[0].mxu0
  %v1937 = vadd.f32 %v1824, %v1936
  %v1938 = vpop.f32.mrb[0].mxu0
  %v1939 = vadd.f32 %v1826, %v1938
  %v1940 = vpop.f32.mrb[0].mxu0
  %v1941 = vadd.f32 %v1828, %v1940
  %1942 = vmatprep.mubr.bf16.mxu0 0
  %1943 = vmatmul.mubr.bf16.gmra.mrb[0].mxu0 %v596
  %v1944 = vpop.f32.mrb[0].mxu0
  %v1945 = vadd.f32 %v1832, %v1944
  %v1946 = vpop.f32.mrb[0].mxu0
  %v1947 = vadd.f32 %v1834, %v1946
  %v1948 = vpop.f32.mrb[0].mxu0
  %v1949 = vadd.f32 %v1836, %v1948
  %v1950 = vpop.f32.mrb[0].mxu0
  %v1951 = vadd.f32 %v1838, %v1950
  %1952 = vmatprep.mubr.bf16.mxu0 0
  %1953 = vmatmul.mubr.bf16.gmra.mrb[0].mxu0 %v605
  %v1954 = vpop.f32.mrb[0].mxu0
  %v1955 = vadd.f32 %v1842, %v1954
  %v1956 = vpop.f32.mrb[0].mxu0
  %v1957 = vadd.f32 %v1844, %v1956
  %v1958 = vpop.f32.mrb[0].mxu0
  %v1959 = vadd.f32 %v1846, %v1958
  %v1960 = vpop.f32.mrb[0].mxu0
  %v1961 = vadd.f32 %v1848, %v1960
  %1962 = vdwg.mxu0
  %v1963 = vadd.f32 %v54, %v1885
  %v1964 = vadd.f32 %v55, %v1887
  %v1965 = vadd.f32 %v56, %v1889
  %v1966 = vadd.f32 %v57, %v1891
  %v1967 = vadd.f32 %v58, %v1895
  %v1968 = vadd.f32 %v59, %v1897
  %v1969 = vadd.f32 %v60, %v1899
  %v1970 = vadd.f32 %v61, %v1901
  %v1971 = vadd.f32 %v62, %v1905
  %v1972 = vadd.f32 %v63, %v1907
  %v1973 = vadd.f32 %v64, %v1909
  %v1974 = vadd.f32 %v65, %v1911
  %v1975 = vadd.f32 %v66, %v1915
  %v1976 = vadd.f32 %v67, %v1917
  %v1977 = vadd.f32 %v68, %v1919
  %v1978 = vadd.f32 %v69, %v1921
  %v1979 = vadd.f32 %v70, %v1925
  %v1980 = vadd.f32 %v71, %v1927
  %v1981 = vadd.f32 %v72, %v1929
  %v1982 = vadd.f32 %v73, %v1931
  %v1983 = vadd.f32 %v74, %v1935
  %v1984 = vadd.f32 %v75, %v1937
  %v1985 = vadd.f32 %v76, %v1939
  %v1986 = vadd.f32 %v77, %v1941
  %v1987 = vadd.f32 %v78, %v1945
  %v1988 = vadd.f32 %v79, %v1947
  %v1989 = vadd.f32 %v80, %v1949
  %v1990 = vadd.f32 %v81, %v1951
  %v1991 = vadd.f32 %v82, %v1955
  %v1992 = vadd.f32 %v83, %v1957
  %v1993 = vadd.f32 %v84, %v1959
  %v1994 = vadd.f32 %v85, %v1961
  %1995 = vst [vmem:[#allocation2] sm:$0xff] %v1963
  %1996 = vst [vmem:[#allocation2 + $0x8] sm:$0xff] %v1964
  %1997 = vst [vmem:[#allocation2 + $0x10] sm:$0xff] %v1965
  %1998 = vst [vmem:[#allocation2 + $0x18] sm:$0xff] %v1966
  %1999 = vst [vmem:[#allocation2 + $0x20] sm:$0xff] %v1967
  %2000 = vst [vmem:[#allocation2 + $0x28] sm:$0xff] %v1968
  %2001 = vst [vmem:[#allocation2 + $0x30] sm:$0xff] %v1969
  %2002 = vst [vmem:[#allocation2 + $0x38] sm:$0xff] %v1970
  %2003 = vst [vmem:[#allocation2 + $0x40] sm:$0xff] %v1971
  %2004 = vst [vmem:[#allocation2 + $0x48] sm:$0xff] %v1972
  %2005 = vst [vmem:[#allocation2 + $0x50] sm:$0xff] %v1973
  %2006 = vst [vmem:[#allocation2 + $0x58] sm:$0xff] %v1974
  %2007 = vst [vmem:[#allocation2 + $0x60] sm:$0xff] %v1975
  %2008 = vst [vmem:[#allocation2 + $0x68] sm:$0xff] %v1976
  %2009 = vst [vmem:[#allocation2 + $0x70] sm:$0xff] %v1977
  %2010 = vst [vmem:[#allocation2 + $0x78] sm:$0xff] %v1978
  %2011 = vst [vmem:[#allocation2 + $0x80] sm:$0xff] %v1979
  %2012 = vst [vmem:[#allocation2 + $0x88] sm:$0xff] %v1980
  %2013 = vst [vmem:[#allocation2 + $0x90] sm:$0xff] %v1981
  %2014 = vst [vmem:[#allocation2 + $0x98] sm:$0xff] %v1982
  %2015 = vst [vmem:[#allocation2 + $0xa0] sm:$0xff] %v1983
  %2016 = vst [vmem:[#allocation2 + $0xa8] sm:$0xff] %v1984
  %2017 = vst [vmem:[#allocation2 + $0xb0] sm:$0xff] %v1985
  %2018 = vst [vmem:[#allocation2 + $0xb8] sm:$0xff] %v1986
  %2019 = vst [vmem:[#allocation2 + $0xc0] sm:$0xff] %v1987
  %2020 = vst [vmem:[#allocation2 + $0xc8] sm:$0xff] %v1988
  %2021 = vst [vmem:[#allocation2 + $0xd0] sm:$0xff] %v1989
  %2022 = vst [vmem:[#allocation2 + $0xd8] sm:$0xff] %v1990
  %2023 = vst [vmem:[#allocation2 + $0xe0] sm:$0xff] %v1991
  %2024 = vst [vmem:[#allocation2 + $0xe8] sm:$0xff] %v1992
  %2025 = vst [vmem:[#allocation2 + $0xf0] sm:$0xff] %v1993
  %2026 = vst [vmem:[#allocation2 + $0xf8] sm:$0xff] %v1994
  // Predicated region
  $region22: #{extra_layers_forward.9} parent=0 // pred_check
    %p2027 = pneg %p18
  $region23: #{extra_layers_forward.9} parent=0 // pred_check_branch
    %2029 = sbr.rel (%p2027) target = $region25
  $region24: #{extra_layers_forward.9} parent=0 // pred_region
    %v2030 = vld [vmem:[#allocation2] sm:$0xff]
    %v2031 = vld [vmem:[#allocation2 + $0x8] sm:$0xff]
    %v2032 = vld [vmem:[#allocation2 + $0x10] sm:$0xff]
    %v2033 = vld [vmem:[#allocation2 + $0x18] sm:$0xff]
    %v2034 = vld [vmem:[#allocation2 + $0x20] sm:$0xff]
    %v2035 = vld [vmem:[#allocation2 + $0x28] sm:$0xff]
    %v2036 = vld [vmem:[#allocation2 + $0x30] sm:$0xff]
    %v2037 = vld [vmem:[#allocation2 + $0x38] sm:$0xff]
    %v2038 = vld [vmem:[#allocation2 + $0x40] sm:$0xff]
    %v2039 = vld [vmem:[#allocation2 + $0x48] sm:$0xff]
    %v2040 = vld [vmem:[#allocation2 + $0x50] sm:$0xff]
    %v2041 = vld [vmem:[#allocation2 + $0x58] sm:$0xff]
    %v2042 = vld [vmem:[#allocation2 + $0x60] sm:$0xff]
    %v2043 = vld [vmem:[#allocation2 + $0x68] sm:$0xff]
    %v2044 = vld [vmem:[#allocation2 + $0x70] sm:$0xff]
    %v2045 = vld [vmem:[#allocation2 + $0x78] sm:$0xff]
    %v2046 = vld [vmem:[#allocation2 + $0x80] sm:$0xff]
    %v2047 = vld [vmem:[#allocation2 + $0x88] sm:$0xff]
    %v2048 = vld [vmem:[#allocation2 + $0x90] sm:$0xff]
    %v2049 = vld [vmem:[#allocation2 + $0x98] sm:$0xff]
    %v2050 = vld [vmem:[#allocation2 + $0xa0] sm:$0xff]
    %v2051 = vld [vmem:[#allocation2 + $0xa8] sm:$0xff]
    %v2052 = vld [vmem:[#allocation2 + $0xb0] sm:$0xff]
    %v2053 = vld [vmem:[#allocation2 + $0xb8] sm:$0xff]
    %v2054 = vld [vmem:[#allocation2 + $0xc0] sm:$0xff]
    %v2055 = vld [vmem:[#allocation2 + $0xc8] sm:$0xff]
    %v2056 = vld [vmem:[#allocation2 + $0xd0] sm:$0xff]
    %v2057 = vld [vmem:[#allocation2 + $0xd8] sm:$0xff]
    %v2058 = vld [vmem:[#allocation2 + $0xe0] sm:$0xff]
    %v2059 = vld [vmem:[#allocation2 + $0xe8] sm:$0xff]
    %v2060 = vld [vmem:[#allocation2 + $0xf0] sm:$0xff]
    %v2061 = vld [vmem:[#allocation2 + $0xf8] sm:$0xff]
    %v2062 = vld [vmem:[%s2] sm:$0x3]
    %v2064 = vlaneseq
    %v2065 = vshrl.u32 %v2064, 7
    %v2066 = vsub.s32 0, %v2065
    %v2067 = vrot.slane %v2062, %v2066
    %v2068 = vlaneseq
    %v2069 = vshrl.u32 %v2068, 7
    %v2070 = vsub.s32 1, %v2069
    %v2071 = vrot.slane %v2062, %v2070
    %v2074 = vmul.f32 %v2030, %v2067
    %v2075 = vmul.f32 %v2031, %v2071
    %v2076 = vmul.f32 %v2032, %v2067
    %v2077 = vmul.f32 %v2033, %v2071
    %v2078 = vmul.f32 %v2034, %v2067
    %v2079 = vmul.f32 %v2035, %v2071
    %v2080 = vmul.f32 %v2036, %v2067
    %v2081 = vmul.f32 %v2037, %v2071
    %v2082 = vmul.f32 %v2038, %v2067
    %v2083 = vmul.f32 %v2039, %v2071
    %v2084 = vmul.f32 %v2040, %v2067
    %v2085 = vmul.f32 %v2041, %v2071
    %v2086 = vmul.f32 %v2042, %v2067
    %v2087 = vmul.f32 %v2043, %v2071
    %v2088 = vmul.f32 %v2044, %v2067
    %v2089 = vmul.f32 %v2045, %v2071
    %v2090 = vmul.f32 %v2046, %v2067
    %v2091 = vmul.f32 %v2047, %v2071
    %v2092 = vmul.f32 %v2048, %v2067
    %v2093 = vmul.f32 %v2049, %v2071
    %v2094 = vmul.f32 %v2050, %v2067
    %v2095 = vmul.f32 %v2051, %v2071
    %v2096 = vmul.f32 %v2052, %v2067
    %v2097 = vmul.f32 %v2053, %v2071
    %v2098 = vmul.f32 %v2054, %v2067
    %v2099 = vmul.f32 %v2055, %v2071
    %v2100 = vmul.f32 %v2056, %v2067
    %v2101 = vmul.f32 %v2057, %v2071
    %v2102 = vmul.f32 %v2058, %v2067
    %v2103 = vmul.f32 %v2059, %v2071
    %v2104 = vmul.f32 %v2060, %v2067
    %v2105 = vmul.f32 %v2061, %v2071
    %v2106 = vld [vmem:[%s3] sm:$0x3]
    %v2108 = vlaneseq
    %v2109 = vshrl.u32 %v2108, 7
    %v2110 = vsub.s32 0, %v2109
    %v2111 = vrot.slane %v2106, %v2110
    %v2112 = vlaneseq
    %v2113 = vshrl.u32 %v2112, 7
    %v2114 = vsub.s32 1, %v2113
    %v2115 = vrot.slane %v2106, %v2114
    %v2118 = vadd.f32 %v2074, %v2111
    %v2119 = vadd.f32 %v2075, %v2115
    %v2120 = vadd.f32 %v2076, %v2111
    %v2121 = vadd.f32 %v2077, %v2115
    %v2122 = vadd.f32 %v2078, %v2111
    %v2123 = vadd.f32 %v2079, %v2115
    %v2124 = vadd.f32 %v2080, %v2111
    %v2125 = vadd.f32 %v2081, %v2115
    %v2126 = vadd.f32 %v2082, %v2111
    %v2127 = vadd.f32 %v2083, %v2115
    %v2128 = vadd.f32 %v2084, %v2111
    %v2129 = vadd.f32 %v2085, %v2115
    %v2130 = vadd.f32 %v2086, %v2111
    %v2131 = vadd.f32 %v2087, %v2115
    %v2132 = vadd.f32 %v2088, %v2111
    %v2133 = vadd.f32 %v2089, %v2115
    %v2134 = vadd.f32 %v2090, %v2111
    %v2135 = vadd.f32 %v2091, %v2115
    %v2136 = vadd.f32 %v2092, %v2111
    %v2137 = vadd.f32 %v2093, %v2115
    %v2138 = vadd.f32 %v2094, %v2111
    %v2139 = vadd.f32 %v2095, %v2115
    %v2140 = vadd.f32 %v2096, %v2111
    %v2141 = vadd.f32 %v2097, %v2115
    %v2142 = vadd.f32 %v2098, %v2111
    %v2143 = vadd.f32 %v2099, %v2115
    %v2144 = vadd.f32 %v2100, %v2111
    %v2145 = vadd.f32 %v2101, %v2115
    %v2146 = vadd.f32 %v2102, %v2111
    %v2147 = vadd.f32 %v2103, %v2115
    %v2148 = vadd.f32 %v2104, %v2111
    %v2149 = vadd.f32 %v2105, %v2115
    %v2150 = vmax.f32 %v2118, 0.0
    %v2151 = vmax.f32 %v2119, 0.0
    %v2152 = vmax.f32 %v2120, 0.0
    %v2153 = vmax.f32 %v2121, 0.0
    %v2154 = vmax.f32 %v2122, 0.0
    %v2155 = vmax.f32 %v2123, 0.0
    %v2156 = vmax.f32 %v2124, 0.0
    %v2157 = vmax.f32 %v2125, 0.0
    %v2158 = vmax.f32 %v2126, 0.0
    %v2159 = vmax.f32 %v2127, 0.0
    %v2160 = vmax.f32 %v2128, 0.0
    %v2161 = vmax.f32 %v2129, 0.0
    %v2162 = vmax.f32 %v2130, 0.0
    %v2163 = vmax.f32 %v2131, 0.0
    %v2164 = vmax.f32 %v2132, 0.0
    %v2165 = vmax.f32 %v2133, 0.0
    %v2166 = vmax.f32 %v2134, 0.0
    %v2167 = vmax.f32 %v2135, 0.0
    %v2168 = vmax.f32 %v2136, 0.0
    %v2169 = vmax.f32 %v2137, 0.0
    %v2170 = vmax.f32 %v2138, 0.0
    %v2171 = vmax.f32 %v2139, 0.0
    %v2172 = vmax.f32 %v2140, 0.0
    %v2173 = vmax.f32 %v2141, 0.0
    %v2174 = vmax.f32 %v2142, 0.0
    %v2175 = vmax.f32 %v2143, 0.0
    %v2176 = vmax.f32 %v2144, 0.0
    %v2177 = vmax.f32 %v2145, 0.0
    %v2178 = vmax.f32 %v2146, 0.0
    %v2179 = vmax.f32 %v2147, 0.0
    %v2180 = vmax.f32 %v2148, 0.0
    %v2181 = vmax.f32 %v2149, 0.0
    %2182 = vst [vmem:[%s4] sm:$0xff] %v2150
    %2183 = vst [vmem:[%s4 + $0x8] sm:$0xff] %v2151
    %2184 = vst [vmem:[%s4 + $0x10] sm:$0xff] %v2152
    %2185 = vst [vmem:[%s4 + $0x18] sm:$0xff] %v2153
    %2186 = vst [vmem:[%s4 + $0x20] sm:$0xff] %v2154
    %2187 = vst [vmem:[%s4 + $0x28] sm:$0xff] %v2155
    %2188 = vst [vmem:[%s4 + $0x30] sm:$0xff] %v2156
    %2189 = vst [vmem:[%s4 + $0x38] sm:$0xff] %v2157
    %2190 = vst [vmem:[%s4 + $0x40] sm:$0xff] %v2158
    %2191 = vst [vmem:[%s4 + $0x48] sm:$0xff] %v2159
    %2192 = vst [vmem:[%s4 + $0x50] sm:$0xff] %v2160
    %2193 = vst [vmem:[%s4 + $0x58] sm:$0xff] %v2161
    %2194 = vst [vmem:[%s4 + $0x60] sm:$0xff] %v2162
    %2195 = vst [vmem:[%s4 + $0x68] sm:$0xff] %v2163
    %2196 = vst [vmem:[%s4 + $0x70] sm:$0xff] %v2164
    %2197 = vst [vmem:[%s4 + $0x78] sm:$0xff] %v2165
    %2198 = vst [vmem:[%s4 + $0x80] sm:$0xff] %v2166
    %2199 = vst [vmem:[%s4 + $0x88] sm:$0xff] %v2167
    %2200 = vst [vmem:[%s4 + $0x90] sm:$0xff] %v2168
    %2201 = vst [vmem:[%s4 + $0x98] sm:$0xff] %v2169
    %2202 = vst [vmem:[%s4 + $0xa0] sm:$0xff] %v2170
    %2203 = vst [vmem:[%s4 + $0xa8] sm:$0xff] %v2171
    %2204 = vst [vmem:[%s4 + $0xb0] sm:$0xff] %v2172
    %2205 = vst [vmem:[%s4 + $0xb8] sm:$0xff] %v2173
    %2206 = vst [vmem:[%s4 + $0xc0] sm:$0xff] %v2174
    %2207 = vst [vmem:[%s4 + $0xc8] sm:$0xff] %v2175
    %2208 = vst [vmem:[%s4 + $0xd0] sm:$0xff] %v2176
    %2209 = vst [vmem:[%s4 + $0xd8] sm:$0xff] %v2177
    %2210 = vst [vmem:[%s4 + $0xe0] sm:$0xff] %v2178
    %2211 = vst [vmem:[%s4 + $0xe8] sm:$0xff] %v2179
    %2212 = vst [vmem:[%s4 + $0xf0] sm:$0xff] %v2180
    %2213 = vst [vmem:[%s4 + $0xf8] sm:$0xff] %v2181
  $region25: #{extra_layers_forward.9} parent=0 // pred_fallthru
    _
  // Predicated region
  $region26: #{extra_layers_forward.9} parent=0 // pred_check
    _
  $region27: #{extra_layers_forward.9} parent=0 // pred_check_branch
    %2215 = sbr.rel (0) target = $region29
  $region28: #{extra_layers_forward.9} parent=0 // pred_region
    _
  $region29: #{extra_layers_forward.9} parent=0 // pred_fallthru
    _
  // Predicated region
  $region30: #{extra_layers_forward.9} parent=0 // pred_check
    _
  $region31: #{extra_layers_forward.9} parent=0 // pred_check_branch
    %2217 = sbr.rel (0) target = $region33
  $region32: #{extra_layers_forward.9} parent=0 // pred_region
    _
  $region33: #{extra_layers_forward.9} parent=0 // pred_fallthru
    _

</llo_original>
